<compile_context>
chip_gen: v6e
topology: v6e:2x2x1
jax: 0.10.0
libtpu: 0.0.40
codegen_flags: <defaults>
</compile_context>

<pallas_src>
import math
import jax
import jax.numpy as jnp
from jax.experimental import pallas as pl
from jax.experimental.pallas import tpu as pltpu

# ----------------------------- config -------------------------------------- #
ENCODER_DIM = 32                     # args.encoder_dim == args.decoder_dim
NUM_HEADS = 4                        # args.num_heads
HEAD_DIM = ENCODER_DIM // NUM_HEADS
KERNEL_SIZE = 7                      # args.kernel_size (odd -> SAME padding)
DECODER = ("ffn", "mhsa", "conformerconv", "ffn")   # args.decoder
LN_EPS = 1e-5
BN_EPS = 1e-5


# ------------------------ canonical parameter order ------------------------ #
def _block_param_names(idx, blk):
    pre = f"b{idx}_"
    if blk == "ffn":
        names = ("ln_g", "ln_b", "w1", "b1", "w2", "b2", "post_g", "post_b")
    elif blk == "mhsa":
        names = ("ln_g", "ln_b", "wqkvp", "bqkvp", "pos", "u", "v",
                 "wo", "bo", "post_g", "post_b")
    elif blk == "conformerconv":
        names = ("ln_g", "ln_b", "pw1_w", "pw1_b", "dw_w", "bn_scale",
                 "bn_shift", "pw2_w", "pw2_b", "post_g", "post_b")
    else:
        raise ValueError(blk)
    return [pre + n for n in names]


PARAM_NAMES = [n for i, blk in enumerate(DECODER) for n in _block_param_names(i, blk)]


# ----------------------------- in-kernel math ------------------------------- #
def _layernorm(x, g, b):
    mu = jnp.mean(x, axis=-1, keepdims=True)
    xc = x - mu
    var = jnp.mean(xc * xc, axis=-1, keepdims=True)
    return xc * jax.lax.rsqrt(var + LN_EPS) * g + b


def _ffn(x, pr, pre):
    xn = _layernorm(x, pr[pre + "ln_g"][...], pr[pre + "ln_b"][...])
    h = jnp.dot(xn, pr[pre + "w1"][...], preferred_element_type=jnp.float32)
    h = h + pr[pre + "b1"][...]
    h = h * jax.nn.sigmoid(h)                            # SiLU
    y = jnp.dot(h, pr[pre + "w2"][...], preferred_element_type=jnp.float32)
    return y + pr[pre + "b2"][...]


def _rel_shift(ps):
    # Exact reproduction of RelativeMultiHeadAttention._relative_shift on a
    # square (T, T) block, using iota masks + one tiny shift matmul so the
    # score matrix never leaves vregs (no concat/reshape, no HBM round trip).
    #   out[i, j] = ps[i, j - i + T - 1]   if j <= i
    #             = 0                      if j == i + 1
    #             = ps[i + 1, j - i - 2]   if j >= i + 2
    T = ps.shape[0]
    row = jax.lax.broadcasted_iota(jnp.int32, (T, T), 0)
    col = jax.lax.broadcasted_iota(jnp.int32, (T, T), 1)
    d = col - row
    shift_up = (col == row + 1).astype(jnp.float32)       # ps_next[i] = ps[i+1]
    ps_next = jnp.dot(shift_up, ps, preferred_element_type=jnp.float32)
    out = jnp.zeros_like(ps)
    for c in range(T):
        out = out + (d == (c - (T - 1))).astype(jnp.float32) * ps[:, c:c + 1]
        if c + 2 <= T - 1:
            out = out + (d == (c + 2)).astype(jnp.float32) * ps_next[:, c:c + 1]
    return out


def _mhsa(x, pr, pre):
    T, D = x.shape
    H, Dh = NUM_HEADS, HEAD_DIM
    xn = _layernorm(x, pr[pre + "ln_g"][...], pr[pre + "ln_b"][...])
    # Fused Q|K|V|pos projection: (T, D) @ (D, 4D) -> lane-dense (T, 128).
    # (The 4th chunk, xn @ W_pos, is a free byproduct and is simply unused; the
    #  real positional branch pe @ W_pos is precomputed outside the kernel.)
    qkvp = jnp.dot(xn, pr[pre + "wqkvp"][...], preferred_element_type=jnp.float32)
    qkvp = qkvp + pr[pre + "bqkvp"][...]
    q = qkvp[:, 0:D]
    k = qkvp[:, D:2 * D]
    v = qkvp[:, 2 * D:3 * D]
    pos = pr[pre + "pos"][...]                 # (T, D): precomputed pe @ W_pos
    u = pr[pre + "u"][...]                     # (1, D) u_bias (head-major layout)
    vb = pr[pre + "v"][...]                    # (1, D) v_bias
    wo = pr[pre + "wo"][...]                   # (D, D)
    scale = 1.0 / math.sqrt(D)                 # reference divides by sqrt(d_model)
    cdims = (((1,), (1,)), ((), ()))           # A @ B^T (contract last dims)
    # Heads live in contiguous channel chunks; select them with channel masks
    # so no narrow (Dh=8) lane slices or head transposes are materialized.
    ch = jax.lax.broadcasted_iota(jnp.int32, (1, D), 1)
    ctx = jnp.zeros((T, D), jnp.float32)
    for h in range(H):
        m_h = ((ch >= h * Dh) & (ch < (h + 1) * Dh)).astype(jnp.float32)
        cs = jax.lax.dot_general(q + u, k * m_h, cdims,
                                 preferred_element_type=jnp.float32)
        ps = jax.lax.dot_general(q + vb, pos * m_h, cdims,
                                 preferred_element_type=jnp.float32)
        s = (cs + _rel_shift(ps)) * scale
        s = s - jnp.max(s, axis=-1, keepdims=True)
        e = jnp.exp(s)
        attn = e / jnp.sum(e, axis=-1, keepdims=True)
        ctx = ctx + jnp.dot(attn, v * m_h, preferred_element_type=jnp.float32)
    out = jnp.dot(ctx, wo, preferred_element_type=jnp.float32)
    return out + pr[pre + "bo"][...]


def _conformer_conv(x, pr, pre):
    T, D = x.shape
    K = KERNEL_SIZE
    pad = (K - 1) // 2
    xn = _layernorm(x, pr[pre + "ln_g"][...], pr[pre + "ln_b"][...])
    # Pointwise conv 1 (D -> 2D, both GLU halves in one matmul), then GLU.
    y = jnp.dot(xn, pr[pre + "pw1_w"][...], preferred_element_type=jnp.float32)
    y = y + pr[pre + "pw1_b"][...]
    g = y[:, 0:D] * jax.nn.sigmoid(y[:, D:2 * D])
    # Depthwise conv: SAME zero padding folded in via constant time-shift
    # selector matrices (rows whose source falls outside [0, T) are all-zero),
    # so there is no jnp.pad and no misaligned time-axis slicing.
    dw_ref = pr[pre + "dw_w"]                  # (K, D)
    row = jax.lax.broadcasted_iota(jnp.int32, (T, T), 0)
    col = jax.lax.broadcasted_iota(jnp.int32, (T, T), 1)
    acc = jnp.zeros((T, D), jnp.float32)
    for kk in range(K):
        off = kk - pad
        sk = (col == row + off).astype(jnp.float32)
        acc = acc + jnp.dot(sk, g, preferred_element_type=jnp.float32) * dw_ref[kk:kk + 1, :]
    # BatchNorm1d (eval: running stats folded to per-channel scale/shift) + SiLU.
    z = acc * pr[pre + "bn_scale"][...] + pr[pre + "bn_shift"][...]
    z = z * jax.nn.sigmoid(z)
    # Pointwise conv 2 (D -> D).
    out = jnp.dot(z, pr[pre + "pw2_w"][...], preferred_element_type=jnp.float32)
    return out + pr[pre + "pw2_b"][...]


# ----------------------------- fused kernel -------------------------------- #
def decoder_block_kernel(*refs):
    x_ref, o_ref = refs[0], refs[-1]
    pr = dict(zip(PARAM_NAMES, refs[1:-1]))
    x = x_ref[0]                                 # (T, D): one batch row per step
    for idx, blk in enumerate(DECODER):
        pre = f"b{idx}_"
        if blk == "ffn":
            y = _ffn(x, pr, pre)
        elif blk == "mhsa":
            y = _mhsa(x, pr, pre)
        else:                                    # "conformerconv"
            y = _conformer_conv(x, pr, pre)
        # PostNorm: LayerNorm(module(x) + x * input_factor), input_factor == 1.
        x = _layernorm(y + x, pr[pre + "post_g"][...], pr[pre + "post_b"][...])
    o_ref[0] = x


def _replicated_spec(arr):
    nd = arr.ndim
    return pl.BlockSpec(arr.shape, lambda b, _nd=nd: (0,) * _nd)


def decoder_block_forward(x, flat_params, memory=None, rope=None, key_padding_mask=None):
    """Fused forward pass for the whole DecoderBlock.

    memory / RoPE / key_padding_mask are only consumed by MHA_decoder /
    MHA_rotary blocks, which are not part of this decoder configuration.
    """
    B, T, D = x.shape
    x_spec = pl.BlockSpec((1, T, D), lambda b: (b, 0, 0))
    in_specs = [x_spec] + [_replicated_spec(p) for p in flat_params]
    return pl.pallas_call(
        decoder_block_kernel,
        out_shape=jax.ShapeDtypeStruct((B, T, D), jnp.float32),
        grid=(B,),
        in_specs=in_specs,
        out_specs=x_spec,
        compiler_params=pltpu.CompilerParams(
            dimension_semantics=("parallel",)),   # one batch row per TensorCore
    )(x, *flat_params)


# ----------------------------- parameters ---------------------------------- #
def positional_encoding(length, d_model):
    pos = jnp.arange(length, dtype=jnp.float32)[:, None]
    div = jnp.exp(jnp.arange(0, d_model, 2, dtype=jnp.float32)
                  * (-math.log(10000.0) / d_model))
    pe = jnp.zeros((length, d_model), jnp.float32)
    pe = pe.at[:, 0::2].set(jnp.sin(pos * div))
    pe = pe.at[:, 1::2].set(jnp.cos(pos * div))
    return pe


def init_params(key, D=ENCODER_DIM, H=NUM_HEADS, K=KERNEL_SIZE):
    keys = iter(jax.random.split(key, 64))

    def w(shape, scale=0.1):
        return jax.random.normal(next(keys), shape, jnp.float32) * scale

    blocks = []
    for blk in DECODER:
        p = dict(ln_g=jnp.ones((D,), jnp.float32), ln_b=jnp.zeros((D,), jnp.float32),
                 post_g=jnp.ones((D,), jnp.float32), post_b=jnp.zeros((D,), jnp.float32))
        if blk == "ffn":
            p.update(w1=w((D, 4 * D)), b1=jnp.zeros((4 * D,), jnp.float32),
                     w2=w((4 * D, D)), b2=jnp.zeros((D,), jnp.float32))
        elif blk == "mhsa":
            Dh = D // H
            p.update(wq=w((D, D)), bq=jnp.zeros((D,), jnp.float32),
                     wk=w((D, D)), bk=jnp.zeros((D,), jnp.float32),
                     wv=w((D, D)), bv=jnp.zeros((D,), jnp.float32),
                     wp=w((D, D)),
                     wo=w((D, D)), bo=jnp.zeros((D,), jnp.float32),
                     u=w((H, Dh)), v=w((H, Dh)))
        elif blk == "conformerconv":
            p.update(pw1_wa=w((D, D)), pw1_ba=jnp.zeros((D,), jnp.float32),
                     pw1_wb=w((D, D)), pw1_bb=jnp.zeros((D,), jnp.float32),
                     dw_w=w((K, D)),
                     bn_g=jnp.ones((D,), jnp.float32), bn_b=jnp.zeros((D,), jnp.float32),
                     bn_mean=jnp.zeros((D,), jnp.float32), bn_var=jnp.ones((D,), jnp.float32),
                     pw2_w=w((D, D)), pw2_b=jnp.zeros((D,), jnp.float32))
        blocks.append((blk, p))
    return blocks


def pack_params(blocks, T, D=ENCODER_DIM):
    """Fold / concatenate raw parameters into the lane-dense kernel layout."""
    r = lambda v: v.reshape(1, -1)
    flat = []
    for blk, p in blocks:
        if blk == "ffn":
            flat += [r(p["ln_g"]), r(p["ln_b"]),
                     p["w1"], r(p["b1"]), p["w2"], r(p["b2"]),
                     r(p["post_g"]), r(p["post_b"])]
        elif blk == "mhsa":
            # Q|K|V|pos weights fused into one (D, 4D) = (32, 128) matmul.
            wqkvp = jnp.concatenate([p["wq"], p["wk"], p["wv"], p["wp"]], axis=1)
            bqkvp = jnp.concatenate(
                [p["bq"], p["bk"], p["bv"], jnp.zeros((D,), jnp.float32)]).reshape(1, -1)
            # Positional branch is input independent: precompute pe @ W_pos once.
            pos = positional_encoding(T, D) @ p["wp"]
            flat += [r(p["ln_g"]), r(p["ln_b"]), wqkvp, bqkvp, pos,
                     r(p["u"]), r(p["v"]), p["wo"], r(p["bo"]),
                     r(p["post_g"]), r(p["post_b"])]
        elif blk == "conformerconv":
            pw1_w = jnp.concatenate([p["pw1_wa"], p["pw1_wb"]], axis=1)
            pw1_b = jnp.concatenate([p["pw1_ba"], p["pw1_bb"]]).reshape(1, -1)
            scale = p["bn_g"] / jnp.sqrt(p["bn_var"] + BN_EPS)
            shift = p["bn_b"] - p["bn_mean"] * scale
            flat += [r(p["ln_g"]), r(p["ln_b"]), pw1_w, pw1_b, p["dw_w"],
                     r(scale), r(shift), p["pw2_w"], r(p["pw2_b"]),
                     r(p["post_g"]), r(p["post_b"])]
    assert len(flat) == len(PARAM_NAMES)
    return flat


# ----------------------------- main ----------------------------------------- #
if __name__ == "__main__":
    B, T, D = 2, 8, ENCODER_DIM
    key = jax.random.PRNGKey(0)
    kx, km, kp = jax.random.split(key, 3)
    x = jax.random.normal(kx, (B, T, D), jnp.float32)
    memory = jax.random.normal(km, (B, T, D), jnp.float32)  # unused (no MHA_decoder block)
    blocks = init_params(kp)
    flat_params = pack_params(blocks, T)

    fwd = jax.jit(lambda inp: decoder_block_forward(inp, flat_params, memory=memory))
    out = fwd(x)
    jax.block_until_ready(out)
    assert out.shape == (B, T, D)
    assert bool(jnp.all(jnp.isfinite(out)))
    print("KERNEL_OK")
</pallas_src>

<mosaic_0001>
module attributes {stable_mosaic.version = 11 : i64} {
  func.func @decoder_block_kernel(%arg0: i32, %arg1: memref<1x8x32xf32, #tpu.memory_space<vmem>>, %arg2: memref<1x32xf32, #tpu.memory_space<vmem>>, %arg3: memref<1x32xf32, #tpu.memory_space<vmem>>, %arg4: memref<32x128xf32, #tpu.memory_space<vmem>>, %arg5: memref<1x128xf32, #tpu.memory_space<vmem>>, %arg6: memref<128x32xf32, #tpu.memory_space<vmem>>, %arg7: memref<1x32xf32, #tpu.memory_space<vmem>>, %arg8: memref<1x32xf32, #tpu.memory_space<vmem>>, %arg9: memref<1x32xf32, #tpu.memory_space<vmem>>, %arg10: memref<1x32xf32, #tpu.memory_space<vmem>>, %arg11: memref<1x32xf32, #tpu.memory_space<vmem>>, %arg12: memref<32x128xf32, #tpu.memory_space<vmem>>, %arg13: memref<1x128xf32, #tpu.memory_space<vmem>>, %arg14: memref<8x32xf32, #tpu.memory_space<vmem>>, %arg15: memref<1x32xf32, #tpu.memory_space<vmem>>, %arg16: memref<1x32xf32, #tpu.memory_space<vmem>>, %arg17: memref<32x32xf32, #tpu.memory_space<vmem>>, %arg18: memref<1x32xf32, #tpu.memory_space<vmem>>, %arg19: memref<1x32xf32, #tpu.memory_space<vmem>>, %arg20: memref<1x32xf32, #tpu.memory_space<vmem>>, %arg21: memref<1x32xf32, #tpu.memory_space<vmem>>, %arg22: memref<1x32xf32, #tpu.memory_space<vmem>>, %arg23: memref<32x64xf32, #tpu.memory_space<vmem>>, %arg24: memref<1x64xf32, #tpu.memory_space<vmem>>, %arg25: memref<7x32xf32, #tpu.memory_space<vmem>>, %arg26: memref<1x32xf32, #tpu.memory_space<vmem>>, %arg27: memref<1x32xf32, #tpu.memory_space<vmem>>, %arg28: memref<32x32xf32, #tpu.memory_space<vmem>>, %arg29: memref<1x32xf32, #tpu.memory_space<vmem>>, %arg30: memref<1x32xf32, #tpu.memory_space<vmem>>, %arg31: memref<1x32xf32, #tpu.memory_space<vmem>>, %arg32: memref<1x32xf32, #tpu.memory_space<vmem>>, %arg33: memref<1x32xf32, #tpu.memory_space<vmem>>, %arg34: memref<32x128xf32, #tpu.memory_space<vmem>>, %arg35: memref<1x128xf32, #tpu.memory_space<vmem>>, %arg36: memref<128x32xf32, #tpu.memory_space<vmem>>, %arg37: memref<1x32xf32, #tpu.memory_space<vmem>>, %arg38: memref<1x32xf32, #tpu.memory_space<vmem>>, %arg39: memref<1x32xf32, #tpu.memory_space<vmem>>, %arg40: memref<1x8x32xf32, #tpu.memory_space<vmem>>) attributes {dimension_semantics = [#tpu.dimension_semantics<parallel>], iteration_bounds = array<i64: 2>, scalar_prefetch = 0 : i64, scratch_operands = 0 : i64, tpu.core_type = #tpu.core_type<tc>, window_params = [{transform_indices = @transform_0, window_bounds = array<i64: 1, 8, 32>}, {pipeline_mode = #tpu.pipeline_mode<synchronous>, transform_indices = @transform_1, window_bounds = array<i64: 1, 32>}, {pipeline_mode = #tpu.pipeline_mode<synchronous>, transform_indices = @transform_2, window_bounds = array<i64: 1, 32>}, {pipeline_mode = #tpu.pipeline_mode<synchronous>, transform_indices = @transform_3, window_bounds = array<i64: 32, 128>}, {pipeline_mode = #tpu.pipeline_mode<synchronous>, transform_indices = @transform_4, window_bounds = array<i64: 1, 128>}, {pipeline_mode = #tpu.pipeline_mode<synchronous>, transform_indices = @transform_5, window_bounds = array<i64: 128, 32>}, {pipeline_mode = #tpu.pipeline_mode<synchronous>, transform_indices = @transform_6, window_bounds = array<i64: 1, 32>}, {pipeline_mode = #tpu.pipeline_mode<synchronous>, transform_indices = @transform_7, window_bounds = array<i64: 1, 32>}, {pipeline_mode = #tpu.pipeline_mode<synchronous>, transform_indices = @transform_8, window_bounds = array<i64: 1, 32>}, {pipeline_mode = #tpu.pipeline_mode<synchronous>, transform_indices = @transform_9, window_bounds = array<i64: 1, 32>}, {pipeline_mode = #tpu.pipeline_mode<synchronous>, transform_indices = @transform_10, window_bounds = array<i64: 1, 32>}, {pipeline_mode = #tpu.pipeline_mode<synchronous>, transform_indices = @transform_11, window_bounds = array<i64: 32, 128>}, {pipeline_mode = #tpu.pipeline_mode<synchronous>, transform_indices = @transform_12, window_bounds = array<i64: 1, 128>}, {pipeline_mode = #tpu.pipeline_mode<synchronous>, transform_indices = @transform_13, window_bounds = array<i64: 8, 32>}, {pipeline_mode = #tpu.pipeline_mode<synchronous>, transform_indices = @transform_14, window_bounds = array<i64: 1, 32>}, {pipeline_mode = #tpu.pipeline_mode<synchronous>, transform_indices = @transform_15, window_bounds = array<i64: 1, 32>}, {pipeline_mode = #tpu.pipeline_mode<synchronous>, transform_indices = @transform_16, window_bounds = array<i64: 32, 32>}, {pipeline_mode = #tpu.pipeline_mode<synchronous>, transform_indices = @transform_17, window_bounds = array<i64: 1, 32>}, {pipeline_mode = #tpu.pipeline_mode<synchronous>, transform_indices = @transform_18, window_bounds = array<i64: 1, 32>}, {pipeline_mode = #tpu.pipeline_mode<synchronous>, transform_indices = @transform_19, window_bounds = array<i64: 1, 32>}, {pipeline_mode = #tpu.pipeline_mode<synchronous>, transform_indices = @transform_20, window_bounds = array<i64: 1, 32>}, {pipeline_mode = #tpu.pipeline_mode<synchronous>, transform_indices = @transform_21, window_bounds = array<i64: 1, 32>}, {pipeline_mode = #tpu.pipeline_mode<synchronous>, transform_indices = @transform_22, window_bounds = array<i64: 32, 64>}, {pipeline_mode = #tpu.pipeline_mode<synchronous>, transform_indices = @transform_23, window_bounds = array<i64: 1, 64>}, {pipeline_mode = #tpu.pipeline_mode<synchronous>, transform_indices = @transform_24, window_bounds = array<i64: 7, 32>}, {pipeline_mode = #tpu.pipeline_mode<synchronous>, transform_indices = @transform_25, window_bounds = array<i64: 1, 32>}, {pipeline_mode = #tpu.pipeline_mode<synchronous>, transform_indices = @transform_26, window_bounds = array<i64: 1, 32>}, {pipeline_mode = #tpu.pipeline_mode<synchronous>, transform_indices = @transform_27, window_bounds = array<i64: 32, 32>}, {pipeline_mode = #tpu.pipeline_mode<synchronous>, transform_indices = @transform_28, window_bounds = array<i64: 1, 32>}, {pipeline_mode = #tpu.pipeline_mode<synchronous>, transform_indices = @transform_29, window_bounds = array<i64: 1, 32>}, {pipeline_mode = #tpu.pipeline_mode<synchronous>, transform_indices = @transform_30, window_bounds = array<i64: 1, 32>}, {pipeline_mode = #tpu.pipeline_mode<synchronous>, transform_indices = @transform_31, window_bounds = array<i64: 1, 32>}, {pipeline_mode = #tpu.pipeline_mode<synchronous>, transform_indices = @transform_32, window_bounds = array<i64: 1, 32>}, {pipeline_mode = #tpu.pipeline_mode<synchronous>, transform_indices = @transform_33, window_bounds = array<i64: 32, 128>}, {pipeline_mode = #tpu.pipeline_mode<synchronous>, transform_indices = @transform_34, window_bounds = array<i64: 1, 128>}, {pipeline_mode = #tpu.pipeline_mode<synchronous>, transform_indices = @transform_35, window_bounds = array<i64: 128, 32>}, {pipeline_mode = #tpu.pipeline_mode<synchronous>, transform_indices = @transform_36, window_bounds = array<i64: 1, 32>}, {pipeline_mode = #tpu.pipeline_mode<synchronous>, transform_indices = @transform_37, window_bounds = array<i64: 1, 32>}, {pipeline_mode = #tpu.pipeline_mode<synchronous>, transform_indices = @transform_38, window_bounds = array<i64: 1, 32>}, {transform_indices = @transform_39, window_bounds = array<i64: 1, 8, 32>}]} {
    %c0 = arith.constant 0 : index
    %c0_0 = arith.constant 0 : index
    %c0_1 = arith.constant 0 : index
    %0 = vector.load %arg1[%c0, %c0_0, %c0_1] : memref<1x8x32xf32, #tpu.memory_space<vmem>>, vector<1x8x32xf32>
    %1 = vector.shape_cast %0 : vector<1x8x32xf32> to vector<8x32xf32>
    %c0_2 = arith.constant 0 : index
    %c0_3 = arith.constant 0 : index
    %2 = vector.load %arg2[%c0_2, %c0_3] : memref<1x32xf32, #tpu.memory_space<vmem>>, vector<1x32xf32>
    %c0_4 = arith.constant 0 : index
    %c0_5 = arith.constant 0 : index
    %3 = vector.load %arg3[%c0_4, %c0_5] : memref<1x32xf32, #tpu.memory_space<vmem>>, vector<1x32xf32>
    %cst = arith.constant dense<0.000000e+00> : vector<8xf32>
    %4 = vector.multi_reduction <add>, %1, %cst [1] : vector<8x32xf32> to vector<8xf32>
    %5 = vector.shape_cast %4 : vector<8xf32> to vector<8x1xf32>
    %cst_6 = arith.constant 3.200000e+01 : f32
    %6 = vector.broadcast %cst_6 : f32 to vector<8x1xf32>
    %7 = arith.divf %5, %6 : vector<8x1xf32>
    %8 = vector.broadcast %7 : vector<8x1xf32> to vector<8x32xf32>
    %9 = arith.subf %1, %8 : vector<8x32xf32>
    %10 = arith.mulf %9, %9 : vector<8x32xf32>
    %cst_7 = arith.constant dense<0.000000e+00> : vector<8xf32>
    %11 = vector.multi_reduction <add>, %10, %cst_7 [1] : vector<8x32xf32> to vector<8xf32>
    %12 = vector.shape_cast %11 : vector<8xf32> to vector<8x1xf32>
    %cst_8 = arith.constant 3.200000e+01 : f32
    %13 = vector.broadcast %cst_8 : f32 to vector<8x1xf32>
    %14 = arith.divf %12, %13 : vector<8x1xf32>
    %cst_9 = arith.constant 9.99999974E-6 : f32
    %15 = vector.broadcast %cst_9 : f32 to vector<8x1xf32>
    %16 = arith.addf %14, %15 : vector<8x1xf32>
    %17 = math.rsqrt %16 : vector<8x1xf32>
    %18 = vector.broadcast %17 : vector<8x1xf32> to vector<8x32xf32>
    %19 = arith.mulf %9, %18 : vector<8x32xf32>
    %20 = vector.broadcast %2 : vector<1x32xf32> to vector<8x32xf32>
    %21 = arith.mulf %19, %20 : vector<8x32xf32>
    %22 = vector.broadcast %3 : vector<1x32xf32> to vector<8x32xf32>
    %23 = arith.addf %21, %22 : vector<8x32xf32>
    %c0_10 = arith.constant 0 : index
    %c0_11 = arith.constant 0 : index
    %24 = vector.load %arg4[%c0_10, %c0_11] : memref<32x128xf32, #tpu.memory_space<vmem>>, vector<32x128xf32>
    %cst_12 = arith.constant dense<0.000000e+00> : vector<8x128xf32>
    %25 = tpu.matmul %23, %24, %cst_12 {dimension_numbers = #tpu.dot_dimension_numbers<[1], [0], [0], [1], [0, 0, 1, 1], [], []>} : vector<8x32xf32>, vector<32x128xf32>, vector<8x128xf32> -> vector<8x128xf32>
    %c0_13 = arith.constant 0 : index
    %c0_14 = arith.constant 0 : index
    %26 = vector.load %arg5[%c0_13, %c0_14] : memref<1x128xf32, #tpu.memory_space<vmem>>, vector<1x128xf32>
    %27 = vector.broadcast %26 : vector<1x128xf32> to vector<8x128xf32>
    %28 = arith.addf %25, %27 : vector<8x128xf32>
    %29 = arith.negf %28 : vector<8x128xf32>
    %30 = math.exp %29 : vector<8x128xf32>
    %cst_15 = arith.constant 1.000000e+00 : f32
    %31 = vector.broadcast %cst_15 : f32 to vector<8x128xf32>
    %32 = arith.addf %31, %30 : vector<8x128xf32>
    %33 = arith.divf %31, %32 : vector<8x128xf32>
    %34 = arith.mulf %28, %33 : vector<8x128xf32>
    %c0_16 = arith.constant 0 : index
    %c0_17 = arith.constant 0 : index
    %35 = vector.load %arg6[%c0_16, %c0_17] : memref<128x32xf32, #tpu.memory_space<vmem>>, vector<128x32xf32>
    %cst_18 = arith.constant dense<0.000000e+00> : vector<8x32xf32>
    %36 = tpu.matmul %34, %35, %cst_18 {dimension_numbers = #tpu.dot_dimension_numbers<[1], [0], [0], [1], [0, 0, 1, 1], [], []>} : vector<8x128xf32>, vector<128x32xf32>, vector<8x32xf32> -> vector<8x32xf32>
    %c0_19 = arith.constant 0 : index
    %c0_20 = arith.constant 0 : index
    %37 = vector.load %arg7[%c0_19, %c0_20] : memref<1x32xf32, #tpu.memory_space<vmem>>, vector<1x32xf32>
    %38 = vector.broadcast %37 : vector<1x32xf32> to vector<8x32xf32>
    %39 = arith.addf %36, %38 : vector<8x32xf32>
    %40 = arith.addf %39, %1 : vector<8x32xf32>
    %c0_21 = arith.constant 0 : index
    %c0_22 = arith.constant 0 : index
    %41 = vector.load %arg8[%c0_21, %c0_22] : memref<1x32xf32, #tpu.memory_space<vmem>>, vector<1x32xf32>
    %c0_23 = arith.constant 0 : index
    %c0_24 = arith.constant 0 : index
    %42 = vector.load %arg9[%c0_23, %c0_24] : memref<1x32xf32, #tpu.memory_space<vmem>>, vector<1x32xf32>
    %cst_25 = arith.constant dense<0.000000e+00> : vector<8xf32>
    %43 = vector.multi_reduction <add>, %40, %cst_25 [1] : vector<8x32xf32> to vector<8xf32>
    %44 = vector.shape_cast %43 : vector<8xf32> to vector<8x1xf32>
    %cst_26 = arith.constant 3.200000e+01 : f32
    %45 = vector.broadcast %cst_26 : f32 to vector<8x1xf32>
    %46 = arith.divf %44, %45 : vector<8x1xf32>
    %47 = vector.broadcast %46 : vector<8x1xf32> to vector<8x32xf32>
    %48 = arith.subf %40, %47 : vector<8x32xf32>
    %49 = arith.mulf %48, %48 : vector<8x32xf32>
    %cst_27 = arith.constant dense<0.000000e+00> : vector<8xf32>
    %50 = vector.multi_reduction <add>, %49, %cst_27 [1] : vector<8x32xf32> to vector<8xf32>
    %51 = vector.shape_cast %50 : vector<8xf32> to vector<8x1xf32>
    %cst_28 = arith.constant 3.200000e+01 : f32
    %52 = vector.broadcast %cst_28 : f32 to vector<8x1xf32>
    %53 = arith.divf %51, %52 : vector<8x1xf32>
    %cst_29 = arith.constant 9.99999974E-6 : f32
    %54 = vector.broadcast %cst_29 : f32 to vector<8x1xf32>
    %55 = arith.addf %53, %54 : vector<8x1xf32>
    %56 = math.rsqrt %55 : vector<8x1xf32>
    %57 = vector.broadcast %56 : vector<8x1xf32> to vector<8x32xf32>
    %58 = arith.mulf %48, %57 : vector<8x32xf32>
    %59 = vector.broadcast %41 : vector<1x32xf32> to vector<8x32xf32>
    %60 = arith.mulf %58, %59 : vector<8x32xf32>
    %61 = vector.broadcast %42 : vector<1x32xf32> to vector<8x32xf32>
    %62 = arith.addf %60, %61 : vector<8x32xf32>
    %c0_30 = arith.constant 0 : index
    %c0_31 = arith.constant 0 : index
    %63 = vector.load %arg10[%c0_30, %c0_31] : memref<1x32xf32, #tpu.memory_space<vmem>>, vector<1x32xf32>
    %c0_32 = arith.constant 0 : index
    %c0_33 = arith.constant 0 : index
    %64 = vector.load %arg11[%c0_32, %c0_33] : memref<1x32xf32, #tpu.memory_space<vmem>>, vector<1x32xf32>
    %cst_34 = arith.constant dense<0.000000e+00> : vector<8xf32>
    %65 = vector.multi_reduction <add>, %62, %cst_34 [1] : vector<8x32xf32> to vector<8xf32>
    %66 = vector.shape_cast %65 : vector<8xf32> to vector<8x1xf32>
    %cst_35 = arith.constant 3.200000e+01 : f32
    %67 = vector.broadcast %cst_35 : f32 to vector<8x1xf32>
    %68 = arith.divf %66, %67 : vector<8x1xf32>
    %69 = vector.broadcast %68 : vector<8x1xf32> to vector<8x32xf32>
    %70 = arith.subf %62, %69 : vector<8x32xf32>
    %71 = arith.mulf %70, %70 : vector<8x32xf32>
    %cst_36 = arith.constant dense<0.000000e+00> : vector<8xf32>
    %72 = vector.multi_reduction <add>, %71, %cst_36 [1] : vector<8x32xf32> to vector<8xf32>
    %73 = vector.shape_cast %72 : vector<8xf32> to vector<8x1xf32>
    %cst_37 = arith.constant 3.200000e+01 : f32
    %74 = vector.broadcast %cst_37 : f32 to vector<8x1xf32>
    %75 = arith.divf %73, %74 : vector<8x1xf32>
    %cst_38 = arith.constant 9.99999974E-6 : f32
    %76 = vector.broadcast %cst_38 : f32 to vector<8x1xf32>
    %77 = arith.addf %75, %76 : vector<8x1xf32>
    %78 = math.rsqrt %77 : vector<8x1xf32>
    %79 = vector.broadcast %78 : vector<8x1xf32> to vector<8x32xf32>
    %80 = arith.mulf %70, %79 : vector<8x32xf32>
    %81 = vector.broadcast %63 : vector<1x32xf32> to vector<8x32xf32>
    %82 = arith.mulf %80, %81 : vector<8x32xf32>
    %83 = vector.broadcast %64 : vector<1x32xf32> to vector<8x32xf32>
    %84 = arith.addf %82, %83 : vector<8x32xf32>
    %c0_39 = arith.constant 0 : index
    %c0_40 = arith.constant 0 : index
    %85 = vector.load %arg12[%c0_39, %c0_40] : memref<32x128xf32, #tpu.memory_space<vmem>>, vector<32x128xf32>
    %cst_41 = arith.constant dense<0.000000e+00> : vector<8x128xf32>
    %86 = tpu.matmul %84, %85, %cst_41 {dimension_numbers = #tpu.dot_dimension_numbers<[1], [0], [0], [1], [0, 0, 1, 1], [], []>} : vector<8x32xf32>, vector<32x128xf32>, vector<8x128xf32> -> vector<8x128xf32>
    %c0_42 = arith.constant 0 : index
    %c0_43 = arith.constant 0 : index
    %87 = vector.load %arg13[%c0_42, %c0_43] : memref<1x128xf32, #tpu.memory_space<vmem>>, vector<1x128xf32>
    %88 = vector.broadcast %87 : vector<1x128xf32> to vector<8x128xf32>
    %89 = arith.addf %86, %88 : vector<8x128xf32>
    %90 = vector.extract_strided_slice %89 {offsets = [0, 0], sizes = [8, 32], strides = [1, 1]} : vector<8x128xf32> to vector<8x32xf32>
    %91 = vector.extract_strided_slice %89 {offsets = [0, 32], sizes = [8, 32], strides = [1, 1]} : vector<8x128xf32> to vector<8x32xf32>
    %92 = vector.extract_strided_slice %89 {offsets = [0, 64], sizes = [8, 32], strides = [1, 1]} : vector<8x128xf32> to vector<8x32xf32>
    %c0_44 = arith.constant 0 : index
    %c0_45 = arith.constant 0 : index
    %93 = vector.load %arg14[%c0_44, %c0_45] : memref<8x32xf32, #tpu.memory_space<vmem>>, vector<8x32xf32>
    %c0_46 = arith.constant 0 : index
    %c0_47 = arith.constant 0 : index
    %94 = vector.load %arg15[%c0_46, %c0_47] : memref<1x32xf32, #tpu.memory_space<vmem>>, vector<1x32xf32>
    %c0_48 = arith.constant 0 : index
    %c0_49 = arith.constant 0 : index
    %95 = vector.load %arg16[%c0_48, %c0_49] : memref<1x32xf32, #tpu.memory_space<vmem>>, vector<1x32xf32>
    %c0_50 = arith.constant 0 : index
    %c0_51 = arith.constant 0 : index
    %96 = vector.load %arg17[%c0_50, %c0_51] : memref<32x32xf32, #tpu.memory_space<vmem>>, vector<32x32xf32>
    %97 = tpu.iota {dimensions = array<i32: 1>} : vector<1x32xi32>
    %cst_52 = arith.constant 0.000000e+00 : f32
    %98 = vector.broadcast %cst_52 : f32 to vector<8x32xf32>
    %c0_i32 = arith.constant 0 : i32
    %99 = vector.broadcast %c0_i32 : i32 to vector<1x32xi32>
    %100 = arith.cmpi sge, %97, %99 : vector<1x32xi32>
    %c8_i32 = arith.constant 8 : i32
    %101 = vector.broadcast %c8_i32 : i32 to vector<1x32xi32>
    %102 = arith.cmpi slt, %97, %101 : vector<1x32xi32>
    %103 = arith.andi %100, %102 : vector<1x32xi1>
    %104 = arith.extui %103 : vector<1x32xi1> to vector<1x32xi32>
    %105 = arith.sitofp %104 : vector<1x32xi32> to vector<1x32xf32>
    %106 = vector.broadcast %94 : vector<1x32xf32> to vector<8x32xf32>
    %107 = arith.addf %90, %106 : vector<8x32xf32>
    %108 = vector.broadcast %105 : vector<1x32xf32> to vector<8x32xf32>
    %109 = arith.mulf %91, %108 : vector<8x32xf32>
    %cst_53 = arith.constant dense<0.000000e+00> : vector<8x8xf32>
    %110 = tpu.matmul %107, %109, %cst_53 {dimension_numbers = #tpu.dot_dimension_numbers<[1], [1], [0], [0], [0, 0, 1, 0], [], []>} : vector<8x32xf32>, vector<8x32xf32>, vector<8x8xf32> -> vector<8x8xf32>
    %111 = vector.broadcast %95 : vector<1x32xf32> to vector<8x32xf32>
    %112 = arith.addf %90, %111 : vector<8x32xf32>
    %113 = vector.broadcast %105 : vector<1x32xf32> to vector<8x32xf32>
    %114 = arith.mulf %93, %113 : vector<8x32xf32>
    %cst_54 = arith.constant dense<0.000000e+00> : vector<8x8xf32>
    %115 = tpu.matmul %112, %114, %cst_54 {dimension_numbers = #tpu.dot_dimension_numbers<[1], [1], [0], [0], [0, 0, 1, 0], [], []>} : vector<8x32xf32>, vector<8x32xf32>, vector<8x8xf32> -> vector<8x8xf32>
    %116 = tpu.iota {dimensions = array<i32: 0>} : vector<8x8xi32>
    %117 = tpu.iota {dimensions = array<i32: 1>} : vector<8x8xi32>
    %118 = arith.subi %117, %116 : vector<8x8xi32>
    %c1_i32 = arith.constant 1 : i32
    %119 = vector.broadcast %c1_i32 : i32 to vector<8x8xi32>
    %120 = arith.addi %116, %119 : vector<8x8xi32>
    %121 = arith.cmpi eq, %117, %120 : vector<8x8xi32>
    %122 = arith.extui %121 : vector<8x8xi1> to vector<8x8xi32>
    %123 = arith.sitofp %122 : vector<8x8xi32> to vector<8x8xf32>
    %cst_55 = arith.constant dense<0.000000e+00> : vector<8x8xf32>
    %124 = tpu.matmul %123, %115, %cst_55 {dimension_numbers = #tpu.dot_dimension_numbers<[1], [0], [0], [1], [0, 0, 1, 1], [], []>} : vector<8x8xf32>, vector<8x8xf32>, vector<8x8xf32> -> vector<8x8xf32>
    %cst_56 = arith.constant 0.000000e+00 : f32
    %125 = vector.broadcast %cst_56 : f32 to vector<8x8xf32>
    %c-7_i32 = arith.constant -7 : i32
    %126 = vector.broadcast %c-7_i32 : i32 to vector<8x8xi32>
    %127 = arith.cmpi eq, %118, %126 : vector<8x8xi32>
    %128 = arith.extui %127 : vector<8x8xi1> to vector<8x8xi32>
    %129 = arith.sitofp %128 : vector<8x8xi32> to vector<8x8xf32>
    %130 = vector.extract_strided_slice %115 {offsets = [0, 0], sizes = [8, 1], strides = [1, 1]} : vector<8x8xf32> to vector<8x1xf32>
    %131 = vector.broadcast %130 : vector<8x1xf32> to vector<8x8xf32>
    %132 = arith.mulf %129, %131 : vector<8x8xf32>
    %133 = arith.addf %125, %132 : vector<8x8xf32>
    %c2_i32 = arith.constant 2 : i32
    %134 = vector.broadcast %c2_i32 : i32 to vector<8x8xi32>
    %135 = arith.cmpi eq, %118, %134 : vector<8x8xi32>
    %136 = arith.extui %135 : vector<8x8xi1> to vector<8x8xi32>
    %137 = arith.sitofp %136 : vector<8x8xi32> to vector<8x8xf32>
    %138 = vector.extract_strided_slice %124 {offsets = [0, 0], sizes = [8, 1], strides = [1, 1]} : vector<8x8xf32> to vector<8x1xf32>
    %139 = vector.broadcast %138 : vector<8x1xf32> to vector<8x8xf32>
    %140 = arith.mulf %137, %139 : vector<8x8xf32>
    %141 = arith.addf %133, %140 : vector<8x8xf32>
    %c-6_i32 = arith.constant -6 : i32
    %142 = vector.broadcast %c-6_i32 : i32 to vector<8x8xi32>
    %143 = arith.cmpi eq, %118, %142 : vector<8x8xi32>
    %144 = arith.extui %143 : vector<8x8xi1> to vector<8x8xi32>
    %145 = arith.sitofp %144 : vector<8x8xi32> to vector<8x8xf32>
    %146 = vector.extract_strided_slice %115 {offsets = [0, 1], sizes = [8, 1], strides = [1, 1]} : vector<8x8xf32> to vector<8x1xf32>
    %147 = vector.broadcast %146 : vector<8x1xf32> to vector<8x8xf32>
    %148 = arith.mulf %145, %147 : vector<8x8xf32>
    %149 = arith.addf %141, %148 : vector<8x8xf32>
    %c3_i32 = arith.constant 3 : i32
    %150 = vector.broadcast %c3_i32 : i32 to vector<8x8xi32>
    %151 = arith.cmpi eq, %118, %150 : vector<8x8xi32>
    %152 = arith.extui %151 : vector<8x8xi1> to vector<8x8xi32>
    %153 = arith.sitofp %152 : vector<8x8xi32> to vector<8x8xf32>
    %154 = vector.extract_strided_slice %124 {offsets = [0, 1], sizes = [8, 1], strides = [1, 1]} : vector<8x8xf32> to vector<8x1xf32>
    %155 = vector.broadcast %154 : vector<8x1xf32> to vector<8x8xf32>
    %156 = arith.mulf %153, %155 : vector<8x8xf32>
    %157 = arith.addf %149, %156 : vector<8x8xf32>
    %c-5_i32 = arith.constant -5 : i32
    %158 = vector.broadcast %c-5_i32 : i32 to vector<8x8xi32>
    %159 = arith.cmpi eq, %118, %158 : vector<8x8xi32>
    %160 = arith.extui %159 : vector<8x8xi1> to vector<8x8xi32>
    %161 = arith.sitofp %160 : vector<8x8xi32> to vector<8x8xf32>
    %162 = vector.extract_strided_slice %115 {offsets = [0, 2], sizes = [8, 1], strides = [1, 1]} : vector<8x8xf32> to vector<8x1xf32>
    %163 = vector.broadcast %162 : vector<8x1xf32> to vector<8x8xf32>
    %164 = arith.mulf %161, %163 : vector<8x8xf32>
    %165 = arith.addf %157, %164 : vector<8x8xf32>
    %c4_i32 = arith.constant 4 : i32
    %166 = vector.broadcast %c4_i32 : i32 to vector<8x8xi32>
    %167 = arith.cmpi eq, %118, %166 : vector<8x8xi32>
    %168 = arith.extui %167 : vector<8x8xi1> to vector<8x8xi32>
    %169 = arith.sitofp %168 : vector<8x8xi32> to vector<8x8xf32>
    %170 = vector.extract_strided_slice %124 {offsets = [0, 2], sizes = [8, 1], strides = [1, 1]} : vector<8x8xf32> to vector<8x1xf32>
    %171 = vector.broadcast %170 : vector<8x1xf32> to vector<8x8xf32>
    %172 = arith.mulf %169, %171 : vector<8x8xf32>
    %173 = arith.addf %165, %172 : vector<8x8xf32>
    %c-4_i32 = arith.constant -4 : i32
    %174 = vector.broadcast %c-4_i32 : i32 to vector<8x8xi32>
    %175 = arith.cmpi eq, %118, %174 : vector<8x8xi32>
    %176 = arith.extui %175 : vector<8x8xi1> to vector<8x8xi32>
    %177 = arith.sitofp %176 : vector<8x8xi32> to vector<8x8xf32>
    %178 = vector.extract_strided_slice %115 {offsets = [0, 3], sizes = [8, 1], strides = [1, 1]} : vector<8x8xf32> to vector<8x1xf32>
    %179 = vector.broadcast %178 : vector<8x1xf32> to vector<8x8xf32>
    %180 = arith.mulf %177, %179 : vector<8x8xf32>
    %181 = arith.addf %173, %180 : vector<8x8xf32>
    %c5_i32 = arith.constant 5 : i32
    %182 = vector.broadcast %c5_i32 : i32 to vector<8x8xi32>
    %183 = arith.cmpi eq, %118, %182 : vector<8x8xi32>
    %184 = arith.extui %183 : vector<8x8xi1> to vector<8x8xi32>
    %185 = arith.sitofp %184 : vector<8x8xi32> to vector<8x8xf32>
    %186 = vector.extract_strided_slice %124 {offsets = [0, 3], sizes = [8, 1], strides = [1, 1]} : vector<8x8xf32> to vector<8x1xf32>
    %187 = vector.broadcast %186 : vector<8x1xf32> to vector<8x8xf32>
    %188 = arith.mulf %185, %187 : vector<8x8xf32>
    %189 = arith.addf %181, %188 : vector<8x8xf32>
    %c-3_i32 = arith.constant -3 : i32
    %190 = vector.broadcast %c-3_i32 : i32 to vector<8x8xi32>
    %191 = arith.cmpi eq, %118, %190 : vector<8x8xi32>
    %192 = arith.extui %191 : vector<8x8xi1> to vector<8x8xi32>
    %193 = arith.sitofp %192 : vector<8x8xi32> to vector<8x8xf32>
    %194 = vector.extract_strided_slice %115 {offsets = [0, 4], sizes = [8, 1], strides = [1, 1]} : vector<8x8xf32> to vector<8x1xf32>
    %195 = vector.broadcast %194 : vector<8x1xf32> to vector<8x8xf32>
    %196 = arith.mulf %193, %195 : vector<8x8xf32>
    %197 = arith.addf %189, %196 : vector<8x8xf32>
    %c6_i32 = arith.constant 6 : i32
    %198 = vector.broadcast %c6_i32 : i32 to vector<8x8xi32>
    %199 = arith.cmpi eq, %118, %198 : vector<8x8xi32>
    %200 = arith.extui %199 : vector<8x8xi1> to vector<8x8xi32>
    %201 = arith.sitofp %200 : vector<8x8xi32> to vector<8x8xf32>
    %202 = vector.extract_strided_slice %124 {offsets = [0, 4], sizes = [8, 1], strides = [1, 1]} : vector<8x8xf32> to vector<8x1xf32>
    %203 = vector.broadcast %202 : vector<8x1xf32> to vector<8x8xf32>
    %204 = arith.mulf %201, %203 : vector<8x8xf32>
    %205 = arith.addf %197, %204 : vector<8x8xf32>
    %c-2_i32 = arith.constant -2 : i32
    %206 = vector.broadcast %c-2_i32 : i32 to vector<8x8xi32>
    %207 = arith.cmpi eq, %118, %206 : vector<8x8xi32>
    %208 = arith.extui %207 : vector<8x8xi1> to vector<8x8xi32>
    %209 = arith.sitofp %208 : vector<8x8xi32> to vector<8x8xf32>
    %210 = vector.extract_strided_slice %115 {offsets = [0, 5], sizes = [8, 1], strides = [1, 1]} : vector<8x8xf32> to vector<8x1xf32>
    %211 = vector.broadcast %210 : vector<8x1xf32> to vector<8x8xf32>
    %212 = arith.mulf %209, %211 : vector<8x8xf32>
    %213 = arith.addf %205, %212 : vector<8x8xf32>
    %c7_i32 = arith.constant 7 : i32
    %214 = vector.broadcast %c7_i32 : i32 to vector<8x8xi32>
    %215 = arith.cmpi eq, %118, %214 : vector<8x8xi32>
    %216 = arith.extui %215 : vector<8x8xi1> to vector<8x8xi32>
    %217 = arith.sitofp %216 : vector<8x8xi32> to vector<8x8xf32>
    %218 = vector.extract_strided_slice %124 {offsets = [0, 5], sizes = [8, 1], strides = [1, 1]} : vector<8x8xf32> to vector<8x1xf32>
    %219 = vector.broadcast %218 : vector<8x1xf32> to vector<8x8xf32>
    %220 = arith.mulf %217, %219 : vector<8x8xf32>
    %221 = arith.addf %213, %220 : vector<8x8xf32>
    %c-1_i32 = arith.constant -1 : i32
    %222 = vector.broadcast %c-1_i32 : i32 to vector<8x8xi32>
    %223 = arith.cmpi eq, %118, %222 : vector<8x8xi32>
    %224 = arith.extui %223 : vector<8x8xi1> to vector<8x8xi32>
    %225 = arith.sitofp %224 : vector<8x8xi32> to vector<8x8xf32>
    %226 = vector.extract_strided_slice %115 {offsets = [0, 6], sizes = [8, 1], strides = [1, 1]} : vector<8x8xf32> to vector<8x1xf32>
    %227 = vector.broadcast %226 : vector<8x1xf32> to vector<8x8xf32>
    %228 = arith.mulf %225, %227 : vector<8x8xf32>
    %229 = arith.addf %221, %228 : vector<8x8xf32>
    %c0_i32_57 = arith.constant 0 : i32
    %230 = vector.broadcast %c0_i32_57 : i32 to vector<8x8xi32>
    %231 = arith.cmpi eq, %118, %230 : vector<8x8xi32>
    %232 = arith.extui %231 : vector<8x8xi1> to vector<8x8xi32>
    %233 = arith.sitofp %232 : vector<8x8xi32> to vector<8x8xf32>
    %234 = vector.extract_strided_slice %115 {offsets = [0, 7], sizes = [8, 1], strides = [1, 1]} : vector<8x8xf32> to vector<8x1xf32>
    %235 = vector.broadcast %234 : vector<8x1xf32> to vector<8x8xf32>
    %236 = arith.mulf %233, %235 : vector<8x8xf32>
    %237 = arith.addf %229, %236 : vector<8x8xf32>
    %238 = arith.addf %110, %237 : vector<8x8xf32>
    %cst_58 = arith.constant 0.176776692 : f32
    %239 = vector.broadcast %cst_58 : f32 to vector<8x8xf32>
    %240 = arith.mulf %238, %239 : vector<8x8xf32>
    %cst_59 = arith.constant dense<0xFF800000> : vector<8xf32>
    %241 = vector.multi_reduction <maximumf>, %240, %cst_59 [1] : vector<8x8xf32> to vector<8xf32>
    %242 = vector.shape_cast %241 : vector<8xf32> to vector<8x1xf32>
    %243 = vector.broadcast %242 : vector<8x1xf32> to vector<8x8xf32>
    %244 = arith.subf %240, %243 : vector<8x8xf32>
    %245 = math.exp %244 : vector<8x8xf32>
    %cst_60 = arith.constant dense<0.000000e+00> : vector<8xf32>
    %246 = vector.multi_reduction <add>, %245, %cst_60 [1] : vector<8x8xf32> to vector<8xf32>
    %247 = vector.shape_cast %246 : vector<8xf32> to vector<8x1xf32>
    %248 = vector.broadcast %247 : vector<8x1xf32> to vector<8x8xf32>
    %249 = arith.divf %245, %248 : vector<8x8xf32>
    %250 = vector.broadcast %105 : vector<1x32xf32> to vector<8x32xf32>
    %251 = arith.mulf %92, %250 : vector<8x32xf32>
    %cst_61 = arith.constant dense<0.000000e+00> : vector<8x32xf32>
    %252 = tpu.matmul %249, %251, %cst_61 {dimension_numbers = #tpu.dot_dimension_numbers<[1], [0], [0], [1], [0, 0, 1, 1], [], []>} : vector<8x8xf32>, vector<8x32xf32>, vector<8x32xf32> -> vector<8x32xf32>
    %253 = arith.addf %98, %252 : vector<8x32xf32>
    %c8_i32_62 = arith.constant 8 : i32
    %254 = vector.broadcast %c8_i32_62 : i32 to vector<1x32xi32>
    %255 = arith.cmpi sge, %97, %254 : vector<1x32xi32>
    %c16_i32 = arith.constant 16 : i32
    %256 = vector.broadcast %c16_i32 : i32 to vector<1x32xi32>
    %257 = arith.cmpi slt, %97, %256 : vector<1x32xi32>
    %258 = arith.andi %255, %257 : vector<1x32xi1>
    %259 = arith.extui %258 : vector<1x32xi1> to vector<1x32xi32>
    %260 = arith.sitofp %259 : vector<1x32xi32> to vector<1x32xf32>
    %261 = vector.broadcast %94 : vector<1x32xf32> to vector<8x32xf32>
    %262 = arith.addf %90, %261 : vector<8x32xf32>
    %263 = vector.broadcast %260 : vector<1x32xf32> to vector<8x32xf32>
    %264 = arith.mulf %91, %263 : vector<8x32xf32>
    %cst_63 = arith.constant dense<0.000000e+00> : vector<8x8xf32>
    %265 = tpu.matmul %262, %264, %cst_63 {dimension_numbers = #tpu.dot_dimension_numbers<[1], [1], [0], [0], [0, 0, 1, 0], [], []>} : vector<8x32xf32>, vector<8x32xf32>, vector<8x8xf32> -> vector<8x8xf32>
    %266 = vector.broadcast %95 : vector<1x32xf32> to vector<8x32xf32>
    %267 = arith.addf %90, %266 : vector<8x32xf32>
    %268 = vector.broadcast %260 : vector<1x32xf32> to vector<8x32xf32>
    %269 = arith.mulf %93, %268 : vector<8x32xf32>
    %cst_64 = arith.constant dense<0.000000e+00> : vector<8x8xf32>
    %270 = tpu.matmul %267, %269, %cst_64 {dimension_numbers = #tpu.dot_dimension_numbers<[1], [1], [0], [0], [0, 0, 1, 0], [], []>} : vector<8x32xf32>, vector<8x32xf32>, vector<8x8xf32> -> vector<8x8xf32>
    %271 = tpu.iota {dimensions = array<i32: 0>} : vector<8x8xi32>
    %272 = tpu.iota {dimensions = array<i32: 1>} : vector<8x8xi32>
    %273 = arith.subi %272, %271 : vector<8x8xi32>
    %c1_i32_65 = arith.constant 1 : i32
    %274 = vector.broadcast %c1_i32_65 : i32 to vector<8x8xi32>
    %275 = arith.addi %271, %274 : vector<8x8xi32>
    %276 = arith.cmpi eq, %272, %275 : vector<8x8xi32>
    %277 = arith.extui %276 : vector<8x8xi1> to vector<8x8xi32>
    %278 = arith.sitofp %277 : vector<8x8xi32> to vector<8x8xf32>
    %cst_66 = arith.constant dense<0.000000e+00> : vector<8x8xf32>
    %279 = tpu.matmul %278, %270, %cst_66 {dimension_numbers = #tpu.dot_dimension_numbers<[1], [0], [0], [1], [0, 0, 1, 1], [], []>} : vector<8x8xf32>, vector<8x8xf32>, vector<8x8xf32> -> vector<8x8xf32>
    %cst_67 = arith.constant 0.000000e+00 : f32
    %280 = vector.broadcast %cst_67 : f32 to vector<8x8xf32>
    %c-7_i32_68 = arith.constant -7 : i32
    %281 = vector.broadcast %c-7_i32_68 : i32 to vector<8x8xi32>
    %282 = arith.cmpi eq, %273, %281 : vector<8x8xi32>
    %283 = arith.extui %282 : vector<8x8xi1> to vector<8x8xi32>
    %284 = arith.sitofp %283 : vector<8x8xi32> to vector<8x8xf32>
    %285 = vector.extract_strided_slice %270 {offsets = [0, 0], sizes = [8, 1], strides = [1, 1]} : vector<8x8xf32> to vector<8x1xf32>
    %286 = vector.broadcast %285 : vector<8x1xf32> to vector<8x8xf32>
    %287 = arith.mulf %284, %286 : vector<8x8xf32>
    %288 = arith.addf %280, %287 : vector<8x8xf32>
    %c2_i32_69 = arith.constant 2 : i32
    %289 = vector.broadcast %c2_i32_69 : i32 to vector<8x8xi32>
    %290 = arith.cmpi eq, %273, %289 : vector<8x8xi32>
    %291 = arith.extui %290 : vector<8x8xi1> to vector<8x8xi32>
    %292 = arith.sitofp %291 : vector<8x8xi32> to vector<8x8xf32>
    %293 = vector.extract_strided_slice %279 {offsets = [0, 0], sizes = [8, 1], strides = [1, 1]} : vector<8x8xf32> to vector<8x1xf32>
    %294 = vector.broadcast %293 : vector<8x1xf32> to vector<8x8xf32>
    %295 = arith.mulf %292, %294 : vector<8x8xf32>
    %296 = arith.addf %288, %295 : vector<8x8xf32>
    %c-6_i32_70 = arith.constant -6 : i32
    %297 = vector.broadcast %c-6_i32_70 : i32 to vector<8x8xi32>
    %298 = arith.cmpi eq, %273, %297 : vector<8x8xi32>
    %299 = arith.extui %298 : vector<8x8xi1> to vector<8x8xi32>
    %300 = arith.sitofp %299 : vector<8x8xi32> to vector<8x8xf32>
    %301 = vector.extract_strided_slice %270 {offsets = [0, 1], sizes = [8, 1], strides = [1, 1]} : vector<8x8xf32> to vector<8x1xf32>
    %302 = vector.broadcast %301 : vector<8x1xf32> to vector<8x8xf32>
    %303 = arith.mulf %300, %302 : vector<8x8xf32>
    %304 = arith.addf %296, %303 : vector<8x8xf32>
    %c3_i32_71 = arith.constant 3 : i32
    %305 = vector.broadcast %c3_i32_71 : i32 to vector<8x8xi32>
    %306 = arith.cmpi eq, %273, %305 : vector<8x8xi32>
    %307 = arith.extui %306 : vector<8x8xi1> to vector<8x8xi32>
    %308 = arith.sitofp %307 : vector<8x8xi32> to vector<8x8xf32>
    %309 = vector.extract_strided_slice %279 {offsets = [0, 1], sizes = [8, 1], strides = [1, 1]} : vector<8x8xf32> to vector<8x1xf32>
    %310 = vector.broadcast %309 : vector<8x1xf32> to vector<8x8xf32>
    %311 = arith.mulf %308, %310 : vector<8x8xf32>
    %312 = arith.addf %304, %311 : vector<8x8xf32>
    %c-5_i32_72 = arith.constant -5 : i32
    %313 = vector.broadcast %c-5_i32_72 : i32 to vector<8x8xi32>
    %314 = arith.cmpi eq, %273, %313 : vector<8x8xi32>
    %315 = arith.extui %314 : vector<8x8xi1> to vector<8x8xi32>
    %316 = arith.sitofp %315 : vector<8x8xi32> to vector<8x8xf32>
    %317 = vector.extract_strided_slice %270 {offsets = [0, 2], sizes = [8, 1], strides = [1, 1]} : vector<8x8xf32> to vector<8x1xf32>
    %318 = vector.broadcast %317 : vector<8x1xf32> to vector<8x8xf32>
    %319 = arith.mulf %316, %318 : vector<8x8xf32>
    %320 = arith.addf %312, %319 : vector<8x8xf32>
    %c4_i32_73 = arith.constant 4 : i32
    %321 = vector.broadcast %c4_i32_73 : i32 to vector<8x8xi32>
    %322 = arith.cmpi eq, %273, %321 : vector<8x8xi32>
    %323 = arith.extui %322 : vector<8x8xi1> to vector<8x8xi32>
    %324 = arith.sitofp %323 : vector<8x8xi32> to vector<8x8xf32>
    %325 = vector.extract_strided_slice %279 {offsets = [0, 2], sizes = [8, 1], strides = [1, 1]} : vector<8x8xf32> to vector<8x1xf32>
    %326 = vector.broadcast %325 : vector<8x1xf32> to vector<8x8xf32>
    %327 = arith.mulf %324, %326 : vector<8x8xf32>
    %328 = arith.addf %320, %327 : vector<8x8xf32>
    %c-4_i32_74 = arith.constant -4 : i32
    %329 = vector.broadcast %c-4_i32_74 : i32 to vector<8x8xi32>
    %330 = arith.cmpi eq, %273, %329 : vector<8x8xi32>
    %331 = arith.extui %330 : vector<8x8xi1> to vector<8x8xi32>
    %332 = arith.sitofp %331 : vector<8x8xi32> to vector<8x8xf32>
    %333 = vector.extract_strided_slice %270 {offsets = [0, 3], sizes = [8, 1], strides = [1, 1]} : vector<8x8xf32> to vector<8x1xf32>
    %334 = vector.broadcast %333 : vector<8x1xf32> to vector<8x8xf32>
    %335 = arith.mulf %332, %334 : vector<8x8xf32>
    %336 = arith.addf %328, %335 : vector<8x8xf32>
    %c5_i32_75 = arith.constant 5 : i32
    %337 = vector.broadcast %c5_i32_75 : i32 to vector<8x8xi32>
    %338 = arith.cmpi eq, %273, %337 : vector<8x8xi32>
    %339 = arith.extui %338 : vector<8x8xi1> to vector<8x8xi32>
    %340 = arith.sitofp %339 : vector<8x8xi32> to vector<8x8xf32>
    %341 = vector.extract_strided_slice %279 {offsets = [0, 3], sizes = [8, 1], strides = [1, 1]} : vector<8x8xf32> to vector<8x1xf32>
    %342 = vector.broadcast %341 : vector<8x1xf32> to vector<8x8xf32>
    %343 = arith.mulf %340, %342 : vector<8x8xf32>
    %344 = arith.addf %336, %343 : vector<8x8xf32>
    %c-3_i32_76 = arith.constant -3 : i32
    %345 = vector.broadcast %c-3_i32_76 : i32 to vector<8x8xi32>
    %346 = arith.cmpi eq, %273, %345 : vector<8x8xi32>
    %347 = arith.extui %346 : vector<8x8xi1> to vector<8x8xi32>
    %348 = arith.sitofp %347 : vector<8x8xi32> to vector<8x8xf32>
    %349 = vector.extract_strided_slice %270 {offsets = [0, 4], sizes = [8, 1], strides = [1, 1]} : vector<8x8xf32> to vector<8x1xf32>
    %350 = vector.broadcast %349 : vector<8x1xf32> to vector<8x8xf32>
    %351 = arith.mulf %348, %350 : vector<8x8xf32>
    %352 = arith.addf %344, %351 : vector<8x8xf32>
    %c6_i32_77 = arith.constant 6 : i32
    %353 = vector.broadcast %c6_i32_77 : i32 to vector<8x8xi32>
    %354 = arith.cmpi eq, %273, %353 : vector<8x8xi32>
    %355 = arith.extui %354 : vector<8x8xi1> to vector<8x8xi32>
    %356 = arith.sitofp %355 : vector<8x8xi32> to vector<8x8xf32>
    %357 = vector.extract_strided_slice %279 {offsets = [0, 4], sizes = [8, 1], strides = [1, 1]} : vector<8x8xf32> to vector<8x1xf32>
    %358 = vector.broadcast %357 : vector<8x1xf32> to vector<8x8xf32>
    %359 = arith.mulf %356, %358 : vector<8x8xf32>
    %360 = arith.addf %352, %359 : vector<8x8xf32>
    %c-2_i32_78 = arith.constant -2 : i32
    %361 = vector.broadcast %c-2_i32_78 : i32 to vector<8x8xi32>
    %362 = arith.cmpi eq, %273, %361 : vector<8x8xi32>
    %363 = arith.extui %362 : vector<8x8xi1> to vector<8x8xi32>
    %364 = arith.sitofp %363 : vector<8x8xi32> to vector<8x8xf32>
    %365 = vector.extract_strided_slice %270 {offsets = [0, 5], sizes = [8, 1], strides = [1, 1]} : vector<8x8xf32> to vector<8x1xf32>
    %366 = vector.broadcast %365 : vector<8x1xf32> to vector<8x8xf32>
    %367 = arith.mulf %364, %366 : vector<8x8xf32>
    %368 = arith.addf %360, %367 : vector<8x8xf32>
    %c7_i32_79 = arith.constant 7 : i32
    %369 = vector.broadcast %c7_i32_79 : i32 to vector<8x8xi32>
    %370 = arith.cmpi eq, %273, %369 : vector<8x8xi32>
    %371 = arith.extui %370 : vector<8x8xi1> to vector<8x8xi32>
    %372 = arith.sitofp %371 : vector<8x8xi32> to vector<8x8xf32>
    %373 = vector.extract_strided_slice %279 {offsets = [0, 5], sizes = [8, 1], strides = [1, 1]} : vector<8x8xf32> to vector<8x1xf32>
    %374 = vector.broadcast %373 : vector<8x1xf32> to vector<8x8xf32>
    %375 = arith.mulf %372, %374 : vector<8x8xf32>
    %376 = arith.addf %368, %375 : vector<8x8xf32>
    %c-1_i32_80 = arith.constant -1 : i32
    %377 = vector.broadcast %c-1_i32_80 : i32 to vector<8x8xi32>
    %378 = arith.cmpi eq, %273, %377 : vector<8x8xi32>
    %379 = arith.extui %378 : vector<8x8xi1> to vector<8x8xi32>
    %380 = arith.sitofp %379 : vector<8x8xi32> to vector<8x8xf32>
    %381 = vector.extract_strided_slice %270 {offsets = [0, 6], sizes = [8, 1], strides = [1, 1]} : vector<8x8xf32> to vector<8x1xf32>
    %382 = vector.broadcast %381 : vector<8x1xf32> to vector<8x8xf32>
    %383 = arith.mulf %380, %382 : vector<8x8xf32>
    %384 = arith.addf %376, %383 : vector<8x8xf32>
    %c0_i32_81 = arith.constant 0 : i32
    %385 = vector.broadcast %c0_i32_81 : i32 to vector<8x8xi32>
    %386 = arith.cmpi eq, %273, %385 : vector<8x8xi32>
    %387 = arith.extui %386 : vector<8x8xi1> to vector<8x8xi32>
    %388 = arith.sitofp %387 : vector<8x8xi32> to vector<8x8xf32>
    %389 = vector.extract_strided_slice %270 {offsets = [0, 7], sizes = [8, 1], strides = [1, 1]} : vector<8x8xf32> to vector<8x1xf32>
    %390 = vector.broadcast %389 : vector<8x1xf32> to vector<8x8xf32>
    %391 = arith.mulf %388, %390 : vector<8x8xf32>
    %392 = arith.addf %384, %391 : vector<8x8xf32>
    %393 = arith.addf %265, %392 : vector<8x8xf32>
    %cst_82 = arith.constant 0.176776692 : f32
    %394 = vector.broadcast %cst_82 : f32 to vector<8x8xf32>
    %395 = arith.mulf %393, %394 : vector<8x8xf32>
    %cst_83 = arith.constant dense<0xFF800000> : vector<8xf32>
    %396 = vector.multi_reduction <maximumf>, %395, %cst_83 [1] : vector<8x8xf32> to vector<8xf32>
    %397 = vector.shape_cast %396 : vector<8xf32> to vector<8x1xf32>
    %398 = vector.broadcast %397 : vector<8x1xf32> to vector<8x8xf32>
    %399 = arith.subf %395, %398 : vector<8x8xf32>
    %400 = math.exp %399 : vector<8x8xf32>
    %cst_84 = arith.constant dense<0.000000e+00> : vector<8xf32>
    %401 = vector.multi_reduction <add>, %400, %cst_84 [1] : vector<8x8xf32> to vector<8xf32>
    %402 = vector.shape_cast %401 : vector<8xf32> to vector<8x1xf32>
    %403 = vector.broadcast %402 : vector<8x1xf32> to vector<8x8xf32>
    %404 = arith.divf %400, %403 : vector<8x8xf32>
    %405 = vector.broadcast %260 : vector<1x32xf32> to vector<8x32xf32>
    %406 = arith.mulf %92, %405 : vector<8x32xf32>
    %cst_85 = arith.constant dense<0.000000e+00> : vector<8x32xf32>
    %407 = tpu.matmul %404, %406, %cst_85 {dimension_numbers = #tpu.dot_dimension_numbers<[1], [0], [0], [1], [0, 0, 1, 1], [], []>} : vector<8x8xf32>, vector<8x32xf32>, vector<8x32xf32> -> vector<8x32xf32>
    %408 = arith.addf %253, %407 : vector<8x32xf32>
    %c16_i32_86 = arith.constant 16 : i32
    %409 = vector.broadcast %c16_i32_86 : i32 to vector<1x32xi32>
    %410 = arith.cmpi sge, %97, %409 : vector<1x32xi32>
    %c24_i32 = arith.constant 24 : i32
    %411 = vector.broadcast %c24_i32 : i32 to vector<1x32xi32>
    %412 = arith.cmpi slt, %97, %411 : vector<1x32xi32>
    %413 = arith.andi %410, %412 : vector<1x32xi1>
    %414 = arith.extui %413 : vector<1x32xi1> to vector<1x32xi32>
    %415 = arith.sitofp %414 : vector<1x32xi32> to vector<1x32xf32>
    %416 = vector.broadcast %94 : vector<1x32xf32> to vector<8x32xf32>
    %417 = arith.addf %90, %416 : vector<8x32xf32>
    %418 = vector.broadcast %415 : vector<1x32xf32> to vector<8x32xf32>
    %419 = arith.mulf %91, %418 : vector<8x32xf32>
    %cst_87 = arith.constant dense<0.000000e+00> : vector<8x8xf32>
    %420 = tpu.matmul %417, %419, %cst_87 {dimension_numbers = #tpu.dot_dimension_numbers<[1], [1], [0], [0], [0, 0, 1, 0], [], []>} : vector<8x32xf32>, vector<8x32xf32>, vector<8x8xf32> -> vector<8x8xf32>
    %421 = vector.broadcast %95 : vector<1x32xf32> to vector<8x32xf32>
    %422 = arith.addf %90, %421 : vector<8x32xf32>
    %423 = vector.broadcast %415 : vector<1x32xf32> to vector<8x32xf32>
    %424 = arith.mulf %93, %423 : vector<8x32xf32>
    %cst_88 = arith.constant dense<0.000000e+00> : vector<8x8xf32>
    %425 = tpu.matmul %422, %424, %cst_88 {dimension_numbers = #tpu.dot_dimension_numbers<[1], [1], [0], [0], [0, 0, 1, 0], [], []>} : vector<8x32xf32>, vector<8x32xf32>, vector<8x8xf32> -> vector<8x8xf32>
    %426 = tpu.iota {dimensions = array<i32: 0>} : vector<8x8xi32>
    %427 = tpu.iota {dimensions = array<i32: 1>} : vector<8x8xi32>
    %428 = arith.subi %427, %426 : vector<8x8xi32>
    %c1_i32_89 = arith.constant 1 : i32
    %429 = vector.broadcast %c1_i32_89 : i32 to vector<8x8xi32>
    %430 = arith.addi %426, %429 : vector<8x8xi32>
    %431 = arith.cmpi eq, %427, %430 : vector<8x8xi32>
    %432 = arith.extui %431 : vector<8x8xi1> to vector<8x8xi32>
    %433 = arith.sitofp %432 : vector<8x8xi32> to vector<8x8xf32>
    %cst_90 = arith.constant dense<0.000000e+00> : vector<8x8xf32>
    %434 = tpu.matmul %433, %425, %cst_90 {dimension_numbers = #tpu.dot_dimension_numbers<[1], [0], [0], [1], [0, 0, 1, 1], [], []>} : vector<8x8xf32>, vector<8x8xf32>, vector<8x8xf32> -> vector<8x8xf32>
    %cst_91 = arith.constant 0.000000e+00 : f32
    %435 = vector.broadcast %cst_91 : f32 to vector<8x8xf32>
    %c-7_i32_92 = arith.constant -7 : i32
    %436 = vector.broadcast %c-7_i32_92 : i32 to vector<8x8xi32>
    %437 = arith.cmpi eq, %428, %436 : vector<8x8xi32>
    %438 = arith.extui %437 : vector<8x8xi1> to vector<8x8xi32>
    %439 = arith.sitofp %438 : vector<8x8xi32> to vector<8x8xf32>
    %440 = vector.extract_strided_slice %425 {offsets = [0, 0], sizes = [8, 1], strides = [1, 1]} : vector<8x8xf32> to vector<8x1xf32>
    %441 = vector.broadcast %440 : vector<8x1xf32> to vector<8x8xf32>
    %442 = arith.mulf %439, %441 : vector<8x8xf32>
    %443 = arith.addf %435, %442 : vector<8x8xf32>
    %c2_i32_93 = arith.constant 2 : i32
    %444 = vector.broadcast %c2_i32_93 : i32 to vector<8x8xi32>
    %445 = arith.cmpi eq, %428, %444 : vector<8x8xi32>
    %446 = arith.extui %445 : vector<8x8xi1> to vector<8x8xi32>
    %447 = arith.sitofp %446 : vector<8x8xi32> to vector<8x8xf32>
    %448 = vector.extract_strided_slice %434 {offsets = [0, 0], sizes = [8, 1], strides = [1, 1]} : vector<8x8xf32> to vector<8x1xf32>
    %449 = vector.broadcast %448 : vector<8x1xf32> to vector<8x8xf32>
    %450 = arith.mulf %447, %449 : vector<8x8xf32>
    %451 = arith.addf %443, %450 : vector<8x8xf32>
    %c-6_i32_94 = arith.constant -6 : i32
    %452 = vector.broadcast %c-6_i32_94 : i32 to vector<8x8xi32>
    %453 = arith.cmpi eq, %428, %452 : vector<8x8xi32>
    %454 = arith.extui %453 : vector<8x8xi1> to vector<8x8xi32>
    %455 = arith.sitofp %454 : vector<8x8xi32> to vector<8x8xf32>
    %456 = vector.extract_strided_slice %425 {offsets = [0, 1], sizes = [8, 1], strides = [1, 1]} : vector<8x8xf32> to vector<8x1xf32>
    %457 = vector.broadcast %456 : vector<8x1xf32> to vector<8x8xf32>
    %458 = arith.mulf %455, %457 : vector<8x8xf32>
    %459 = arith.addf %451, %458 : vector<8x8xf32>
    %c3_i32_95 = arith.constant 3 : i32
    %460 = vector.broadcast %c3_i32_95 : i32 to vector<8x8xi32>
    %461 = arith.cmpi eq, %428, %460 : vector<8x8xi32>
    %462 = arith.extui %461 : vector<8x8xi1> to vector<8x8xi32>
    %463 = arith.sitofp %462 : vector<8x8xi32> to vector<8x8xf32>
    %464 = vector.extract_strided_slice %434 {offsets = [0, 1], sizes = [8, 1], strides = [1, 1]} : vector<8x8xf32> to vector<8x1xf32>
    %465 = vector.broadcast %464 : vector<8x1xf32> to vector<8x8xf32>
    %466 = arith.mulf %463, %465 : vector<8x8xf32>
    %467 = arith.addf %459, %466 : vector<8x8xf32>
    %c-5_i32_96 = arith.constant -5 : i32
    %468 = vector.broadcast %c-5_i32_96 : i32 to vector<8x8xi32>
    %469 = arith.cmpi eq, %428, %468 : vector<8x8xi32>
    %470 = arith.extui %469 : vector<8x8xi1> to vector<8x8xi32>
    %471 = arith.sitofp %470 : vector<8x8xi32> to vector<8x8xf32>
    %472 = vector.extract_strided_slice %425 {offsets = [0, 2], sizes = [8, 1], strides = [1, 1]} : vector<8x8xf32> to vector<8x1xf32>
    %473 = vector.broadcast %472 : vector<8x1xf32> to vector<8x8xf32>
    %474 = arith.mulf %471, %473 : vector<8x8xf32>
    %475 = arith.addf %467, %474 : vector<8x8xf32>
    %c4_i32_97 = arith.constant 4 : i32
    %476 = vector.broadcast %c4_i32_97 : i32 to vector<8x8xi32>
    %477 = arith.cmpi eq, %428, %476 : vector<8x8xi32>
    %478 = arith.extui %477 : vector<8x8xi1> to vector<8x8xi32>
    %479 = arith.sitofp %478 : vector<8x8xi32> to vector<8x8xf32>
    %480 = vector.extract_strided_slice %434 {offsets = [0, 2], sizes = [8, 1], strides = [1, 1]} : vector<8x8xf32> to vector<8x1xf32>
    %481 = vector.broadcast %480 : vector<8x1xf32> to vector<8x8xf32>
    %482 = arith.mulf %479, %481 : vector<8x8xf32>
    %483 = arith.addf %475, %482 : vector<8x8xf32>
    %c-4_i32_98 = arith.constant -4 : i32
    %484 = vector.broadcast %c-4_i32_98 : i32 to vector<8x8xi32>
    %485 = arith.cmpi eq, %428, %484 : vector<8x8xi32>
    %486 = arith.extui %485 : vector<8x8xi1> to vector<8x8xi32>
    %487 = arith.sitofp %486 : vector<8x8xi32> to vector<8x8xf32>
    %488 = vector.extract_strided_slice %425 {offsets = [0, 3], sizes = [8, 1], strides = [1, 1]} : vector<8x8xf32> to vector<8x1xf32>
    %489 = vector.broadcast %488 : vector<8x1xf32> to vector<8x8xf32>
    %490 = arith.mulf %487, %489 : vector<8x8xf32>
    %491 = arith.addf %483, %490 : vector<8x8xf32>
    %c5_i32_99 = arith.constant 5 : i32
    %492 = vector.broadcast %c5_i32_99 : i32 to vector<8x8xi32>
    %493 = arith.cmpi eq, %428, %492 : vector<8x8xi32>
    %494 = arith.extui %493 : vector<8x8xi1> to vector<8x8xi32>
    %495 = arith.sitofp %494 : vector<8x8xi32> to vector<8x8xf32>
    %496 = vector.extract_strided_slice %434 {offsets = [0, 3], sizes = [8, 1], strides = [1, 1]} : vector<8x8xf32> to vector<8x1xf32>
    %497 = vector.broadcast %496 : vector<8x1xf32> to vector<8x8xf32>
    %498 = arith.mulf %495, %497 : vector<8x8xf32>
    %499 = arith.addf %491, %498 : vector<8x8xf32>
    %c-3_i32_100 = arith.constant -3 : i32
    %500 = vector.broadcast %c-3_i32_100 : i32 to vector<8x8xi32>
    %501 = arith.cmpi eq, %428, %500 : vector<8x8xi32>
    %502 = arith.extui %501 : vector<8x8xi1> to vector<8x8xi32>
    %503 = arith.sitofp %502 : vector<8x8xi32> to vector<8x8xf32>
    %504 = vector.extract_strided_slice %425 {offsets = [0, 4], sizes = [8, 1], strides = [1, 1]} : vector<8x8xf32> to vector<8x1xf32>
    %505 = vector.broadcast %504 : vector<8x1xf32> to vector<8x8xf32>
    %506 = arith.mulf %503, %505 : vector<8x8xf32>
    %507 = arith.addf %499, %506 : vector<8x8xf32>
    %c6_i32_101 = arith.constant 6 : i32
    %508 = vector.broadcast %c6_i32_101 : i32 to vector<8x8xi32>
    %509 = arith.cmpi eq, %428, %508 : vector<8x8xi32>
    %510 = arith.extui %509 : vector<8x8xi1> to vector<8x8xi32>
    %511 = arith.sitofp %510 : vector<8x8xi32> to vector<8x8xf32>
    %512 = vector.extract_strided_slice %434 {offsets = [0, 4], sizes = [8, 1], strides = [1, 1]} : vector<8x8xf32> to vector<8x1xf32>
    %513 = vector.broadcast %512 : vector<8x1xf32> to vector<8x8xf32>
    %514 = arith.mulf %511, %513 : vector<8x8xf32>
    %515 = arith.addf %507, %514 : vector<8x8xf32>
    %c-2_i32_102 = arith.constant -2 : i32
    %516 = vector.broadcast %c-2_i32_102 : i32 to vector<8x8xi32>
    %517 = arith.cmpi eq, %428, %516 : vector<8x8xi32>
    %518 = arith.extui %517 : vector<8x8xi1> to vector<8x8xi32>
    %519 = arith.sitofp %518 : vector<8x8xi32> to vector<8x8xf32>
    %520 = vector.extract_strided_slice %425 {offsets = [0, 5], sizes = [8, 1], strides = [1, 1]} : vector<8x8xf32> to vector<8x1xf32>
    %521 = vector.broadcast %520 : vector<8x1xf32> to vector<8x8xf32>
    %522 = arith.mulf %519, %521 : vector<8x8xf32>
    %523 = arith.addf %515, %522 : vector<8x8xf32>
    %c7_i32_103 = arith.constant 7 : i32
    %524 = vector.broadcast %c7_i32_103 : i32 to vector<8x8xi32>
    %525 = arith.cmpi eq, %428, %524 : vector<8x8xi32>
    %526 = arith.extui %525 : vector<8x8xi1> to vector<8x8xi32>
    %527 = arith.sitofp %526 : vector<8x8xi32> to vector<8x8xf32>
    %528 = vector.extract_strided_slice %434 {offsets = [0, 5], sizes = [8, 1], strides = [1, 1]} : vector<8x8xf32> to vector<8x1xf32>
    %529 = vector.broadcast %528 : vector<8x1xf32> to vector<8x8xf32>
    %530 = arith.mulf %527, %529 : vector<8x8xf32>
    %531 = arith.addf %523, %530 : vector<8x8xf32>
    %c-1_i32_104 = arith.constant -1 : i32
    %532 = vector.broadcast %c-1_i32_104 : i32 to vector<8x8xi32>
    %533 = arith.cmpi eq, %428, %532 : vector<8x8xi32>
    %534 = arith.extui %533 : vector<8x8xi1> to vector<8x8xi32>
    %535 = arith.sitofp %534 : vector<8x8xi32> to vector<8x8xf32>
    %536 = vector.extract_strided_slice %425 {offsets = [0, 6], sizes = [8, 1], strides = [1, 1]} : vector<8x8xf32> to vector<8x1xf32>
    %537 = vector.broadcast %536 : vector<8x1xf32> to vector<8x8xf32>
    %538 = arith.mulf %535, %537 : vector<8x8xf32>
    %539 = arith.addf %531, %538 : vector<8x8xf32>
    %c0_i32_105 = arith.constant 0 : i32
    %540 = vector.broadcast %c0_i32_105 : i32 to vector<8x8xi32>
    %541 = arith.cmpi eq, %428, %540 : vector<8x8xi32>
    %542 = arith.extui %541 : vector<8x8xi1> to vector<8x8xi32>
    %543 = arith.sitofp %542 : vector<8x8xi32> to vector<8x8xf32>
    %544 = vector.extract_strided_slice %425 {offsets = [0, 7], sizes = [8, 1], strides = [1, 1]} : vector<8x8xf32> to vector<8x1xf32>
    %545 = vector.broadcast %544 : vector<8x1xf32> to vector<8x8xf32>
    %546 = arith.mulf %543, %545 : vector<8x8xf32>
    %547 = arith.addf %539, %546 : vector<8x8xf32>
    %548 = arith.addf %420, %547 : vector<8x8xf32>
    %cst_106 = arith.constant 0.176776692 : f32
    %549 = vector.broadcast %cst_106 : f32 to vector<8x8xf32>
    %550 = arith.mulf %548, %549 : vector<8x8xf32>
    %cst_107 = arith.constant dense<0xFF800000> : vector<8xf32>
    %551 = vector.multi_reduction <maximumf>, %550, %cst_107 [1] : vector<8x8xf32> to vector<8xf32>
    %552 = vector.shape_cast %551 : vector<8xf32> to vector<8x1xf32>
    %553 = vector.broadcast %552 : vector<8x1xf32> to vector<8x8xf32>
    %554 = arith.subf %550, %553 : vector<8x8xf32>
    %555 = math.exp %554 : vector<8x8xf32>
    %cst_108 = arith.constant dense<0.000000e+00> : vector<8xf32>
    %556 = vector.multi_reduction <add>, %555, %cst_108 [1] : vector<8x8xf32> to vector<8xf32>
    %557 = vector.shape_cast %556 : vector<8xf32> to vector<8x1xf32>
    %558 = vector.broadcast %557 : vector<8x1xf32> to vector<8x8xf32>
    %559 = arith.divf %555, %558 : vector<8x8xf32>
    %560 = vector.broadcast %415 : vector<1x32xf32> to vector<8x32xf32>
    %561 = arith.mulf %92, %560 : vector<8x32xf32>
    %cst_109 = arith.constant dense<0.000000e+00> : vector<8x32xf32>
    %562 = tpu.matmul %559, %561, %cst_109 {dimension_numbers = #tpu.dot_dimension_numbers<[1], [0], [0], [1], [0, 0, 1, 1], [], []>} : vector<8x8xf32>, vector<8x32xf32>, vector<8x32xf32> -> vector<8x32xf32>
    %563 = arith.addf %408, %562 : vector<8x32xf32>
    %c24_i32_110 = arith.constant 24 : i32
    %564 = vector.broadcast %c24_i32_110 : i32 to vector<1x32xi32>
    %565 = arith.cmpi sge, %97, %564 : vector<1x32xi32>
    %c32_i32 = arith.constant 32 : i32
    %566 = vector.broadcast %c32_i32 : i32 to vector<1x32xi32>
    %567 = arith.cmpi slt, %97, %566 : vector<1x32xi32>
    %568 = arith.andi %565, %567 : vector<1x32xi1>
    %569 = arith.extui %568 : vector<1x32xi1> to vector<1x32xi32>
    %570 = arith.sitofp %569 : vector<1x32xi32> to vector<1x32xf32>
    %571 = vector.broadcast %94 : vector<1x32xf32> to vector<8x32xf32>
    %572 = arith.addf %90, %571 : vector<8x32xf32>
    %573 = vector.broadcast %570 : vector<1x32xf32> to vector<8x32xf32>
    %574 = arith.mulf %91, %573 : vector<8x32xf32>
    %cst_111 = arith.constant dense<0.000000e+00> : vector<8x8xf32>
    %575 = tpu.matmul %572, %574, %cst_111 {dimension_numbers = #tpu.dot_dimension_numbers<[1], [1], [0], [0], [0, 0, 1, 0], [], []>} : vector<8x32xf32>, vector<8x32xf32>, vector<8x8xf32> -> vector<8x8xf32>
    %576 = vector.broadcast %95 : vector<1x32xf32> to vector<8x32xf32>
    %577 = arith.addf %90, %576 : vector<8x32xf32>
    %578 = vector.broadcast %570 : vector<1x32xf32> to vector<8x32xf32>
    %579 = arith.mulf %93, %578 : vector<8x32xf32>
    %cst_112 = arith.constant dense<0.000000e+00> : vector<8x8xf32>
    %580 = tpu.matmul %577, %579, %cst_112 {dimension_numbers = #tpu.dot_dimension_numbers<[1], [1], [0], [0], [0, 0, 1, 0], [], []>} : vector<8x32xf32>, vector<8x32xf32>, vector<8x8xf32> -> vector<8x8xf32>
    %581 = tpu.iota {dimensions = array<i32: 0>} : vector<8x8xi32>
    %582 = tpu.iota {dimensions = array<i32: 1>} : vector<8x8xi32>
    %583 = arith.subi %582, %581 : vector<8x8xi32>
    %c1_i32_113 = arith.constant 1 : i32
    %584 = vector.broadcast %c1_i32_113 : i32 to vector<8x8xi32>
    %585 = arith.addi %581, %584 : vector<8x8xi32>
    %586 = arith.cmpi eq, %582, %585 : vector<8x8xi32>
    %587 = arith.extui %586 : vector<8x8xi1> to vector<8x8xi32>
    %588 = arith.sitofp %587 : vector<8x8xi32> to vector<8x8xf32>
    %cst_114 = arith.constant dense<0.000000e+00> : vector<8x8xf32>
    %589 = tpu.matmul %588, %580, %cst_114 {dimension_numbers = #tpu.dot_dimension_numbers<[1], [0], [0], [1], [0, 0, 1, 1], [], []>} : vector<8x8xf32>, vector<8x8xf32>, vector<8x8xf32> -> vector<8x8xf32>
    %cst_115 = arith.constant 0.000000e+00 : f32
    %590 = vector.broadcast %cst_115 : f32 to vector<8x8xf32>
    %c-7_i32_116 = arith.constant -7 : i32
    %591 = vector.broadcast %c-7_i32_116 : i32 to vector<8x8xi32>
    %592 = arith.cmpi eq, %583, %591 : vector<8x8xi32>
    %593 = arith.extui %592 : vector<8x8xi1> to vector<8x8xi32>
    %594 = arith.sitofp %593 : vector<8x8xi32> to vector<8x8xf32>
    %595 = vector.extract_strided_slice %580 {offsets = [0, 0], sizes = [8, 1], strides = [1, 1]} : vector<8x8xf32> to vector<8x1xf32>
    %596 = vector.broadcast %595 : vector<8x1xf32> to vector<8x8xf32>
    %597 = arith.mulf %594, %596 : vector<8x8xf32>
    %598 = arith.addf %590, %597 : vector<8x8xf32>
    %c2_i32_117 = arith.constant 2 : i32
    %599 = vector.broadcast %c2_i32_117 : i32 to vector<8x8xi32>
    %600 = arith.cmpi eq, %583, %599 : vector<8x8xi32>
    %601 = arith.extui %600 : vector<8x8xi1> to vector<8x8xi32>
    %602 = arith.sitofp %601 : vector<8x8xi32> to vector<8x8xf32>
    %603 = vector.extract_strided_slice %589 {offsets = [0, 0], sizes = [8, 1], strides = [1, 1]} : vector<8x8xf32> to vector<8x1xf32>
    %604 = vector.broadcast %603 : vector<8x1xf32> to vector<8x8xf32>
    %605 = arith.mulf %602, %604 : vector<8x8xf32>
    %606 = arith.addf %598, %605 : vector<8x8xf32>
    %c-6_i32_118 = arith.constant -6 : i32
    %607 = vector.broadcast %c-6_i32_118 : i32 to vector<8x8xi32>
    %608 = arith.cmpi eq, %583, %607 : vector<8x8xi32>
    %609 = arith.extui %608 : vector<8x8xi1> to vector<8x8xi32>
    %610 = arith.sitofp %609 : vector<8x8xi32> to vector<8x8xf32>
    %611 = vector.extract_strided_slice %580 {offsets = [0, 1], sizes = [8, 1], strides = [1, 1]} : vector<8x8xf32> to vector<8x1xf32>
    %612 = vector.broadcast %611 : vector<8x1xf32> to vector<8x8xf32>
    %613 = arith.mulf %610, %612 : vector<8x8xf32>
    %614 = arith.addf %606, %613 : vector<8x8xf32>
    %c3_i32_119 = arith.constant 3 : i32
    %615 = vector.broadcast %c3_i32_119 : i32 to vector<8x8xi32>
    %616 = arith.cmpi eq, %583, %615 : vector<8x8xi32>
    %617 = arith.extui %616 : vector<8x8xi1> to vector<8x8xi32>
    %618 = arith.sitofp %617 : vector<8x8xi32> to vector<8x8xf32>
    %619 = vector.extract_strided_slice %589 {offsets = [0, 1], sizes = [8, 1], strides = [1, 1]} : vector<8x8xf32> to vector<8x1xf32>
    %620 = vector.broadcast %619 : vector<8x1xf32> to vector<8x8xf32>
    %621 = arith.mulf %618, %620 : vector<8x8xf32>
    %622 = arith.addf %614, %621 : vector<8x8xf32>
    %c-5_i32_120 = arith.constant -5 : i32
    %623 = vector.broadcast %c-5_i32_120 : i32 to vector<8x8xi32>
    %624 = arith.cmpi eq, %583, %623 : vector<8x8xi32>
    %625 = arith.extui %624 : vector<8x8xi1> to vector<8x8xi32>
    %626 = arith.sitofp %625 : vector<8x8xi32> to vector<8x8xf32>
    %627 = vector.extract_strided_slice %580 {offsets = [0, 2], sizes = [8, 1], strides = [1, 1]} : vector<8x8xf32> to vector<8x1xf32>
    %628 = vector.broadcast %627 : vector<8x1xf32> to vector<8x8xf32>
    %629 = arith.mulf %626, %628 : vector<8x8xf32>
    %630 = arith.addf %622, %629 : vector<8x8xf32>
    %c4_i32_121 = arith.constant 4 : i32
    %631 = vector.broadcast %c4_i32_121 : i32 to vector<8x8xi32>
    %632 = arith.cmpi eq, %583, %631 : vector<8x8xi32>
    %633 = arith.extui %632 : vector<8x8xi1> to vector<8x8xi32>
    %634 = arith.sitofp %633 : vector<8x8xi32> to vector<8x8xf32>
    %635 = vector.extract_strided_slice %589 {offsets = [0, 2], sizes = [8, 1], strides = [1, 1]} : vector<8x8xf32> to vector<8x1xf32>
    %636 = vector.broadcast %635 : vector<8x1xf32> to vector<8x8xf32>
    %637 = arith.mulf %634, %636 : vector<8x8xf32>
    %638 = arith.addf %630, %637 : vector<8x8xf32>
    %c-4_i32_122 = arith.constant -4 : i32
    %639 = vector.broadcast %c-4_i32_122 : i32 to vector<8x8xi32>
    %640 = arith.cmpi eq, %583, %639 : vector<8x8xi32>
    %641 = arith.extui %640 : vector<8x8xi1> to vector<8x8xi32>
    %642 = arith.sitofp %641 : vector<8x8xi32> to vector<8x8xf32>
    %643 = vector.extract_strided_slice %580 {offsets = [0, 3], sizes = [8, 1], strides = [1, 1]} : vector<8x8xf32> to vector<8x1xf32>
    %644 = vector.broadcast %643 : vector<8x1xf32> to vector<8x8xf32>
    %645 = arith.mulf %642, %644 : vector<8x8xf32>
    %646 = arith.addf %638, %645 : vector<8x8xf32>
    %c5_i32_123 = arith.constant 5 : i32
    %647 = vector.broadcast %c5_i32_123 : i32 to vector<8x8xi32>
    %648 = arith.cmpi eq, %583, %647 : vector<8x8xi32>
    %649 = arith.extui %648 : vector<8x8xi1> to vector<8x8xi32>
    %650 = arith.sitofp %649 : vector<8x8xi32> to vector<8x8xf32>
    %651 = vector.extract_strided_slice %589 {offsets = [0, 3], sizes = [8, 1], strides = [1, 1]} : vector<8x8xf32> to vector<8x1xf32>
    %652 = vector.broadcast %651 : vector<8x1xf32> to vector<8x8xf32>
    %653 = arith.mulf %650, %652 : vector<8x8xf32>
    %654 = arith.addf %646, %653 : vector<8x8xf32>
    %c-3_i32_124 = arith.constant -3 : i32
    %655 = vector.broadcast %c-3_i32_124 : i32 to vector<8x8xi32>
    %656 = arith.cmpi eq, %583, %655 : vector<8x8xi32>
    %657 = arith.extui %656 : vector<8x8xi1> to vector<8x8xi32>
    %658 = arith.sitofp %657 : vector<8x8xi32> to vector<8x8xf32>
    %659 = vector.extract_strided_slice %580 {offsets = [0, 4], sizes = [8, 1], strides = [1, 1]} : vector<8x8xf32> to vector<8x1xf32>
    %660 = vector.broadcast %659 : vector<8x1xf32> to vector<8x8xf32>
    %661 = arith.mulf %658, %660 : vector<8x8xf32>
    %662 = arith.addf %654, %661 : vector<8x8xf32>
    %c6_i32_125 = arith.constant 6 : i32
    %663 = vector.broadcast %c6_i32_125 : i32 to vector<8x8xi32>
    %664 = arith.cmpi eq, %583, %663 : vector<8x8xi32>
    %665 = arith.extui %664 : vector<8x8xi1> to vector<8x8xi32>
    %666 = arith.sitofp %665 : vector<8x8xi32> to vector<8x8xf32>
    %667 = vector.extract_strided_slice %589 {offsets = [0, 4], sizes = [8, 1], strides = [1, 1]} : vector<8x8xf32> to vector<8x1xf32>
    %668 = vector.broadcast %667 : vector<8x1xf32> to vector<8x8xf32>
    %669 = arith.mulf %666, %668 : vector<8x8xf32>
    %670 = arith.addf %662, %669 : vector<8x8xf32>
    %c-2_i32_126 = arith.constant -2 : i32
    %671 = vector.broadcast %c-2_i32_126 : i32 to vector<8x8xi32>
    %672 = arith.cmpi eq, %583, %671 : vector<8x8xi32>
    %673 = arith.extui %672 : vector<8x8xi1> to vector<8x8xi32>
    %674 = arith.sitofp %673 : vector<8x8xi32> to vector<8x8xf32>
    %675 = vector.extract_strided_slice %580 {offsets = [0, 5], sizes = [8, 1], strides = [1, 1]} : vector<8x8xf32> to vector<8x1xf32>
    %676 = vector.broadcast %675 : vector<8x1xf32> to vector<8x8xf32>
    %677 = arith.mulf %674, %676 : vector<8x8xf32>
    %678 = arith.addf %670, %677 : vector<8x8xf32>
    %c7_i32_127 = arith.constant 7 : i32
    %679 = vector.broadcast %c7_i32_127 : i32 to vector<8x8xi32>
    %680 = arith.cmpi eq, %583, %679 : vector<8x8xi32>
    %681 = arith.extui %680 : vector<8x8xi1> to vector<8x8xi32>
    %682 = arith.sitofp %681 : vector<8x8xi32> to vector<8x8xf32>
    %683 = vector.extract_strided_slice %589 {offsets = [0, 5], sizes = [8, 1], strides = [1, 1]} : vector<8x8xf32> to vector<8x1xf32>
    %684 = vector.broadcast %683 : vector<8x1xf32> to vector<8x8xf32>
    %685 = arith.mulf %682, %684 : vector<8x8xf32>
    %686 = arith.addf %678, %685 : vector<8x8xf32>
    %c-1_i32_128 = arith.constant -1 : i32
    %687 = vector.broadcast %c-1_i32_128 : i32 to vector<8x8xi32>
    %688 = arith.cmpi eq, %583, %687 : vector<8x8xi32>
    %689 = arith.extui %688 : vector<8x8xi1> to vector<8x8xi32>
    %690 = arith.sitofp %689 : vector<8x8xi32> to vector<8x8xf32>
    %691 = vector.extract_strided_slice %580 {offsets = [0, 6], sizes = [8, 1], strides = [1, 1]} : vector<8x8xf32> to vector<8x1xf32>
    %692 = vector.broadcast %691 : vector<8x1xf32> to vector<8x8xf32>
    %693 = arith.mulf %690, %692 : vector<8x8xf32>
    %694 = arith.addf %686, %693 : vector<8x8xf32>
    %c0_i32_129 = arith.constant 0 : i32
    %695 = vector.broadcast %c0_i32_129 : i32 to vector<8x8xi32>
    %696 = arith.cmpi eq, %583, %695 : vector<8x8xi32>
    %697 = arith.extui %696 : vector<8x8xi1> to vector<8x8xi32>
    %698 = arith.sitofp %697 : vector<8x8xi32> to vector<8x8xf32>
    %699 = vector.extract_strided_slice %580 {offsets = [0, 7], sizes = [8, 1], strides = [1, 1]} : vector<8x8xf32> to vector<8x1xf32>
    %700 = vector.broadcast %699 : vector<8x1xf32> to vector<8x8xf32>
    %701 = arith.mulf %698, %700 : vector<8x8xf32>
    %702 = arith.addf %694, %701 : vector<8x8xf32>
    %703 = arith.addf %575, %702 : vector<8x8xf32>
    %cst_130 = arith.constant 0.176776692 : f32
    %704 = vector.broadcast %cst_130 : f32 to vector<8x8xf32>
    %705 = arith.mulf %703, %704 : vector<8x8xf32>
    %cst_131 = arith.constant dense<0xFF800000> : vector<8xf32>
    %706 = vector.multi_reduction <maximumf>, %705, %cst_131 [1] : vector<8x8xf32> to vector<8xf32>
    %707 = vector.shape_cast %706 : vector<8xf32> to vector<8x1xf32>
    %708 = vector.broadcast %707 : vector<8x1xf32> to vector<8x8xf32>
    %709 = arith.subf %705, %708 : vector<8x8xf32>
    %710 = math.exp %709 : vector<8x8xf32>
    %cst_132 = arith.constant dense<0.000000e+00> : vector<8xf32>
    %711 = vector.multi_reduction <add>, %710, %cst_132 [1] : vector<8x8xf32> to vector<8xf32>
    %712 = vector.shape_cast %711 : vector<8xf32> to vector<8x1xf32>
    %713 = vector.broadcast %712 : vector<8x1xf32> to vector<8x8xf32>
    %714 = arith.divf %710, %713 : vector<8x8xf32>
    %715 = vector.broadcast %570 : vector<1x32xf32> to vector<8x32xf32>
    %716 = arith.mulf %92, %715 : vector<8x32xf32>
    %cst_133 = arith.constant dense<0.000000e+00> : vector<8x32xf32>
    %717 = tpu.matmul %714, %716, %cst_133 {dimension_numbers = #tpu.dot_dimension_numbers<[1], [0], [0], [1], [0, 0, 1, 1], [], []>} : vector<8x8xf32>, vector<8x32xf32>, vector<8x32xf32> -> vector<8x32xf32>
    %718 = arith.addf %563, %717 : vector<8x32xf32>
    %cst_134 = arith.constant dense<0.000000e+00> : vector<8x32xf32>
    %719 = tpu.matmul %718, %96, %cst_134 {dimension_numbers = #tpu.dot_dimension_numbers<[1], [0], [0], [1], [0, 0, 1, 1], [], []>} : vector<8x32xf32>, vector<32x32xf32>, vector<8x32xf32> -> vector<8x32xf32>
    %c0_135 = arith.constant 0 : index
    %c0_136 = arith.constant 0 : index
    %720 = vector.load %arg18[%c0_135, %c0_136] : memref<1x32xf32, #tpu.memory_space<vmem>>, vector<1x32xf32>
    %721 = vector.broadcast %720 : vector<1x32xf32> to vector<8x32xf32>
    %722 = arith.addf %719, %721 : vector<8x32xf32>
    %723 = arith.addf %722, %62 : vector<8x32xf32>
    %c0_137 = arith.constant 0 : index
    %c0_138 = arith.constant 0 : index
    %724 = vector.load %arg19[%c0_137, %c0_138] : memref<1x32xf32, #tpu.memory_space<vmem>>, vector<1x32xf32>
    %c0_139 = arith.constant 0 : index
    %c0_140 = arith.constant 0 : index
    %725 = vector.load %arg20[%c0_139, %c0_140] : memref<1x32xf32, #tpu.memory_space<vmem>>, vector<1x32xf32>
    %cst_141 = arith.constant dense<0.000000e+00> : vector<8xf32>
    %726 = vector.multi_reduction <add>, %723, %cst_141 [1] : vector<8x32xf32> to vector<8xf32>
    %727 = vector.shape_cast %726 : vector<8xf32> to vector<8x1xf32>
    %cst_142 = arith.constant 3.200000e+01 : f32
    %728 = vector.broadcast %cst_142 : f32 to vector<8x1xf32>
    %729 = arith.divf %727, %728 : vector<8x1xf32>
    %730 = vector.broadcast %729 : vector<8x1xf32> to vector<8x32xf32>
    %731 = arith.subf %723, %730 : vector<8x32xf32>
    %732 = arith.mulf %731, %731 : vector<8x32xf32>
    %cst_143 = arith.constant dense<0.000000e+00> : vector<8xf32>
    %733 = vector.multi_reduction <add>, %732, %cst_143 [1] : vector<8x32xf32> to vector<8xf32>
    %734 = vector.shape_cast %733 : vector<8xf32> to vector<8x1xf32>
    %cst_144 = arith.constant 3.200000e+01 : f32
    %735 = vector.broadcast %cst_144 : f32 to vector<8x1xf32>
    %736 = arith.divf %734, %735 : vector<8x1xf32>
    %cst_145 = arith.constant 9.99999974E-6 : f32
    %737 = vector.broadcast %cst_145 : f32 to vector<8x1xf32>
    %738 = arith.addf %736, %737 : vector<8x1xf32>
    %739 = math.rsqrt %738 : vector<8x1xf32>
    %740 = vector.broadcast %739 : vector<8x1xf32> to vector<8x32xf32>
    %741 = arith.mulf %731, %740 : vector<8x32xf32>
    %742 = vector.broadcast %724 : vector<1x32xf32> to vector<8x32xf32>
    %743 = arith.mulf %741, %742 : vector<8x32xf32>
    %744 = vector.broadcast %725 : vector<1x32xf32> to vector<8x32xf32>
    %745 = arith.addf %743, %744 : vector<8x32xf32>
    %c0_146 = arith.constant 0 : index
    %c0_147 = arith.constant 0 : index
    %746 = vector.load %arg21[%c0_146, %c0_147] : memref<1x32xf32, #tpu.memory_space<vmem>>, vector<1x32xf32>
    %c0_148 = arith.constant 0 : index
    %c0_149 = arith.constant 0 : index
    %747 = vector.load %arg22[%c0_148, %c0_149] : memref<1x32xf32, #tpu.memory_space<vmem>>, vector<1x32xf32>
    %cst_150 = arith.constant dense<0.000000e+00> : vector<8xf32>
    %748 = vector.multi_reduction <add>, %745, %cst_150 [1] : vector<8x32xf32> to vector<8xf32>
    %749 = vector.shape_cast %748 : vector<8xf32> to vector<8x1xf32>
    %cst_151 = arith.constant 3.200000e+01 : f32
    %750 = vector.broadcast %cst_151 : f32 to vector<8x1xf32>
    %751 = arith.divf %749, %750 : vector<8x1xf32>
    %752 = vector.broadcast %751 : vector<8x1xf32> to vector<8x32xf32>
    %753 = arith.subf %745, %752 : vector<8x32xf32>
    %754 = arith.mulf %753, %753 : vector<8x32xf32>
    %cst_152 = arith.constant dense<0.000000e+00> : vector<8xf32>
    %755 = vector.multi_reduction <add>, %754, %cst_152 [1] : vector<8x32xf32> to vector<8xf32>
    %756 = vector.shape_cast %755 : vector<8xf32> to vector<8x1xf32>
    %cst_153 = arith.constant 3.200000e+01 : f32
    %757 = vector.broadcast %cst_153 : f32 to vector<8x1xf32>
    %758 = arith.divf %756, %757 : vector<8x1xf32>
    %cst_154 = arith.constant 9.99999974E-6 : f32
    %759 = vector.broadcast %cst_154 : f32 to vector<8x1xf32>
    %760 = arith.addf %758, %759 : vector<8x1xf32>
    %761 = math.rsqrt %760 : vector<8x1xf32>
    %762 = vector.broadcast %761 : vector<8x1xf32> to vector<8x32xf32>
    %763 = arith.mulf %753, %762 : vector<8x32xf32>
    %764 = vector.broadcast %746 : vector<1x32xf32> to vector<8x32xf32>
    %765 = arith.mulf %763, %764 : vector<8x32xf32>
    %766 = vector.broadcast %747 : vector<1x32xf32> to vector<8x32xf32>
    %767 = arith.addf %765, %766 : vector<8x32xf32>
    %c0_155 = arith.constant 0 : index
    %c0_156 = arith.constant 0 : index
    %768 = vector.load %arg23[%c0_155, %c0_156] : memref<32x64xf32, #tpu.memory_space<vmem>>, vector<32x64xf32>
    %cst_157 = arith.constant dense<0.000000e+00> : vector<8x64xf32>
    %769 = tpu.matmul %767, %768, %cst_157 {dimension_numbers = #tpu.dot_dimension_numbers<[1], [0], [0], [1], [0, 0, 1, 1], [], []>} : vector<8x32xf32>, vector<32x64xf32>, vector<8x64xf32> -> vector<8x64xf32>
    %c0_158 = arith.constant 0 : index
    %c0_159 = arith.constant 0 : index
    %770 = vector.load %arg24[%c0_158, %c0_159] : memref<1x64xf32, #tpu.memory_space<vmem>>, vector<1x64xf32>
    %771 = vector.broadcast %770 : vector<1x64xf32> to vector<8x64xf32>
    %772 = arith.addf %769, %771 : vector<8x64xf32>
    %773 = vector.extract_strided_slice %772 {offsets = [0, 0], sizes = [8, 32], strides = [1, 1]} : vector<8x64xf32> to vector<8x32xf32>
    %774 = vector.extract_strided_slice %772 {offsets = [0, 32], sizes = [8, 32], strides = [1, 1]} : vector<8x64xf32> to vector<8x32xf32>
    %775 = arith.negf %774 : vector<8x32xf32>
    %776 = math.exp %775 : vector<8x32xf32>
    %cst_160 = arith.constant 1.000000e+00 : f32
    %777 = vector.broadcast %cst_160 : f32 to vector<8x32xf32>
    %778 = arith.addf %777, %776 : vector<8x32xf32>
    %779 = arith.divf %777, %778 : vector<8x32xf32>
    %780 = arith.mulf %773, %779 : vector<8x32xf32>
    %781 = tpu.iota {dimensions = array<i32: 0>} : vector<8x8xi32>
    %782 = tpu.iota {dimensions = array<i32: 1>} : vector<8x8xi32>
    %cst_161 = arith.constant 0.000000e+00 : f32
    %783 = vector.broadcast %cst_161 : f32 to vector<8x32xf32>
    %c-3_i32_162 = arith.constant -3 : i32
    %784 = vector.broadcast %c-3_i32_162 : i32 to vector<8x8xi32>
    %785 = arith.addi %781, %784 : vector<8x8xi32>
    %786 = arith.cmpi eq, %782, %785 : vector<8x8xi32>
    %787 = arith.extui %786 : vector<8x8xi1> to vector<8x8xi32>
    %788 = arith.sitofp %787 : vector<8x8xi32> to vector<8x8xf32>
    %cst_163 = arith.constant dense<0.000000e+00> : vector<8x32xf32>
    %789 = tpu.matmul %788, %780, %cst_163 {dimension_numbers = #tpu.dot_dimension_numbers<[1], [0], [0], [1], [0, 0, 1, 1], [], []>} : vector<8x8xf32>, vector<8x32xf32>, vector<8x32xf32> -> vector<8x32xf32>
    %c0_164 = arith.constant 0 : index
    %c0_165 = arith.constant 0 : index
    %790 = vector.load %arg25[%c0_164, %c0_165] : memref<7x32xf32, #tpu.memory_space<vmem>>, vector<1x32xf32>
    %791 = vector.broadcast %790 : vector<1x32xf32> to vector<8x32xf32>
    %792 = arith.mulf %789, %791 : vector<8x32xf32>
    %793 = arith.addf %783, %792 : vector<8x32xf32>
    %c-2_i32_166 = arith.constant -2 : i32
    %794 = vector.broadcast %c-2_i32_166 : i32 to vector<8x8xi32>
    %795 = arith.addi %781, %794 : vector<8x8xi32>
    %796 = arith.cmpi eq, %782, %795 : vector<8x8xi32>
    %797 = arith.extui %796 : vector<8x8xi1> to vector<8x8xi32>
    %798 = arith.sitofp %797 : vector<8x8xi32> to vector<8x8xf32>
    %cst_167 = arith.constant dense<0.000000e+00> : vector<8x32xf32>
    %799 = tpu.matmul %798, %780, %cst_167 {dimension_numbers = #tpu.dot_dimension_numbers<[1], [0], [0], [1], [0, 0, 1, 1], [], []>} : vector<8x8xf32>, vector<8x32xf32>, vector<8x32xf32> -> vector<8x32xf32>
    %c1 = arith.constant 1 : index
    %c0_168 = arith.constant 0 : index
    %800 = vector.load %arg25[%c1, %c0_168] : memref<7x32xf32, #tpu.memory_space<vmem>>, vector<1x32xf32>
    %801 = vector.broadcast %800 : vector<1x32xf32> to vector<8x32xf32>
    %802 = arith.mulf %799, %801 : vector<8x32xf32>
    %803 = arith.addf %793, %802 : vector<8x32xf32>
    %c-1_i32_169 = arith.constant -1 : i32
    %804 = vector.broadcast %c-1_i32_169 : i32 to vector<8x8xi32>
    %805 = arith.addi %781, %804 : vector<8x8xi32>
    %806 = arith.cmpi eq, %782, %805 : vector<8x8xi32>
    %807 = arith.extui %806 : vector<8x8xi1> to vector<8x8xi32>
    %808 = arith.sitofp %807 : vector<8x8xi32> to vector<8x8xf32>
    %cst_170 = arith.constant dense<0.000000e+00> : vector<8x32xf32>
    %809 = tpu.matmul %808, %780, %cst_170 {dimension_numbers = #tpu.dot_dimension_numbers<[1], [0], [0], [1], [0, 0, 1, 1], [], []>} : vector<8x8xf32>, vector<8x32xf32>, vector<8x32xf32> -> vector<8x32xf32>
    %c2 = arith.constant 2 : index
    %c0_171 = arith.constant 0 : index
    %810 = vector.load %arg25[%c2, %c0_171] : memref<7x32xf32, #tpu.memory_space<vmem>>, vector<1x32xf32>
    %811 = vector.broadcast %810 : vector<1x32xf32> to vector<8x32xf32>
    %812 = arith.mulf %809, %811 : vector<8x32xf32>
    %813 = arith.addf %803, %812 : vector<8x32xf32>
    %c0_i32_172 = arith.constant 0 : i32
    %814 = vector.broadcast %c0_i32_172 : i32 to vector<8x8xi32>
    %815 = arith.addi %781, %814 : vector<8x8xi32>
    %816 = arith.cmpi eq, %782, %815 : vector<8x8xi32>
    %817 = arith.extui %816 : vector<8x8xi1> to vector<8x8xi32>
    %818 = arith.sitofp %817 : vector<8x8xi32> to vector<8x8xf32>
    %cst_173 = arith.constant dense<0.000000e+00> : vector<8x32xf32>
    %819 = tpu.matmul %818, %780, %cst_173 {dimension_numbers = #tpu.dot_dimension_numbers<[1], [0], [0], [1], [0, 0, 1, 1], [], []>} : vector<8x8xf32>, vector<8x32xf32>, vector<8x32xf32> -> vector<8x32xf32>
    %c3 = arith.constant 3 : index
    %c0_174 = arith.constant 0 : index
    %820 = vector.load %arg25[%c3, %c0_174] : memref<7x32xf32, #tpu.memory_space<vmem>>, vector<1x32xf32>
    %821 = vector.broadcast %820 : vector<1x32xf32> to vector<8x32xf32>
    %822 = arith.mulf %819, %821 : vector<8x32xf32>
    %823 = arith.addf %813, %822 : vector<8x32xf32>
    %c1_i32_175 = arith.constant 1 : i32
    %824 = vector.broadcast %c1_i32_175 : i32 to vector<8x8xi32>
    %825 = arith.addi %781, %824 : vector<8x8xi32>
    %826 = arith.cmpi eq, %782, %825 : vector<8x8xi32>
    %827 = arith.extui %826 : vector<8x8xi1> to vector<8x8xi32>
    %828 = arith.sitofp %827 : vector<8x8xi32> to vector<8x8xf32>
    %cst_176 = arith.constant dense<0.000000e+00> : vector<8x32xf32>
    %829 = tpu.matmul %828, %780, %cst_176 {dimension_numbers = #tpu.dot_dimension_numbers<[1], [0], [0], [1], [0, 0, 1, 1], [], []>} : vector<8x8xf32>, vector<8x32xf32>, vector<8x32xf32> -> vector<8x32xf32>
    %c4 = arith.constant 4 : index
    %c0_177 = arith.constant 0 : index
    %830 = vector.load %arg25[%c4, %c0_177] : memref<7x32xf32, #tpu.memory_space<vmem>>, vector<1x32xf32>
    %831 = vector.broadcast %830 : vector<1x32xf32> to vector<8x32xf32>
    %832 = arith.mulf %829, %831 : vector<8x32xf32>
    %833 = arith.addf %823, %832 : vector<8x32xf32>
    %c2_i32_178 = arith.constant 2 : i32
    %834 = vector.broadcast %c2_i32_178 : i32 to vector<8x8xi32>
    %835 = arith.addi %781, %834 : vector<8x8xi32>
    %836 = arith.cmpi eq, %782, %835 : vector<8x8xi32>
    %837 = arith.extui %836 : vector<8x8xi1> to vector<8x8xi32>
    %838 = arith.sitofp %837 : vector<8x8xi32> to vector<8x8xf32>
    %cst_179 = arith.constant dense<0.000000e+00> : vector<8x32xf32>
    %839 = tpu.matmul %838, %780, %cst_179 {dimension_numbers = #tpu.dot_dimension_numbers<[1], [0], [0], [1], [0, 0, 1, 1], [], []>} : vector<8x8xf32>, vector<8x32xf32>, vector<8x32xf32> -> vector<8x32xf32>
    %c5 = arith.constant 5 : index
    %c0_180 = arith.constant 0 : index
    %840 = vector.load %arg25[%c5, %c0_180] : memref<7x32xf32, #tpu.memory_space<vmem>>, vector<1x32xf32>
    %841 = vector.broadcast %840 : vector<1x32xf32> to vector<8x32xf32>
    %842 = arith.mulf %839, %841 : vector<8x32xf32>
    %843 = arith.addf %833, %842 : vector<8x32xf32>
    %c3_i32_181 = arith.constant 3 : i32
    %844 = vector.broadcast %c3_i32_181 : i32 to vector<8x8xi32>
    %845 = arith.addi %781, %844 : vector<8x8xi32>
    %846 = arith.cmpi eq, %782, %845 : vector<8x8xi32>
    %847 = arith.extui %846 : vector<8x8xi1> to vector<8x8xi32>
    %848 = arith.sitofp %847 : vector<8x8xi32> to vector<8x8xf32>
    %cst_182 = arith.constant dense<0.000000e+00> : vector<8x32xf32>
    %849 = tpu.matmul %848, %780, %cst_182 {dimension_numbers = #tpu.dot_dimension_numbers<[1], [0], [0], [1], [0, 0, 1, 1], [], []>} : vector<8x8xf32>, vector<8x32xf32>, vector<8x32xf32> -> vector<8x32xf32>
    %c6 = arith.constant 6 : index
    %c0_183 = arith.constant 0 : index
    %850 = vector.load %arg25[%c6, %c0_183] : memref<7x32xf32, #tpu.memory_space<vmem>>, vector<1x32xf32>
    %851 = vector.broadcast %850 : vector<1x32xf32> to vector<8x32xf32>
    %852 = arith.mulf %849, %851 : vector<8x32xf32>
    %853 = arith.addf %843, %852 : vector<8x32xf32>
    %c0_184 = arith.constant 0 : index
    %c0_185 = arith.constant 0 : index
    %854 = vector.load %arg26[%c0_184, %c0_185] : memref<1x32xf32, #tpu.memory_space<vmem>>, vector<1x32xf32>
    %855 = vector.broadcast %854 : vector<1x32xf32> to vector<8x32xf32>
    %856 = arith.mulf %853, %855 : vector<8x32xf32>
    %c0_186 = arith.constant 0 : index
    %c0_187 = arith.constant 0 : index
    %857 = vector.load %arg27[%c0_186, %c0_187] : memref<1x32xf32, #tpu.memory_space<vmem>>, vector<1x32xf32>
    %858 = vector.broadcast %857 : vector<1x32xf32> to vector<8x32xf32>
    %859 = arith.addf %856, %858 : vector<8x32xf32>
    %860 = arith.negf %859 : vector<8x32xf32>
    %861 = math.exp %860 : vector<8x32xf32>
    %cst_188 = arith.constant 1.000000e+00 : f32
    %862 = vector.broadcast %cst_188 : f32 to vector<8x32xf32>
    %863 = arith.addf %862, %861 : vector<8x32xf32>
    %864 = arith.divf %862, %863 : vector<8x32xf32>
    %865 = arith.mulf %859, %864 : vector<8x32xf32>
    %c0_189 = arith.constant 0 : index
    %c0_190 = arith.constant 0 : index
    %866 = vector.load %arg28[%c0_189, %c0_190] : memref<32x32xf32, #tpu.memory_space<vmem>>, vector<32x32xf32>
    %cst_191 = arith.constant dense<0.000000e+00> : vector<8x32xf32>
    %867 = tpu.matmul %865, %866, %cst_191 {dimension_numbers = #tpu.dot_dimension_numbers<[1], [0], [0], [1], [0, 0, 1, 1], [], []>} : vector<8x32xf32>, vector<32x32xf32>, vector<8x32xf32> -> vector<8x32xf32>
    %c0_192 = arith.constant 0 : index
    %c0_193 = arith.constant 0 : index
    %868 = vector.load %arg29[%c0_192, %c0_193] : memref<1x32xf32, #tpu.memory_space<vmem>>, vector<1x32xf32>
    %869 = vector.broadcast %868 : vector<1x32xf32> to vector<8x32xf32>
    %870 = arith.addf %867, %869 : vector<8x32xf32>
    %871 = arith.addf %870, %745 : vector<8x32xf32>
    %c0_194 = arith.constant 0 : index
    %c0_195 = arith.constant 0 : index
    %872 = vector.load %arg30[%c0_194, %c0_195] : memref<1x32xf32, #tpu.memory_space<vmem>>, vector<1x32xf32>
    %c0_196 = arith.constant 0 : index
    %c0_197 = arith.constant 0 : index
    %873 = vector.load %arg31[%c0_196, %c0_197] : memref<1x32xf32, #tpu.memory_space<vmem>>, vector<1x32xf32>
    %cst_198 = arith.constant dense<0.000000e+00> : vector<8xf32>
    %874 = vector.multi_reduction <add>, %871, %cst_198 [1] : vector<8x32xf32> to vector<8xf32>
    %875 = vector.shape_cast %874 : vector<8xf32> to vector<8x1xf32>
    %cst_199 = arith.constant 3.200000e+01 : f32
    %876 = vector.broadcast %cst_199 : f32 to vector<8x1xf32>
    %877 = arith.divf %875, %876 : vector<8x1xf32>
    %878 = vector.broadcast %877 : vector<8x1xf32> to vector<8x32xf32>
    %879 = arith.subf %871, %878 : vector<8x32xf32>
    %880 = arith.mulf %879, %879 : vector<8x32xf32>
    %cst_200 = arith.constant dense<0.000000e+00> : vector<8xf32>
    %881 = vector.multi_reduction <add>, %880, %cst_200 [1] : vector<8x32xf32> to vector<8xf32>
    %882 = vector.shape_cast %881 : vector<8xf32> to vector<8x1xf32>
    %cst_201 = arith.constant 3.200000e+01 : f32
    %883 = vector.broadcast %cst_201 : f32 to vector<8x1xf32>
    %884 = arith.divf %882, %883 : vector<8x1xf32>
    %cst_202 = arith.constant 9.99999974E-6 : f32
    %885 = vector.broadcast %cst_202 : f32 to vector<8x1xf32>
    %886 = arith.addf %884, %885 : vector<8x1xf32>
    %887 = math.rsqrt %886 : vector<8x1xf32>
    %888 = vector.broadcast %887 : vector<8x1xf32> to vector<8x32xf32>
    %889 = arith.mulf %879, %888 : vector<8x32xf32>
    %890 = vector.broadcast %872 : vector<1x32xf32> to vector<8x32xf32>
    %891 = arith.mulf %889, %890 : vector<8x32xf32>
    %892 = vector.broadcast %873 : vector<1x32xf32> to vector<8x32xf32>
    %893 = arith.addf %891, %892 : vector<8x32xf32>
    %c0_203 = arith.constant 0 : index
    %c0_204 = arith.constant 0 : index
    %894 = vector.load %arg32[%c0_203, %c0_204] : memref<1x32xf32, #tpu.memory_space<vmem>>, vector<1x32xf32>
    %c0_205 = arith.constant 0 : index
    %c0_206 = arith.constant 0 : index
    %895 = vector.load %arg33[%c0_205, %c0_206] : memref<1x32xf32, #tpu.memory_space<vmem>>, vector<1x32xf32>
    %cst_207 = arith.constant dense<0.000000e+00> : vector<8xf32>
    %896 = vector.multi_reduction <add>, %893, %cst_207 [1] : vector<8x32xf32> to vector<8xf32>
    %897 = vector.shape_cast %896 : vector<8xf32> to vector<8x1xf32>
    %cst_208 = arith.constant 3.200000e+01 : f32
    %898 = vector.broadcast %cst_208 : f32 to vector<8x1xf32>
    %899 = arith.divf %897, %898 : vector<8x1xf32>
    %900 = vector.broadcast %899 : vector<8x1xf32> to vector<8x32xf32>
    %901 = arith.subf %893, %900 : vector<8x32xf32>
    %902 = arith.mulf %901, %901 : vector<8x32xf32>
    %cst_209 = arith.constant dense<0.000000e+00> : vector<8xf32>
    %903 = vector.multi_reduction <add>, %902, %cst_209 [1] : vector<8x32xf32> to vector<8xf32>
    %904 = vector.shape_cast %903 : vector<8xf32> to vector<8x1xf32>
    %cst_210 = arith.constant 3.200000e+01 : f32
    %905 = vector.broadcast %cst_210 : f32 to vector<8x1xf32>
    %906 = arith.divf %904, %905 : vector<8x1xf32>
    %cst_211 = arith.constant 9.99999974E-6 : f32
    %907 = vector.broadcast %cst_211 : f32 to vector<8x1xf32>
    %908 = arith.addf %906, %907 : vector<8x1xf32>
    %909 = math.rsqrt %908 : vector<8x1xf32>
    %910 = vector.broadcast %909 : vector<8x1xf32> to vector<8x32xf32>
    %911 = arith.mulf %901, %910 : vector<8x32xf32>
    %912 = vector.broadcast %894 : vector<1x32xf32> to vector<8x32xf32>
    %913 = arith.mulf %911, %912 : vector<8x32xf32>
    %914 = vector.broadcast %895 : vector<1x32xf32> to vector<8x32xf32>
    %915 = arith.addf %913, %914 : vector<8x32xf32>
    %c0_212 = arith.constant 0 : index
    %c0_213 = arith.constant 0 : index
    %916 = vector.load %arg34[%c0_212, %c0_213] : memref<32x128xf32, #tpu.memory_space<vmem>>, vector<32x128xf32>
    %cst_214 = arith.constant dense<0.000000e+00> : vector<8x128xf32>
    %917 = tpu.matmul %915, %916, %cst_214 {dimension_numbers = #tpu.dot_dimension_numbers<[1], [0], [0], [1], [0, 0, 1, 1], [], []>} : vector<8x32xf32>, vector<32x128xf32>, vector<8x128xf32> -> vector<8x128xf32>
    %c0_215 = arith.constant 0 : index
    %c0_216 = arith.constant 0 : index
    %918 = vector.load %arg35[%c0_215, %c0_216] : memref<1x128xf32, #tpu.memory_space<vmem>>, vector<1x128xf32>
    %919 = vector.broadcast %918 : vector<1x128xf32> to vector<8x128xf32>
    %920 = arith.addf %917, %919 : vector<8x128xf32>
    %921 = arith.negf %920 : vector<8x128xf32>
    %922 = math.exp %921 : vector<8x128xf32>
    %cst_217 = arith.constant 1.000000e+00 : f32
    %923 = vector.broadcast %cst_217 : f32 to vector<8x128xf32>
    %924 = arith.addf %923, %922 : vector<8x128xf32>
    %925 = arith.divf %923, %924 : vector<8x128xf32>
    %926 = arith.mulf %920, %925 : vector<8x128xf32>
    %c0_218 = arith.constant 0 : index
    %c0_219 = arith.constant 0 : index
    %927 = vector.load %arg36[%c0_218, %c0_219] : memref<128x32xf32, #tpu.memory_space<vmem>>, vector<128x32xf32>
    %cst_220 = arith.constant dense<0.000000e+00> : vector<8x32xf32>
    %928 = tpu.matmul %926, %927, %cst_220 {dimension_numbers = #tpu.dot_dimension_numbers<[1], [0], [0], [1], [0, 0, 1, 1], [], []>} : vector<8x128xf32>, vector<128x32xf32>, vector<8x32xf32> -> vector<8x32xf32>
    %c0_221 = arith.constant 0 : index
    %c0_222 = arith.constant 0 : index
    %929 = vector.load %arg37[%c0_221, %c0_222] : memref<1x32xf32, #tpu.memory_space<vmem>>, vector<1x32xf32>
    %930 = vector.broadcast %929 : vector<1x32xf32> to vector<8x32xf32>
    %931 = arith.addf %928, %930 : vector<8x32xf32>
    %932 = arith.addf %931, %893 : vector<8x32xf32>
    %c0_223 = arith.constant 0 : index
    %c0_224 = arith.constant 0 : index
    %933 = vector.load %arg38[%c0_223, %c0_224] : memref<1x32xf32, #tpu.memory_space<vmem>>, vector<1x32xf32>
    %c0_225 = arith.constant 0 : index
    %c0_226 = arith.constant 0 : index
    %934 = vector.load %arg39[%c0_225, %c0_226] : memref<1x32xf32, #tpu.memory_space<vmem>>, vector<1x32xf32>
    %cst_227 = arith.constant dense<0.000000e+00> : vector<8xf32>
    %935 = vector.multi_reduction <add>, %932, %cst_227 [1] : vector<8x32xf32> to vector<8xf32>
    %936 = vector.shape_cast %935 : vector<8xf32> to vector<8x1xf32>
    %cst_228 = arith.constant 3.200000e+01 : f32
    %937 = vector.broadcast %cst_228 : f32 to vector<8x1xf32>
    %938 = arith.divf %936, %937 : vector<8x1xf32>
    %939 = vector.broadcast %938 : vector<8x1xf32> to vector<8x32xf32>
    %940 = arith.subf %932, %939 : vector<8x32xf32>
    %941 = arith.mulf %940, %940 : vector<8x32xf32>
    %cst_229 = arith.constant dense<0.000000e+00> : vector<8xf32>
    %942 = vector.multi_reduction <add>, %941, %cst_229 [1] : vector<8x32xf32> to vector<8xf32>
    %943 = vector.shape_cast %942 : vector<8xf32> to vector<8x1xf32>
    %cst_230 = arith.constant 3.200000e+01 : f32
    %944 = vector.broadcast %cst_230 : f32 to vector<8x1xf32>
    %945 = arith.divf %943, %944 : vector<8x1xf32>
    %cst_231 = arith.constant 9.99999974E-6 : f32
    %946 = vector.broadcast %cst_231 : f32 to vector<8x1xf32>
    %947 = arith.addf %945, %946 : vector<8x1xf32>
    %948 = math.rsqrt %947 : vector<8x1xf32>
    %949 = vector.broadcast %948 : vector<8x1xf32> to vector<8x32xf32>
    %950 = arith.mulf %940, %949 : vector<8x32xf32>
    %951 = vector.broadcast %933 : vector<1x32xf32> to vector<8x32xf32>
    %952 = arith.mulf %950, %951 : vector<8x32xf32>
    %953 = vector.broadcast %934 : vector<1x32xf32> to vector<8x32xf32>
    %954 = arith.addf %952, %953 : vector<8x32xf32>
    %c0_232 = arith.constant 0 : index
    %c0_233 = arith.constant 0 : index
    %c0_234 = arith.constant 0 : index
    %955 = vector.load %arg40[%c0_232, %c0_233, %c0_234] : memref<1x8x32xf32, #tpu.memory_space<vmem>>, vector<1x8x32xf32>
    %956 = vector.shape_cast %955 : vector<1x8x32xf32> to vector<8x32xf32>
    %957 = vector.shape_cast %954 : vector<8x32xf32> to vector<1x8x32xf32>
    tpu.vector_store %arg40[%c0_232, %c0_233, %c0_234], %957 {strides = array<i32>} : memref<1x8x32xf32, #tpu.memory_space<vmem>>, vector<1x8x32xf32>,
    return
  }
  func.func @transform_0(%arg0: i32) -> (i32, i32, i32) {
    %c0_i32 = arith.constant 0 : i32
    %c0_i32_0 = arith.constant 0 : i32
    %c0_i32_1 = arith.constant 0 : i32
    return %arg0, %c0_i32, %c0_i32_0 : i32, i32, i32
  }
  func.func @transform_1(%arg0: i32) -> (i32, i32) {
    %c0_i32 = arith.constant 0 : i32
    %c0_i32_0 = arith.constant 0 : i32
    %c0_i32_1 = arith.constant 0 : i32
    return %c0_i32, %c0_i32_0 : i32, i32
  }
  func.func @transform_2(%arg0: i32) -> (i32, i32) {
    %c0_i32 = arith.constant 0 : i32
    %c0_i32_0 = arith.constant 0 : i32
    %c0_i32_1 = arith.constant 0 : i32
    return %c0_i32, %c0_i32_0 : i32, i32
  }
  func.func @transform_3(%arg0: i32) -> (i32, i32) {
    %c0_i32 = arith.constant 0 : i32
    %c0_i32_0 = arith.constant 0 : i32
    %c0_i32_1 = arith.constant 0 : i32
    return %c0_i32, %c0_i32_0 : i32, i32
  }
  func.func @transform_4(%arg0: i32) -> (i32, i32) {
    %c0_i32 = arith.constant 0 : i32
    %c0_i32_0 = arith.constant 0 : i32
    %c0_i32_1 = arith.constant 0 : i32
    return %c0_i32, %c0_i32_0 : i32, i32
  }
  func.func @transform_5(%arg0: i32) -> (i32, i32) {
    %c0_i32 = arith.constant 0 : i32
    %c0_i32_0 = arith.constant 0 : i32
    %c0_i32_1 = arith.constant 0 : i32
    return %c0_i32, %c0_i32_0 : i32, i32
  }
  func.func @transform_6(%arg0: i32) -> (i32, i32) {
    %c0_i32 = arith.constant 0 : i32
    %c0_i32_0 = arith.constant 0 : i32
    %c0_i32_1 = arith.constant 0 : i32
    return %c0_i32, %c0_i32_0 : i32, i32
  }
  func.func @transform_7(%arg0: i32) -> (i32, i32) {
    %c0_i32 = arith.constant 0 : i32
    %c0_i32_0 = arith.constant 0 : i32
    %c0_i32_1 = arith.constant 0 : i32
    return %c0_i32, %c0_i32_0 : i32, i32
  }
  func.func @transform_8(%arg0: i32) -> (i32, i32) {
    %c0_i32 = arith.constant 0 : i32
    %c0_i32_0 = arith.constant 0 : i32
    %c0_i32_1 = arith.constant 0 : i32
    return %c0_i32, %c0_i32_0 : i32, i32
  }
  func.func @transform_9(%arg0: i32) -> (i32, i32) {
    %c0_i32 = arith.constant 0 : i32
    %c0_i32_0 = arith.constant 0 : i32
    %c0_i32_1 = arith.constant 0 : i32
    return %c0_i32, %c0_i32_0 : i32, i32
  }
  func.func @transform_10(%arg0: i32) -> (i32, i32) {
    %c0_i32 = arith.constant 0 : i32
    %c0_i32_0 = arith.constant 0 : i32
    %c0_i32_1 = arith.constant 0 : i32
    return %c0_i32, %c0_i32_0 : i32, i32
  }
  func.func @transform_11(%arg0: i32) -> (i32, i32) {
    %c0_i32 = arith.constant 0 : i32
    %c0_i32_0 = arith.constant 0 : i32
    %c0_i32_1 = arith.constant 0 : i32
    return %c0_i32, %c0_i32_0 : i32, i32
  }
  func.func @transform_12(%arg0: i32) -> (i32, i32) {
    %c0_i32 = arith.constant 0 : i32
    %c0_i32_0 = arith.constant 0 : i32
    %c0_i32_1 = arith.constant 0 : i32
    return %c0_i32, %c0_i32_0 : i32, i32
  }
  func.func @transform_13(%arg0: i32) -> (i32, i32) {
    %c0_i32 = arith.constant 0 : i32
    %c0_i32_0 = arith.constant 0 : i32
    %c0_i32_1 = arith.constant 0 : i32
    return %c0_i32, %c0_i32_0 : i32, i32
  }
  func.func @transform_14(%arg0: i32) -> (i32, i32) {
    %c0_i32 = arith.constant 0 : i32
    %c0_i32_0 = arith.constant 0 : i32
    %c0_i32_1 = arith.constant 0 : i32
    return %c0_i32, %c0_i32_0 : i32, i32
  }
  func.func @transform_15(%arg0: i32) -> (i32, i32) {
    %c0_i32 = arith.constant 0 : i32
    %c0_i32_0 = arith.constant 0 : i32
    %c0_i32_1 = arith.constant 0 : i32
    return %c0_i32, %c0_i32_0 : i32, i32
  }
  func.func @transform_16(%arg0: i32) -> (i32, i32) {
    %c0_i32 = arith.constant 0 : i32
    %c0_i32_0 = arith.constant 0 : i32
    %c0_i32_1 = arith.constant 0 : i32
    return %c0_i32, %c0_i32_0 : i32, i32
  }
  func.func @transform_17(%arg0: i32) -> (i32, i32) {
    %c0_i32 = arith.constant 0 : i32
    %c0_i32_0 = arith.constant 0 : i32
    %c0_i32_1 = arith.constant 0 : i32
    return %c0_i32, %c0_i32_0 : i32, i32
  }
  func.func @transform_18(%arg0: i32) -> (i32, i32) {
    %c0_i32 = arith.constant 0 : i32
    %c0_i32_0 = arith.constant 0 : i32
    %c0_i32_1 = arith.constant 0 : i32
    return %c0_i32, %c0_i32_0 : i32, i32
  }
  func.func @transform_19(%arg0: i32) -> (i32, i32) {
    %c0_i32 = arith.constant 0 : i32
    %c0_i32_0 = arith.constant 0 : i32
    %c0_i32_1 = arith.constant 0 : i32
    return %c0_i32, %c0_i32_0 : i32, i32
  }
  func.func @transform_20(%arg0: i32) -> (i32, i32) {
    %c0_i32 = arith.constant 0 : i32
    %c0_i32_0 = arith.constant 0 : i32
    %c0_i32_1 = arith.constant 0 : i32
    return %c0_i32, %c0_i32_0 : i32, i32
  }
  func.func @transform_21(%arg0: i32) -> (i32, i32) {
    %c0_i32 = arith.constant 0 : i32
    %c0_i32_0 = arith.constant 0 : i32
    %c0_i32_1 = arith.constant 0 : i32
    return %c0_i32, %c0_i32_0 : i32, i32
  }
  func.func @transform_22(%arg0: i32) -> (i32, i32) {
    %c0_i32 = arith.constant 0 : i32
    %c0_i32_0 = arith.constant 0 : i32
    %c0_i32_1 = arith.constant 0 : i32
    return %c0_i32, %c0_i32_0 : i32, i32
  }
  func.func @transform_23(%arg0: i32) -> (i32, i32) {
    %c0_i32 = arith.constant 0 : i32
    %c0_i32_0 = arith.constant 0 : i32
    %c0_i32_1 = arith.constant 0 : i32
    return %c0_i32, %c0_i32_0 : i32, i32
  }
  func.func @transform_24(%arg0: i32) -> (i32, i32) {
    %c0_i32 = arith.constant 0 : i32
    %c0_i32_0 = arith.constant 0 : i32
    %c0_i32_1 = arith.constant 0 : i32
    return %c0_i32, %c0_i32_0 : i32, i32
  }
  func.func @transform_25(%arg0: i32) -> (i32, i32) {
    %c0_i32 = arith.constant 0 : i32
    %c0_i32_0 = arith.constant 0 : i32
    %c0_i32_1 = arith.constant 0 : i32
    return %c0_i32, %c0_i32_0 : i32, i32
  }
  func.func @transform_26(%arg0: i32) -> (i32, i32) {
    %c0_i32 = arith.constant 0 : i32
    %c0_i32_0 = arith.constant 0 : i32
    %c0_i32_1 = arith.constant 0 : i32
    return %c0_i32, %c0_i32_0 : i32, i32
  }
  func.func @transform_27(%arg0: i32) -> (i32, i32) {
    %c0_i32 = arith.constant 0 : i32
    %c0_i32_0 = arith.constant 0 : i32
    %c0_i32_1 = arith.constant 0 : i32
    return %c0_i32, %c0_i32_0 : i32, i32
  }
  func.func @transform_28(%arg0: i32) -> (i32, i32) {
    %c0_i32 = arith.constant 0 : i32
    %c0_i32_0 = arith.constant 0 : i32
    %c0_i32_1 = arith.constant 0 : i32
    return %c0_i32, %c0_i32_0 : i32, i32
  }
  func.func @transform_29(%arg0: i32) -> (i32, i32) {
    %c0_i32 = arith.constant 0 : i32
    %c0_i32_0 = arith.constant 0 : i32
    %c0_i32_1 = arith.constant 0 : i32
    return %c0_i32, %c0_i32_0 : i32, i32
  }
  func.func @transform_30(%arg0: i32) -> (i32, i32) {
    %c0_i32 = arith.constant 0 : i32
    %c0_i32_0 = arith.constant 0 : i32
    %c0_i32_1 = arith.constant 0 : i32
    return %c0_i32, %c0_i32_0 : i32, i32
  }
  func.func @transform_31(%arg0: i32) -> (i32, i32) {
    %c0_i32 = arith.constant 0 : i32
    %c0_i32_0 = arith.constant 0 : i32
    %c0_i32_1 = arith.constant 0 : i32
    return %c0_i32, %c0_i32_0 : i32, i32
  }
  func.func @transform_32(%arg0: i32) -> (i32, i32) {
    %c0_i32 = arith.constant 0 : i32
    %c0_i32_0 = arith.constant 0 : i32
    %c0_i32_1 = arith.constant 0 : i32
    return %c0_i32, %c0_i32_0 : i32, i32
  }
  func.func @transform_33(%arg0: i32) -> (i32, i32) {
    %c0_i32 = arith.constant 0 : i32
    %c0_i32_0 = arith.constant 0 : i32
    %c0_i32_1 = arith.constant 0 : i32
    return %c0_i32, %c0_i32_0 : i32, i32
  }
  func.func @transform_34(%arg0: i32) -> (i32, i32) {
    %c0_i32 = arith.constant 0 : i32
    %c0_i32_0 = arith.constant 0 : i32
    %c0_i32_1 = arith.constant 0 : i32
    return %c0_i32, %c0_i32_0 : i32, i32
  }
  func.func @transform_35(%arg0: i32) -> (i32, i32) {
    %c0_i32 = arith.constant 0 : i32
    %c0_i32_0 = arith.constant 0 : i32
    %c0_i32_1 = arith.constant 0 : i32
    return %c0_i32, %c0_i32_0 : i32, i32
  }
  func.func @transform_36(%arg0: i32) -> (i32, i32) {
    %c0_i32 = arith.constant 0 : i32
    %c0_i32_0 = arith.constant 0 : i32
    %c0_i32_1 = arith.constant 0 : i32
    return %c0_i32, %c0_i32_0 : i32, i32
  }
  func.func @transform_37(%arg0: i32) -> (i32, i32) {
    %c0_i32 = arith.constant 0 : i32
    %c0_i32_0 = arith.constant 0 : i32
    %c0_i32_1 = arith.constant 0 : i32
    return %c0_i32, %c0_i32_0 : i32, i32
  }
  func.func @transform_38(%arg0: i32) -> (i32, i32) {
    %c0_i32 = arith.constant 0 : i32
    %c0_i32_0 = arith.constant 0 : i32
    %c0_i32_1 = arith.constant 0 : i32
    return %c0_i32, %c0_i32_0 : i32, i32
  }
  func.func @transform_39(%arg0: i32) -> (i32, i32, i32) {
    %c0_i32 = arith.constant 0 : i32
    %c0_i32_0 = arith.constant 0 : i32
    %c0_i32_1 = arith.constant 0 : i32
    return %arg0, %c0_i32, %c0_i32_0 : i32, i32, i32
  }
}

</mosaic_0001>

<llo_original>
// kernel: _lambda_.1
$region0: #{_lambda_.1}
  #allocation0 [shape = 'u32[]', space=smem, size = 0x4, offset = 0x4, fixed_abs, tag = 'smem constant byte address 0x4 - core index']
  #allocation1 [shape = 'u32[144,128]{1,0:T(1,128)}', space=vmem, size = 0x12000, scoped, tag = 'internal scratch']
  %s0 = inlined_call_operand.smem [shape: u32[40], index: -1, kind: input, shape index: {}]
  %s1 = sld [smem:[%s0]]
  %s2 = scalar_lea.smem %s0, 1
  %s3 = sld [smem:[%s2]]
  %s4 = scalar_lea.smem %s0, 2
  %s5 = sld [smem:[%s4]]
  %s6 = scalar_lea.smem %s0, 3
  %s7 = sld [smem:[%s6]]
  %s8 = scalar_lea.smem %s0, 4
  %s9 = sld [smem:[%s8]]
  %s10 = scalar_lea.smem %s0, 5
  %s11 = sld [smem:[%s10]]
  %s12 = scalar_lea.smem %s0, 6
  %s13 = sld [smem:[%s12]]
  %s14 = scalar_lea.smem %s0, 7
  %s15 = sld [smem:[%s14]]
  %s16 = scalar_lea.smem %s0, 8
  %s17 = sld [smem:[%s16]]
  %s18 = scalar_lea.smem %s0, 9
  %s19 = sld [smem:[%s18]]
  %s20 = scalar_lea.smem %s0, 10
  %s21 = sld [smem:[%s20]]
  %s22 = scalar_lea.smem %s0, 11
  %s23 = sld [smem:[%s22]]
  %s24 = scalar_lea.smem %s0, 12
  %s25 = sld [smem:[%s24]]
  %s26 = scalar_lea.smem %s0, 13
  %s27 = sld [smem:[%s26]]
  %s28 = scalar_lea.smem %s0, 14
  %s29 = sld [smem:[%s28]]
  %s30 = scalar_lea.smem %s0, 15
  %s31 = sld [smem:[%s30]]
  %s32 = scalar_lea.smem %s0, 16
  %s33 = sld [smem:[%s32]]
  %s34 = scalar_lea.smem %s0, 17
  %s35 = sld [smem:[%s34]]
  %s36 = scalar_lea.smem %s0, 18
  %s37 = sld [smem:[%s36]]
  %s38 = scalar_lea.smem %s0, 19
  %s39 = sld [smem:[%s38]]
  %s40 = scalar_lea.smem %s0, 20
  %s41 = sld [smem:[%s40]]
  %s42 = scalar_lea.smem %s0, 21
  %s43 = sld [smem:[%s42]]
  %s44 = scalar_lea.smem %s0, 22
  %s45 = sld [smem:[%s44]]
  %s46 = scalar_lea.smem %s0, 23
  %s47 = sld [smem:[%s46]]
  %s48 = scalar_lea.smem %s0, 24
  %s49 = sld [smem:[%s48]]
  %s50 = scalar_lea.smem %s0, 25
  %s51 = sld [smem:[%s50]]
  %s52 = scalar_lea.smem %s0, 26
  %s53 = sld [smem:[%s52]]
  %s54 = scalar_lea.smem %s0, 27
  %s55 = sld [smem:[%s54]]
  %s56 = scalar_lea.smem %s0, 28
  %s57 = sld [smem:[%s56]]
  %s58 = scalar_lea.smem %s0, 29
  %s59 = sld [smem:[%s58]]
  %s60 = scalar_lea.smem %s0, 30
  %s61 = sld [smem:[%s60]]
  %s62 = scalar_lea.smem %s0, 31
  %s63 = sld [smem:[%s62]]
  %s64 = scalar_lea.smem %s0, 32
  %s65 = sld [smem:[%s64]]
  %s66 = scalar_lea.smem %s0, 33
  %s67 = sld [smem:[%s66]]
  %s68 = scalar_lea.smem %s0, 34
  %s69 = sld [smem:[%s68]]
  %s70 = scalar_lea.smem %s0, 35
  %s71 = sld [smem:[%s70]]
  %s72 = scalar_lea.smem %s0, 36
  %s73 = sld [smem:[%s72]]
  %s74 = scalar_lea.smem %s0, 37
  %s75 = sld [smem:[%s74]]
  %s76 = scalar_lea.smem %s0, 38
  %s77 = sld [smem:[%s76]]
  %s78 = scalar_lea.smem %s0, 39
  %s79 = sld [smem:[%s78]]
  %s80 = sld [smem:[#allocation0]]
  $region229: #{_lambda_.1} parent=0
    _
  %s82 = ssub.s32 1, %s80
  %s83 = scalar_select 0, %s82, %s80
  $region1: #{_lambda_.1} parent=0
    #allocation2 [shape = 'u8[8192]{0}', space=vmem, size = 0x2000, scoped, tag = 'input window, operand 0']
    #allocation3 [shape = 's32[2]{0}', space=sflag, size = 0x8, scoped, tag = 'scoped memory for _lambda_.1']
    #allocation4 [shape = 's32[2]{0}', space=sflag, size = 0x8, scoped, tag = 'scoped memory for _lambda_.1']
    #allocation5 [shape = 'u8[16384]{0}', space=vmem, size = 0x4000, scoped, tag = 'input window, operand 3, single buffered']
    #allocation6 [shape = 's32[1]{0}', space=sflag, size = 0x4, scoped, tag = 'scoped memory for _lambda_.1']
    #allocation7 [shape = 'u8[65536]{0}', space=vmem, size = 0x10000, scoped, tag = 'input window, operand 5, single buffered']
    #allocation8 [shape = 'u8[16384]{0}', space=vmem, size = 0x4000, scoped, tag = 'input window, operand 11, single buffered']
    #allocation9 [shape = 's32[1]{0}', space=sflag, size = 0x4, scoped, tag = 'scoped memory for _lambda_.1']
    #allocation10 [shape = 'u8[4096]{0}', space=vmem, size = 0x1000, scoped, tag = 'input window, operand 13, single buffered']
    #allocation11 [shape = 'u8[16384]{0}', space=vmem, size = 0x4000, scoped, tag = 'input window, operand 16, single buffered']
    #allocation12 [shape = 's32[1]{0}', space=sflag, size = 0x4, scoped, tag = 'scoped memory for _lambda_.1']
    #allocation13 [shape = 'u8[16384]{0}', space=vmem, size = 0x4000, scoped, tag = 'input window, operand 22, single buffered']
    #allocation14 [shape = 'u8[4096]{0}', space=vmem, size = 0x1000, scoped, tag = 'input window, operand 24, single buffered']
    #allocation15 [shape = 's32[1]{0}', space=sflag, size = 0x4, scoped, tag = 'scoped memory for _lambda_.1']
    #allocation16 [shape = 'u8[16384]{0}', space=vmem, size = 0x4000, scoped, tag = 'input window, operand 27, single buffered']
    #allocation17 [shape = 'u8[65536]{0}', space=vmem, size = 0x10000, scoped, tag = 'input window, operand 35, single buffered']
    #allocation18 [shape = 's32[1]{0}', space=sflag, size = 0x4, scoped, tag = 'scoped memory for _lambda_.1']
    #allocation19 [shape = 'u8[8192]{0}', space=vmem, size = 0x2000, scoped, tag = 'output window, operand 0']
    %84 = vsyncpa [#allocation3], 0
    %s85 = scalar_lea.sflag [#allocation3], 1
    %86 = vsyncpa %s85, 0
    %87 = vsyncpa [#allocation6], 0
    %88 = vsyncpa [#allocation9], 0
    %89 = vsyncpa [#allocation12], 0
    %90 = vsyncpa [#allocation15], 0
    %91 = vsyncpa [#allocation18], 0
    %92 = vsyncpa [#allocation4], 0
    %s93 = scalar_lea.sflag [#allocation4], 1
    %94 = vsyncpa %s93, 0
    loop: start=0, step=1, limit=4
    $region2: #{_lambda_.1} parent=1 // loop_pre_header
      _
    $region3: #{_lambda_.1} parent=1 // loop_header
      %s96 = sphi 0, %s100
      %p97 = scmp.ge.s32.totalorder %s96, 4
      %s106 = sphi 0, %s108
      %s109 = sphi 0, %s106
      %s110 = sphi 0, %s109
      %s126 = sphi 0, %s110
      %s130 = sphi 0, %s130
      %s132 = sphi 0, %s130
      %s133 = sphi 0, %s132
      %s147 = sphi 0, %s133
      %s151 = sphi 0, %s151
      %s153 = sphi 0, %s151
      %s154 = sphi 0, %s153
      %s168 = sphi 0, %s154
      %s172 = sphi 0, %s172
      %s174 = sphi 0, %s172
      %s175 = sphi 0, %s174
      %s189 = sphi 0, %s175
      %s193 = sphi 0, %s193
      %s195 = sphi 0, %s193
      %s196 = sphi 0, %s195
      %s210 = sphi 0, %s196
      %s214 = sphi 0, %s214
      %s216 = sphi 0, %s214
      %s217 = sphi 0, %s216
      %s231 = sphi 0, %s217
      %s235 = sphi 0, %s235
      %s237 = sphi 0, %s235
      %s238 = sphi 0, %s237
      %s252 = sphi 0, %s238
      %s256 = sphi 0, %s256
      %s258 = sphi 0, %s256
      %s259 = sphi 0, %s258
      %s273 = sphi 0, %s259
      %s277 = sphi 0, %s277
      %s279 = sphi 0, %s277
      %s280 = sphi 0, %s279
      %s294 = sphi 0, %s280
      %s298 = sphi 0, %s298
      %s300 = sphi 0, %s298
      %s301 = sphi 0, %s300
      %s315 = sphi 0, %s301
      %s319 = sphi 0, %s319
      %s321 = sphi 0, %s319
      %s322 = sphi 0, %s321
      %s336 = sphi 0, %s322
      %s340 = sphi 0, %s340
      %s342 = sphi 0, %s340
      %s343 = sphi 0, %s342
      %s357 = sphi 0, %s343
      %s361 = sphi 0, %s361
      %s363 = sphi 0, %s361
      %s364 = sphi 0, %s363
      %s378 = sphi 0, %s364
      %s382 = sphi 0, %s382
      %s384 = sphi 0, %s382
      %s385 = sphi 0, %s384
      %s399 = sphi 0, %s385
      %s403 = sphi 0, %s403
      %s405 = sphi 0, %s403
      %s406 = sphi 0, %s405
      %s420 = sphi 0, %s406
      %s424 = sphi 0, %s424
      %s426 = sphi 0, %s424
      %s427 = sphi 0, %s426
      %s441 = sphi 0, %s427
      %s445 = sphi 0, %s445
      %s447 = sphi 0, %s445
      %s448 = sphi 0, %s447
      %s462 = sphi 0, %s448
      %s466 = sphi 0, %s466
      %s468 = sphi 0, %s466
      %s469 = sphi 0, %s468
      %s483 = sphi 0, %s469
      %s487 = sphi 0, %s487
      %s489 = sphi 0, %s487
      %s490 = sphi 0, %s489
      %s504 = sphi 0, %s490
      %s508 = sphi 0, %s508
      %s510 = sphi 0, %s508
      %s511 = sphi 0, %s510
      %s525 = sphi 0, %s511
      %s529 = sphi 0, %s529
      %s531 = sphi 0, %s529
      %s532 = sphi 0, %s531
      %s546 = sphi 0, %s532
      %s550 = sphi 0, %s550
      %s552 = sphi 0, %s550
      %s553 = sphi 0, %s552
      %s567 = sphi 0, %s553
      %s571 = sphi 0, %s571
      %s573 = sphi 0, %s571
      %s574 = sphi 0, %s573
      %s588 = sphi 0, %s574
      %s592 = sphi 0, %s592
      %s594 = sphi 0, %s592
      %s595 = sphi 0, %s594
      %s609 = sphi 0, %s595
      %s613 = sphi 0, %s613
      %s615 = sphi 0, %s613
      %s616 = sphi 0, %s615
      %s630 = sphi 0, %s616
      %s634 = sphi 0, %s634
      %s636 = sphi 0, %s634
      %s637 = sphi 0, %s636
      %s651 = sphi 0, %s637
      %s655 = sphi 0, %s655
      %s657 = sphi 0, %s655
      %s658 = sphi 0, %s657
      %s672 = sphi 0, %s658
      %s676 = sphi 0, %s676
      %s678 = sphi 0, %s676
      %s679 = sphi 0, %s678
      %s693 = sphi 0, %s679
      %s697 = sphi 0, %s697
      %s699 = sphi 0, %s697
      %s700 = sphi 0, %s699
      %s714 = sphi 0, %s700
      %s718 = sphi 0, %s718
      %s720 = sphi 0, %s718
      %s721 = sphi 0, %s720
      %s735 = sphi 0, %s721
      %s739 = sphi 0, %s739
      %s741 = sphi 0, %s739
      %s742 = sphi 0, %s741
      %s756 = sphi 0, %s742
      %s760 = sphi 0, %s760
      %s762 = sphi 0, %s760
      %s763 = sphi 0, %s762
      %s777 = sphi 0, %s763
      %s781 = sphi 0, %s781
      %s783 = sphi 0, %s781
      %s784 = sphi 0, %s783
      %s798 = sphi 0, %s784
      %s802 = sphi 0, %s802
      %s804 = sphi 0, %s802
      %s805 = sphi 0, %s804
      %s819 = sphi 0, %s805
      %s823 = sphi 0, %s823
      %s825 = sphi 0, %s823
      %s826 = sphi 0, %s825
      %s840 = sphi 0, %s826
      %s844 = sphi 0, %s844
      %s846 = sphi 0, %s844
      %s847 = sphi 0, %s846
      %s861 = sphi 0, %s847
      %s865 = sphi 0, %s865
      %s867 = sphi 0, %s865
      %s868 = sphi 0, %s867
      %s882 = sphi 0, %s868
      %s886 = sphi 0, %s886
      %s888 = sphi 0, %s886
      %s889 = sphi 0, %s888
      %s903 = sphi 0, %s889
      %s907 = sphi 0, %s907
      %s909 = sphi 0, %s907
      %s910 = sphi 0, %s909
      %s924 = sphi 0, %s910
      %s930 = sphi 0, %s932
      %s933 = sphi 0, %s930
      %s934 = sphi 0, %s933
      %s950 = sphi 0, %s934
    $region4: #{_lambda_.1} parent=1 // loop_header_branch
      %99 = sbr.rel (%p97) target = $region8
    $region5: #{_lambda_.1} parent=1 // loop_body
      %s101 = ssub.s32 %s96, 1
      %s102 = ssub.s32 %s96, 2
      %s103 = sadd.s32 %s96, 1
      %s104 = ssub.s32 %s96, %s103
      %p105 = scmp.eq.s32.totalorder %s104, 0
      %s107 = sadd.s32 %s106, 1
      %s108 = scalar_select %p105, %s106, %s107
      %p111 = pneg %p105
      %p112 = scmp.eq.s32.totalorder %s96, 1
      %p113 = por %p111, %p112
      %p114 = scmp.ne.s32.totalorder %s106, %s109
      %p115 = scmp.eq.s32.totalorder %s96, 0
      %p116 = por %p114, %p115
      %p117 = scmp.ne.s32.totalorder %s106, %s109
      %p118 = scmp.eq.s32.totalorder %s101, 1
      %p119 = por %p117, %p118
      %p120 = scmp.ne.s32.totalorder %s109, %s110
      %p121 = scmp.eq.s32.totalorder %s101, 0
      %p122 = por %p120, %p121
      %p123 = scmp.ne.s32.totalorder %s109, %s110
      %p124 = scmp.eq.s32.totalorder %s102, 1
      %p125 = por %p123, %p124
      %p127 = scmp.ne.s32.totalorder %s110, %s126
      %p128 = scmp.eq.s32.totalorder %s102, 0
      %p129 = por %p127, %p128
      %s131 = sadd.s32 %s130, 1
      %p134 = scmp.eq.s32.totalorder %s96, 1
      %p135 = scmp.ne.s32.totalorder %s130, %s132
      %p136 = scmp.eq.s32.totalorder %s96, 0
      %p137 = por %p135, %p136
      %p138 = scmp.ne.s32.totalorder %s130, %s132
      %p139 = scmp.eq.s32.totalorder %s101, 1
      %p140 = por %p138, %p139
      %p141 = scmp.ne.s32.totalorder %s132, %s133
      %p142 = scmp.eq.s32.totalorder %s101, 0
      %p143 = por %p141, %p142
      %p144 = scmp.ne.s32.totalorder %s132, %s133
      %p145 = scmp.eq.s32.totalorder %s102, 1
      %p146 = por %p144, %p145
      %p148 = scmp.ne.s32.totalorder %s133, %s147
      %p149 = scmp.eq.s32.totalorder %s102, 0
      %p150 = por %p148, %p149
      %s152 = sadd.s32 %s151, 1
      %p155 = scmp.eq.s32.totalorder %s96, 1
      %p156 = scmp.ne.s32.totalorder %s151, %s153
      %p157 = scmp.eq.s32.totalorder %s96, 0
      %p158 = por %p156, %p157
      %p159 = scmp.ne.s32.totalorder %s151, %s153
      %p160 = scmp.eq.s32.totalorder %s101, 1
      %p161 = por %p159, %p160
      %p162 = scmp.ne.s32.totalorder %s153, %s154
      %p163 = scmp.eq.s32.totalorder %s101, 0
      %p164 = por %p162, %p163
      %p165 = scmp.ne.s32.totalorder %s153, %s154
      %p166 = scmp.eq.s32.totalorder %s102, 1
      %p167 = por %p165, %p166
      %p169 = scmp.ne.s32.totalorder %s154, %s168
      %p170 = scmp.eq.s32.totalorder %s102, 0
      %p171 = por %p169, %p170
      %s173 = sadd.s32 %s172, 1
      %p176 = scmp.eq.s32.totalorder %s96, 1
      %p177 = scmp.ne.s32.totalorder %s172, %s174
      %p178 = scmp.eq.s32.totalorder %s96, 0
      %p179 = por %p177, %p178
      %p180 = scmp.ne.s32.totalorder %s172, %s174
      %p181 = scmp.eq.s32.totalorder %s101, 1
      %p182 = por %p180, %p181
      %p183 = scmp.ne.s32.totalorder %s174, %s175
      %p184 = scmp.eq.s32.totalorder %s101, 0
      %p185 = por %p183, %p184
      %p186 = scmp.ne.s32.totalorder %s174, %s175
      %p187 = scmp.eq.s32.totalorder %s102, 1
      %p188 = por %p186, %p187
      %p190 = scmp.ne.s32.totalorder %s175, %s189
      %p191 = scmp.eq.s32.totalorder %s102, 0
      %p192 = por %p190, %p191
      %s194 = sadd.s32 %s193, 1
      %p197 = scmp.eq.s32.totalorder %s96, 1
      %p198 = scmp.ne.s32.totalorder %s193, %s195
      %p199 = scmp.eq.s32.totalorder %s96, 0
      %p200 = por %p198, %p199
      %p201 = scmp.ne.s32.totalorder %s193, %s195
      %p202 = scmp.eq.s32.totalorder %s101, 1
      %p203 = por %p201, %p202
      %p204 = scmp.ne.s32.totalorder %s195, %s196
      %p205 = scmp.eq.s32.totalorder %s101, 0
      %p206 = por %p204, %p205
      %p207 = scmp.ne.s32.totalorder %s195, %s196
      %p208 = scmp.eq.s32.totalorder %s102, 1
      %p209 = por %p207, %p208
      %p211 = scmp.ne.s32.totalorder %s196, %s210
      %p212 = scmp.eq.s32.totalorder %s102, 0
      %p213 = por %p211, %p212
      %s215 = sadd.s32 %s214, 1
      %p218 = scmp.eq.s32.totalorder %s96, 1
      %p219 = scmp.ne.s32.totalorder %s214, %s216
      %p220 = scmp.eq.s32.totalorder %s96, 0
      %p221 = por %p219, %p220
      %p222 = scmp.ne.s32.totalorder %s214, %s216
      %p223 = scmp.eq.s32.totalorder %s101, 1
      %p224 = por %p222, %p223
      %p225 = scmp.ne.s32.totalorder %s216, %s217
      %p226 = scmp.eq.s32.totalorder %s101, 0
      %p227 = por %p225, %p226
      %p228 = scmp.ne.s32.totalorder %s216, %s217
      %p229 = scmp.eq.s32.totalorder %s102, 1
      %p230 = por %p228, %p229
      %p232 = scmp.ne.s32.totalorder %s217, %s231
      %p233 = scmp.eq.s32.totalorder %s102, 0
      %p234 = por %p232, %p233
      %s236 = sadd.s32 %s235, 1
      %p239 = scmp.eq.s32.totalorder %s96, 1
      %p240 = scmp.ne.s32.totalorder %s235, %s237
      %p241 = scmp.eq.s32.totalorder %s96, 0
      %p242 = por %p240, %p241
      %p243 = scmp.ne.s32.totalorder %s235, %s237
      %p244 = scmp.eq.s32.totalorder %s101, 1
      %p245 = por %p243, %p244
      %p246 = scmp.ne.s32.totalorder %s237, %s238
      %p247 = scmp.eq.s32.totalorder %s101, 0
      %p248 = por %p246, %p247
      %p249 = scmp.ne.s32.totalorder %s237, %s238
      %p250 = scmp.eq.s32.totalorder %s102, 1
      %p251 = por %p249, %p250
      %p253 = scmp.ne.s32.totalorder %s238, %s252
      %p254 = scmp.eq.s32.totalorder %s102, 0
      %p255 = por %p253, %p254
      %s257 = sadd.s32 %s256, 1
      %p260 = scmp.eq.s32.totalorder %s96, 1
      %p261 = scmp.ne.s32.totalorder %s256, %s258
      %p262 = scmp.eq.s32.totalorder %s96, 0
      %p263 = por %p261, %p262
      %p264 = scmp.ne.s32.totalorder %s256, %s258
      %p265 = scmp.eq.s32.totalorder %s101, 1
      %p266 = por %p264, %p265
      %p267 = scmp.ne.s32.totalorder %s258, %s259
      %p268 = scmp.eq.s32.totalorder %s101, 0
      %p269 = por %p267, %p268
      %p270 = scmp.ne.s32.totalorder %s258, %s259
      %p271 = scmp.eq.s32.totalorder %s102, 1
      %p272 = por %p270, %p271
      %p274 = scmp.ne.s32.totalorder %s259, %s273
      %p275 = scmp.eq.s32.totalorder %s102, 0
      %p276 = por %p274, %p275
      %s278 = sadd.s32 %s277, 1
      %p281 = scmp.eq.s32.totalorder %s96, 1
      %p282 = scmp.ne.s32.totalorder %s277, %s279
      %p283 = scmp.eq.s32.totalorder %s96, 0
      %p284 = por %p282, %p283
      %p285 = scmp.ne.s32.totalorder %s277, %s279
      %p286 = scmp.eq.s32.totalorder %s101, 1
      %p287 = por %p285, %p286
      %p288 = scmp.ne.s32.totalorder %s279, %s280
      %p289 = scmp.eq.s32.totalorder %s101, 0
      %p290 = por %p288, %p289
      %p291 = scmp.ne.s32.totalorder %s279, %s280
      %p292 = scmp.eq.s32.totalorder %s102, 1
      %p293 = por %p291, %p292
      %p295 = scmp.ne.s32.totalorder %s280, %s294
      %p296 = scmp.eq.s32.totalorder %s102, 0
      %p297 = por %p295, %p296
      %s299 = sadd.s32 %s298, 1
      %p302 = scmp.eq.s32.totalorder %s96, 1
      %p303 = scmp.ne.s32.totalorder %s298, %s300
      %p304 = scmp.eq.s32.totalorder %s96, 0
      %p305 = por %p303, %p304
      %p306 = scmp.ne.s32.totalorder %s298, %s300
      %p307 = scmp.eq.s32.totalorder %s101, 1
      %p308 = por %p306, %p307
      %p309 = scmp.ne.s32.totalorder %s300, %s301
      %p310 = scmp.eq.s32.totalorder %s101, 0
      %p311 = por %p309, %p310
      %p312 = scmp.ne.s32.totalorder %s300, %s301
      %p313 = scmp.eq.s32.totalorder %s102, 1
      %p314 = por %p312, %p313
      %p316 = scmp.ne.s32.totalorder %s301, %s315
      %p317 = scmp.eq.s32.totalorder %s102, 0
      %p318 = por %p316, %p317
      %s320 = sadd.s32 %s319, 1
      %p323 = scmp.eq.s32.totalorder %s96, 1
      %p324 = scmp.ne.s32.totalorder %s319, %s321
      %p325 = scmp.eq.s32.totalorder %s96, 0
      %p326 = por %p324, %p325
      %p327 = scmp.ne.s32.totalorder %s319, %s321
      %p328 = scmp.eq.s32.totalorder %s101, 1
      %p329 = por %p327, %p328
      %p330 = scmp.ne.s32.totalorder %s321, %s322
      %p331 = scmp.eq.s32.totalorder %s101, 0
      %p332 = por %p330, %p331
      %p333 = scmp.ne.s32.totalorder %s321, %s322
      %p334 = scmp.eq.s32.totalorder %s102, 1
      %p335 = por %p333, %p334
      %p337 = scmp.ne.s32.totalorder %s322, %s336
      %p338 = scmp.eq.s32.totalorder %s102, 0
      %p339 = por %p337, %p338
      %s341 = sadd.s32 %s340, 1
      %p344 = scmp.eq.s32.totalorder %s96, 1
      %p345 = scmp.ne.s32.totalorder %s340, %s342
      %p346 = scmp.eq.s32.totalorder %s96, 0
      %p347 = por %p345, %p346
      %p348 = scmp.ne.s32.totalorder %s340, %s342
      %p349 = scmp.eq.s32.totalorder %s101, 1
      %p350 = por %p348, %p349
      %p351 = scmp.ne.s32.totalorder %s342, %s343
      %p352 = scmp.eq.s32.totalorder %s101, 0
      %p353 = por %p351, %p352
      %p354 = scmp.ne.s32.totalorder %s342, %s343
      %p355 = scmp.eq.s32.totalorder %s102, 1
      %p356 = por %p354, %p355
      %p358 = scmp.ne.s32.totalorder %s343, %s357
      %p359 = scmp.eq.s32.totalorder %s102, 0
      %p360 = por %p358, %p359
      %s362 = sadd.s32 %s361, 1
      %p365 = scmp.eq.s32.totalorder %s96, 1
      %p366 = scmp.ne.s32.totalorder %s361, %s363
      %p367 = scmp.eq.s32.totalorder %s96, 0
      %p368 = por %p366, %p367
      %p369 = scmp.ne.s32.totalorder %s361, %s363
      %p370 = scmp.eq.s32.totalorder %s101, 1
      %p371 = por %p369, %p370
      %p372 = scmp.ne.s32.totalorder %s363, %s364
      %p373 = scmp.eq.s32.totalorder %s101, 0
      %p374 = por %p372, %p373
      %p375 = scmp.ne.s32.totalorder %s363, %s364
      %p376 = scmp.eq.s32.totalorder %s102, 1
      %p377 = por %p375, %p376
      %p379 = scmp.ne.s32.totalorder %s364, %s378
      %p380 = scmp.eq.s32.totalorder %s102, 0
      %p381 = por %p379, %p380
      %s383 = sadd.s32 %s382, 1
      %p386 = scmp.eq.s32.totalorder %s96, 1
      %p387 = scmp.ne.s32.totalorder %s382, %s384
      %p388 = scmp.eq.s32.totalorder %s96, 0
      %p389 = por %p387, %p388
      %p390 = scmp.ne.s32.totalorder %s382, %s384
      %p391 = scmp.eq.s32.totalorder %s101, 1
      %p392 = por %p390, %p391
      %p393 = scmp.ne.s32.totalorder %s384, %s385
      %p394 = scmp.eq.s32.totalorder %s101, 0
      %p395 = por %p393, %p394
      %p396 = scmp.ne.s32.totalorder %s384, %s385
      %p397 = scmp.eq.s32.totalorder %s102, 1
      %p398 = por %p396, %p397
      %p400 = scmp.ne.s32.totalorder %s385, %s399
      %p401 = scmp.eq.s32.totalorder %s102, 0
      %p402 = por %p400, %p401
      %s404 = sadd.s32 %s403, 1
      %p407 = scmp.eq.s32.totalorder %s96, 1
      %p408 = scmp.ne.s32.totalorder %s403, %s405
      %p409 = scmp.eq.s32.totalorder %s96, 0
      %p410 = por %p408, %p409
      %p411 = scmp.ne.s32.totalorder %s403, %s405
      %p412 = scmp.eq.s32.totalorder %s101, 1
      %p413 = por %p411, %p412
      %p414 = scmp.ne.s32.totalorder %s405, %s406
      %p415 = scmp.eq.s32.totalorder %s101, 0
      %p416 = por %p414, %p415
      %p417 = scmp.ne.s32.totalorder %s405, %s406
      %p418 = scmp.eq.s32.totalorder %s102, 1
      %p419 = por %p417, %p418
      %p421 = scmp.ne.s32.totalorder %s406, %s420
      %p422 = scmp.eq.s32.totalorder %s102, 0
      %p423 = por %p421, %p422
      %s425 = sadd.s32 %s424, 1
      %p428 = scmp.eq.s32.totalorder %s96, 1
      %p429 = scmp.ne.s32.totalorder %s424, %s426
      %p430 = scmp.eq.s32.totalorder %s96, 0
      %p431 = por %p429, %p430
      %p432 = scmp.ne.s32.totalorder %s424, %s426
      %p433 = scmp.eq.s32.totalorder %s101, 1
      %p434 = por %p432, %p433
      %p435 = scmp.ne.s32.totalorder %s426, %s427
      %p436 = scmp.eq.s32.totalorder %s101, 0
      %p437 = por %p435, %p436
      %p438 = scmp.ne.s32.totalorder %s426, %s427
      %p439 = scmp.eq.s32.totalorder %s102, 1
      %p440 = por %p438, %p439
      %p442 = scmp.ne.s32.totalorder %s427, %s441
      %p443 = scmp.eq.s32.totalorder %s102, 0
      %p444 = por %p442, %p443
      %s446 = sadd.s32 %s445, 1
      %p449 = scmp.eq.s32.totalorder %s96, 1
      %p450 = scmp.ne.s32.totalorder %s445, %s447
      %p451 = scmp.eq.s32.totalorder %s96, 0
      %p452 = por %p450, %p451
      %p453 = scmp.ne.s32.totalorder %s445, %s447
      %p454 = scmp.eq.s32.totalorder %s101, 1
      %p455 = por %p453, %p454
      %p456 = scmp.ne.s32.totalorder %s447, %s448
      %p457 = scmp.eq.s32.totalorder %s101, 0
      %p458 = por %p456, %p457
      %p459 = scmp.ne.s32.totalorder %s447, %s448
      %p460 = scmp.eq.s32.totalorder %s102, 1
      %p461 = por %p459, %p460
      %p463 = scmp.ne.s32.totalorder %s448, %s462
      %p464 = scmp.eq.s32.totalorder %s102, 0
      %p465 = por %p463, %p464
      %s467 = sadd.s32 %s466, 1
      %p470 = scmp.eq.s32.totalorder %s96, 1
      %p471 = scmp.ne.s32.totalorder %s466, %s468
      %p472 = scmp.eq.s32.totalorder %s96, 0
      %p473 = por %p471, %p472
      %p474 = scmp.ne.s32.totalorder %s466, %s468
      %p475 = scmp.eq.s32.totalorder %s101, 1
      %p476 = por %p474, %p475
      %p477 = scmp.ne.s32.totalorder %s468, %s469
      %p478 = scmp.eq.s32.totalorder %s101, 0
      %p479 = por %p477, %p478
      %p480 = scmp.ne.s32.totalorder %s468, %s469
      %p481 = scmp.eq.s32.totalorder %s102, 1
      %p482 = por %p480, %p481
      %p484 = scmp.ne.s32.totalorder %s469, %s483
      %p485 = scmp.eq.s32.totalorder %s102, 0
      %p486 = por %p484, %p485
      %s488 = sadd.s32 %s487, 1
      %p491 = scmp.eq.s32.totalorder %s96, 1
      %p492 = scmp.ne.s32.totalorder %s487, %s489
      %p493 = scmp.eq.s32.totalorder %s96, 0
      %p494 = por %p492, %p493
      %p495 = scmp.ne.s32.totalorder %s487, %s489
      %p496 = scmp.eq.s32.totalorder %s101, 1
      %p497 = por %p495, %p496
      %p498 = scmp.ne.s32.totalorder %s489, %s490
      %p499 = scmp.eq.s32.totalorder %s101, 0
      %p500 = por %p498, %p499
      %p501 = scmp.ne.s32.totalorder %s489, %s490
      %p502 = scmp.eq.s32.totalorder %s102, 1
      %p503 = por %p501, %p502
      %p505 = scmp.ne.s32.totalorder %s490, %s504
      %p506 = scmp.eq.s32.totalorder %s102, 0
      %p507 = por %p505, %p506
      %s509 = sadd.s32 %s508, 1
      %p512 = scmp.eq.s32.totalorder %s96, 1
      %p513 = scmp.ne.s32.totalorder %s508, %s510
      %p514 = scmp.eq.s32.totalorder %s96, 0
      %p515 = por %p513, %p514
      %p516 = scmp.ne.s32.totalorder %s508, %s510
      %p517 = scmp.eq.s32.totalorder %s101, 1
      %p518 = por %p516, %p517
      %p519 = scmp.ne.s32.totalorder %s510, %s511
      %p520 = scmp.eq.s32.totalorder %s101, 0
      %p521 = por %p519, %p520
      %p522 = scmp.ne.s32.totalorder %s510, %s511
      %p523 = scmp.eq.s32.totalorder %s102, 1
      %p524 = por %p522, %p523
      %p526 = scmp.ne.s32.totalorder %s511, %s525
      %p527 = scmp.eq.s32.totalorder %s102, 0
      %p528 = por %p526, %p527
      %s530 = sadd.s32 %s529, 1
      %p533 = scmp.eq.s32.totalorder %s96, 1
      %p534 = scmp.ne.s32.totalorder %s529, %s531
      %p535 = scmp.eq.s32.totalorder %s96, 0
      %p536 = por %p534, %p535
      %p537 = scmp.ne.s32.totalorder %s529, %s531
      %p538 = scmp.eq.s32.totalorder %s101, 1
      %p539 = por %p537, %p538
      %p540 = scmp.ne.s32.totalorder %s531, %s532
      %p541 = scmp.eq.s32.totalorder %s101, 0
      %p542 = por %p540, %p541
      %p543 = scmp.ne.s32.totalorder %s531, %s532
      %p544 = scmp.eq.s32.totalorder %s102, 1
      %p545 = por %p543, %p544
      %p547 = scmp.ne.s32.totalorder %s532, %s546
      %p548 = scmp.eq.s32.totalorder %s102, 0
      %p549 = por %p547, %p548
      %s551 = sadd.s32 %s550, 1
      %p554 = scmp.eq.s32.totalorder %s96, 1
      %p555 = scmp.ne.s32.totalorder %s550, %s552
      %p556 = scmp.eq.s32.totalorder %s96, 0
      %p557 = por %p555, %p556
      %p558 = scmp.ne.s32.totalorder %s550, %s552
      %p559 = scmp.eq.s32.totalorder %s101, 1
      %p560 = por %p558, %p559
      %p561 = scmp.ne.s32.totalorder %s552, %s553
      %p562 = scmp.eq.s32.totalorder %s101, 0
      %p563 = por %p561, %p562
      %p564 = scmp.ne.s32.totalorder %s552, %s553
      %p565 = scmp.eq.s32.totalorder %s102, 1
      %p566 = por %p564, %p565
      %p568 = scmp.ne.s32.totalorder %s553, %s567
      %p569 = scmp.eq.s32.totalorder %s102, 0
      %p570 = por %p568, %p569
      %s572 = sadd.s32 %s571, 1
      %p575 = scmp.eq.s32.totalorder %s96, 1
      %p576 = scmp.ne.s32.totalorder %s571, %s573
      %p577 = scmp.eq.s32.totalorder %s96, 0
      %p578 = por %p576, %p577
      %p579 = scmp.ne.s32.totalorder %s571, %s573
      %p580 = scmp.eq.s32.totalorder %s101, 1
      %p581 = por %p579, %p580
      %p582 = scmp.ne.s32.totalorder %s573, %s574
      %p583 = scmp.eq.s32.totalorder %s101, 0
      %p584 = por %p582, %p583
      %p585 = scmp.ne.s32.totalorder %s573, %s574
      %p586 = scmp.eq.s32.totalorder %s102, 1
      %p587 = por %p585, %p586
      %p589 = scmp.ne.s32.totalorder %s574, %s588
      %p590 = scmp.eq.s32.totalorder %s102, 0
      %p591 = por %p589, %p590
      %s593 = sadd.s32 %s592, 1
      %p596 = scmp.eq.s32.totalorder %s96, 1
      %p597 = scmp.ne.s32.totalorder %s592, %s594
      %p598 = scmp.eq.s32.totalorder %s96, 0
      %p599 = por %p597, %p598
      %p600 = scmp.ne.s32.totalorder %s592, %s594
      %p601 = scmp.eq.s32.totalorder %s101, 1
      %p602 = por %p600, %p601
      %p603 = scmp.ne.s32.totalorder %s594, %s595
      %p604 = scmp.eq.s32.totalorder %s101, 0
      %p605 = por %p603, %p604
      %p606 = scmp.ne.s32.totalorder %s594, %s595
      %p607 = scmp.eq.s32.totalorder %s102, 1
      %p608 = por %p606, %p607
      %p610 = scmp.ne.s32.totalorder %s595, %s609
      %p611 = scmp.eq.s32.totalorder %s102, 0
      %p612 = por %p610, %p611
      %s614 = sadd.s32 %s613, 1
      %p617 = scmp.eq.s32.totalorder %s96, 1
      %p618 = scmp.ne.s32.totalorder %s613, %s615
      %p619 = scmp.eq.s32.totalorder %s96, 0
      %p620 = por %p618, %p619
      %p621 = scmp.ne.s32.totalorder %s613, %s615
      %p622 = scmp.eq.s32.totalorder %s101, 1
      %p623 = por %p621, %p622
      %p624 = scmp.ne.s32.totalorder %s615, %s616
      %p625 = scmp.eq.s32.totalorder %s101, 0
      %p626 = por %p624, %p625
      %p627 = scmp.ne.s32.totalorder %s615, %s616
      %p628 = scmp.eq.s32.totalorder %s102, 1
      %p629 = por %p627, %p628
      %p631 = scmp.ne.s32.totalorder %s616, %s630
      %p632 = scmp.eq.s32.totalorder %s102, 0
      %p633 = por %p631, %p632
      %s635 = sadd.s32 %s634, 1
      %p638 = scmp.eq.s32.totalorder %s96, 1
      %p639 = scmp.ne.s32.totalorder %s634, %s636
      %p640 = scmp.eq.s32.totalorder %s96, 0
      %p641 = por %p639, %p640
      %p642 = scmp.ne.s32.totalorder %s634, %s636
      %p643 = scmp.eq.s32.totalorder %s101, 1
      %p644 = por %p642, %p643
      %p645 = scmp.ne.s32.totalorder %s636, %s637
      %p646 = scmp.eq.s32.totalorder %s101, 0
      %p647 = por %p645, %p646
      %p648 = scmp.ne.s32.totalorder %s636, %s637
      %p649 = scmp.eq.s32.totalorder %s102, 1
      %p650 = por %p648, %p649
      %p652 = scmp.ne.s32.totalorder %s637, %s651
      %p653 = scmp.eq.s32.totalorder %s102, 0
      %p654 = por %p652, %p653
      %s656 = sadd.s32 %s655, 1
      %p659 = scmp.eq.s32.totalorder %s96, 1
      %p660 = scmp.ne.s32.totalorder %s655, %s657
      %p661 = scmp.eq.s32.totalorder %s96, 0
      %p662 = por %p660, %p661
      %p663 = scmp.ne.s32.totalorder %s655, %s657
      %p664 = scmp.eq.s32.totalorder %s101, 1
      %p665 = por %p663, %p664
      %p666 = scmp.ne.s32.totalorder %s657, %s658
      %p667 = scmp.eq.s32.totalorder %s101, 0
      %p668 = por %p666, %p667
      %p669 = scmp.ne.s32.totalorder %s657, %s658
      %p670 = scmp.eq.s32.totalorder %s102, 1
      %p671 = por %p669, %p670
      %p673 = scmp.ne.s32.totalorder %s658, %s672
      %p674 = scmp.eq.s32.totalorder %s102, 0
      %p675 = por %p673, %p674
      %s677 = sadd.s32 %s676, 1
      %p680 = scmp.eq.s32.totalorder %s96, 1
      %p681 = scmp.ne.s32.totalorder %s676, %s678
      %p682 = scmp.eq.s32.totalorder %s96, 0
      %p683 = por %p681, %p682
      %p684 = scmp.ne.s32.totalorder %s676, %s678
      %p685 = scmp.eq.s32.totalorder %s101, 1
      %p686 = por %p684, %p685
      %p687 = scmp.ne.s32.totalorder %s678, %s679
      %p688 = scmp.eq.s32.totalorder %s101, 0
      %p689 = por %p687, %p688
      %p690 = scmp.ne.s32.totalorder %s678, %s679
      %p691 = scmp.eq.s32.totalorder %s102, 1
      %p692 = por %p690, %p691
      %p694 = scmp.ne.s32.totalorder %s679, %s693
      %p695 = scmp.eq.s32.totalorder %s102, 0
      %p696 = por %p694, %p695
      %s698 = sadd.s32 %s697, 1
      %p701 = scmp.eq.s32.totalorder %s96, 1
      %p702 = scmp.ne.s32.totalorder %s697, %s699
      %p703 = scmp.eq.s32.totalorder %s96, 0
      %p704 = por %p702, %p703
      %p705 = scmp.ne.s32.totalorder %s697, %s699
      %p706 = scmp.eq.s32.totalorder %s101, 1
      %p707 = por %p705, %p706
      %p708 = scmp.ne.s32.totalorder %s699, %s700
      %p709 = scmp.eq.s32.totalorder %s101, 0
      %p710 = por %p708, %p709
      %p711 = scmp.ne.s32.totalorder %s699, %s700
      %p712 = scmp.eq.s32.totalorder %s102, 1
      %p713 = por %p711, %p712
      %p715 = scmp.ne.s32.totalorder %s700, %s714
      %p716 = scmp.eq.s32.totalorder %s102, 0
      %p717 = por %p715, %p716
      %s719 = sadd.s32 %s718, 1
      %p722 = scmp.eq.s32.totalorder %s96, 1
      %p723 = scmp.ne.s32.totalorder %s718, %s720
      %p724 = scmp.eq.s32.totalorder %s96, 0
      %p725 = por %p723, %p724
      %p726 = scmp.ne.s32.totalorder %s718, %s720
      %p727 = scmp.eq.s32.totalorder %s101, 1
      %p728 = por %p726, %p727
      %p729 = scmp.ne.s32.totalorder %s720, %s721
      %p730 = scmp.eq.s32.totalorder %s101, 0
      %p731 = por %p729, %p730
      %p732 = scmp.ne.s32.totalorder %s720, %s721
      %p733 = scmp.eq.s32.totalorder %s102, 1
      %p734 = por %p732, %p733
      %p736 = scmp.ne.s32.totalorder %s721, %s735
      %p737 = scmp.eq.s32.totalorder %s102, 0
      %p738 = por %p736, %p737
      %s740 = sadd.s32 %s739, 1
      %p743 = scmp.eq.s32.totalorder %s96, 1
      %p744 = scmp.ne.s32.totalorder %s739, %s741
      %p745 = scmp.eq.s32.totalorder %s96, 0
      %p746 = por %p744, %p745
      %p747 = scmp.ne.s32.totalorder %s739, %s741
      %p748 = scmp.eq.s32.totalorder %s101, 1
      %p749 = por %p747, %p748
      %p750 = scmp.ne.s32.totalorder %s741, %s742
      %p751 = scmp.eq.s32.totalorder %s101, 0
      %p752 = por %p750, %p751
      %p753 = scmp.ne.s32.totalorder %s741, %s742
      %p754 = scmp.eq.s32.totalorder %s102, 1
      %p755 = por %p753, %p754
      %p757 = scmp.ne.s32.totalorder %s742, %s756
      %p758 = scmp.eq.s32.totalorder %s102, 0
      %p759 = por %p757, %p758
      %s761 = sadd.s32 %s760, 1
      %p764 = scmp.eq.s32.totalorder %s96, 1
      %p765 = scmp.ne.s32.totalorder %s760, %s762
      %p766 = scmp.eq.s32.totalorder %s96, 0
      %p767 = por %p765, %p766
      %p768 = scmp.ne.s32.totalorder %s760, %s762
      %p769 = scmp.eq.s32.totalorder %s101, 1
      %p770 = por %p768, %p769
      %p771 = scmp.ne.s32.totalorder %s762, %s763
      %p772 = scmp.eq.s32.totalorder %s101, 0
      %p773 = por %p771, %p772
      %p774 = scmp.ne.s32.totalorder %s762, %s763
      %p775 = scmp.eq.s32.totalorder %s102, 1
      %p776 = por %p774, %p775
      %p778 = scmp.ne.s32.totalorder %s763, %s777
      %p779 = scmp.eq.s32.totalorder %s102, 0
      %p780 = por %p778, %p779
      %s782 = sadd.s32 %s781, 1
      %p785 = scmp.eq.s32.totalorder %s96, 1
      %p786 = scmp.ne.s32.totalorder %s781, %s783
      %p787 = scmp.eq.s32.totalorder %s96, 0
      %p788 = por %p786, %p787
      %p789 = scmp.ne.s32.totalorder %s781, %s783
      %p790 = scmp.eq.s32.totalorder %s101, 1
      %p791 = por %p789, %p790
      %p792 = scmp.ne.s32.totalorder %s783, %s784
      %p793 = scmp.eq.s32.totalorder %s101, 0
      %p794 = por %p792, %p793
      %p795 = scmp.ne.s32.totalorder %s783, %s784
      %p796 = scmp.eq.s32.totalorder %s102, 1
      %p797 = por %p795, %p796
      %p799 = scmp.ne.s32.totalorder %s784, %s798
      %p800 = scmp.eq.s32.totalorder %s102, 0
      %p801 = por %p799, %p800
      %s803 = sadd.s32 %s802, 1
      %p806 = scmp.eq.s32.totalorder %s96, 1
      %p807 = scmp.ne.s32.totalorder %s802, %s804
      %p808 = scmp.eq.s32.totalorder %s96, 0
      %p809 = por %p807, %p808
      %p810 = scmp.ne.s32.totalorder %s802, %s804
      %p811 = scmp.eq.s32.totalorder %s101, 1
      %p812 = por %p810, %p811
      %p813 = scmp.ne.s32.totalorder %s804, %s805
      %p814 = scmp.eq.s32.totalorder %s101, 0
      %p815 = por %p813, %p814
      %p816 = scmp.ne.s32.totalorder %s804, %s805
      %p817 = scmp.eq.s32.totalorder %s102, 1
      %p818 = por %p816, %p817
      %p820 = scmp.ne.s32.totalorder %s805, %s819
      %p821 = scmp.eq.s32.totalorder %s102, 0
      %p822 = por %p820, %p821
      %s824 = sadd.s32 %s823, 1
      %p827 = scmp.eq.s32.totalorder %s96, 1
      %p828 = scmp.ne.s32.totalorder %s823, %s825
      %p829 = scmp.eq.s32.totalorder %s96, 0
      %p830 = por %p828, %p829
      %p831 = scmp.ne.s32.totalorder %s823, %s825
      %p832 = scmp.eq.s32.totalorder %s101, 1
      %p833 = por %p831, %p832
      %p834 = scmp.ne.s32.totalorder %s825, %s826
      %p835 = scmp.eq.s32.totalorder %s101, 0
      %p836 = por %p834, %p835
      %p837 = scmp.ne.s32.totalorder %s825, %s826
      %p838 = scmp.eq.s32.totalorder %s102, 1
      %p839 = por %p837, %p838
      %p841 = scmp.ne.s32.totalorder %s826, %s840
      %p842 = scmp.eq.s32.totalorder %s102, 0
      %p843 = por %p841, %p842
      %s845 = sadd.s32 %s844, 1
      %p848 = scmp.eq.s32.totalorder %s96, 1
      %p849 = scmp.ne.s32.totalorder %s844, %s846
      %p850 = scmp.eq.s32.totalorder %s96, 0
      %p851 = por %p849, %p850
      %p852 = scmp.ne.s32.totalorder %s844, %s846
      %p853 = scmp.eq.s32.totalorder %s101, 1
      %p854 = por %p852, %p853
      %p855 = scmp.ne.s32.totalorder %s846, %s847
      %p856 = scmp.eq.s32.totalorder %s101, 0
      %p857 = por %p855, %p856
      %p858 = scmp.ne.s32.totalorder %s846, %s847
      %p859 = scmp.eq.s32.totalorder %s102, 1
      %p860 = por %p858, %p859
      %p862 = scmp.ne.s32.totalorder %s847, %s861
      %p863 = scmp.eq.s32.totalorder %s102, 0
      %p864 = por %p862, %p863
      %s866 = sadd.s32 %s865, 1
      %p869 = scmp.eq.s32.totalorder %s96, 1
      %p870 = scmp.ne.s32.totalorder %s865, %s867
      %p871 = scmp.eq.s32.totalorder %s96, 0
      %p872 = por %p870, %p871
      %p873 = scmp.ne.s32.totalorder %s865, %s867
      %p874 = scmp.eq.s32.totalorder %s101, 1
      %p875 = por %p873, %p874
      %p876 = scmp.ne.s32.totalorder %s867, %s868
      %p877 = scmp.eq.s32.totalorder %s101, 0
      %p878 = por %p876, %p877
      %p879 = scmp.ne.s32.totalorder %s867, %s868
      %p880 = scmp.eq.s32.totalorder %s102, 1
      %p881 = por %p879, %p880
      %p883 = scmp.ne.s32.totalorder %s868, %s882
      %p884 = scmp.eq.s32.totalorder %s102, 0
      %p885 = por %p883, %p884
      %s887 = sadd.s32 %s886, 1
      %p890 = scmp.eq.s32.totalorder %s96, 1
      %p891 = scmp.ne.s32.totalorder %s886, %s888
      %p892 = scmp.eq.s32.totalorder %s96, 0
      %p893 = por %p891, %p892
      %p894 = scmp.ne.s32.totalorder %s886, %s888
      %p895 = scmp.eq.s32.totalorder %s101, 1
      %p896 = por %p894, %p895
      %p897 = scmp.ne.s32.totalorder %s888, %s889
      %p898 = scmp.eq.s32.totalorder %s101, 0
      %p899 = por %p897, %p898
      %p900 = scmp.ne.s32.totalorder %s888, %s889
      %p901 = scmp.eq.s32.totalorder %s102, 1
      %p902 = por %p900, %p901
      %p904 = scmp.ne.s32.totalorder %s889, %s903
      %p905 = scmp.eq.s32.totalorder %s102, 0
      %p906 = por %p904, %p905
      %s908 = sadd.s32 %s907, 1
      %p911 = scmp.eq.s32.totalorder %s96, 1
      %p912 = scmp.ne.s32.totalorder %s907, %s909
      %p913 = scmp.eq.s32.totalorder %s96, 0
      %p914 = por %p912, %p913
      %p915 = scmp.ne.s32.totalorder %s907, %s909
      %p916 = scmp.eq.s32.totalorder %s101, 1
      %p917 = por %p915, %p916
      %p918 = scmp.ne.s32.totalorder %s909, %s910
      %p919 = scmp.eq.s32.totalorder %s101, 0
      %p920 = por %p918, %p919
      %p921 = scmp.ne.s32.totalorder %s909, %s910
      %p922 = scmp.eq.s32.totalorder %s102, 1
      %p923 = por %p921, %p922
      %p925 = scmp.ne.s32.totalorder %s910, %s924
      %p926 = scmp.eq.s32.totalorder %s102, 0
      %p927 = por %p925, %p926
      %s928 = ssub.s32 %s96, %s103
      %p929 = scmp.eq.s32.totalorder %s928, 0
      %s931 = sadd.s32 %s930, 1
      %s932 = scalar_select %p929, %s930, %s931
      %p935 = pneg %p929
      %p936 = scmp.eq.s32.totalorder %s96, 1
      %p937 = por %p935, %p936
      %p938 = scmp.ne.s32.totalorder %s930, %s933
      %p939 = scmp.eq.s32.totalorder %s96, 0
      %p940 = por %p938, %p939
      %p941 = scmp.ne.s32.totalorder %s930, %s933
      %p942 = scmp.eq.s32.totalorder %s101, 1
      %p943 = por %p941, %p942
      %p944 = scmp.ne.s32.totalorder %s933, %s934
      %p945 = scmp.eq.s32.totalorder %s101, 0
      %p946 = por %p944, %p945
      %p947 = scmp.ne.s32.totalorder %s933, %s934
      %p948 = scmp.eq.s32.totalorder %s102, 1
      %p949 = por %p947, %p948
      %p951 = scmp.ne.s32.totalorder %s934, %s950
      %p952 = scmp.eq.s32.totalorder %s102, 0
      %p953 = por %p951, %p952
      %p954 = scmp.le.s32.totalorder 1, %s96
      %p955 = scmp.lt.s32.totalorder %s96, 3
      %p956 = pnand %p954, %p955
      %p957 = pneg %p956
      // Predicated region
      $region9: #{_lambda_.1} parent=5 // pred_check
        _
      $region10: #{_lambda_.1} parent=5 // pred_check_branch
        %959 = sbr.rel (%p956) target = $region12
      $region11: #{_lambda_.1} parent=5 // pred_region
        %s960 = ssub.s32 %s96, 1
        // Predicated region
        $region13: #{_lambda_.1} parent=11 // pred_check
          %p961 = pneg %p143
        $region14: #{_lambda_.1} parent=11 // pred_check_branch
          %963 = sbr.rel (%p961) target = $region16
        $region15: #{_lambda_.1} parent=11 // pred_region
          _
        $region16: #{_lambda_.1} parent=11 // pred_fallthru
          _
        // Predicated region
        $region17: #{_lambda_.1} parent=11 // pred_check
          %p964 = pneg %p164
        $region18: #{_lambda_.1} parent=11 // pred_check_branch
          %966 = sbr.rel (%p964) target = $region20
        $region19: #{_lambda_.1} parent=11 // pred_region
          _
        $region20: #{_lambda_.1} parent=11 // pred_fallthru
          _
        // Predicated region
        $region21: #{_lambda_.1} parent=11 // pred_check
          %p967 = pneg %p185
        $region22: #{_lambda_.1} parent=11 // pred_check_branch
          %969 = sbr.rel (%p967) target = $region24
        $region23: #{_lambda_.1} parent=11 // pred_region
          %s971 = ssub.s32 512, 512
          %972 = vsyncadd [#allocation6], %s971
          %s973 = sshll.u32 [#allocation5], 4
          %s974 = int_to_ptr.vmem [resolvable:$true] %s973
          %979 = dma.hbm_to_vmem [thread:$0]  %s7, 512, %s974, [#allocation6], 128, 128, 8
        $region24: #{_lambda_.1} parent=11 // pred_fallthru
          _
        // Predicated region
        $region25: #{_lambda_.1} parent=11 // pred_check
          %p980 = pneg %p206
        $region26: #{_lambda_.1} parent=11 // pred_check_branch
          %982 = sbr.rel (%p980) target = $region28
        $region27: #{_lambda_.1} parent=11 // pred_region
          _
        $region28: #{_lambda_.1} parent=11 // pred_fallthru
          _
        // Predicated region
        $region29: #{_lambda_.1} parent=11 // pred_check
          %p983 = pneg %p227
        $region30: #{_lambda_.1} parent=11 // pred_check_branch
          %985 = sbr.rel (%p983) target = $region32
        $region31: #{_lambda_.1} parent=11 // pred_region
          %s987 = ssub.s32 2048, 2048
          %988 = vsyncadd [#allocation6], %s987
          %s989 = sshll.u32 [#allocation7], 4
          %s990 = int_to_ptr.vmem [resolvable:$true] %s989
          %995 = dma.hbm_to_vmem [thread:$0]  %s11, 2048, %s990, [#allocation6], 128, 128, 8
        $region32: #{_lambda_.1} parent=11 // pred_fallthru
          _
        // Predicated region
        $region33: #{_lambda_.1} parent=11 // pred_check
          %p996 = pneg %p248
        $region34: #{_lambda_.1} parent=11 // pred_check_branch
          %998 = sbr.rel (%p996) target = $region36
        $region35: #{_lambda_.1} parent=11 // pred_region
          _
        $region36: #{_lambda_.1} parent=11 // pred_fallthru
          _
        // Predicated region
        $region37: #{_lambda_.1} parent=11 // pred_check
          %p999 = pneg %p269
        $region38: #{_lambda_.1} parent=11 // pred_check_branch
          %1001 = sbr.rel (%p999) target = $region40
        $region39: #{_lambda_.1} parent=11 // pred_region
          _
        $region40: #{_lambda_.1} parent=11 // pred_fallthru
          _
        // Predicated region
        $region41: #{_lambda_.1} parent=11 // pred_check
          %p1002 = pneg %p290
        $region42: #{_lambda_.1} parent=11 // pred_check_branch
          %1004 = sbr.rel (%p1002) target = $region44
        $region43: #{_lambda_.1} parent=11 // pred_region
          _
        $region44: #{_lambda_.1} parent=11 // pred_fallthru
          _
        // Predicated region
        $region45: #{_lambda_.1} parent=11 // pred_check
          %p1005 = pneg %p311
        $region46: #{_lambda_.1} parent=11 // pred_check_branch
          %1007 = sbr.rel (%p1005) target = $region48
        $region47: #{_lambda_.1} parent=11 // pred_region
          _
        $region48: #{_lambda_.1} parent=11 // pred_fallthru
          _
        // Predicated region
        $region49: #{_lambda_.1} parent=11 // pred_check
          %p1008 = pneg %p332
        $region50: #{_lambda_.1} parent=11 // pred_check_branch
          %1010 = sbr.rel (%p1008) target = $region52
        $region51: #{_lambda_.1} parent=11 // pred_region
          _
        $region52: #{_lambda_.1} parent=11 // pred_fallthru
          _
        // Predicated region
        $region53: #{_lambda_.1} parent=11 // pred_check
          %p1011 = pneg %p353
        $region54: #{_lambda_.1} parent=11 // pred_check_branch
          %1013 = sbr.rel (%p1011) target = $region56
        $region55: #{_lambda_.1} parent=11 // pred_region
          %s1015 = ssub.s32 512, 512
          %1016 = vsyncadd [#allocation9], %s1015
          %s1017 = sshll.u32 [#allocation8], 4
          %s1018 = int_to_ptr.vmem [resolvable:$true] %s1017
          %1023 = dma.hbm_to_vmem [thread:$0]  %s23, 512, %s1018, [#allocation9], 128, 128, 8
        $region56: #{_lambda_.1} parent=11 // pred_fallthru
          _
        // Predicated region
        $region57: #{_lambda_.1} parent=11 // pred_check
          %p1024 = pneg %p374
        $region58: #{_lambda_.1} parent=11 // pred_check_branch
          %1026 = sbr.rel (%p1024) target = $region60
        $region59: #{_lambda_.1} parent=11 // pred_region
          _
        $region60: #{_lambda_.1} parent=11 // pred_fallthru
          _
        // Predicated region
        $region61: #{_lambda_.1} parent=11 // pred_check
          %p1027 = pneg %p395
        $region62: #{_lambda_.1} parent=11 // pred_check_branch
          %1029 = sbr.rel (%p1027) target = $region64
        $region63: #{_lambda_.1} parent=11 // pred_region
          %s1031 = ssub.s32 128, 128
          %1032 = vsyncadd [#allocation9], %s1031
          %s1034 = sshll.u32 [#allocation10], 4
          %s1035 = int_to_ptr.vmem [resolvable:$true] %s1034
          %1037 = dma.hbm_to_vmem [thread:$0]  %s27, 128, %s1035, [#allocation9]
        $region64: #{_lambda_.1} parent=11 // pred_fallthru
          _
        // Predicated region
        $region65: #{_lambda_.1} parent=11 // pred_check
          %p1038 = pneg %p416
        $region66: #{_lambda_.1} parent=11 // pred_check_branch
          %1040 = sbr.rel (%p1038) target = $region68
        $region67: #{_lambda_.1} parent=11 // pred_region
          _
        $region68: #{_lambda_.1} parent=11 // pred_fallthru
          _
        // Predicated region
        $region69: #{_lambda_.1} parent=11 // pred_check
          %p1041 = pneg %p437
        $region70: #{_lambda_.1} parent=11 // pred_check_branch
          %1043 = sbr.rel (%p1041) target = $region72
        $region71: #{_lambda_.1} parent=11 // pred_region
          _
        $region72: #{_lambda_.1} parent=11 // pred_fallthru
          _
        // Predicated region
        $region73: #{_lambda_.1} parent=11 // pred_check
          %p1044 = pneg %p458
        $region74: #{_lambda_.1} parent=11 // pred_check_branch
          %1046 = sbr.rel (%p1044) target = $region76
        $region75: #{_lambda_.1} parent=11 // pred_region
          %s1048 = ssub.s32 512, 512
          %1049 = vsyncadd [#allocation12], %s1048
          %s1050 = sshll.u32 [#allocation11], 4
          %s1051 = int_to_ptr.vmem [resolvable:$true] %s1050
          %1056 = dma.hbm_to_vmem [thread:$0]  %s33, 512, %s1051, [#allocation12], 128, 128, 8
        $region76: #{_lambda_.1} parent=11 // pred_fallthru
          _
        // Predicated region
        $region77: #{_lambda_.1} parent=11 // pred_check
          %p1057 = pneg %p479
        $region78: #{_lambda_.1} parent=11 // pred_check_branch
          %1059 = sbr.rel (%p1057) target = $region80
        $region79: #{_lambda_.1} parent=11 // pred_region
          _
        $region80: #{_lambda_.1} parent=11 // pred_fallthru
          _
        // Predicated region
        $region81: #{_lambda_.1} parent=11 // pred_check
          %p1060 = pneg %p500
        $region82: #{_lambda_.1} parent=11 // pred_check_branch
          %1062 = sbr.rel (%p1060) target = $region84
        $region83: #{_lambda_.1} parent=11 // pred_region
          _
        $region84: #{_lambda_.1} parent=11 // pred_fallthru
          _
        // Predicated region
        $region85: #{_lambda_.1} parent=11 // pred_check
          %p1063 = pneg %p521
        $region86: #{_lambda_.1} parent=11 // pred_check_branch
          %1065 = sbr.rel (%p1063) target = $region88
        $region87: #{_lambda_.1} parent=11 // pred_region
          _
        $region88: #{_lambda_.1} parent=11 // pred_fallthru
          _
        // Predicated region
        $region89: #{_lambda_.1} parent=11 // pred_check
          %p1066 = pneg %p542
        $region90: #{_lambda_.1} parent=11 // pred_check_branch
          %1068 = sbr.rel (%p1066) target = $region92
        $region91: #{_lambda_.1} parent=11 // pred_region
          _
        $region92: #{_lambda_.1} parent=11 // pred_fallthru
          _
        // Predicated region
        $region93: #{_lambda_.1} parent=11 // pred_check
          %p1069 = pneg %p563
        $region94: #{_lambda_.1} parent=11 // pred_check_branch
          %1071 = sbr.rel (%p1069) target = $region96
        $region95: #{_lambda_.1} parent=11 // pred_region
          _
        $region96: #{_lambda_.1} parent=11 // pred_fallthru
          _
        // Predicated region
        $region97: #{_lambda_.1} parent=11 // pred_check
          %p1072 = pneg %p584
        $region98: #{_lambda_.1} parent=11 // pred_check_branch
          %1074 = sbr.rel (%p1072) target = $region100
        $region99: #{_lambda_.1} parent=11 // pred_region
          %s1076 = ssub.s32 512, 512
          %1077 = vsyncadd [#allocation12], %s1076
          %s1078 = sshll.u32 [#allocation13], 4
          %s1079 = int_to_ptr.vmem [resolvable:$true] %s1078
          %1084 = dma.hbm_to_vmem [thread:$0]  %s45, 512, %s1079, [#allocation12], 128, 128, 8
        $region100: #{_lambda_.1} parent=11 // pred_fallthru
          _
        // Predicated region
        $region101: #{_lambda_.1} parent=11 // pred_check
          %p1085 = pneg %p605
        $region102: #{_lambda_.1} parent=11 // pred_check_branch
          %1087 = sbr.rel (%p1085) target = $region104
        $region103: #{_lambda_.1} parent=11 // pred_region
          _
        $region104: #{_lambda_.1} parent=11 // pred_fallthru
          _
        // Predicated region
        $region105: #{_lambda_.1} parent=11 // pred_check
          %p1088 = pneg %p626
        $region106: #{_lambda_.1} parent=11 // pred_check_branch
          %1090 = sbr.rel (%p1088) target = $region108
        $region107: #{_lambda_.1} parent=11 // pred_region
          %s1092 = ssub.s32 128, 128
          %1093 = vsyncadd [#allocation15], %s1092
          %s1095 = sshll.u32 [#allocation14], 4
          %s1096 = int_to_ptr.vmem [resolvable:$true] %s1095
          %1098 = dma.hbm_to_vmem [thread:$0]  %s49, 128, %s1096, [#allocation15]
        $region108: #{_lambda_.1} parent=11 // pred_fallthru
          _
        // Predicated region
        $region109: #{_lambda_.1} parent=11 // pred_check
          %p1099 = pneg %p647
        $region110: #{_lambda_.1} parent=11 // pred_check_branch
          %1101 = sbr.rel (%p1099) target = $region112
        $region111: #{_lambda_.1} parent=11 // pred_region
          _
        $region112: #{_lambda_.1} parent=11 // pred_fallthru
          _
        // Predicated region
        $region113: #{_lambda_.1} parent=11 // pred_check
          %p1102 = pneg %p668
        $region114: #{_lambda_.1} parent=11 // pred_check_branch
          %1104 = sbr.rel (%p1102) target = $region116
        $region115: #{_lambda_.1} parent=11 // pred_region
          _
        $region116: #{_lambda_.1} parent=11 // pred_fallthru
          _
        // Predicated region
        $region117: #{_lambda_.1} parent=11 // pred_check
          %p1105 = pneg %p689
        $region118: #{_lambda_.1} parent=11 // pred_check_branch
          %1107 = sbr.rel (%p1105) target = $region120
        $region119: #{_lambda_.1} parent=11 // pred_region
          %s1109 = ssub.s32 512, 512
          %1110 = vsyncadd [#allocation15], %s1109
          %s1111 = sshll.u32 [#allocation16], 4
          %s1112 = int_to_ptr.vmem [resolvable:$true] %s1111
          %1117 = dma.hbm_to_vmem [thread:$0]  %s55, 512, %s1112, [#allocation15], 128, 128, 8
        $region120: #{_lambda_.1} parent=11 // pred_fallthru
          _
        // Predicated region
        $region121: #{_lambda_.1} parent=11 // pred_check
          %p1118 = pneg %p710
        $region122: #{_lambda_.1} parent=11 // pred_check_branch
          %1120 = sbr.rel (%p1118) target = $region124
        $region123: #{_lambda_.1} parent=11 // pred_region
          _
        $region124: #{_lambda_.1} parent=11 // pred_fallthru
          _
        // Predicated region
        $region125: #{_lambda_.1} parent=11 // pred_check
          %p1121 = pneg %p731
        $region126: #{_lambda_.1} parent=11 // pred_check_branch
          %1123 = sbr.rel (%p1121) target = $region128
        $region127: #{_lambda_.1} parent=11 // pred_region
          _
        $region128: #{_lambda_.1} parent=11 // pred_fallthru
          _
        // Predicated region
        $region129: #{_lambda_.1} parent=11 // pred_check
          %p1124 = pneg %p752
        $region130: #{_lambda_.1} parent=11 // pred_check_branch
          %1126 = sbr.rel (%p1124) target = $region132
        $region131: #{_lambda_.1} parent=11 // pred_region
          _
        $region132: #{_lambda_.1} parent=11 // pred_fallthru
          _
        // Predicated region
        $region133: #{_lambda_.1} parent=11 // pred_check
          %p1127 = pneg %p773
        $region134: #{_lambda_.1} parent=11 // pred_check_branch
          %1129 = sbr.rel (%p1127) target = $region136
        $region135: #{_lambda_.1} parent=11 // pred_region
          _
        $region136: #{_lambda_.1} parent=11 // pred_fallthru
          _
        // Predicated region
        $region137: #{_lambda_.1} parent=11 // pred_check
          %p1130 = pneg %p794
        $region138: #{_lambda_.1} parent=11 // pred_check_branch
          %1132 = sbr.rel (%p1130) target = $region140
        $region139: #{_lambda_.1} parent=11 // pred_region
          _
        $region140: #{_lambda_.1} parent=11 // pred_fallthru
          _
        // Predicated region
        $region141: #{_lambda_.1} parent=11 // pred_check
          %p1133 = pneg %p815
        $region142: #{_lambda_.1} parent=11 // pred_check_branch
          %1135 = sbr.rel (%p1133) target = $region144
        $region143: #{_lambda_.1} parent=11 // pred_region
          _
        $region144: #{_lambda_.1} parent=11 // pred_fallthru
          _
        // Predicated region
        $region145: #{_lambda_.1} parent=11 // pred_check
          %p1136 = pneg %p836
        $region146: #{_lambda_.1} parent=11 // pred_check_branch
          %1138 = sbr.rel (%p1136) target = $region148
        $region147: #{_lambda_.1} parent=11 // pred_region
          _
        $region148: #{_lambda_.1} parent=11 // pred_fallthru
          _
        // Predicated region
        $region149: #{_lambda_.1} parent=11 // pred_check
          %p1139 = pneg %p857
        $region150: #{_lambda_.1} parent=11 // pred_check_branch
          %1141 = sbr.rel (%p1139) target = $region152
        $region151: #{_lambda_.1} parent=11 // pred_region
          %s1143 = ssub.s32 2048, 2048
          %1144 = vsyncadd [#allocation18], %s1143
          %s1145 = sshll.u32 [#allocation17], 4
          %s1146 = int_to_ptr.vmem [resolvable:$true] %s1145
          %1151 = dma.hbm_to_vmem [thread:$0]  %s71, 2048, %s1146, [#allocation18], 128, 128, 8
        $region152: #{_lambda_.1} parent=11 // pred_fallthru
          _
        // Predicated region
        $region153: #{_lambda_.1} parent=11 // pred_check
          %p1152 = pneg %p878
        $region154: #{_lambda_.1} parent=11 // pred_check_branch
          %1154 = sbr.rel (%p1152) target = $region156
        $region155: #{_lambda_.1} parent=11 // pred_region
          _
        $region156: #{_lambda_.1} parent=11 // pred_fallthru
          _
        // Predicated region
        $region157: #{_lambda_.1} parent=11 // pred_check
          %p1155 = pneg %p899
        $region158: #{_lambda_.1} parent=11 // pred_check_branch
          %1157 = sbr.rel (%p1155) target = $region160
        $region159: #{_lambda_.1} parent=11 // pred_region
          _
        $region160: #{_lambda_.1} parent=11 // pred_fallthru
          _
        // Predicated region
        $region161: #{_lambda_.1} parent=11 // pred_check
          %p1158 = pneg %p920
        $region162: #{_lambda_.1} parent=11 // pred_check_branch
          %1160 = sbr.rel (%p1158) target = $region164
        $region163: #{_lambda_.1} parent=11 // pred_region
          _
        $region164: #{_lambda_.1} parent=11 // pred_fallthru
          _
      $region12: #{_lambda_.1} parent=5 // pred_fallthru
        _
      %p1161 = scmp.lt.s32.totalorder %s96, 2
      // Predicated region
      $region165: #{_lambda_.1} parent=5 // pred_check
        %p1162 = pneg %p1161
      $region166: #{_lambda_.1} parent=5 // pred_check_branch
        %1164 = sbr.rel (%p1162) target = $region168
      $region167: #{_lambda_.1} parent=5 // pred_region
        // Predicated region
        $region169: #{_lambda_.1} parent=167 // pred_check
          %p1165 = pneg %p116
        $region170: #{_lambda_.1} parent=167 // pred_check_branch
          %1167 = sbr.rel (%p1165) target = $region172
        $region171: #{_lambda_.1} parent=167 // pred_region
          %s1168 = sand.u32 %s106, 1
          %s1169 = scalar_lea.sflag [#allocation3], %s1168
          %s1170 = sand.u32 %s106, 1
          %s1171 = smul.addr %s1170, 8
          %s1172 = scalar_lea.vmem [#allocation2], %s1171
          %s1174 = ssub.s32 128, 128
          %1175 = vsyncadd %s1169, %s1174
          %s1176 = smul.addr %s96, 128
          %s1177 = scalar_lea.hbm %s1, %s1176
          %s1179 = sshll.u32 %s1172, 4
          %s1180 = int_to_ptr.vmem [resolvable:$true] %s1179
          %1182 = dma.hbm_to_vmem [thread:$0]  %s1177, 128, %s1180, %s1169
        $region172: #{_lambda_.1} parent=167 // pred_fallthru
          _
      $region168: #{_lambda_.1} parent=5 // pred_fallthru
        _
      %p1183 = scmp.le.s32.totalorder 1, %s96
      %p1184 = scmp.lt.s32.totalorder %s96, 3
      %p1185 = pnand %p1183, %p1184
      %p1186 = pneg %p1185
      // Predicated region
      $region173: #{_lambda_.1} parent=5 // pred_check
        _
      $region174: #{_lambda_.1} parent=5 // pred_check_branch
        %1188 = sbr.rel (%p1185) target = $region176
      $region175: #{_lambda_.1} parent=5 // pred_region
        %s1189 = ssub.s32 %s96, 1
        %s1190 = sand.u32 %s109, 1
        %s1191 = scalar_lea.sflag [#allocation3], %s1190
        %s1192 = sand.u32 %s109, 1
        %s1193 = smul.addr %s1192, 8
        %s1194 = scalar_lea.vmem [#allocation2], %s1193
        // Predicated region
        $region177: #{_lambda_.1} parent=175 // pred_check
          %p1195 = pneg %p122
        $region178: #{_lambda_.1} parent=175 // pred_check_branch
          %1197 = sbr.rel (%p1195) target = $region180
        $region179: #{_lambda_.1} parent=175 // pred_region
          %1198 = dma.done %s1191, 128
        $region180: #{_lambda_.1} parent=175 // pred_fallthru
          _
        // Predicated region
        $region181: #{_lambda_.1} parent=175 // pred_check
          %p1199 = pneg %p185
        $region182: #{_lambda_.1} parent=175 // pred_check_branch
          %1201 = sbr.rel (%p1199) target = $region184
        $region183: #{_lambda_.1} parent=175 // pred_region
          %1202 = dma.done [#allocation6], 512
        $region184: #{_lambda_.1} parent=175 // pred_fallthru
          _
        // Predicated region
        $region185: #{_lambda_.1} parent=175 // pred_check
          %p1203 = pneg %p227
        $region186: #{_lambda_.1} parent=175 // pred_check_branch
          %1205 = sbr.rel (%p1203) target = $region188
        $region187: #{_lambda_.1} parent=175 // pred_region
          %1206 = dma.done [#allocation6], 2048
        $region188: #{_lambda_.1} parent=175 // pred_fallthru
          _
        // Predicated region
        $region189: #{_lambda_.1} parent=175 // pred_check
          %p1207 = pneg %p353
        $region190: #{_lambda_.1} parent=175 // pred_check_branch
          %1209 = sbr.rel (%p1207) target = $region192
        $region191: #{_lambda_.1} parent=175 // pred_region
          %1210 = dma.done [#allocation9], 512
        $region192: #{_lambda_.1} parent=175 // pred_fallthru
          _
        // Predicated region
        $region193: #{_lambda_.1} parent=175 // pred_check
          %p1211 = pneg %p395
        $region194: #{_lambda_.1} parent=175 // pred_check_branch
          %1213 = sbr.rel (%p1211) target = $region196
        $region195: #{_lambda_.1} parent=175 // pred_region
          %1214 = dma.done [#allocation9], 128
        $region196: #{_lambda_.1} parent=175 // pred_fallthru
          _
        // Predicated region
        $region197: #{_lambda_.1} parent=175 // pred_check
          %p1215 = pneg %p458
        $region198: #{_lambda_.1} parent=175 // pred_check_branch
          %1217 = sbr.rel (%p1215) target = $region200
        $region199: #{_lambda_.1} parent=175 // pred_region
          %1218 = dma.done [#allocation12], 512
        $region200: #{_lambda_.1} parent=175 // pred_fallthru
          _
        // Predicated region
        $region201: #{_lambda_.1} parent=175 // pred_check
          %p1219 = pneg %p584
        $region202: #{_lambda_.1} parent=175 // pred_check_branch
          %1221 = sbr.rel (%p1219) target = $region204
        $region203: #{_lambda_.1} parent=175 // pred_region
          %1222 = dma.done [#allocation12], 512
        $region204: #{_lambda_.1} parent=175 // pred_fallthru
          _
        // Predicated region
        $region205: #{_lambda_.1} parent=175 // pred_check
          %p1223 = pneg %p626
        $region206: #{_lambda_.1} parent=175 // pred_check_branch
          %1225 = sbr.rel (%p1223) target = $region208
        $region207: #{_lambda_.1} parent=175 // pred_region
          %1226 = dma.done [#allocation15], 128
        $region208: #{_lambda_.1} parent=175 // pred_fallthru
          _
        // Predicated region
        $region209: #{_lambda_.1} parent=175 // pred_check
          %p1227 = pneg %p689
        $region210: #{_lambda_.1} parent=175 // pred_check_branch
          %1229 = sbr.rel (%p1227) target = $region212
        $region211: #{_lambda_.1} parent=175 // pred_region
          %1230 = dma.done [#allocation15], 512
        $region212: #{_lambda_.1} parent=175 // pred_fallthru
          _
        // Predicated region
        $region213: #{_lambda_.1} parent=175 // pred_check
          %p1231 = pneg %p857
        $region214: #{_lambda_.1} parent=175 // pred_check_branch
          %1233 = sbr.rel (%p1231) target = $region216
        $region215: #{_lambda_.1} parent=175 // pred_region
          %1234 = dma.done [#allocation18], 2048
        $region216: #{_lambda_.1} parent=175 // pred_fallthru
          _
        %s1235 = sand.u32 %s109, 1
        %s1236 = scalar_lea.sflag [#allocation3], %s1235
        %s1237 = sand.u32 %s109, 1
        %s1238 = smul.addr %s1237, 8
        %s1239 = scalar_lea.vmem [#allocation2], %s1238
        %p1240 = pneg %p122
        %p1241 = pneg %p119
        %p1242 = pneg %p143
        %p1243 = pneg %p140
        %p1244 = pneg %p164
        %p1245 = pneg %p161
        %p1246 = pneg %p185
        %p1247 = pneg %p182
        %p1248 = pneg %p206
        %p1249 = pneg %p203
        %p1250 = pneg %p227
        %p1251 = pneg %p224
        %p1252 = pneg %p248
        %p1253 = pneg %p245
        %p1254 = pneg %p269
        %p1255 = pneg %p266
        %p1256 = pneg %p290
        %p1257 = pneg %p287
        %p1258 = pneg %p311
        %p1259 = pneg %p308
        %p1260 = pneg %p332
        %p1261 = pneg %p329
        %p1262 = pneg %p353
        %p1263 = pneg %p350
        %p1264 = pneg %p374
        %p1265 = pneg %p371
        %p1266 = pneg %p395
        %p1267 = pneg %p392
        %p1268 = pneg %p416
        %p1269 = pneg %p413
        %p1270 = pneg %p437
        %p1271 = pneg %p434
        %p1272 = pneg %p458
        %p1273 = pneg %p455
        %p1274 = pneg %p479
        %p1275 = pneg %p476
        %p1276 = pneg %p500
        %p1277 = pneg %p497
        %p1278 = pneg %p521
        %p1279 = pneg %p518
        %p1280 = pneg %p542
        %p1281 = pneg %p539
        %p1282 = pneg %p563
        %p1283 = pneg %p560
        %p1284 = pneg %p584
        %p1285 = pneg %p581
        %p1286 = pneg %p605
        %p1287 = pneg %p602
        %p1288 = pneg %p626
        %p1289 = pneg %p623
        %p1290 = pneg %p647
        %p1291 = pneg %p644
        %p1292 = pneg %p668
        %p1293 = pneg %p665
        %p1294 = pneg %p689
        %p1295 = pneg %p686
        %p1296 = pneg %p710
        %p1297 = pneg %p707
        %p1298 = pneg %p731
        %p1299 = pneg %p728
        %p1300 = pneg %p752
        %p1301 = pneg %p749
        %p1302 = pneg %p773
        %p1303 = pneg %p770
        %p1304 = pneg %p794
        %p1305 = pneg %p791
        %p1306 = pneg %p815
        %p1307 = pneg %p812
        %p1308 = pneg %p836
        %p1309 = pneg %p833
        %p1310 = pneg %p857
        %p1311 = pneg %p854
        %p1312 = pneg %p878
        %p1313 = pneg %p875
        %p1314 = pneg %p899
        %p1315 = pneg %p896
        %p1316 = pneg %p920
        %p1317 = pneg %p917
        %p1318 = pneg %p946
        %p1319 = pneg %p943
        %s1320 = sand.u32 %s933, 1
        %s1321 = scalar_lea.sflag [#allocation4], %s1320
        %s1322 = sand.u32 %s933, 1
        %s1323 = smul.addr %s1322, 8
        %s1324 = scalar_lea.vmem [#allocation19], %s1323
        %v1325 = vld [vmem:[%s1194] sm:$0xff]
        %v1326 = vld [vmem:[%s3] sm:$0x1]
        %v1327 = vld [vmem:[%s5] sm:$0x1]
        %vm1328 = vcmask 261120
        %v1329 = vsel %vm1328, %v1325, 0.0
        %1330 = vadd.xlane.f32.xlu0 %v1329
        %v1331 = vpop.xlane.xlu0 %1330
        %v1332 = vrcp.pop 32.0
        %v1333 = vmul.f32 %v1331, %v1332
        %v1334 = vsub.f32 %v1325, %v1333
        %v1335 = vmul.f32 %v1334, %v1334
        %v1336 = vsel %vm1328, %v1335, 0.0
        %1337 = vadd.xlane.f32.xlu0 %v1336
        %v1338 = vpop.xlane.xlu0 %1337
        %v1339 = vmul.f32 %v1338, %v1332
        %v1340 = vadd.f32 %v1339, 1e-05
        %v1341 = vrsqrt.pop %v1340
        %v1342 = vmul.f32 %v1334, %v1341
        %v1344 = vlaneseq
        %v1345 = vshrl.u32 %v1344, 7
        %v1346 = vsub.s32 0, %v1345
        %v1347 = vrot.slane %v1326, %v1346
        %v1349 = vmul.f32 %v1342, %v1347
        %v1351 = vlaneseq
        %v1352 = vshrl.u32 %v1351, 7
        %v1353 = vsub.s32 0, %v1352
        %v1354 = vrot.slane %v1327, %v1353
        %v1356 = vadd.f32 %v1349, %v1354
        %v1357 = vld [vmem:[#allocation5] sm:$0xff]
        %v1358 = vld [vmem:[#allocation5 + $0x8] sm:$0xff]
        %v1359 = vld [vmem:[#allocation5 + $0x10] sm:$0xff]
        %v1360 = vld [vmem:[#allocation5 + $0x18] sm:$0xff]
        %v1361 = vld [vmem:[%s9] sm:$0x1]
        %v1363 = vlaneseq
        %v1364 = vshrl.u32 %v1363, 7
        %v1365 = vsub.s32 0, %v1364
        %v1366 = vrot.slane %v1361, %v1365
        %v1369 = vsel %vm1328, %v1356, 0
        %1371 = vmatprep.subr.mxu0 0.0
        %1372 = vmatpush1.msra.mxu0 0.0
        %1373 = vmatprep.subr.mxu0 0.0
        %1374 = vmatpush1.msra.mxu0 0.0
        %1375 = vmatprep.subr.mxu0 0.0
        %1376 = vmatpush1.msra.mxu0 0.0
        %1377 = vmatprep.subr.mxu0 0.0
        %1378 = vmatpush1.msra.mxu0 0.0
        %1379 = vmatprep.subr.mxu0 0.0
        %1380 = vmatpush1.msra.mxu0 0.0
        %1381 = vmatprep.subr.mxu0 0.0
        %1382 = vmatpush1.msra.mxu0 0.0
        %1383 = vmatprep.subr.mxu0 0.0
        %1384 = vmatpush1.msra.mxu0 0.0
        %1385 = vmatprep.subr.mxu0 0.0
        %1386 = vmatpush1.msra.mxu0 0.0
        %1387 = vmatprep.subr.mxu0 0.0
        %1388 = vmatpush1.msra.mxu0 0.0
        %1389 = vmatprep.subr.mxu0 0.0
        %1390 = vmatpush1.msra.mxu0 0.0
        %1391 = vmatprep.subr.mxu0 0.0
        %1392 = vmatpush1.msra.mxu0 0.0
        %1393 = vmatprep.subr.mxu0 0.0
        %1394 = vmatpush1.msra.mxu0 0.0
        %1395 = vmatprep.subr.mxu0 0.0
        %1396 = vmatpush1.msra.mxu0 %v1360
        %1397 = vmatprep.subr.mxu0 0.0
        %1398 = vmatpush1.msra.mxu0 %v1359
        %1399 = vmatprep.subr.mxu0 0.0
        %1400 = vmatpush1.msra.mxu0 %v1358
        %1401 = vmatprep.subr.mxu0 0.0
        %1402 = vmatpush1.msra.mxu0 %v1357
        %1403 = vmatprep.subr.mxu0 0.0
        %1404 = vmatpush2.msra.mxu0 0.0
        %1405 = vmatprep.subr.mxu0 0.0
        %1406 = vmatpush2.msra.mxu0 0.0
        %1407 = vmatprep.subr.mxu0 0.0
        %1408 = vmatpush2.msra.mxu0 0.0
        %1409 = vmatprep.subr.mxu0 0.0
        %1410 = vmatpush2.msra.mxu0 0.0
        %1411 = vmatprep.subr.mxu0 0.0
        %1412 = vmatpush2.msra.mxu0 0.0
        %1413 = vmatprep.subr.mxu0 0.0
        %1414 = vmatpush2.msra.mxu0 0.0
        %1415 = vmatprep.subr.mxu0 0.0
        %1416 = vmatpush2.msra.mxu0 0.0
        %1417 = vmatprep.subr.mxu0 0.0
        %1418 = vmatpush2.msra.mxu0 0.0
        %1419 = vmatprep.subr.mxu0 0.0
        %1420 = vmatpush2.msra.mxu0 0.0
        %1421 = vmatprep.subr.mxu0 0.0
        %1422 = vmatpush2.msra.mxu0 0.0
        %1423 = vmatprep.subr.mxu0 0.0
        %1424 = vmatpush2.msra.mxu0 0.0
        %1425 = vmatprep.subr.mxu0 0.0
        %1426 = vmatpush2.msra.mxu0 0.0
        %1427 = vmatprep.subr.mxu0 0.0
        %1428 = vmatpush2.msra.mxu0 0.0
        %1429 = vmatprep.subr.mxu0 0.0
        %1430 = vmatpush2.msra.mxu0 0.0
        %1431 = vmatprep.subr.mxu0 0.0
        %1432 = vmatpush2.msra.mxu0 0.0
        %1433 = vmatprep.subr.mxu0 0.0
        %1434 = vmatpush2.msra.mxu0 0.0
        %1435 = vmatprep.mubr.f32.mxu0 0.0
        %1436 = vmatmul.mubr.f32.gmra.mxu0 %v1369
        %v1437 = vpop.f32.mrf.mxu0
        %v1438 = vadd.f32 %v1366, %v1437
        %v1439 = vpop.f32.mrf.mxu0
        %1440 = vdwg.mxu0
        %v1441 = vxor.u32 %v1438, 2147483648
        %v1442 = vmul.f32 %v1441, 1.442695
        %v1443 = vpow.pop %v1442
        %v1444 = vadd.f32 %v1443, 1.0
        %v1445 = vrcp.pop %v1444
        %v1446 = vmul.f32 1.0, %v1445
        %v1447 = vmul.f32 %v1438, %v1446
        %v1448 = vld [vmem:[#allocation7] sm:$0xff]
        %v1449 = vld [vmem:[#allocation7 + $0x8] sm:$0xff]
        %v1450 = vld [vmem:[#allocation7 + $0x10] sm:$0xff]
        %v1451 = vld [vmem:[#allocation7 + $0x18] sm:$0xff]
        %v1452 = vld [vmem:[#allocation7 + $0x20] sm:$0xff]
        %v1453 = vld [vmem:[#allocation7 + $0x28] sm:$0xff]
        %v1454 = vld [vmem:[#allocation7 + $0x30] sm:$0xff]
        %v1455 = vld [vmem:[#allocation7 + $0x38] sm:$0xff]
        %v1456 = vld [vmem:[#allocation7 + $0x40] sm:$0xff]
        %v1457 = vld [vmem:[#allocation7 + $0x48] sm:$0xff]
        %v1458 = vld [vmem:[#allocation7 + $0x50] sm:$0xff]
        %v1459 = vld [vmem:[#allocation7 + $0x58] sm:$0xff]
        %v1460 = vld [vmem:[#allocation7 + $0x60] sm:$0xff]
        %v1461 = vld [vmem:[#allocation7 + $0x68] sm:$0xff]
        %v1462 = vld [vmem:[#allocation7 + $0x70] sm:$0xff]
        %v1463 = vld [vmem:[#allocation7 + $0x78] sm:$0xff]
        %v1464 = vld [vmem:[%s13] sm:$0x1]
        %v1466 = vlaneseq
        %v1467 = vshrl.u32 %v1466, 7
        %v1468 = vsub.s32 0, %v1467
        %v1469 = vrot.slane %v1464, %v1468
        %1471 = vmatprep.subr.mxu0 0.0
        %1472 = vmatpush1.msra.mxu0 %v1463
        %1473 = vmatprep.subr.mxu0 0.0
        %1474 = vmatpush1.msra.mxu0 %v1462
        %1475 = vmatprep.subr.mxu0 0.0
        %1476 = vmatpush1.msra.mxu0 %v1461
        %1477 = vmatprep.subr.mxu0 0.0
        %1478 = vmatpush1.msra.mxu0 %v1460
        %1479 = vmatprep.subr.mxu0 0.0
        %1480 = vmatpush1.msra.mxu0 %v1459
        %1481 = vmatprep.subr.mxu0 0.0
        %1482 = vmatpush1.msra.mxu0 %v1458
        %1483 = vmatprep.subr.mxu0 0.0
        %1484 = vmatpush1.msra.mxu0 %v1457
        %1485 = vmatprep.subr.mxu0 0.0
        %1486 = vmatpush1.msra.mxu0 %v1456
        %1487 = vmatprep.subr.mxu0 0.0
        %1488 = vmatpush1.msra.mxu0 %v1455
        %1489 = vmatprep.subr.mxu0 0.0
        %1490 = vmatpush1.msra.mxu0 %v1454
        %1491 = vmatprep.subr.mxu0 0.0
        %1492 = vmatpush1.msra.mxu0 %v1453
        %1493 = vmatprep.subr.mxu0 0.0
        %1494 = vmatpush1.msra.mxu0 %v1452
        %1495 = vmatprep.subr.mxu0 0.0
        %1496 = vmatpush1.msra.mxu0 %v1451
        %1497 = vmatprep.subr.mxu0 0.0
        %1498 = vmatpush1.msra.mxu0 %v1450
        %1499 = vmatprep.subr.mxu0 0.0
        %1500 = vmatpush1.msra.mxu0 %v1449
        %1501 = vmatprep.subr.mxu0 0.0
        %1502 = vmatpush1.msra.mxu0 %v1448
        %1503 = vmatprep.subr.mxu0 0.0
        %1504 = vmatpush2.msra.mxu0 0.0
        %1505 = vmatprep.subr.mxu0 0.0
        %1506 = vmatpush2.msra.mxu0 0.0
        %1507 = vmatprep.subr.mxu0 0.0
        %1508 = vmatpush2.msra.mxu0 0.0
        %1509 = vmatprep.subr.mxu0 0.0
        %1510 = vmatpush2.msra.mxu0 0.0
        %1511 = vmatprep.subr.mxu0 0.0
        %1512 = vmatpush2.msra.mxu0 0.0
        %1513 = vmatprep.subr.mxu0 0.0
        %1514 = vmatpush2.msra.mxu0 0.0
        %1515 = vmatprep.subr.mxu0 0.0
        %1516 = vmatpush2.msra.mxu0 0.0
        %1517 = vmatprep.subr.mxu0 0.0
        %1518 = vmatpush2.msra.mxu0 0.0
        %1519 = vmatprep.subr.mxu0 0.0
        %1520 = vmatpush2.msra.mxu0 0.0
        %1521 = vmatprep.subr.mxu0 0.0
        %1522 = vmatpush2.msra.mxu0 0.0
        %1523 = vmatprep.subr.mxu0 0.0
        %1524 = vmatpush2.msra.mxu0 0.0
        %1525 = vmatprep.subr.mxu0 0.0
        %1526 = vmatpush2.msra.mxu0 0.0
        %1527 = vmatprep.subr.mxu0 0.0
        %1528 = vmatpush2.msra.mxu0 0.0
        %1529 = vmatprep.subr.mxu0 0.0
        %1530 = vmatpush2.msra.mxu0 0.0
        %1531 = vmatprep.subr.mxu0 0.0
        %1532 = vmatpush2.msra.mxu0 0.0
        %1533 = vmatprep.subr.mxu0 0.0
        %1534 = vmatpush2.msra.mxu0 0.0
        %1535 = vmatprep.mubr.f32.mxu0 0.0
        %1536 = vmatmul.mubr.f32.gmra.mxu0 %v1447
        %v1537 = vpop.f32.mrf.mxu0
        %v1538 = vadd.f32 %v1469, %v1537
        %v1539 = vpop.f32.mrf.mxu0
        %1540 = vdwg.mxu0
        %v1541 = vadd.f32 %v1538, %v1325
        %v1542 = vld [vmem:[%s15] sm:$0x1]
        %v1543 = vld [vmem:[%s17] sm:$0x1]
        %v1544 = vsel %vm1328, %v1541, 0.0
        %1545 = vadd.xlane.f32.xlu0 %v1544
        %v1546 = vpop.xlane.xlu0 %1545
        %v1547 = vmul.f32 %v1546, %v1332
        %v1548 = vsub.f32 %v1541, %v1547
        %v1549 = vmul.f32 %v1548, %v1548
        %v1550 = vsel %vm1328, %v1549, 0.0
        %1551 = vadd.xlane.f32.xlu0 %v1550
        %v1552 = vpop.xlane.xlu0 %1551
        %v1553 = vmul.f32 %v1552, %v1332
        %v1554 = vadd.f32 %v1553, 1e-05
        %v1555 = vrsqrt.pop %v1554
        %v1556 = vmul.f32 %v1548, %v1555
        %v1558 = vlaneseq
        %v1559 = vshrl.u32 %v1558, 7
        %v1560 = vsub.s32 0, %v1559
        %v1561 = vrot.slane %v1542, %v1560
        %v1563 = vmul.f32 %v1556, %v1561
        %v1565 = vlaneseq
        %v1566 = vshrl.u32 %v1565, 7
        %v1567 = vsub.s32 0, %v1566
        %v1568 = vrot.slane %v1543, %v1567
        %v1570 = vadd.f32 %v1563, %v1568
        %v1571 = vld [vmem:[%s19] sm:$0x1]
        %v1572 = vld [vmem:[%s21] sm:$0x1]
        %v1573 = vsel %vm1328, %v1570, 0.0
        %1574 = vadd.xlane.f32.xlu0 %v1573
        %v1575 = vpop.xlane.xlu0 %1574
        %v1576 = vmul.f32 %v1575, %v1332
        %v1577 = vsub.f32 %v1570, %v1576
        %v1578 = vmul.f32 %v1577, %v1577
        %v1579 = vsel %vm1328, %v1578, 0.0
        %1580 = vadd.xlane.f32.xlu0 %v1579
        %v1581 = vpop.xlane.xlu0 %1580
        %v1582 = vmul.f32 %v1581, %v1332
        %v1583 = vadd.f32 %v1582, 1e-05
        %v1584 = vrsqrt.pop %v1583
        %v1585 = vmul.f32 %v1577, %v1584
        %v1587 = vlaneseq
        %v1588 = vshrl.u32 %v1587, 7
        %v1589 = vsub.s32 0, %v1588
        %v1590 = vrot.slane %v1571, %v1589
        %v1592 = vmul.f32 %v1585, %v1590
        %v1594 = vlaneseq
        %v1595 = vshrl.u32 %v1594, 7
        %v1596 = vsub.s32 0, %v1595
        %v1597 = vrot.slane %v1572, %v1596
        %v1599 = vadd.f32 %v1592, %v1597
        %v1600 = vld [vmem:[#allocation8] sm:$0xff]
        %v1601 = vld [vmem:[#allocation8 + $0x8] sm:$0xff]
        %v1602 = vld [vmem:[#allocation8 + $0x10] sm:$0xff]
        %v1603 = vld [vmem:[#allocation8 + $0x18] sm:$0xff]
        %v1604 = vld [vmem:[%s25] sm:$0x1]
        %v1606 = vlaneseq
        %v1607 = vshrl.u32 %v1606, 7
        %v1608 = vsub.s32 0, %v1607
        %v1609 = vrot.slane %v1604, %v1608
        %v1612 = vsel %vm1328, %v1599, 0
        %1614 = vmatprep.subr.mxu0 0.0
        %1615 = vmatpush1.msra.mxu0 0.0
        %1616 = vmatprep.subr.mxu0 0.0
        %1617 = vmatpush1.msra.mxu0 0.0
        %1618 = vmatprep.subr.mxu0 0.0
        %1619 = vmatpush1.msra.mxu0 0.0
        %1620 = vmatprep.subr.mxu0 0.0
        %1621 = vmatpush1.msra.mxu0 0.0
        %1622 = vmatprep.subr.mxu0 0.0
        %1623 = vmatpush1.msra.mxu0 0.0
        %1624 = vmatprep.subr.mxu0 0.0
        %1625 = vmatpush1.msra.mxu0 0.0
        %1626 = vmatprep.subr.mxu0 0.0
        %1627 = vmatpush1.msra.mxu0 0.0
        %1628 = vmatprep.subr.mxu0 0.0
        %1629 = vmatpush1.msra.mxu0 0.0
        %1630 = vmatprep.subr.mxu0 0.0
        %1631 = vmatpush1.msra.mxu0 0.0
        %1632 = vmatprep.subr.mxu0 0.0
        %1633 = vmatpush1.msra.mxu0 0.0
        %1634 = vmatprep.subr.mxu0 0.0
        %1635 = vmatpush1.msra.mxu0 0.0
        %1636 = vmatprep.subr.mxu0 0.0
        %1637 = vmatpush1.msra.mxu0 0.0
        %1638 = vmatprep.subr.mxu0 0.0
        %1639 = vmatpush1.msra.mxu0 %v1603
        %1640 = vmatprep.subr.mxu0 0.0
        %1641 = vmatpush1.msra.mxu0 %v1602
        %1642 = vmatprep.subr.mxu0 0.0
        %1643 = vmatpush1.msra.mxu0 %v1601
        %1644 = vmatprep.subr.mxu0 0.0
        %1645 = vmatpush1.msra.mxu0 %v1600
        %1646 = vmatprep.subr.mxu0 0.0
        %1647 = vmatpush2.msra.mxu0 0.0
        %1648 = vmatprep.subr.mxu0 0.0
        %1649 = vmatpush2.msra.mxu0 0.0
        %1650 = vmatprep.subr.mxu0 0.0
        %1651 = vmatpush2.msra.mxu0 0.0
        %1652 = vmatprep.subr.mxu0 0.0
        %1653 = vmatpush2.msra.mxu0 0.0
        %1654 = vmatprep.subr.mxu0 0.0
        %1655 = vmatpush2.msra.mxu0 0.0
        %1656 = vmatprep.subr.mxu0 0.0
        %1657 = vmatpush2.msra.mxu0 0.0
        %1658 = vmatprep.subr.mxu0 0.0
        %1659 = vmatpush2.msra.mxu0 0.0
        %1660 = vmatprep.subr.mxu0 0.0
        %1661 = vmatpush2.msra.mxu0 0.0
        %1662 = vmatprep.subr.mxu0 0.0
        %1663 = vmatpush2.msra.mxu0 0.0
        %1664 = vmatprep.subr.mxu0 0.0
        %1665 = vmatpush2.msra.mxu0 0.0
        %1666 = vmatprep.subr.mxu0 0.0
        %1667 = vmatpush2.msra.mxu0 0.0
        %1668 = vmatprep.subr.mxu0 0.0
        %1669 = vmatpush2.msra.mxu0 0.0
        %1670 = vmatprep.subr.mxu0 0.0
        %1671 = vmatpush2.msra.mxu0 0.0
        %1672 = vmatprep.subr.mxu0 0.0
        %1673 = vmatpush2.msra.mxu0 0.0
        %1674 = vmatprep.subr.mxu0 0.0
        %1675 = vmatpush2.msra.mxu0 0.0
        %1676 = vmatprep.subr.mxu0 0.0
        %1677 = vmatpush2.msra.mxu0 0.0
        %1678 = vmatprep.mubr.f32.mxu0 0.0
        %1679 = vmatmul.mubr.f32.gmra.mxu0 %v1612
        %v1680 = vpop.f32.mrf.mxu0
        %v1681 = vadd.f32 %v1609, %v1680
        %v1682 = vpop.f32.mrf.mxu0
        %1683 = vdwg.mxu0
        %v1684 = vld [vmem:[#allocation10] sm:$0xff]
        %v1685 = vld [vmem:[%s29] sm:$0x1]
        %v1686 = vld [vmem:[%s31] sm:$0x1]
        %v1687 = vld [vmem:[#allocation11] sm:$0xff]
        %v1688 = vld [vmem:[#allocation11 + $0x8] sm:$0xff]
        %v1689 = vld [vmem:[#allocation11 + $0x10] sm:$0xff]
        %v1690 = vld [vmem:[#allocation11 + $0x18] sm:$0xff]
        %v1691 = vlaneseq
        %v1692 = vand.u32 %v1691, 127
        %vm1693 = vcmp.ge.s32.totalorder %v1692, 0
        %vm1694 = vcmp.lt.s32.totalorder %v1692, 8
        %vm1695 = vmand %vm1693, %vm1694
        %v1696 = vsel %vm1695, 1, 0
        %v1697 = vcvt.s32.f32 %v1696
        %v1699 = vlaneseq
        %v1700 = vshrl.u32 %v1699, 7
        %v1701 = vsub.s32 0, %v1700
        %v1702 = vrot.slane %v1685, %v1701
        %v1704 = vadd.f32 %v1681, %v1702
        %1706 = vrot.lane.b32.xlu0 %v1697, 32
        %v1707 = vpop.permute.xlu0 %1706
        %v1709 = vmul.f32 %v1681, %v1707
        %v1711 = vlaneseq
        %v1712 = vshrl.u32 %v1711, 7
        %v1713 = vsub.s32 0, %v1712
        %v1714 = vrot.slane %v1686, %v1713
        %v1716 = vadd.f32 %v1681, %v1714
        %v1717 = vmul.f32 %v1684, %v1697
        %v1719 = vsel %vm1328, %v1716, 0
        %v1722 = vsel %vm1328, %v1717, 0
        %1724 = vmatprep.subr.mxu0 0.0
        %1725 = vmatpush1.xpose.msra.mxu0 0.0
        %1726 = vmatprep.subr.mxu0 0.0
        %1727 = vmatpush1.xpose.msra.mxu0 0.0
        %1728 = vmatprep.subr.mxu0 0.0
        %1729 = vmatpush1.xpose.msra.mxu0 0.0
        %1730 = vmatprep.subr.mxu0 0.0
        %1731 = vmatpush1.xpose.msra.mxu0 0.0
        %1732 = vmatprep.subr.mxu0 0.0
        %1733 = vmatpush1.xpose.msra.mxu0 0.0
        %1734 = vmatprep.subr.mxu0 0.0
        %1735 = vmatpush1.xpose.msra.mxu0 0.0
        %1736 = vmatprep.subr.mxu0 0.0
        %1737 = vmatpush1.xpose.msra.mxu0 0.0
        %1738 = vmatprep.subr.mxu0 0.0
        %1739 = vmatpush1.xpose.msra.mxu0 0.0
        %1740 = vmatprep.subr.mxu0 0.0
        %1741 = vmatpush1.xpose.msra.mxu0 0.0
        %1742 = vmatprep.subr.mxu0 0.0
        %1743 = vmatpush1.xpose.msra.mxu0 0.0
        %1744 = vmatprep.subr.mxu0 0.0
        %1745 = vmatpush1.xpose.msra.mxu0 0.0
        %1746 = vmatprep.subr.mxu0 0.0
        %1747 = vmatpush1.xpose.msra.mxu0 0.0
        %1748 = vmatprep.subr.mxu0 0.0
        %1749 = vmatpush1.xpose.msra.mxu0 0.0
        %1750 = vmatprep.subr.mxu0 0.0
        %1751 = vmatpush1.xpose.msra.mxu0 0.0
        %1752 = vmatprep.subr.mxu0 0.0
        %1753 = vmatpush1.xpose.msra.mxu0 0.0
        %1754 = vmatprep.subr.mxu0 0.0
        %1755 = vmatpush1.xpose.msra.mxu0 %v1722
        %1756 = vmatprep.subr.mxu0 0.0
        %1757 = vmatpush2.xpose.msra.mxu0 0.0
        %1758 = vmatprep.subr.mxu0 0.0
        %1759 = vmatpush2.xpose.msra.mxu0 0.0
        %1760 = vmatprep.subr.mxu0 0.0
        %1761 = vmatpush2.xpose.msra.mxu0 0.0
        %1762 = vmatprep.subr.mxu0 0.0
        %1763 = vmatpush2.xpose.msra.mxu0 0.0
        %1764 = vmatprep.subr.mxu0 0.0
        %1765 = vmatpush2.xpose.msra.mxu0 0.0
        %1766 = vmatprep.subr.mxu0 0.0
        %1767 = vmatpush2.xpose.msra.mxu0 0.0
        %1768 = vmatprep.subr.mxu0 0.0
        %1769 = vmatpush2.xpose.msra.mxu0 0.0
        %1770 = vmatprep.subr.mxu0 0.0
        %1771 = vmatpush2.xpose.msra.mxu0 0.0
        %1772 = vmatprep.subr.mxu0 0.0
        %1773 = vmatpush2.xpose.msra.mxu0 0.0
        %1774 = vmatprep.subr.mxu0 0.0
        %1775 = vmatpush2.xpose.msra.mxu0 0.0
        %1776 = vmatprep.subr.mxu0 0.0
        %1777 = vmatpush2.xpose.msra.mxu0 0.0
        %1778 = vmatprep.subr.mxu0 0.0
        %1779 = vmatpush2.xpose.msra.mxu0 0.0
        %1780 = vmatprep.subr.mxu0 0.0
        %1781 = vmatpush2.xpose.msra.mxu0 0.0
        %1782 = vmatprep.subr.mxu0 0.0
        %1783 = vmatpush2.xpose.msra.mxu0 0.0
        %1784 = vmatprep.subr.mxu0 0.0
        %1785 = vmatpush2.xpose.msra.mxu0 0.0
        %1786 = vmatprep.subr.mxu0 0.0
        %1787 = vmatpush2.xpose.msra.mxu0 0.0
        %1788 = vmatprep.mubr.f32.mxu0 0.0
        %1789 = vmatmul.mubr.f32.gmra.mxu0 %v1719
        %v1790 = vpop.f32.mrf.mxu0
        %v1791 = vadd.f32 0.0, %v1790
        %v1792 = vpop.f32.mrf.mxu0
        %1793 = vdwg.mxu0
        %v1794 = vlaneseq
        %v1795 = vshrl.u32 %v1794, 7
        %v1796 = vsub.s32 %v1692, %v1795
        %v1797 = vadd.s32 %v1795, 1
        %vm1798 = vcmp.eq.s32.totalorder %v1692, %v1797
        %v1799 = vsel %vm1798, 1, 0
        %v1800 = vcvt.s32.f32 %v1799
        %vm1801 = vcmask 64512
        %v1803 = vsel %vm1801, %v1800, 0
        %1805 = vmatprep.subr.mxu0 0.0
        %1806 = vmatpush1.msra.mxu0 0.0
        %1807 = vmatprep.subr.mxu0 0.0
        %1808 = vmatpush1.msra.mxu0 0.0
        %1809 = vmatprep.subr.mxu0 0.0
        %1810 = vmatpush1.msra.mxu0 0.0
        %1811 = vmatprep.subr.mxu0 0.0
        %1812 = vmatpush1.msra.mxu0 0.0
        %1813 = vmatprep.subr.mxu0 0.0
        %1814 = vmatpush1.msra.mxu0 0.0
        %1815 = vmatprep.subr.mxu0 0.0
        %1816 = vmatpush1.msra.mxu0 0.0
        %1817 = vmatprep.subr.mxu0 0.0
        %1818 = vmatpush1.msra.mxu0 0.0
        %1819 = vmatprep.subr.mxu0 0.0
        %1820 = vmatpush1.msra.mxu0 0.0
        %1821 = vmatprep.subr.mxu0 0.0
        %1822 = vmatpush1.msra.mxu0 0.0
        %1823 = vmatprep.subr.mxu0 0.0
        %1824 = vmatpush1.msra.mxu0 0.0
        %1825 = vmatprep.subr.mxu0 0.0
        %1826 = vmatpush1.msra.mxu0 0.0
        %1827 = vmatprep.subr.mxu0 0.0
        %1828 = vmatpush1.msra.mxu0 0.0
        %1829 = vmatprep.subr.mxu0 0.0
        %1830 = vmatpush1.msra.mxu0 0.0
        %1831 = vmatprep.subr.mxu0 0.0
        %1832 = vmatpush1.msra.mxu0 0.0
        %1833 = vmatprep.subr.mxu0 0.0
        %1834 = vmatpush1.msra.mxu0 0.0
        %1835 = vmatprep.subr.mxu0 0.0
        %1836 = vmatpush1.msra.mxu0 %v1791
        %1837 = vmatprep.subr.mxu0 0.0
        %1838 = vmatpush2.msra.mxu0 0.0
        %1839 = vmatprep.subr.mxu0 0.0
        %1840 = vmatpush2.msra.mxu0 0.0
        %1841 = vmatprep.subr.mxu0 0.0
        %1842 = vmatpush2.msra.mxu0 0.0
        %1843 = vmatprep.subr.mxu0 0.0
        %1844 = vmatpush2.msra.mxu0 0.0
        %1845 = vmatprep.subr.mxu0 0.0
        %1846 = vmatpush2.msra.mxu0 0.0
        %1847 = vmatprep.subr.mxu0 0.0
        %1848 = vmatpush2.msra.mxu0 0.0
        %1849 = vmatprep.subr.mxu0 0.0
        %1850 = vmatpush2.msra.mxu0 0.0
        %1851 = vmatprep.subr.mxu0 0.0
        %1852 = vmatpush2.msra.mxu0 0.0
        %1853 = vmatprep.subr.mxu0 0.0
        %1854 = vmatpush2.msra.mxu0 0.0
        %1855 = vmatprep.subr.mxu0 0.0
        %1856 = vmatpush2.msra.mxu0 0.0
        %1857 = vmatprep.subr.mxu0 0.0
        %1858 = vmatpush2.msra.mxu0 0.0
        %1859 = vmatprep.subr.mxu0 0.0
        %1860 = vmatpush2.msra.mxu0 0.0
        %1861 = vmatprep.subr.mxu0 0.0
        %1862 = vmatpush2.msra.mxu0 0.0
        %1863 = vmatprep.subr.mxu0 0.0
        %1864 = vmatpush2.msra.mxu0 0.0
        %1865 = vmatprep.subr.mxu0 0.0
        %1866 = vmatpush2.msra.mxu0 0.0
        %1867 = vmatprep.subr.mxu0 0.0
        %1868 = vmatpush2.msra.mxu0 0.0
        %1869 = vmatprep.mubr.f32.mxu0 0.0
        %1870 = vmatmul.mubr.f32.gmra.mxu0 %v1803
        %v1871 = vpop.f32.mrf.mxu0
        %v1872 = vadd.f32 0.0, %v1871
        %v1873 = vpop.f32.mrf.mxu0
        %1874 = vdwg.mxu0
        %vm1875 = vcmp.eq.s32.totalorder %v1796, 4294967289
        %v1876 = vsel %vm1875, 1, 0
        %v1877 = vcvt.s32.f32 %v1876
        %1879 = vset.pattern.permute.xlu0 0
        %1880 = vperm.xlu0 %1879, %v1791
        %v1881 = vpop.permute.xlu0 %1880
        %v1883 = vmul.f32 %v1877, %v1881
        %v1884 = vadd.f32 %v1883, 0.0
        %vm1885 = vcmp.eq.s32.totalorder %v1796, 2
        %v1886 = vsel %vm1885, 1, 0
        %v1887 = vcvt.s32.f32 %v1886
        %1889 = vset.pattern.permute.xlu0 0
        %1890 = vperm.xlu0 %1889, %v1872
        %v1891 = vpop.permute.xlu0 %1890
        %v1893 = vmul.f32 %v1887, %v1891
        %v1894 = vadd.f32 %v1884, %v1893
        %vm1895 = vcmp.eq.s32.totalorder %v1796, 4294967290
        %v1896 = vsel %vm1895, 1, 0
        %v1897 = vcvt.s32.f32 %v1896
        %1898 = vset.pattern.permute.xlu0 1
        %1899 = vperm.xlu0 %1898, %v1791
        %v1900 = vpop.permute.xlu0 %1899
        %v1902 = vmul.f32 %v1897, %v1900
        %v1903 = vadd.f32 %v1894, %v1902
        %vm1904 = vcmp.eq.s32.totalorder %v1796, 3
        %v1905 = vsel %vm1904, 1, 0
        %v1906 = vcvt.s32.f32 %v1905
        %1907 = vset.pattern.permute.xlu0 1
        %1908 = vperm.xlu0 %1907, %v1872
        %v1909 = vpop.permute.xlu0 %1908
        %v1911 = vmul.f32 %v1906, %v1909
        %v1912 = vadd.f32 %v1903, %v1911
        %vm1913 = vcmp.eq.s32.totalorder %v1796, 4294967291
        %v1914 = vsel %vm1913, 1, 0
        %v1915 = vcvt.s32.f32 %v1914
        %1916 = vset.pattern.permute.xlu0 2
        %1917 = vperm.xlu0 %1916, %v1791
        %v1918 = vpop.permute.xlu0 %1917
        %v1920 = vmul.f32 %v1915, %v1918
        %v1921 = vadd.f32 %v1912, %v1920
        %vm1922 = vcmp.eq.s32.totalorder %v1796, 4
        %v1923 = vsel %vm1922, 1, 0
        %v1924 = vcvt.s32.f32 %v1923
        %1925 = vset.pattern.permute.xlu0 2
        %1926 = vperm.xlu0 %1925, %v1872
        %v1927 = vpop.permute.xlu0 %1926
        %v1929 = vmul.f32 %v1924, %v1927
        %v1930 = vadd.f32 %v1921, %v1929
        %vm1931 = vcmp.eq.s32.totalorder %v1796, 4294967292
        %v1932 = vsel %vm1931, 1, 0
        %v1933 = vcvt.s32.f32 %v1932
        %1934 = vset.pattern.permute.xlu0 3
        %1935 = vperm.xlu0 %1934, %v1791
        %v1936 = vpop.permute.xlu0 %1935
        %v1938 = vmul.f32 %v1933, %v1936
        %v1939 = vadd.f32 %v1930, %v1938
        %vm1940 = vcmp.eq.s32.totalorder %v1796, 5
        %v1941 = vsel %vm1940, 1, 0
        %v1942 = vcvt.s32.f32 %v1941
        %1943 = vset.pattern.permute.xlu0 3
        %1944 = vperm.xlu0 %1943, %v1872
        %v1945 = vpop.permute.xlu0 %1944
        %v1947 = vmul.f32 %v1942, %v1945
        %v1948 = vadd.f32 %v1939, %v1947
        %vm1949 = vcmp.eq.s32.totalorder %v1796, 4294967293
        %v1950 = vsel %vm1949, 1, 0
        %v1951 = vcvt.s32.f32 %v1950
        %1952 = vset.pattern.permute.xlu0 4
        %1953 = vperm.xlu0 %1952, %v1791
        %v1954 = vpop.permute.xlu0 %1953
        %v1956 = vmul.f32 %v1951, %v1954
        %v1957 = vadd.f32 %v1948, %v1956
        %vm1958 = vcmp.eq.s32.totalorder %v1796, 6
        %v1959 = vsel %vm1958, 1, 0
        %v1960 = vcvt.s32.f32 %v1959
        %1961 = vset.pattern.permute.xlu0 4
        %1962 = vperm.xlu0 %1961, %v1872
        %v1963 = vpop.permute.xlu0 %1962
        %v1965 = vmul.f32 %v1960, %v1963
        %v1966 = vadd.f32 %v1957, %v1965
        %vm1967 = vcmp.eq.s32.totalorder %v1796, 4294967294
        %v1968 = vsel %vm1967, 1, 0
        %v1969 = vcvt.s32.f32 %v1968
        %1970 = vset.pattern.permute.xlu0 5
        %1971 = vperm.xlu0 %1970, %v1791
        %v1972 = vpop.permute.xlu0 %1971
        %v1974 = vmul.f32 %v1969, %v1972
        %v1975 = vadd.f32 %v1966, %v1974
        %vm1976 = vcmp.eq.s32.totalorder %v1796, 7
        %v1977 = vsel %vm1976, 1, 0
        %v1978 = vcvt.s32.f32 %v1977
        %1979 = vset.pattern.permute.xlu0 5
        %1980 = vperm.xlu0 %1979, %v1872
        %v1981 = vpop.permute.xlu0 %1980
        %v1983 = vmul.f32 %v1978, %v1981
        %v1984 = vadd.f32 %v1975, %v1983
        %vm1985 = vcmp.eq.s32.totalorder %v1796, 4294967295
        %v1986 = vsel %vm1985, 1, 0
        %v1987 = vcvt.s32.f32 %v1986
        %1988 = vset.pattern.permute.xlu0 6
        %1989 = vperm.xlu0 %1988, %v1791
        %v1990 = vpop.permute.xlu0 %1989
        %v1992 = vmul.f32 %v1987, %v1990
        %v1993 = vadd.f32 %v1984, %v1992
        %vm1994 = vcmp.eq.s32.totalorder %v1796, 0
        %v1995 = vsel %vm1994, 1, 0
        %v1996 = vcvt.s32.f32 %v1995
        %1997 = vset.pattern.permute.xlu0 7
        %1998 = vperm.xlu0 %1997, %v1791
        %v1999 = vpop.permute.xlu0 %1998
        %v2001 = vmul.f32 %v1996, %v1999
        %v2002 = vadd.f32 %v1993, %v2001
        %2004 = vrot.lane.b32.xlu0 %v1709, 96
        %v2005 = vpop.permute.xlu0 %2004
        %v2007 = vsel %vm1328, %v1704, 0
        %v2009 = vsel %vm1328, %v2005, 0
        %2011 = vmatprep.subr.mxu0 0.0
        %2012 = vmatpush1.xpose.msra.mxu0 0.0
        %2013 = vmatprep.subr.mxu0 0.0
        %2014 = vmatpush1.xpose.msra.mxu0 0.0
        %2015 = vmatprep.subr.mxu0 0.0
        %2016 = vmatpush1.xpose.msra.mxu0 0.0
        %2017 = vmatprep.subr.mxu0 0.0
        %2018 = vmatpush1.xpose.msra.mxu0 0.0
        %2019 = vmatprep.subr.mxu0 0.0
        %2020 = vmatpush1.xpose.msra.mxu0 0.0
        %2021 = vmatprep.subr.mxu0 0.0
        %2022 = vmatpush1.xpose.msra.mxu0 0.0
        %2023 = vmatprep.subr.mxu0 0.0
        %2024 = vmatpush1.xpose.msra.mxu0 0.0
        %2025 = vmatprep.subr.mxu0 0.0
        %2026 = vmatpush1.xpose.msra.mxu0 0.0
        %2027 = vmatprep.subr.mxu0 0.0
        %2028 = vmatpush1.xpose.msra.mxu0 0.0
        %2029 = vmatprep.subr.mxu0 0.0
        %2030 = vmatpush1.xpose.msra.mxu0 0.0
        %2031 = vmatprep.subr.mxu0 0.0
        %2032 = vmatpush1.xpose.msra.mxu0 0.0
        %2033 = vmatprep.subr.mxu0 0.0
        %2034 = vmatpush1.xpose.msra.mxu0 0.0
        %2035 = vmatprep.subr.mxu0 0.0
        %2036 = vmatpush1.xpose.msra.mxu0 0.0
        %2037 = vmatprep.subr.mxu0 0.0
        %2038 = vmatpush1.xpose.msra.mxu0 0.0
        %2039 = vmatprep.subr.mxu0 0.0
        %2040 = vmatpush1.xpose.msra.mxu0 0.0
        %2041 = vmatprep.subr.mxu0 0.0
        %2042 = vmatpush1.xpose.msra.mxu0 %v2009
        %2043 = vmatprep.subr.mxu0 0.0
        %2044 = vmatpush2.xpose.msra.mxu0 0.0
        %2045 = vmatprep.subr.mxu0 0.0
        %2046 = vmatpush2.xpose.msra.mxu0 0.0
        %2047 = vmatprep.subr.mxu0 0.0
        %2048 = vmatpush2.xpose.msra.mxu0 0.0
        %2049 = vmatprep.subr.mxu0 0.0
        %2050 = vmatpush2.xpose.msra.mxu0 0.0
        %2051 = vmatprep.subr.mxu0 0.0
        %2052 = vmatpush2.xpose.msra.mxu0 0.0
        %2053 = vmatprep.subr.mxu0 0.0
        %2054 = vmatpush2.xpose.msra.mxu0 0.0
        %2055 = vmatprep.subr.mxu0 0.0
        %2056 = vmatpush2.xpose.msra.mxu0 0.0
        %2057 = vmatprep.subr.mxu0 0.0
        %2058 = vmatpush2.xpose.msra.mxu0 0.0
        %2059 = vmatprep.subr.mxu0 0.0
        %2060 = vmatpush2.xpose.msra.mxu0 0.0
        %2061 = vmatprep.subr.mxu0 0.0
        %2062 = vmatpush2.xpose.msra.mxu0 0.0
        %2063 = vmatprep.subr.mxu0 0.0
        %2064 = vmatpush2.xpose.msra.mxu0 0.0
        %2065 = vmatprep.subr.mxu0 0.0
        %2066 = vmatpush2.xpose.msra.mxu0 0.0
        %2067 = vmatprep.subr.mxu0 0.0
        %2068 = vmatpush2.xpose.msra.mxu0 0.0
        %2069 = vmatprep.subr.mxu0 0.0
        %2070 = vmatpush2.xpose.msra.mxu0 0.0
        %2071 = vmatprep.subr.mxu0 0.0
        %2072 = vmatpush2.xpose.msra.mxu0 0.0
        %2073 = vmatprep.subr.mxu0 0.0
        %2074 = vmatpush2.xpose.msra.mxu0 0.0
        %2075 = vmatprep.mubr.f32.mxu0 0.0
        %2076 = vmatmul.mubr.f32.gmra.mxu0 %v2007
        %v2077 = vpop.f32.mrf.mxu0
        %v2078 = vadd.f32 %v2002, %v2077
        %v2079 = vpop.f32.mrf.mxu0
        %2080 = vdwg.mxu0
        %v2081 = vmul.f32 %v2078, 0.17677669
        %v2082 = vsel %vm1801, %v2081, -inf
        %2083 = vmax.xlane.f32.xlu0 %v2082
        %v2084 = vpop.xlane.xlu0 %2083
        %v2085 = vsub.f32 %v2081, %v2084
        %v2086 = vmul.f32 %v2085, 1.442695
        %v2087 = vpow.pop %v2086
        %v2088 = vsel %vm1801, %v2087, 0.0
        %2089 = vadd.xlane.f32.xlu0 %v2088
        %v2090 = vpop.xlane.xlu0 %2089
        %v2091 = vrcp.pop %v2090
        %v2092 = vmul.f32 %v2087, %v2091
        %2093 = vrot.lane.b32.xlu0 %v1697, 64
        %v2094 = vpop.permute.xlu0 %2093
        %v2096 = vmul.f32 %v1681, %v2094
        %vm2097 = vcmp.ge.s32.totalorder %v1692, 8
        %vm2098 = vcmp.lt.s32.totalorder %v1692, 16
        %vm2099 = vmand %vm2097, %vm2098
        %v2100 = vsel %vm2099, 1, 0
        %v2101 = vcvt.s32.f32 %v2100
        %2103 = vrot.lane.b32.xlu0 %v2101, 32
        %v2104 = vpop.permute.xlu0 %2103
        %v2106 = vmul.f32 %v1681, %v2104
        %v2107 = vmul.f32 %v1684, %v2101
        %v2109 = vsel %vm1328, %v2107, 0
        %2111 = vmatprep.subr.mxu0 0.0
        %2112 = vmatpush1.xpose.msra.mxu0 0.0
        %2113 = vmatprep.subr.mxu0 0.0
        %2114 = vmatpush1.xpose.msra.mxu0 0.0
        %2115 = vmatprep.subr.mxu0 0.0
        %2116 = vmatpush1.xpose.msra.mxu0 0.0
        %2117 = vmatprep.subr.mxu0 0.0
        %2118 = vmatpush1.xpose.msra.mxu0 0.0
        %2119 = vmatprep.subr.mxu0 0.0
        %2120 = vmatpush1.xpose.msra.mxu0 0.0
        %2121 = vmatprep.subr.mxu0 0.0
        %2122 = vmatpush1.xpose.msra.mxu0 0.0
        %2123 = vmatprep.subr.mxu0 0.0
        %2124 = vmatpush1.xpose.msra.mxu0 0.0
        %2125 = vmatprep.subr.mxu0 0.0
        %2126 = vmatpush1.xpose.msra.mxu0 0.0
        %2127 = vmatprep.subr.mxu0 0.0
        %2128 = vmatpush1.xpose.msra.mxu0 0.0
        %2129 = vmatprep.subr.mxu0 0.0
        %2130 = vmatpush1.xpose.msra.mxu0 0.0
        %2131 = vmatprep.subr.mxu0 0.0
        %2132 = vmatpush1.xpose.msra.mxu0 0.0
        %2133 = vmatprep.subr.mxu0 0.0
        %2134 = vmatpush1.xpose.msra.mxu0 0.0
        %2135 = vmatprep.subr.mxu0 0.0
        %2136 = vmatpush1.xpose.msra.mxu0 0.0
        %2137 = vmatprep.subr.mxu0 0.0
        %2138 = vmatpush1.xpose.msra.mxu0 0.0
        %2139 = vmatprep.subr.mxu0 0.0
        %2140 = vmatpush1.xpose.msra.mxu0 0.0
        %2141 = vmatprep.subr.mxu0 0.0
        %2142 = vmatpush1.xpose.msra.mxu0 %v2109
        %2143 = vmatprep.subr.mxu0 0.0
        %2144 = vmatpush2.xpose.msra.mxu0 0.0
        %2145 = vmatprep.subr.mxu0 0.0
        %2146 = vmatpush2.xpose.msra.mxu0 0.0
        %2147 = vmatprep.subr.mxu0 0.0
        %2148 = vmatpush2.xpose.msra.mxu0 0.0
        %2149 = vmatprep.subr.mxu0 0.0
        %2150 = vmatpush2.xpose.msra.mxu0 0.0
        %2151 = vmatprep.subr.mxu0 0.0
        %2152 = vmatpush2.xpose.msra.mxu0 0.0
        %2153 = vmatprep.subr.mxu0 0.0
        %2154 = vmatpush2.xpose.msra.mxu0 0.0
        %2155 = vmatprep.subr.mxu0 0.0
        %2156 = vmatpush2.xpose.msra.mxu0 0.0
        %2157 = vmatprep.subr.mxu0 0.0
        %2158 = vmatpush2.xpose.msra.mxu0 0.0
        %2159 = vmatprep.subr.mxu0 0.0
        %2160 = vmatpush2.xpose.msra.mxu0 0.0
        %2161 = vmatprep.subr.mxu0 0.0
        %2162 = vmatpush2.xpose.msra.mxu0 0.0
        %2163 = vmatprep.subr.mxu0 0.0
        %2164 = vmatpush2.xpose.msra.mxu0 0.0
        %2165 = vmatprep.subr.mxu0 0.0
        %2166 = vmatpush2.xpose.msra.mxu0 0.0
        %2167 = vmatprep.subr.mxu0 0.0
        %2168 = vmatpush2.xpose.msra.mxu0 0.0
        %2169 = vmatprep.subr.mxu0 0.0
        %2170 = vmatpush2.xpose.msra.mxu0 0.0
        %2171 = vmatprep.subr.mxu0 0.0
        %2172 = vmatpush2.xpose.msra.mxu0 0.0
        %2173 = vmatprep.subr.mxu0 0.0
        %2174 = vmatpush2.xpose.msra.mxu0 0.0
        %2175 = vmatprep.mubr.f32.mxu0 0.0
        %2176 = vmatmul.mubr.f32.gmra.mxu0 %v1719
        %v2177 = vpop.f32.mrf.mxu0
        %v2178 = vadd.f32 0.0, %v2177
        %v2179 = vpop.f32.mrf.mxu0
        %2180 = vdwg.mxu0
        %2181 = vmatprep.subr.mxu0 0.0
        %2182 = vmatpush1.msra.mxu0 0.0
        %2183 = vmatprep.subr.mxu0 0.0
        %2184 = vmatpush1.msra.mxu0 0.0
        %2185 = vmatprep.subr.mxu0 0.0
        %2186 = vmatpush1.msra.mxu0 0.0
        %2187 = vmatprep.subr.mxu0 0.0
        %2188 = vmatpush1.msra.mxu0 0.0
        %2189 = vmatprep.subr.mxu0 0.0
        %2190 = vmatpush1.msra.mxu0 0.0
        %2191 = vmatprep.subr.mxu0 0.0
        %2192 = vmatpush1.msra.mxu0 0.0
        %2193 = vmatprep.subr.mxu0 0.0
        %2194 = vmatpush1.msra.mxu0 0.0
        %2195 = vmatprep.subr.mxu0 0.0
        %2196 = vmatpush1.msra.mxu0 0.0
        %2197 = vmatprep.subr.mxu0 0.0
        %2198 = vmatpush1.msra.mxu0 0.0
        %2199 = vmatprep.subr.mxu0 0.0
        %2200 = vmatpush1.msra.mxu0 0.0
        %2201 = vmatprep.subr.mxu0 0.0
        %2202 = vmatpush1.msra.mxu0 0.0
        %2203 = vmatprep.subr.mxu0 0.0
        %2204 = vmatpush1.msra.mxu0 0.0
        %2205 = vmatprep.subr.mxu0 0.0
        %2206 = vmatpush1.msra.mxu0 0.0
        %2207 = vmatprep.subr.mxu0 0.0
        %2208 = vmatpush1.msra.mxu0 0.0
        %2209 = vmatprep.subr.mxu0 0.0
        %2210 = vmatpush1.msra.mxu0 0.0
        %2211 = vmatprep.subr.mxu0 0.0
        %2212 = vmatpush1.msra.mxu0 %v2178
        %2213 = vmatprep.subr.mxu0 0.0
        %2214 = vmatpush2.msra.mxu0 0.0
        %2215 = vmatprep.subr.mxu0 0.0
        %2216 = vmatpush2.msra.mxu0 0.0
        %2217 = vmatprep.subr.mxu0 0.0
        %2218 = vmatpush2.msra.mxu0 0.0
        %2219 = vmatprep.subr.mxu0 0.0
        %2220 = vmatpush2.msra.mxu0 0.0
        %2221 = vmatprep.subr.mxu0 0.0
        %2222 = vmatpush2.msra.mxu0 0.0
        %2223 = vmatprep.subr.mxu0 0.0
        %2224 = vmatpush2.msra.mxu0 0.0
        %2225 = vmatprep.subr.mxu0 0.0
        %2226 = vmatpush2.msra.mxu0 0.0
        %2227 = vmatprep.subr.mxu0 0.0
        %2228 = vmatpush2.msra.mxu0 0.0
        %2229 = vmatprep.subr.mxu0 0.0
        %2230 = vmatpush2.msra.mxu0 0.0
        %2231 = vmatprep.subr.mxu0 0.0
        %2232 = vmatpush2.msra.mxu0 0.0
        %2233 = vmatprep.subr.mxu0 0.0
        %2234 = vmatpush2.msra.mxu0 0.0
        %2235 = vmatprep.subr.mxu0 0.0
        %2236 = vmatpush2.msra.mxu0 0.0
        %2237 = vmatprep.subr.mxu0 0.0
        %2238 = vmatpush2.msra.mxu0 0.0
        %2239 = vmatprep.subr.mxu0 0.0
        %2240 = vmatpush2.msra.mxu0 0.0
        %2241 = vmatprep.subr.mxu0 0.0
        %2242 = vmatpush2.msra.mxu0 0.0
        %2243 = vmatprep.subr.mxu0 0.0
        %2244 = vmatpush2.msra.mxu0 0.0
        %2245 = vmatprep.mubr.f32.mxu0 0.0
        %2246 = vmatmul.mubr.f32.gmra.mxu0 %v1803
        %v2247 = vpop.f32.mrf.mxu0
        %v2248 = vadd.f32 0.0, %v2247
        %v2249 = vpop.f32.mrf.mxu0
        %2250 = vdwg.mxu0
        %2252 = vset.pattern.permute.xlu0 0
        %2253 = vperm.xlu0 %2252, %v2178
        %v2254 = vpop.permute.xlu0 %2253
        %v2256 = vmul.f32 %v1877, %v2254
        %v2257 = vadd.f32 %v2256, 0.0
        %2259 = vset.pattern.permute.xlu0 0
        %2260 = vperm.xlu0 %2259, %v2248
        %v2261 = vpop.permute.xlu0 %2260
        %v2263 = vmul.f32 %v1887, %v2261
        %v2264 = vadd.f32 %v2257, %v2263
        %2265 = vset.pattern.permute.xlu0 1
        %2266 = vperm.xlu0 %2265, %v2178
        %v2267 = vpop.permute.xlu0 %2266
        %v2269 = vmul.f32 %v1897, %v2267
        %v2270 = vadd.f32 %v2264, %v2269
        %2271 = vset.pattern.permute.xlu0 1
        %2272 = vperm.xlu0 %2271, %v2248
        %v2273 = vpop.permute.xlu0 %2272
        %v2275 = vmul.f32 %v1906, %v2273
        %v2276 = vadd.f32 %v2270, %v2275
        %2277 = vset.pattern.permute.xlu0 2
        %2278 = vperm.xlu0 %2277, %v2178
        %v2279 = vpop.permute.xlu0 %2278
        %v2281 = vmul.f32 %v1915, %v2279
        %v2282 = vadd.f32 %v2276, %v2281
        %2283 = vset.pattern.permute.xlu0 2
        %2284 = vperm.xlu0 %2283, %v2248
        %v2285 = vpop.permute.xlu0 %2284
        %v2287 = vmul.f32 %v1924, %v2285
        %v2288 = vadd.f32 %v2282, %v2287
        %2289 = vset.pattern.permute.xlu0 3
        %2290 = vperm.xlu0 %2289, %v2178
        %v2291 = vpop.permute.xlu0 %2290
        %v2293 = vmul.f32 %v1933, %v2291
        %v2294 = vadd.f32 %v2288, %v2293
        %2295 = vset.pattern.permute.xlu0 3
        %2296 = vperm.xlu0 %2295, %v2248
        %v2297 = vpop.permute.xlu0 %2296
        %v2299 = vmul.f32 %v1942, %v2297
        %v2300 = vadd.f32 %v2294, %v2299
        %2301 = vset.pattern.permute.xlu0 4
        %2302 = vperm.xlu0 %2301, %v2178
        %v2303 = vpop.permute.xlu0 %2302
        %v2305 = vmul.f32 %v1951, %v2303
        %v2306 = vadd.f32 %v2300, %v2305
        %2307 = vset.pattern.permute.xlu0 4
        %2308 = vperm.xlu0 %2307, %v2248
        %v2309 = vpop.permute.xlu0 %2308
        %v2311 = vmul.f32 %v1960, %v2309
        %v2312 = vadd.f32 %v2306, %v2311
        %2313 = vset.pattern.permute.xlu0 5
        %2314 = vperm.xlu0 %2313, %v2178
        %v2315 = vpop.permute.xlu0 %2314
        %v2317 = vmul.f32 %v1969, %v2315
        %v2318 = vadd.f32 %v2312, %v2317
        %2319 = vset.pattern.permute.xlu0 5
        %2320 = vperm.xlu0 %2319, %v2248
        %v2321 = vpop.permute.xlu0 %2320
        %v2323 = vmul.f32 %v1978, %v2321
        %v2324 = vadd.f32 %v2318, %v2323
        %2325 = vset.pattern.permute.xlu0 6
        %2326 = vperm.xlu0 %2325, %v2178
        %v2327 = vpop.permute.xlu0 %2326
        %v2329 = vmul.f32 %v1987, %v2327
        %v2330 = vadd.f32 %v2324, %v2329
        %2331 = vset.pattern.permute.xlu0 7
        %2332 = vperm.xlu0 %2331, %v2178
        %v2333 = vpop.permute.xlu0 %2332
        %v2335 = vmul.f32 %v1996, %v2333
        %v2336 = vadd.f32 %v2330, %v2335
        %2338 = vrot.lane.b32.xlu0 %v2106, 96
        %v2339 = vpop.permute.xlu0 %2338
        %v2340 = vsel %vm1328, %v2339, 0
        %2342 = vmatprep.subr.mxu0 0.0
        %2343 = vmatpush1.xpose.msra.mxu0 0.0
        %2344 = vmatprep.subr.mxu0 0.0
        %2345 = vmatpush1.xpose.msra.mxu0 0.0
        %2346 = vmatprep.subr.mxu0 0.0
        %2347 = vmatpush1.xpose.msra.mxu0 0.0
        %2348 = vmatprep.subr.mxu0 0.0
        %2349 = vmatpush1.xpose.msra.mxu0 0.0
        %2350 = vmatprep.subr.mxu0 0.0
        %2351 = vmatpush1.xpose.msra.mxu0 0.0
        %2352 = vmatprep.subr.mxu0 0.0
        %2353 = vmatpush1.xpose.msra.mxu0 0.0
        %2354 = vmatprep.subr.mxu0 0.0
        %2355 = vmatpush1.xpose.msra.mxu0 0.0
        %2356 = vmatprep.subr.mxu0 0.0
        %2357 = vmatpush1.xpose.msra.mxu0 0.0
        %2358 = vmatprep.subr.mxu0 0.0
        %2359 = vmatpush1.xpose.msra.mxu0 0.0
        %2360 = vmatprep.subr.mxu0 0.0
        %2361 = vmatpush1.xpose.msra.mxu0 0.0
        %2362 = vmatprep.subr.mxu0 0.0
        %2363 = vmatpush1.xpose.msra.mxu0 0.0
        %2364 = vmatprep.subr.mxu0 0.0
        %2365 = vmatpush1.xpose.msra.mxu0 0.0
        %2366 = vmatprep.subr.mxu0 0.0
        %2367 = vmatpush1.xpose.msra.mxu0 0.0
        %2368 = vmatprep.subr.mxu0 0.0
        %2369 = vmatpush1.xpose.msra.mxu0 0.0
        %2370 = vmatprep.subr.mxu0 0.0
        %2371 = vmatpush1.xpose.msra.mxu0 0.0
        %2372 = vmatprep.subr.mxu0 0.0
        %2373 = vmatpush1.xpose.msra.mxu0 %v2340
        %2374 = vmatprep.subr.mxu0 0.0
        %2375 = vmatpush2.xpose.msra.mxu0 0.0
        %2376 = vmatprep.subr.mxu0 0.0
        %2377 = vmatpush2.xpose.msra.mxu0 0.0
        %2378 = vmatprep.subr.mxu0 0.0
        %2379 = vmatpush2.xpose.msra.mxu0 0.0
        %2380 = vmatprep.subr.mxu0 0.0
        %2381 = vmatpush2.xpose.msra.mxu0 0.0
        %2382 = vmatprep.subr.mxu0 0.0
        %2383 = vmatpush2.xpose.msra.mxu0 0.0
        %2384 = vmatprep.subr.mxu0 0.0
        %2385 = vmatpush2.xpose.msra.mxu0 0.0
        %2386 = vmatprep.subr.mxu0 0.0
        %2387 = vmatpush2.xpose.msra.mxu0 0.0
        %2388 = vmatprep.subr.mxu0 0.0
        %2389 = vmatpush2.xpose.msra.mxu0 0.0
        %2390 = vmatprep.subr.mxu0 0.0
        %2391 = vmatpush2.xpose.msra.mxu0 0.0
        %2392 = vmatprep.subr.mxu0 0.0
        %2393 = vmatpush2.xpose.msra.mxu0 0.0
        %2394 = vmatprep.subr.mxu0 0.0
        %2395 = vmatpush2.xpose.msra.mxu0 0.0
        %2396 = vmatprep.subr.mxu0 0.0
        %2397 = vmatpush2.xpose.msra.mxu0 0.0
        %2398 = vmatprep.subr.mxu0 0.0
        %2399 = vmatpush2.xpose.msra.mxu0 0.0
        %2400 = vmatprep.subr.mxu0 0.0
        %2401 = vmatpush2.xpose.msra.mxu0 0.0
        %2402 = vmatprep.subr.mxu0 0.0
        %2403 = vmatpush2.xpose.msra.mxu0 0.0
        %2404 = vmatprep.subr.mxu0 0.0
        %2405 = vmatpush2.xpose.msra.mxu0 0.0
        %2406 = vmatprep.mubr.f32.mxu0 0.0
        %2407 = vmatmul.mubr.f32.gmra.mxu0 %v2007
        %v2408 = vpop.f32.mrf.mxu0
        %v2409 = vadd.f32 %v2336, %v2408
        %v2410 = vpop.f32.mrf.mxu0
        %2411 = vdwg.mxu0
        %v2412 = vmul.f32 %v2409, 0.17677669
        %v2413 = vsel %vm1801, %v2412, -inf
        %2414 = vmax.xlane.f32.xlu0 %v2413
        %v2415 = vpop.xlane.xlu0 %2414
        %v2416 = vsub.f32 %v2412, %v2415
        %v2417 = vmul.f32 %v2416, 1.442695
        %v2418 = vpow.pop %v2417
        %v2419 = vsel %vm1801, %v2418, 0.0
        %2420 = vadd.xlane.f32.xlu0 %v2419
        %v2421 = vpop.xlane.xlu0 %2420
        %v2422 = vrcp.pop %v2421
        %v2423 = vmul.f32 %v2418, %v2422
        %2424 = vrot.lane.b32.xlu0 %v2101, 64
        %v2425 = vpop.permute.xlu0 %2424
        %v2427 = vmul.f32 %v1681, %v2425
        %2429 = vrot.lane.b32.xlu0 %v2427, 64
        %v2430 = vpop.permute.xlu0 %2429
        %v2433 = vsel %vm1801, %v2423, 0
        %2435 = vmatprep.subr.mxu0 0.0
        %2436 = vmatpush1.msra.mxu0 0.0
        %2437 = vmatprep.subr.mxu0 0.0
        %2438 = vmatpush1.msra.mxu0 0.0
        %2439 = vmatprep.subr.mxu0 0.0
        %2440 = vmatpush1.msra.mxu0 0.0
        %2441 = vmatprep.subr.mxu0 0.0
        %2442 = vmatpush1.msra.mxu0 0.0
        %2443 = vmatprep.subr.mxu0 0.0
        %2444 = vmatpush1.msra.mxu0 0.0
        %2445 = vmatprep.subr.mxu0 0.0
        %2446 = vmatpush1.msra.mxu0 0.0
        %2447 = vmatprep.subr.mxu0 0.0
        %2448 = vmatpush1.msra.mxu0 0.0
        %2449 = vmatprep.subr.mxu0 0.0
        %2450 = vmatpush1.msra.mxu0 0.0
        %2451 = vmatprep.subr.mxu0 0.0
        %2452 = vmatpush1.msra.mxu0 0.0
        %2453 = vmatprep.subr.mxu0 0.0
        %2454 = vmatpush1.msra.mxu0 0.0
        %2455 = vmatprep.subr.mxu0 0.0
        %2456 = vmatpush1.msra.mxu0 0.0
        %2457 = vmatprep.subr.mxu0 0.0
        %2458 = vmatpush1.msra.mxu0 0.0
        %2459 = vmatprep.subr.mxu0 0.0
        %2460 = vmatpush1.msra.mxu0 0.0
        %2461 = vmatprep.subr.mxu0 0.0
        %2462 = vmatpush1.msra.mxu0 0.0
        %2463 = vmatprep.subr.mxu0 0.0
        %2464 = vmatpush1.msra.mxu0 0.0
        %2465 = vmatprep.subr.mxu0 0.0
        %2466 = vmatpush1.msra.mxu0 %v2430
        %2467 = vmatprep.subr.mxu0 0.0
        %2468 = vmatpush2.msra.mxu0 0.0
        %2469 = vmatprep.subr.mxu0 0.0
        %2470 = vmatpush2.msra.mxu0 0.0
        %2471 = vmatprep.subr.mxu0 0.0
        %2472 = vmatpush2.msra.mxu0 0.0
        %2473 = vmatprep.subr.mxu0 0.0
        %2474 = vmatpush2.msra.mxu0 0.0
        %2475 = vmatprep.subr.mxu0 0.0
        %2476 = vmatpush2.msra.mxu0 0.0
        %2477 = vmatprep.subr.mxu0 0.0
        %2478 = vmatpush2.msra.mxu0 0.0
        %2479 = vmatprep.subr.mxu0 0.0
        %2480 = vmatpush2.msra.mxu0 0.0
        %2481 = vmatprep.subr.mxu0 0.0
        %2482 = vmatpush2.msra.mxu0 0.0
        %2483 = vmatprep.subr.mxu0 0.0
        %2484 = vmatpush2.msra.mxu0 0.0
        %2485 = vmatprep.subr.mxu0 0.0
        %2486 = vmatpush2.msra.mxu0 0.0
        %2487 = vmatprep.subr.mxu0 0.0
        %2488 = vmatpush2.msra.mxu0 0.0
        %2489 = vmatprep.subr.mxu0 0.0
        %2490 = vmatpush2.msra.mxu0 0.0
        %2491 = vmatprep.subr.mxu0 0.0
        %2492 = vmatpush2.msra.mxu0 0.0
        %2493 = vmatprep.subr.mxu0 0.0
        %2494 = vmatpush2.msra.mxu0 0.0
        %2495 = vmatprep.subr.mxu0 0.0
        %2496 = vmatpush2.msra.mxu0 0.0
        %2497 = vmatprep.subr.mxu0 0.0
        %2498 = vmatpush2.msra.mxu0 0.0
        %2499 = vmatprep.mubr.f32.mxu0 0.0
        %2500 = vmatmul.mubr.f32.gmra.mxu0 %v2433
        %v2501 = vpop.f32.mrf.mxu0
        %v2502 = vadd.f32 0.0, %v2501
        %v2503 = vpop.f32.mrf.mxu0
        %2504 = vdwg.mxu0
        %2506 = vrot.lane.b32.xlu0 %v2096, 64
        %v2507 = vpop.permute.xlu0 %2506
        %v2510 = vsel %vm1801, %v2092, 0
        %2512 = vmatprep.subr.mxu0 0.0
        %2513 = vmatpush1.msra.mxu0 0.0
        %2514 = vmatprep.subr.mxu0 0.0
        %2515 = vmatpush1.msra.mxu0 0.0
        %2516 = vmatprep.subr.mxu0 0.0
        %2517 = vmatpush1.msra.mxu0 0.0
        %2518 = vmatprep.subr.mxu0 0.0
        %2519 = vmatpush1.msra.mxu0 0.0
        %2520 = vmatprep.subr.mxu0 0.0
        %2521 = vmatpush1.msra.mxu0 0.0
        %2522 = vmatprep.subr.mxu0 0.0
        %2523 = vmatpush1.msra.mxu0 0.0
        %2524 = vmatprep.subr.mxu0 0.0
        %2525 = vmatpush1.msra.mxu0 0.0
        %2526 = vmatprep.subr.mxu0 0.0
        %2527 = vmatpush1.msra.mxu0 0.0
        %2528 = vmatprep.subr.mxu0 0.0
        %2529 = vmatpush1.msra.mxu0 0.0
        %2530 = vmatprep.subr.mxu0 0.0
        %2531 = vmatpush1.msra.mxu0 0.0
        %2532 = vmatprep.subr.mxu0 0.0
        %2533 = vmatpush1.msra.mxu0 0.0
        %2534 = vmatprep.subr.mxu0 0.0
        %2535 = vmatpush1.msra.mxu0 0.0
        %2536 = vmatprep.subr.mxu0 0.0
        %2537 = vmatpush1.msra.mxu0 0.0
        %2538 = vmatprep.subr.mxu0 0.0
        %2539 = vmatpush1.msra.mxu0 0.0
        %2540 = vmatprep.subr.mxu0 0.0
        %2541 = vmatpush1.msra.mxu0 0.0
        %2542 = vmatprep.subr.mxu0 0.0
        %2543 = vmatpush1.msra.mxu0 %v2507
        %2544 = vmatprep.subr.mxu0 0.0
        %2545 = vmatpush2.msra.mxu0 0.0
        %2546 = vmatprep.subr.mxu0 0.0
        %2547 = vmatpush2.msra.mxu0 0.0
        %2548 = vmatprep.subr.mxu0 0.0
        %2549 = vmatpush2.msra.mxu0 0.0
        %2550 = vmatprep.subr.mxu0 0.0
        %2551 = vmatpush2.msra.mxu0 0.0
        %2552 = vmatprep.subr.mxu0 0.0
        %2553 = vmatpush2.msra.mxu0 0.0
        %2554 = vmatprep.subr.mxu0 0.0
        %2555 = vmatpush2.msra.mxu0 0.0
        %2556 = vmatprep.subr.mxu0 0.0
        %2557 = vmatpush2.msra.mxu0 0.0
        %2558 = vmatprep.subr.mxu0 0.0
        %2559 = vmatpush2.msra.mxu0 0.0
        %2560 = vmatprep.subr.mxu0 0.0
        %2561 = vmatpush2.msra.mxu0 0.0
        %2562 = vmatprep.subr.mxu0 0.0
        %2563 = vmatpush2.msra.mxu0 0.0
        %2564 = vmatprep.subr.mxu0 0.0
        %2565 = vmatpush2.msra.mxu0 0.0
        %2566 = vmatprep.subr.mxu0 0.0
        %2567 = vmatpush2.msra.mxu0 0.0
        %2568 = vmatprep.subr.mxu0 0.0
        %2569 = vmatpush2.msra.mxu0 0.0
        %2570 = vmatprep.subr.mxu0 0.0
        %2571 = vmatpush2.msra.mxu0 0.0
        %2572 = vmatprep.subr.mxu0 0.0
        %2573 = vmatpush2.msra.mxu0 0.0
        %2574 = vmatprep.subr.mxu0 0.0
        %2575 = vmatpush2.msra.mxu0 0.0
        %2576 = vmatprep.mubr.f32.mxu0 0.0
        %2577 = vmatmul.mubr.f32.gmra.mxu0 %v2510
        %v2578 = vpop.f32.mrf.mxu0
        %v2579 = vadd.f32 %v2502, %v2578
        %v2580 = vpop.f32.mrf.mxu0
        %2581 = vdwg.mxu0
        %vm2582 = vcmp.ge.s32.totalorder %v1692, 16
        %vm2583 = vcmp.lt.s32.totalorder %v1692, 24
        %vm2584 = vmand %vm2582, %vm2583
        %v2585 = vsel %vm2584, 1, 0
        %v2586 = vcvt.s32.f32 %v2585
        %2588 = vrot.lane.b32.xlu0 %v2586, 32
        %v2589 = vpop.permute.xlu0 %2588
        %v2591 = vmul.f32 %v1681, %v2589
        %v2592 = vmul.f32 %v1684, %v2586
        %v2594 = vsel %vm1328, %v2592, 0
        %2596 = vmatprep.subr.mxu0 0.0
        %2597 = vmatpush1.xpose.msra.mxu0 0.0
        %2598 = vmatprep.subr.mxu0 0.0
        %2599 = vmatpush1.xpose.msra.mxu0 0.0
        %2600 = vmatprep.subr.mxu0 0.0
        %2601 = vmatpush1.xpose.msra.mxu0 0.0
        %2602 = vmatprep.subr.mxu0 0.0
        %2603 = vmatpush1.xpose.msra.mxu0 0.0
        %2604 = vmatprep.subr.mxu0 0.0
        %2605 = vmatpush1.xpose.msra.mxu0 0.0
        %2606 = vmatprep.subr.mxu0 0.0
        %2607 = vmatpush1.xpose.msra.mxu0 0.0
        %2608 = vmatprep.subr.mxu0 0.0
        %2609 = vmatpush1.xpose.msra.mxu0 0.0
        %2610 = vmatprep.subr.mxu0 0.0
        %2611 = vmatpush1.xpose.msra.mxu0 0.0
        %2612 = vmatprep.subr.mxu0 0.0
        %2613 = vmatpush1.xpose.msra.mxu0 0.0
        %2614 = vmatprep.subr.mxu0 0.0
        %2615 = vmatpush1.xpose.msra.mxu0 0.0
        %2616 = vmatprep.subr.mxu0 0.0
        %2617 = vmatpush1.xpose.msra.mxu0 0.0
        %2618 = vmatprep.subr.mxu0 0.0
        %2619 = vmatpush1.xpose.msra.mxu0 0.0
        %2620 = vmatprep.subr.mxu0 0.0
        %2621 = vmatpush1.xpose.msra.mxu0 0.0
        %2622 = vmatprep.subr.mxu0 0.0
        %2623 = vmatpush1.xpose.msra.mxu0 0.0
        %2624 = vmatprep.subr.mxu0 0.0
        %2625 = vmatpush1.xpose.msra.mxu0 0.0
        %2626 = vmatprep.subr.mxu0 0.0
        %2627 = vmatpush1.xpose.msra.mxu0 %v2594
        %2628 = vmatprep.subr.mxu0 0.0
        %2629 = vmatpush2.xpose.msra.mxu0 0.0
        %2630 = vmatprep.subr.mxu0 0.0
        %2631 = vmatpush2.xpose.msra.mxu0 0.0
        %2632 = vmatprep.subr.mxu0 0.0
        %2633 = vmatpush2.xpose.msra.mxu0 0.0
        %2634 = vmatprep.subr.mxu0 0.0
        %2635 = vmatpush2.xpose.msra.mxu0 0.0
        %2636 = vmatprep.subr.mxu0 0.0
        %2637 = vmatpush2.xpose.msra.mxu0 0.0
        %2638 = vmatprep.subr.mxu0 0.0
        %2639 = vmatpush2.xpose.msra.mxu0 0.0
        %2640 = vmatprep.subr.mxu0 0.0
        %2641 = vmatpush2.xpose.msra.mxu0 0.0
        %2642 = vmatprep.subr.mxu0 0.0
        %2643 = vmatpush2.xpose.msra.mxu0 0.0
        %2644 = vmatprep.subr.mxu0 0.0
        %2645 = vmatpush2.xpose.msra.mxu0 0.0
        %2646 = vmatprep.subr.mxu0 0.0
        %2647 = vmatpush2.xpose.msra.mxu0 0.0
        %2648 = vmatprep.subr.mxu0 0.0
        %2649 = vmatpush2.xpose.msra.mxu0 0.0
        %2650 = vmatprep.subr.mxu0 0.0
        %2651 = vmatpush2.xpose.msra.mxu0 0.0
        %2652 = vmatprep.subr.mxu0 0.0
        %2653 = vmatpush2.xpose.msra.mxu0 0.0
        %2654 = vmatprep.subr.mxu0 0.0
        %2655 = vmatpush2.xpose.msra.mxu0 0.0
        %2656 = vmatprep.subr.mxu0 0.0
        %2657 = vmatpush2.xpose.msra.mxu0 0.0
        %2658 = vmatprep.subr.mxu0 0.0
        %2659 = vmatpush2.xpose.msra.mxu0 0.0
        %2660 = vmatprep.mubr.f32.mxu0 0.0
        %2661 = vmatmul.mubr.f32.gmra.mxu0 %v1719
        %v2662 = vpop.f32.mrf.mxu0
        %v2663 = vadd.f32 0.0, %v2662
        %v2664 = vpop.f32.mrf.mxu0
        %2665 = vdwg.mxu0
        %2666 = vmatprep.subr.mxu0 0.0
        %2667 = vmatpush1.msra.mxu0 0.0
        %2668 = vmatprep.subr.mxu0 0.0
        %2669 = vmatpush1.msra.mxu0 0.0
        %2670 = vmatprep.subr.mxu0 0.0
        %2671 = vmatpush1.msra.mxu0 0.0
        %2672 = vmatprep.subr.mxu0 0.0
        %2673 = vmatpush1.msra.mxu0 0.0
        %2674 = vmatprep.subr.mxu0 0.0
        %2675 = vmatpush1.msra.mxu0 0.0
        %2676 = vmatprep.subr.mxu0 0.0
        %2677 = vmatpush1.msra.mxu0 0.0
        %2678 = vmatprep.subr.mxu0 0.0
        %2679 = vmatpush1.msra.mxu0 0.0
        %2680 = vmatprep.subr.mxu0 0.0
        %2681 = vmatpush1.msra.mxu0 0.0
        %2682 = vmatprep.subr.mxu0 0.0
        %2683 = vmatpush1.msra.mxu0 0.0
        %2684 = vmatprep.subr.mxu0 0.0
        %2685 = vmatpush1.msra.mxu0 0.0
        %2686 = vmatprep.subr.mxu0 0.0
        %2687 = vmatpush1.msra.mxu0 0.0
        %2688 = vmatprep.subr.mxu0 0.0
        %2689 = vmatpush1.msra.mxu0 0.0
        %2690 = vmatprep.subr.mxu0 0.0
        %2691 = vmatpush1.msra.mxu0 0.0
        %2692 = vmatprep.subr.mxu0 0.0
        %2693 = vmatpush1.msra.mxu0 0.0
        %2694 = vmatprep.subr.mxu0 0.0
        %2695 = vmatpush1.msra.mxu0 0.0
        %2696 = vmatprep.subr.mxu0 0.0
        %2697 = vmatpush1.msra.mxu0 %v2663
        %2698 = vmatprep.subr.mxu0 0.0
        %2699 = vmatpush2.msra.mxu0 0.0
        %2700 = vmatprep.subr.mxu0 0.0
        %2701 = vmatpush2.msra.mxu0 0.0
        %2702 = vmatprep.subr.mxu0 0.0
        %2703 = vmatpush2.msra.mxu0 0.0
        %2704 = vmatprep.subr.mxu0 0.0
        %2705 = vmatpush2.msra.mxu0 0.0
        %2706 = vmatprep.subr.mxu0 0.0
        %2707 = vmatpush2.msra.mxu0 0.0
        %2708 = vmatprep.subr.mxu0 0.0
        %2709 = vmatpush2.msra.mxu0 0.0
        %2710 = vmatprep.subr.mxu0 0.0
        %2711 = vmatpush2.msra.mxu0 0.0
        %2712 = vmatprep.subr.mxu0 0.0
        %2713 = vmatpush2.msra.mxu0 0.0
        %2714 = vmatprep.subr.mxu0 0.0
        %2715 = vmatpush2.msra.mxu0 0.0
        %2716 = vmatprep.subr.mxu0 0.0
        %2717 = vmatpush2.msra.mxu0 0.0
        %2718 = vmatprep.subr.mxu0 0.0
        %2719 = vmatpush2.msra.mxu0 0.0
        %2720 = vmatprep.subr.mxu0 0.0
        %2721 = vmatpush2.msra.mxu0 0.0
        %2722 = vmatprep.subr.mxu0 0.0
        %2723 = vmatpush2.msra.mxu0 0.0
        %2724 = vmatprep.subr.mxu0 0.0
        %2725 = vmatpush2.msra.mxu0 0.0
        %2726 = vmatprep.subr.mxu0 0.0
        %2727 = vmatpush2.msra.mxu0 0.0
        %2728 = vmatprep.subr.mxu0 0.0
        %2729 = vmatpush2.msra.mxu0 0.0
        %2730 = vmatprep.mubr.f32.mxu0 0.0
        %2731 = vmatmul.mubr.f32.gmra.mxu0 %v1803
        %v2732 = vpop.f32.mrf.mxu0
        %v2733 = vadd.f32 0.0, %v2732
        %v2734 = vpop.f32.mrf.mxu0
        %2735 = vdwg.mxu0
        %2737 = vset.pattern.permute.xlu0 0
        %2738 = vperm.xlu0 %2737, %v2663
        %v2739 = vpop.permute.xlu0 %2738
        %v2741 = vmul.f32 %v1877, %v2739
        %v2742 = vadd.f32 %v2741, 0.0
        %2744 = vset.pattern.permute.xlu0 0
        %2745 = vperm.xlu0 %2744, %v2733
        %v2746 = vpop.permute.xlu0 %2745
        %v2748 = vmul.f32 %v1887, %v2746
        %v2749 = vadd.f32 %v2742, %v2748
        %2750 = vset.pattern.permute.xlu0 1
        %2751 = vperm.xlu0 %2750, %v2663
        %v2752 = vpop.permute.xlu0 %2751
        %v2754 = vmul.f32 %v1897, %v2752
        %v2755 = vadd.f32 %v2749, %v2754
        %2756 = vset.pattern.permute.xlu0 1
        %2757 = vperm.xlu0 %2756, %v2733
        %v2758 = vpop.permute.xlu0 %2757
        %v2760 = vmul.f32 %v1906, %v2758
        %v2761 = vadd.f32 %v2755, %v2760
        %2762 = vset.pattern.permute.xlu0 2
        %2763 = vperm.xlu0 %2762, %v2663
        %v2764 = vpop.permute.xlu0 %2763
        %v2766 = vmul.f32 %v1915, %v2764
        %v2767 = vadd.f32 %v2761, %v2766
        %2768 = vset.pattern.permute.xlu0 2
        %2769 = vperm.xlu0 %2768, %v2733
        %v2770 = vpop.permute.xlu0 %2769
        %v2772 = vmul.f32 %v1924, %v2770
        %v2773 = vadd.f32 %v2767, %v2772
        %2774 = vset.pattern.permute.xlu0 3
        %2775 = vperm.xlu0 %2774, %v2663
        %v2776 = vpop.permute.xlu0 %2775
        %v2778 = vmul.f32 %v1933, %v2776
        %v2779 = vadd.f32 %v2773, %v2778
        %2780 = vset.pattern.permute.xlu0 3
        %2781 = vperm.xlu0 %2780, %v2733
        %v2782 = vpop.permute.xlu0 %2781
        %v2784 = vmul.f32 %v1942, %v2782
        %v2785 = vadd.f32 %v2779, %v2784
        %2786 = vset.pattern.permute.xlu0 4
        %2787 = vperm.xlu0 %2786, %v2663
        %v2788 = vpop.permute.xlu0 %2787
        %v2790 = vmul.f32 %v1951, %v2788
        %v2791 = vadd.f32 %v2785, %v2790
        %2792 = vset.pattern.permute.xlu0 4
        %2793 = vperm.xlu0 %2792, %v2733
        %v2794 = vpop.permute.xlu0 %2793
        %v2796 = vmul.f32 %v1960, %v2794
        %v2797 = vadd.f32 %v2791, %v2796
        %2798 = vset.pattern.permute.xlu0 5
        %2799 = vperm.xlu0 %2798, %v2663
        %v2800 = vpop.permute.xlu0 %2799
        %v2802 = vmul.f32 %v1969, %v2800
        %v2803 = vadd.f32 %v2797, %v2802
        %2804 = vset.pattern.permute.xlu0 5
        %2805 = vperm.xlu0 %2804, %v2733
        %v2806 = vpop.permute.xlu0 %2805
        %v2808 = vmul.f32 %v1978, %v2806
        %v2809 = vadd.f32 %v2803, %v2808
        %2810 = vset.pattern.permute.xlu0 6
        %2811 = vperm.xlu0 %2810, %v2663
        %v2812 = vpop.permute.xlu0 %2811
        %v2814 = vmul.f32 %v1987, %v2812
        %v2815 = vadd.f32 %v2809, %v2814
        %2816 = vset.pattern.permute.xlu0 7
        %2817 = vperm.xlu0 %2816, %v2663
        %v2818 = vpop.permute.xlu0 %2817
        %v2820 = vmul.f32 %v1996, %v2818
        %v2821 = vadd.f32 %v2815, %v2820
        %2823 = vrot.lane.b32.xlu0 %v2591, 96
        %v2824 = vpop.permute.xlu0 %2823
        %v2825 = vsel %vm1328, %v2824, 0
        %2827 = vmatprep.subr.mxu0 0.0
        %2828 = vmatpush1.xpose.msra.mxu0 0.0
        %2829 = vmatprep.subr.mxu0 0.0
        %2830 = vmatpush1.xpose.msra.mxu0 0.0
        %2831 = vmatprep.subr.mxu0 0.0
        %2832 = vmatpush1.xpose.msra.mxu0 0.0
        %2833 = vmatprep.subr.mxu0 0.0
        %2834 = vmatpush1.xpose.msra.mxu0 0.0
        %2835 = vmatprep.subr.mxu0 0.0
        %2836 = vmatpush1.xpose.msra.mxu0 0.0
        %2837 = vmatprep.subr.mxu0 0.0
        %2838 = vmatpush1.xpose.msra.mxu0 0.0
        %2839 = vmatprep.subr.mxu0 0.0
        %2840 = vmatpush1.xpose.msra.mxu0 0.0
        %2841 = vmatprep.subr.mxu0 0.0
        %2842 = vmatpush1.xpose.msra.mxu0 0.0
        %2843 = vmatprep.subr.mxu0 0.0
        %2844 = vmatpush1.xpose.msra.mxu0 0.0
        %2845 = vmatprep.subr.mxu0 0.0
        %2846 = vmatpush1.xpose.msra.mxu0 0.0
        %2847 = vmatprep.subr.mxu0 0.0
        %2848 = vmatpush1.xpose.msra.mxu0 0.0
        %2849 = vmatprep.subr.mxu0 0.0
        %2850 = vmatpush1.xpose.msra.mxu0 0.0
        %2851 = vmatprep.subr.mxu0 0.0
        %2852 = vmatpush1.xpose.msra.mxu0 0.0
        %2853 = vmatprep.subr.mxu0 0.0
        %2854 = vmatpush1.xpose.msra.mxu0 0.0
        %2855 = vmatprep.subr.mxu0 0.0
        %2856 = vmatpush1.xpose.msra.mxu0 0.0
        %2857 = vmatprep.subr.mxu0 0.0
        %2858 = vmatpush1.xpose.msra.mxu0 %v2825
        %2859 = vmatprep.subr.mxu0 0.0
        %2860 = vmatpush2.xpose.msra.mxu0 0.0
        %2861 = vmatprep.subr.mxu0 0.0
        %2862 = vmatpush2.xpose.msra.mxu0 0.0
        %2863 = vmatprep.subr.mxu0 0.0
        %2864 = vmatpush2.xpose.msra.mxu0 0.0
        %2865 = vmatprep.subr.mxu0 0.0
        %2866 = vmatpush2.xpose.msra.mxu0 0.0
        %2867 = vmatprep.subr.mxu0 0.0
        %2868 = vmatpush2.xpose.msra.mxu0 0.0
        %2869 = vmatprep.subr.mxu0 0.0
        %2870 = vmatpush2.xpose.msra.mxu0 0.0
        %2871 = vmatprep.subr.mxu0 0.0
        %2872 = vmatpush2.xpose.msra.mxu0 0.0
        %2873 = vmatprep.subr.mxu0 0.0
        %2874 = vmatpush2.xpose.msra.mxu0 0.0
        %2875 = vmatprep.subr.mxu0 0.0
        %2876 = vmatpush2.xpose.msra.mxu0 0.0
        %2877 = vmatprep.subr.mxu0 0.0
        %2878 = vmatpush2.xpose.msra.mxu0 0.0
        %2879 = vmatprep.subr.mxu0 0.0
        %2880 = vmatpush2.xpose.msra.mxu0 0.0
        %2881 = vmatprep.subr.mxu0 0.0
        %2882 = vmatpush2.xpose.msra.mxu0 0.0
        %2883 = vmatprep.subr.mxu0 0.0
        %2884 = vmatpush2.xpose.msra.mxu0 0.0
        %2885 = vmatprep.subr.mxu0 0.0
        %2886 = vmatpush2.xpose.msra.mxu0 0.0
        %2887 = vmatprep.subr.mxu0 0.0
        %2888 = vmatpush2.xpose.msra.mxu0 0.0
        %2889 = vmatprep.subr.mxu0 0.0
        %2890 = vmatpush2.xpose.msra.mxu0 0.0
        %2891 = vmatprep.mubr.f32.mxu0 0.0
        %2892 = vmatmul.mubr.f32.gmra.mxu0 %v2007
        %v2893 = vpop.f32.mrf.mxu0
        %v2894 = vadd.f32 %v2821, %v2893
        %v2895 = vpop.f32.mrf.mxu0
        %2896 = vdwg.mxu0
        %v2897 = vmul.f32 %v2894, 0.17677669
        %v2898 = vsel %vm1801, %v2897, -inf
        %2899 = vmax.xlane.f32.xlu0 %v2898
        %v2900 = vpop.xlane.xlu0 %2899
        %v2901 = vsub.f32 %v2897, %v2900
        %v2902 = vmul.f32 %v2901, 1.442695
        %v2903 = vpow.pop %v2902
        %v2904 = vsel %vm1801, %v2903, 0.0
        %2905 = vadd.xlane.f32.xlu0 %v2904
        %v2906 = vpop.xlane.xlu0 %2905
        %v2907 = vrcp.pop %v2906
        %v2908 = vmul.f32 %v2903, %v2907
        %2909 = vrot.lane.b32.xlu0 %v2586, 64
        %v2910 = vpop.permute.xlu0 %2909
        %v2912 = vmul.f32 %v1681, %v2910
        %2914 = vrot.lane.b32.xlu0 %v2912, 64
        %v2915 = vpop.permute.xlu0 %2914
        %v2918 = vsel %vm1801, %v2908, 0
        %2920 = vmatprep.subr.mxu0 0.0
        %2921 = vmatpush1.msra.mxu0 0.0
        %2922 = vmatprep.subr.mxu0 0.0
        %2923 = vmatpush1.msra.mxu0 0.0
        %2924 = vmatprep.subr.mxu0 0.0
        %2925 = vmatpush1.msra.mxu0 0.0
        %2926 = vmatprep.subr.mxu0 0.0
        %2927 = vmatpush1.msra.mxu0 0.0
        %2928 = vmatprep.subr.mxu0 0.0
        %2929 = vmatpush1.msra.mxu0 0.0
        %2930 = vmatprep.subr.mxu0 0.0
        %2931 = vmatpush1.msra.mxu0 0.0
        %2932 = vmatprep.subr.mxu0 0.0
        %2933 = vmatpush1.msra.mxu0 0.0
        %2934 = vmatprep.subr.mxu0 0.0
        %2935 = vmatpush1.msra.mxu0 0.0
        %2936 = vmatprep.subr.mxu0 0.0
        %2937 = vmatpush1.msra.mxu0 0.0
        %2938 = vmatprep.subr.mxu0 0.0
        %2939 = vmatpush1.msra.mxu0 0.0
        %2940 = vmatprep.subr.mxu0 0.0
        %2941 = vmatpush1.msra.mxu0 0.0
        %2942 = vmatprep.subr.mxu0 0.0
        %2943 = vmatpush1.msra.mxu0 0.0
        %2944 = vmatprep.subr.mxu0 0.0
        %2945 = vmatpush1.msra.mxu0 0.0
        %2946 = vmatprep.subr.mxu0 0.0
        %2947 = vmatpush1.msra.mxu0 0.0
        %2948 = vmatprep.subr.mxu0 0.0
        %2949 = vmatpush1.msra.mxu0 0.0
        %2950 = vmatprep.subr.mxu0 0.0
        %2951 = vmatpush1.msra.mxu0 %v2915
        %2952 = vmatprep.subr.mxu0 0.0
        %2953 = vmatpush2.msra.mxu0 0.0
        %2954 = vmatprep.subr.mxu0 0.0
        %2955 = vmatpush2.msra.mxu0 0.0
        %2956 = vmatprep.subr.mxu0 0.0
        %2957 = vmatpush2.msra.mxu0 0.0
        %2958 = vmatprep.subr.mxu0 0.0
        %2959 = vmatpush2.msra.mxu0 0.0
        %2960 = vmatprep.subr.mxu0 0.0
        %2961 = vmatpush2.msra.mxu0 0.0
        %2962 = vmatprep.subr.mxu0 0.0
        %2963 = vmatpush2.msra.mxu0 0.0
        %2964 = vmatprep.subr.mxu0 0.0
        %2965 = vmatpush2.msra.mxu0 0.0
        %2966 = vmatprep.subr.mxu0 0.0
        %2967 = vmatpush2.msra.mxu0 0.0
        %2968 = vmatprep.subr.mxu0 0.0
        %2969 = vmatpush2.msra.mxu0 0.0
        %2970 = vmatprep.subr.mxu0 0.0
        %2971 = vmatpush2.msra.mxu0 0.0
        %2972 = vmatprep.subr.mxu0 0.0
        %2973 = vmatpush2.msra.mxu0 0.0
        %2974 = vmatprep.subr.mxu0 0.0
        %2975 = vmatpush2.msra.mxu0 0.0
        %2976 = vmatprep.subr.mxu0 0.0
        %2977 = vmatpush2.msra.mxu0 0.0
        %2978 = vmatprep.subr.mxu0 0.0
        %2979 = vmatpush2.msra.mxu0 0.0
        %2980 = vmatprep.subr.mxu0 0.0
        %2981 = vmatpush2.msra.mxu0 0.0
        %2982 = vmatprep.subr.mxu0 0.0
        %2983 = vmatpush2.msra.mxu0 0.0
        %2984 = vmatprep.mubr.f32.mxu0 0.0
        %2985 = vmatmul.mubr.f32.gmra.mxu0 %v2918
        %v2986 = vpop.f32.mrf.mxu0
        %v2987 = vadd.f32 0.0, %v2986
        %v2988 = vpop.f32.mrf.mxu0
        %2989 = vdwg.mxu0
        %v2990 = vadd.f32 %v2579, %v2987
        %vm2991 = vcmp.ge.s32.totalorder %v1692, 24
        %vm2992 = vcmp.lt.s32.totalorder %v1692, 32
        %vm2993 = vmand %vm2991, %vm2992
        %v2994 = vsel %vm2993, 1, 0
        %v2995 = vcvt.s32.f32 %v2994
        %2997 = vrot.lane.b32.xlu0 %v2995, 32
        %v2998 = vpop.permute.xlu0 %2997
        %v3000 = vmul.f32 %v1681, %v2998
        %v3001 = vmul.f32 %v1684, %v2995
        %v3003 = vsel %vm1328, %v3001, 0
        %3005 = vmatprep.subr.mxu0 0.0
        %3006 = vmatpush1.xpose.msra.mxu0 0.0
        %3007 = vmatprep.subr.mxu0 0.0
        %3008 = vmatpush1.xpose.msra.mxu0 0.0
        %3009 = vmatprep.subr.mxu0 0.0
        %3010 = vmatpush1.xpose.msra.mxu0 0.0
        %3011 = vmatprep.subr.mxu0 0.0
        %3012 = vmatpush1.xpose.msra.mxu0 0.0
        %3013 = vmatprep.subr.mxu0 0.0
        %3014 = vmatpush1.xpose.msra.mxu0 0.0
        %3015 = vmatprep.subr.mxu0 0.0
        %3016 = vmatpush1.xpose.msra.mxu0 0.0
        %3017 = vmatprep.subr.mxu0 0.0
        %3018 = vmatpush1.xpose.msra.mxu0 0.0
        %3019 = vmatprep.subr.mxu0 0.0
        %3020 = vmatpush1.xpose.msra.mxu0 0.0
        %3021 = vmatprep.subr.mxu0 0.0
        %3022 = vmatpush1.xpose.msra.mxu0 0.0
        %3023 = vmatprep.subr.mxu0 0.0
        %3024 = vmatpush1.xpose.msra.mxu0 0.0
        %3025 = vmatprep.subr.mxu0 0.0
        %3026 = vmatpush1.xpose.msra.mxu0 0.0
        %3027 = vmatprep.subr.mxu0 0.0
        %3028 = vmatpush1.xpose.msra.mxu0 0.0
        %3029 = vmatprep.subr.mxu0 0.0
        %3030 = vmatpush1.xpose.msra.mxu0 0.0
        %3031 = vmatprep.subr.mxu0 0.0
        %3032 = vmatpush1.xpose.msra.mxu0 0.0
        %3033 = vmatprep.subr.mxu0 0.0
        %3034 = vmatpush1.xpose.msra.mxu0 0.0
        %3035 = vmatprep.subr.mxu0 0.0
        %3036 = vmatpush1.xpose.msra.mxu0 %v3003
        %3037 = vmatprep.subr.mxu0 0.0
        %3038 = vmatpush2.xpose.msra.mxu0 0.0
        %3039 = vmatprep.subr.mxu0 0.0
        %3040 = vmatpush2.xpose.msra.mxu0 0.0
        %3041 = vmatprep.subr.mxu0 0.0
        %3042 = vmatpush2.xpose.msra.mxu0 0.0
        %3043 = vmatprep.subr.mxu0 0.0
        %3044 = vmatpush2.xpose.msra.mxu0 0.0
        %3045 = vmatprep.subr.mxu0 0.0
        %3046 = vmatpush2.xpose.msra.mxu0 0.0
        %3047 = vmatprep.subr.mxu0 0.0
        %3048 = vmatpush2.xpose.msra.mxu0 0.0
        %3049 = vmatprep.subr.mxu0 0.0
        %3050 = vmatpush2.xpose.msra.mxu0 0.0
        %3051 = vmatprep.subr.mxu0 0.0
        %3052 = vmatpush2.xpose.msra.mxu0 0.0
        %3053 = vmatprep.subr.mxu0 0.0
        %3054 = vmatpush2.xpose.msra.mxu0 0.0
        %3055 = vmatprep.subr.mxu0 0.0
        %3056 = vmatpush2.xpose.msra.mxu0 0.0
        %3057 = vmatprep.subr.mxu0 0.0
        %3058 = vmatpush2.xpose.msra.mxu0 0.0
        %3059 = vmatprep.subr.mxu0 0.0
        %3060 = vmatpush2.xpose.msra.mxu0 0.0
        %3061 = vmatprep.subr.mxu0 0.0
        %3062 = vmatpush2.xpose.msra.mxu0 0.0
        %3063 = vmatprep.subr.mxu0 0.0
        %3064 = vmatpush2.xpose.msra.mxu0 0.0
        %3065 = vmatprep.subr.mxu0 0.0
        %3066 = vmatpush2.xpose.msra.mxu0 0.0
        %3067 = vmatprep.subr.mxu0 0.0
        %3068 = vmatpush2.xpose.msra.mxu0 0.0
        %3069 = vmatprep.mubr.f32.mxu0 0.0
        %3070 = vmatmul.mubr.f32.gmra.mxu0 %v1719
        %v3071 = vpop.f32.mrf.mxu0
        %v3072 = vadd.f32 0.0, %v3071
        %v3073 = vpop.f32.mrf.mxu0
        %3074 = vdwg.mxu0
        %3075 = vmatprep.subr.mxu0 0.0
        %3076 = vmatpush1.msra.mxu0 0.0
        %3077 = vmatprep.subr.mxu0 0.0
        %3078 = vmatpush1.msra.mxu0 0.0
        %3079 = vmatprep.subr.mxu0 0.0
        %3080 = vmatpush1.msra.mxu0 0.0
        %3081 = vmatprep.subr.mxu0 0.0
        %3082 = vmatpush1.msra.mxu0 0.0
        %3083 = vmatprep.subr.mxu0 0.0
        %3084 = vmatpush1.msra.mxu0 0.0
        %3085 = vmatprep.subr.mxu0 0.0
        %3086 = vmatpush1.msra.mxu0 0.0
        %3087 = vmatprep.subr.mxu0 0.0
        %3088 = vmatpush1.msra.mxu0 0.0
        %3089 = vmatprep.subr.mxu0 0.0
        %3090 = vmatpush1.msra.mxu0 0.0
        %3091 = vmatprep.subr.mxu0 0.0
        %3092 = vmatpush1.msra.mxu0 0.0
        %3093 = vmatprep.subr.mxu0 0.0
        %3094 = vmatpush1.msra.mxu0 0.0
        %3095 = vmatprep.subr.mxu0 0.0
        %3096 = vmatpush1.msra.mxu0 0.0
        %3097 = vmatprep.subr.mxu0 0.0
        %3098 = vmatpush1.msra.mxu0 0.0
        %3099 = vmatprep.subr.mxu0 0.0
        %3100 = vmatpush1.msra.mxu0 0.0
        %3101 = vmatprep.subr.mxu0 0.0
        %3102 = vmatpush1.msra.mxu0 0.0
        %3103 = vmatprep.subr.mxu0 0.0
        %3104 = vmatpush1.msra.mxu0 0.0
        %3105 = vmatprep.subr.mxu0 0.0
        %3106 = vmatpush1.msra.mxu0 %v3072
        %3107 = vmatprep.subr.mxu0 0.0
        %3108 = vmatpush2.msra.mxu0 0.0
        %3109 = vmatprep.subr.mxu0 0.0
        %3110 = vmatpush2.msra.mxu0 0.0
        %3111 = vmatprep.subr.mxu0 0.0
        %3112 = vmatpush2.msra.mxu0 0.0
        %3113 = vmatprep.subr.mxu0 0.0
        %3114 = vmatpush2.msra.mxu0 0.0
        %3115 = vmatprep.subr.mxu0 0.0
        %3116 = vmatpush2.msra.mxu0 0.0
        %3117 = vmatprep.subr.mxu0 0.0
        %3118 = vmatpush2.msra.mxu0 0.0
        %3119 = vmatprep.subr.mxu0 0.0
        %3120 = vmatpush2.msra.mxu0 0.0
        %3121 = vmatprep.subr.mxu0 0.0
        %3122 = vmatpush2.msra.mxu0 0.0
        %3123 = vmatprep.subr.mxu0 0.0
        %3124 = vmatpush2.msra.mxu0 0.0
        %3125 = vmatprep.subr.mxu0 0.0
        %3126 = vmatpush2.msra.mxu0 0.0
        %3127 = vmatprep.subr.mxu0 0.0
        %3128 = vmatpush2.msra.mxu0 0.0
        %3129 = vmatprep.subr.mxu0 0.0
        %3130 = vmatpush2.msra.mxu0 0.0
        %3131 = vmatprep.subr.mxu0 0.0
        %3132 = vmatpush2.msra.mxu0 0.0
        %3133 = vmatprep.subr.mxu0 0.0
        %3134 = vmatpush2.msra.mxu0 0.0
        %3135 = vmatprep.subr.mxu0 0.0
        %3136 = vmatpush2.msra.mxu0 0.0
        %3137 = vmatprep.subr.mxu0 0.0
        %3138 = vmatpush2.msra.mxu0 0.0
        %3139 = vmatprep.mubr.f32.mxu0 0.0
        %3140 = vmatmul.mubr.f32.gmra.mxu0 %v1803
        %v3141 = vpop.f32.mrf.mxu0
        %v3142 = vadd.f32 0.0, %v3141
        %v3143 = vpop.f32.mrf.mxu0
        %3144 = vdwg.mxu0
        %3146 = vset.pattern.permute.xlu0 0
        %3147 = vperm.xlu0 %3146, %v3072
        %v3148 = vpop.permute.xlu0 %3147
        %v3150 = vmul.f32 %v1877, %v3148
        %v3151 = vadd.f32 %v3150, 0.0
        %3153 = vset.pattern.permute.xlu0 0
        %3154 = vperm.xlu0 %3153, %v3142
        %v3155 = vpop.permute.xlu0 %3154
        %v3157 = vmul.f32 %v1887, %v3155
        %v3158 = vadd.f32 %v3151, %v3157
        %3159 = vset.pattern.permute.xlu0 1
        %3160 = vperm.xlu0 %3159, %v3072
        %v3161 = vpop.permute.xlu0 %3160
        %v3163 = vmul.f32 %v1897, %v3161
        %v3164 = vadd.f32 %v3158, %v3163
        %3165 = vset.pattern.permute.xlu0 1
        %3166 = vperm.xlu0 %3165, %v3142
        %v3167 = vpop.permute.xlu0 %3166
        %v3169 = vmul.f32 %v1906, %v3167
        %v3170 = vadd.f32 %v3164, %v3169
        %3171 = vset.pattern.permute.xlu0 2
        %3172 = vperm.xlu0 %3171, %v3072
        %v3173 = vpop.permute.xlu0 %3172
        %v3175 = vmul.f32 %v1915, %v3173
        %v3176 = vadd.f32 %v3170, %v3175
        %3177 = vset.pattern.permute.xlu0 2
        %3178 = vperm.xlu0 %3177, %v3142
        %v3179 = vpop.permute.xlu0 %3178
        %v3181 = vmul.f32 %v1924, %v3179
        %v3182 = vadd.f32 %v3176, %v3181
        %3183 = vset.pattern.permute.xlu0 3
        %3184 = vperm.xlu0 %3183, %v3072
        %v3185 = vpop.permute.xlu0 %3184
        %v3187 = vmul.f32 %v1933, %v3185
        %v3188 = vadd.f32 %v3182, %v3187
        %3189 = vset.pattern.permute.xlu0 3
        %3190 = vperm.xlu0 %3189, %v3142
        %v3191 = vpop.permute.xlu0 %3190
        %v3193 = vmul.f32 %v1942, %v3191
        %v3194 = vadd.f32 %v3188, %v3193
        %3195 = vset.pattern.permute.xlu0 4
        %3196 = vperm.xlu0 %3195, %v3072
        %v3197 = vpop.permute.xlu0 %3196
        %v3199 = vmul.f32 %v1951, %v3197
        %v3200 = vadd.f32 %v3194, %v3199
        %3201 = vset.pattern.permute.xlu0 4
        %3202 = vperm.xlu0 %3201, %v3142
        %v3203 = vpop.permute.xlu0 %3202
        %v3205 = vmul.f32 %v1960, %v3203
        %v3206 = vadd.f32 %v3200, %v3205
        %3207 = vset.pattern.permute.xlu0 5
        %3208 = vperm.xlu0 %3207, %v3072
        %v3209 = vpop.permute.xlu0 %3208
        %v3211 = vmul.f32 %v1969, %v3209
        %v3212 = vadd.f32 %v3206, %v3211
        %3213 = vset.pattern.permute.xlu0 5
        %3214 = vperm.xlu0 %3213, %v3142
        %v3215 = vpop.permute.xlu0 %3214
        %v3217 = vmul.f32 %v1978, %v3215
        %v3218 = vadd.f32 %v3212, %v3217
        %3219 = vset.pattern.permute.xlu0 6
        %3220 = vperm.xlu0 %3219, %v3072
        %v3221 = vpop.permute.xlu0 %3220
        %v3223 = vmul.f32 %v1987, %v3221
        %v3224 = vadd.f32 %v3218, %v3223
        %3225 = vset.pattern.permute.xlu0 7
        %3226 = vperm.xlu0 %3225, %v3072
        %v3227 = vpop.permute.xlu0 %3226
        %v3229 = vmul.f32 %v1996, %v3227
        %v3230 = vadd.f32 %v3224, %v3229
        %3232 = vrot.lane.b32.xlu0 %v3000, 96
        %v3233 = vpop.permute.xlu0 %3232
        %v3234 = vsel %vm1328, %v3233, 0
        %3236 = vmatprep.subr.mxu0 0.0
        %3237 = vmatpush1.xpose.msra.mxu0 0.0
        %3238 = vmatprep.subr.mxu0 0.0
        %3239 = vmatpush1.xpose.msra.mxu0 0.0
        %3240 = vmatprep.subr.mxu0 0.0
        %3241 = vmatpush1.xpose.msra.mxu0 0.0
        %3242 = vmatprep.subr.mxu0 0.0
        %3243 = vmatpush1.xpose.msra.mxu0 0.0
        %3244 = vmatprep.subr.mxu0 0.0
        %3245 = vmatpush1.xpose.msra.mxu0 0.0
        %3246 = vmatprep.subr.mxu0 0.0
        %3247 = vmatpush1.xpose.msra.mxu0 0.0
        %3248 = vmatprep.subr.mxu0 0.0
        %3249 = vmatpush1.xpose.msra.mxu0 0.0
        %3250 = vmatprep.subr.mxu0 0.0
        %3251 = vmatpush1.xpose.msra.mxu0 0.0
        %3252 = vmatprep.subr.mxu0 0.0
        %3253 = vmatpush1.xpose.msra.mxu0 0.0
        %3254 = vmatprep.subr.mxu0 0.0
        %3255 = vmatpush1.xpose.msra.mxu0 0.0
        %3256 = vmatprep.subr.mxu0 0.0
        %3257 = vmatpush1.xpose.msra.mxu0 0.0
        %3258 = vmatprep.subr.mxu0 0.0
        %3259 = vmatpush1.xpose.msra.mxu0 0.0
        %3260 = vmatprep.subr.mxu0 0.0
        %3261 = vmatpush1.xpose.msra.mxu0 0.0
        %3262 = vmatprep.subr.mxu0 0.0
        %3263 = vmatpush1.xpose.msra.mxu0 0.0
        %3264 = vmatprep.subr.mxu0 0.0
        %3265 = vmatpush1.xpose.msra.mxu0 0.0
        %3266 = vmatprep.subr.mxu0 0.0
        %3267 = vmatpush1.xpose.msra.mxu0 %v3234
        %3268 = vmatprep.subr.mxu0 0.0
        %3269 = vmatpush2.xpose.msra.mxu0 0.0
        %3270 = vmatprep.subr.mxu0 0.0
        %3271 = vmatpush2.xpose.msra.mxu0 0.0
        %3272 = vmatprep.subr.mxu0 0.0
        %3273 = vmatpush2.xpose.msra.mxu0 0.0
        %3274 = vmatprep.subr.mxu0 0.0
        %3275 = vmatpush2.xpose.msra.mxu0 0.0
        %3276 = vmatprep.subr.mxu0 0.0
        %3277 = vmatpush2.xpose.msra.mxu0 0.0
        %3278 = vmatprep.subr.mxu0 0.0
        %3279 = vmatpush2.xpose.msra.mxu0 0.0
        %3280 = vmatprep.subr.mxu0 0.0
        %3281 = vmatpush2.xpose.msra.mxu0 0.0
        %3282 = vmatprep.subr.mxu0 0.0
        %3283 = vmatpush2.xpose.msra.mxu0 0.0
        %3284 = vmatprep.subr.mxu0 0.0
        %3285 = vmatpush2.xpose.msra.mxu0 0.0
        %3286 = vmatprep.subr.mxu0 0.0
        %3287 = vmatpush2.xpose.msra.mxu0 0.0
        %3288 = vmatprep.subr.mxu0 0.0
        %3289 = vmatpush2.xpose.msra.mxu0 0.0
        %3290 = vmatprep.subr.mxu0 0.0
        %3291 = vmatpush2.xpose.msra.mxu0 0.0
        %3292 = vmatprep.subr.mxu0 0.0
        %3293 = vmatpush2.xpose.msra.mxu0 0.0
        %3294 = vmatprep.subr.mxu0 0.0
        %3295 = vmatpush2.xpose.msra.mxu0 0.0
        %3296 = vmatprep.subr.mxu0 0.0
        %3297 = vmatpush2.xpose.msra.mxu0 0.0
        %3298 = vmatprep.subr.mxu0 0.0
        %3299 = vmatpush2.xpose.msra.mxu0 0.0
        %3300 = vmatprep.mubr.f32.mxu0 0.0
        %3301 = vmatmul.mubr.f32.gmra.mxu0 %v2007
        %v3302 = vpop.f32.mrf.mxu0
        %v3303 = vadd.f32 %v3230, %v3302
        %v3304 = vpop.f32.mrf.mxu0
        %3305 = vdwg.mxu0
        %v3306 = vmul.f32 %v3303, 0.17677669
        %v3307 = vsel %vm1801, %v3306, -inf
        %3308 = vmax.xlane.f32.xlu0 %v3307
        %v3309 = vpop.xlane.xlu0 %3308
        %v3310 = vsub.f32 %v3306, %v3309
        %v3311 = vmul.f32 %v3310, 1.442695
        %v3312 = vpow.pop %v3311
        %v3313 = vsel %vm1801, %v3312, 0.0
        %3314 = vadd.xlane.f32.xlu0 %v3313
        %v3315 = vpop.xlane.xlu0 %3314
        %v3316 = vrcp.pop %v3315
        %v3317 = vmul.f32 %v3312, %v3316
        %3318 = vrot.lane.b32.xlu0 %v2995, 64
        %v3319 = vpop.permute.xlu0 %3318
        %v3321 = vmul.f32 %v1681, %v3319
        %3323 = vrot.lane.b32.xlu0 %v3321, 64
        %v3324 = vpop.permute.xlu0 %3323
        %v3327 = vsel %vm1801, %v3317, 0
        %3329 = vmatprep.subr.mxu0 0.0
        %3330 = vmatpush1.msra.mxu0 0.0
        %3331 = vmatprep.subr.mxu0 0.0
        %3332 = vmatpush1.msra.mxu0 0.0
        %3333 = vmatprep.subr.mxu0 0.0
        %3334 = vmatpush1.msra.mxu0 0.0
        %3335 = vmatprep.subr.mxu0 0.0
        %3336 = vmatpush1.msra.mxu0 0.0
        %3337 = vmatprep.subr.mxu0 0.0
        %3338 = vmatpush1.msra.mxu0 0.0
        %3339 = vmatprep.subr.mxu0 0.0
        %3340 = vmatpush1.msra.mxu0 0.0
        %3341 = vmatprep.subr.mxu0 0.0
        %3342 = vmatpush1.msra.mxu0 0.0
        %3343 = vmatprep.subr.mxu0 0.0
        %3344 = vmatpush1.msra.mxu0 0.0
        %3345 = vmatprep.subr.mxu0 0.0
        %3346 = vmatpush1.msra.mxu0 0.0
        %3347 = vmatprep.subr.mxu0 0.0
        %3348 = vmatpush1.msra.mxu0 0.0
        %3349 = vmatprep.subr.mxu0 0.0
        %3350 = vmatpush1.msra.mxu0 0.0
        %3351 = vmatprep.subr.mxu0 0.0
        %3352 = vmatpush1.msra.mxu0 0.0
        %3353 = vmatprep.subr.mxu0 0.0
        %3354 = vmatpush1.msra.mxu0 0.0
        %3355 = vmatprep.subr.mxu0 0.0
        %3356 = vmatpush1.msra.mxu0 0.0
        %3357 = vmatprep.subr.mxu0 0.0
        %3358 = vmatpush1.msra.mxu0 0.0
        %3359 = vmatprep.subr.mxu0 0.0
        %3360 = vmatpush1.msra.mxu0 %v3324
        %3361 = vmatprep.subr.mxu0 0.0
        %3362 = vmatpush2.msra.mxu0 0.0
        %3363 = vmatprep.subr.mxu0 0.0
        %3364 = vmatpush2.msra.mxu0 0.0
        %3365 = vmatprep.subr.mxu0 0.0
        %3366 = vmatpush2.msra.mxu0 0.0
        %3367 = vmatprep.subr.mxu0 0.0
        %3368 = vmatpush2.msra.mxu0 0.0
        %3369 = vmatprep.subr.mxu0 0.0
        %3370 = vmatpush2.msra.mxu0 0.0
        %3371 = vmatprep.subr.mxu0 0.0
        %3372 = vmatpush2.msra.mxu0 0.0
        %3373 = vmatprep.subr.mxu0 0.0
        %3374 = vmatpush2.msra.mxu0 0.0
        %3375 = vmatprep.subr.mxu0 0.0
        %3376 = vmatpush2.msra.mxu0 0.0
        %3377 = vmatprep.subr.mxu0 0.0
        %3378 = vmatpush2.msra.mxu0 0.0
        %3379 = vmatprep.subr.mxu0 0.0
        %3380 = vmatpush2.msra.mxu0 0.0
        %3381 = vmatprep.subr.mxu0 0.0
        %3382 = vmatpush2.msra.mxu0 0.0
        %3383 = vmatprep.subr.mxu0 0.0
        %3384 = vmatpush2.msra.mxu0 0.0
        %3385 = vmatprep.subr.mxu0 0.0
        %3386 = vmatpush2.msra.mxu0 0.0
        %3387 = vmatprep.subr.mxu0 0.0
        %3388 = vmatpush2.msra.mxu0 0.0
        %3389 = vmatprep.subr.mxu0 0.0
        %3390 = vmatpush2.msra.mxu0 0.0
        %3391 = vmatprep.subr.mxu0 0.0
        %3392 = vmatpush2.msra.mxu0 0.0
        %3393 = vmatprep.mubr.f32.mxu0 0.0
        %3394 = vmatmul.mubr.f32.gmra.mxu0 %v3327
        %v3395 = vpop.f32.mrf.mxu0
        %v3396 = vadd.f32 0.0, %v3395
        %v3397 = vpop.f32.mrf.mxu0
        %3398 = vdwg.mxu0
        %v3399 = vadd.f32 %v2990, %v3396
        %v3400 = vld [vmem:[%s35] sm:$0x1]
        %v3402 = vlaneseq
        %v3403 = vshrl.u32 %v3402, 7
        %v3404 = vsub.s32 0, %v3403
        %v3405 = vrot.slane %v3400, %v3404
        %v3408 = vsel %vm1328, %v3399, 0
        %3410 = vmatprep.subr.mxu0 0.0
        %3411 = vmatpush1.msra.mxu0 0.0
        %3412 = vmatprep.subr.mxu0 0.0
        %3413 = vmatpush1.msra.mxu0 0.0
        %3414 = vmatprep.subr.mxu0 0.0
        %3415 = vmatpush1.msra.mxu0 0.0
        %3416 = vmatprep.subr.mxu0 0.0
        %3417 = vmatpush1.msra.mxu0 0.0
        %3418 = vmatprep.subr.mxu0 0.0
        %3419 = vmatpush1.msra.mxu0 0.0
        %3420 = vmatprep.subr.mxu0 0.0
        %3421 = vmatpush1.msra.mxu0 0.0
        %3422 = vmatprep.subr.mxu0 0.0
        %3423 = vmatpush1.msra.mxu0 0.0
        %3424 = vmatprep.subr.mxu0 0.0
        %3425 = vmatpush1.msra.mxu0 0.0
        %3426 = vmatprep.subr.mxu0 0.0
        %3427 = vmatpush1.msra.mxu0 0.0
        %3428 = vmatprep.subr.mxu0 0.0
        %3429 = vmatpush1.msra.mxu0 0.0
        %3430 = vmatprep.subr.mxu0 0.0
        %3431 = vmatpush1.msra.mxu0 0.0
        %3432 = vmatprep.subr.mxu0 0.0
        %3433 = vmatpush1.msra.mxu0 0.0
        %3434 = vmatprep.subr.mxu0 0.0
        %3435 = vmatpush1.msra.mxu0 %v1690
        %3436 = vmatprep.subr.mxu0 0.0
        %3437 = vmatpush1.msra.mxu0 %v1689
        %3438 = vmatprep.subr.mxu0 0.0
        %3439 = vmatpush1.msra.mxu0 %v1688
        %3440 = vmatprep.subr.mxu0 0.0
        %3441 = vmatpush1.msra.mxu0 %v1687
        %3442 = vmatprep.subr.mxu0 0.0
        %3443 = vmatpush2.msra.mxu0 0.0
        %3444 = vmatprep.subr.mxu0 0.0
        %3445 = vmatpush2.msra.mxu0 0.0
        %3446 = vmatprep.subr.mxu0 0.0
        %3447 = vmatpush2.msra.mxu0 0.0
        %3448 = vmatprep.subr.mxu0 0.0
        %3449 = vmatpush2.msra.mxu0 0.0
        %3450 = vmatprep.subr.mxu0 0.0
        %3451 = vmatpush2.msra.mxu0 0.0
        %3452 = vmatprep.subr.mxu0 0.0
        %3453 = vmatpush2.msra.mxu0 0.0
        %3454 = vmatprep.subr.mxu0 0.0
        %3455 = vmatpush2.msra.mxu0 0.0
        %3456 = vmatprep.subr.mxu0 0.0
        %3457 = vmatpush2.msra.mxu0 0.0
        %3458 = vmatprep.subr.mxu0 0.0
        %3459 = vmatpush2.msra.mxu0 0.0
        %3460 = vmatprep.subr.mxu0 0.0
        %3461 = vmatpush2.msra.mxu0 0.0
        %3462 = vmatprep.subr.mxu0 0.0
        %3463 = vmatpush2.msra.mxu0 0.0
        %3464 = vmatprep.subr.mxu0 0.0
        %3465 = vmatpush2.msra.mxu0 0.0
        %3466 = vmatprep.subr.mxu0 0.0
        %3467 = vmatpush2.msra.mxu0 0.0
        %3468 = vmatprep.subr.mxu0 0.0
        %3469 = vmatpush2.msra.mxu0 0.0
        %3470 = vmatprep.subr.mxu0 0.0
        %3471 = vmatpush2.msra.mxu0 0.0
        %3472 = vmatprep.subr.mxu0 0.0
        %3473 = vmatpush2.msra.mxu0 0.0
        %3474 = vmatprep.mubr.f32.mxu0 0.0
        %3475 = vmatmul.mubr.f32.gmra.mxu0 %v3408
        %v3476 = vpop.f32.mrf.mxu0
        %v3477 = vadd.f32 %v3405, %v3476
        %v3478 = vpop.f32.mrf.mxu0
        %3479 = vdwg.mxu0
        %v3480 = vadd.f32 %v3477, %v1570
        %v3481 = vld [vmem:[%s37] sm:$0x1]
        %v3482 = vld [vmem:[%s39] sm:$0x1]
        %v3483 = vsel %vm1328, %v3480, 0.0
        %3484 = vadd.xlane.f32.xlu0 %v3483
        %v3485 = vpop.xlane.xlu0 %3484
        %v3486 = vmul.f32 %v3485, %v1332
        %v3487 = vsub.f32 %v3480, %v3486
        %v3488 = vmul.f32 %v3487, %v3487
        %v3489 = vsel %vm1328, %v3488, 0.0
        %3490 = vadd.xlane.f32.xlu0 %v3489
        %v3491 = vpop.xlane.xlu0 %3490
        %v3492 = vmul.f32 %v3491, %v1332
        %v3493 = vadd.f32 %v3492, 1e-05
        %v3494 = vrsqrt.pop %v3493
        %v3495 = vmul.f32 %v3487, %v3494
        %v3497 = vlaneseq
        %v3498 = vshrl.u32 %v3497, 7
        %v3499 = vsub.s32 0, %v3498
        %v3500 = vrot.slane %v3481, %v3499
        %v3502 = vmul.f32 %v3495, %v3500
        %v3504 = vlaneseq
        %v3505 = vshrl.u32 %v3504, 7
        %v3506 = vsub.s32 0, %v3505
        %v3507 = vrot.slane %v3482, %v3506
        %v3509 = vadd.f32 %v3502, %v3507
        %v3510 = vld [vmem:[%s41] sm:$0x1]
        %v3511 = vld [vmem:[%s43] sm:$0x1]
        %v3512 = vsel %vm1328, %v3509, 0.0
        %3513 = vadd.xlane.f32.xlu0 %v3512
        %v3514 = vpop.xlane.xlu0 %3513
        %v3515 = vmul.f32 %v3514, %v1332
        %v3516 = vsub.f32 %v3509, %v3515
        %v3517 = vmul.f32 %v3516, %v3516
        %v3518 = vsel %vm1328, %v3517, 0.0
        %3519 = vadd.xlane.f32.xlu0 %v3518
        %v3520 = vpop.xlane.xlu0 %3519
        %v3521 = vmul.f32 %v3520, %v1332
        %v3522 = vadd.f32 %v3521, 1e-05
        %v3523 = vrsqrt.pop %v3522
        %v3524 = vmul.f32 %v3516, %v3523
        %v3526 = vlaneseq
        %v3527 = vshrl.u32 %v3526, 7
        %v3528 = vsub.s32 0, %v3527
        %v3529 = vrot.slane %v3510, %v3528
        %v3531 = vmul.f32 %v3524, %v3529
        %v3533 = vlaneseq
        %v3534 = vshrl.u32 %v3533, 7
        %v3535 = vsub.s32 0, %v3534
        %v3536 = vrot.slane %v3511, %v3535
        %v3538 = vadd.f32 %v3531, %v3536
        %v3539 = vld [vmem:[#allocation13] sm:$0xff]
        %v3540 = vld [vmem:[#allocation13 + $0x8] sm:$0xff]
        %v3541 = vld [vmem:[#allocation13 + $0x10] sm:$0xff]
        %v3542 = vld [vmem:[#allocation13 + $0x18] sm:$0xff]
        %v3543 = vld [vmem:[%s47] sm:$0x1]
        %v3545 = vlaneseq
        %v3546 = vshrl.u32 %v3545, 7
        %v3547 = vsub.s32 0, %v3546
        %v3548 = vrot.slane %v3543, %v3547
        %v3551 = vsel %vm1328, %v3538, 0
        %3553 = vmatprep.subr.mxu0 0.0
        %3554 = vmatpush1.msra.mxu0 0.0
        %3555 = vmatprep.subr.mxu0 0.0
        %3556 = vmatpush1.msra.mxu0 0.0
        %3557 = vmatprep.subr.mxu0 0.0
        %3558 = vmatpush1.msra.mxu0 0.0
        %3559 = vmatprep.subr.mxu0 0.0
        %3560 = vmatpush1.msra.mxu0 0.0
        %3561 = vmatprep.subr.mxu0 0.0
        %3562 = vmatpush1.msra.mxu0 0.0
        %3563 = vmatprep.subr.mxu0 0.0
        %3564 = vmatpush1.msra.mxu0 0.0
        %3565 = vmatprep.subr.mxu0 0.0
        %3566 = vmatpush1.msra.mxu0 0.0
        %3567 = vmatprep.subr.mxu0 0.0
        %3568 = vmatpush1.msra.mxu0 0.0
        %3569 = vmatprep.subr.mxu0 0.0
        %3570 = vmatpush1.msra.mxu0 0.0
        %3571 = vmatprep.subr.mxu0 0.0
        %3572 = vmatpush1.msra.mxu0 0.0
        %3573 = vmatprep.subr.mxu0 0.0
        %3574 = vmatpush1.msra.mxu0 0.0
        %3575 = vmatprep.subr.mxu0 0.0
        %3576 = vmatpush1.msra.mxu0 0.0
        %3577 = vmatprep.subr.mxu0 0.0
        %3578 = vmatpush1.msra.mxu0 %v3542
        %3579 = vmatprep.subr.mxu0 0.0
        %3580 = vmatpush1.msra.mxu0 %v3541
        %3581 = vmatprep.subr.mxu0 0.0
        %3582 = vmatpush1.msra.mxu0 %v3540
        %3583 = vmatprep.subr.mxu0 0.0
        %3584 = vmatpush1.msra.mxu0 %v3539
        %3585 = vmatprep.subr.mxu0 0.0
        %3586 = vmatpush2.msra.mxu0 0.0
        %3587 = vmatprep.subr.mxu0 0.0
        %3588 = vmatpush2.msra.mxu0 0.0
        %3589 = vmatprep.subr.mxu0 0.0
        %3590 = vmatpush2.msra.mxu0 0.0
        %3591 = vmatprep.subr.mxu0 0.0
        %3592 = vmatpush2.msra.mxu0 0.0
        %3593 = vmatprep.subr.mxu0 0.0
        %3594 = vmatpush2.msra.mxu0 0.0
        %3595 = vmatprep.subr.mxu0 0.0
        %3596 = vmatpush2.msra.mxu0 0.0
        %3597 = vmatprep.subr.mxu0 0.0
        %3598 = vmatpush2.msra.mxu0 0.0
        %3599 = vmatprep.subr.mxu0 0.0
        %3600 = vmatpush2.msra.mxu0 0.0
        %3601 = vmatprep.subr.mxu0 0.0
        %3602 = vmatpush2.msra.mxu0 0.0
        %3603 = vmatprep.subr.mxu0 0.0
        %3604 = vmatpush2.msra.mxu0 0.0
        %3605 = vmatprep.subr.mxu0 0.0
        %3606 = vmatpush2.msra.mxu0 0.0
        %3607 = vmatprep.subr.mxu0 0.0
        %3608 = vmatpush2.msra.mxu0 0.0
        %3609 = vmatprep.subr.mxu0 0.0
        %3610 = vmatpush2.msra.mxu0 0.0
        %3611 = vmatprep.subr.mxu0 0.0
        %3612 = vmatpush2.msra.mxu0 0.0
        %3613 = vmatprep.subr.mxu0 0.0
        %3614 = vmatpush2.msra.mxu0 0.0
        %3615 = vmatprep.subr.mxu0 0.0
        %3616 = vmatpush2.msra.mxu0 0.0
        %3617 = vmatprep.mubr.f32.mxu0 0.0
        %3618 = vmatmul.mubr.f32.gmra.mxu0 %v3551
        %v3619 = vpop.f32.mrf.mxu0
        %v3620 = vadd.f32 %v3548, %v3619
        %v3621 = vpop.f32.mrf.mxu0
        %3622 = vdwg.mxu0
        %v3623 = vxor.u32 %v3620, 2147483648
        %v3624 = vmul.f32 %v3623, 1.442695
        %v3625 = vpow.pop %v3624
        %v3626 = vadd.f32 %v3625, 1.0
        %v3627 = vrcp.pop %v3626
        %v3628 = vmul.f32 1.0, %v3627
        %3630 = vrot.lane.b32.xlu0 %v3628, 96
        %v3631 = vpop.permute.xlu0 %3630
        %v3633 = vmul.f32 %v3620, %v3631
        %v3634 = vadd.s32 %v1795, 4294967293
        %vm3635 = vcmp.eq.s32.totalorder %v1692, %v3634
        %v3636 = vsel %vm3635, 1, 0
        %v3637 = vcvt.s32.f32 %v3636
        %v3639 = vsel %vm1801, %v3637, 0
        %3641 = vmatprep.subr.mxu0 0.0
        %3642 = vmatpush1.msra.mxu0 0.0
        %3643 = vmatprep.subr.mxu0 0.0
        %3644 = vmatpush1.msra.mxu0 0.0
        %3645 = vmatprep.subr.mxu0 0.0
        %3646 = vmatpush1.msra.mxu0 0.0
        %3647 = vmatprep.subr.mxu0 0.0
        %3648 = vmatpush1.msra.mxu0 0.0
        %3649 = vmatprep.subr.mxu0 0.0
        %3650 = vmatpush1.msra.mxu0 0.0
        %3651 = vmatprep.subr.mxu0 0.0
        %3652 = vmatpush1.msra.mxu0 0.0
        %3653 = vmatprep.subr.mxu0 0.0
        %3654 = vmatpush1.msra.mxu0 0.0
        %3655 = vmatprep.subr.mxu0 0.0
        %3656 = vmatpush1.msra.mxu0 0.0
        %3657 = vmatprep.subr.mxu0 0.0
        %3658 = vmatpush1.msra.mxu0 0.0
        %3659 = vmatprep.subr.mxu0 0.0
        %3660 = vmatpush1.msra.mxu0 0.0
        %3661 = vmatprep.subr.mxu0 0.0
        %3662 = vmatpush1.msra.mxu0 0.0
        %3663 = vmatprep.subr.mxu0 0.0
        %3664 = vmatpush1.msra.mxu0 0.0
        %3665 = vmatprep.subr.mxu0 0.0
        %3666 = vmatpush1.msra.mxu0 0.0
        %3667 = vmatprep.subr.mxu0 0.0
        %3668 = vmatpush1.msra.mxu0 0.0
        %3669 = vmatprep.subr.mxu0 0.0
        %3670 = vmatpush1.msra.mxu0 0.0
        %3671 = vmatprep.subr.mxu0 0.0
        %3672 = vmatpush1.msra.mxu0 %v3633
        %3673 = vmatprep.subr.mxu0 0.0
        %3674 = vmatpush2.msra.mxu0 0.0
        %3675 = vmatprep.subr.mxu0 0.0
        %3676 = vmatpush2.msra.mxu0 0.0
        %3677 = vmatprep.subr.mxu0 0.0
        %3678 = vmatpush2.msra.mxu0 0.0
        %3679 = vmatprep.subr.mxu0 0.0
        %3680 = vmatpush2.msra.mxu0 0.0
        %3681 = vmatprep.subr.mxu0 0.0
        %3682 = vmatpush2.msra.mxu0 0.0
        %3683 = vmatprep.subr.mxu0 0.0
        %3684 = vmatpush2.msra.mxu0 0.0
        %3685 = vmatprep.subr.mxu0 0.0
        %3686 = vmatpush2.msra.mxu0 0.0
        %3687 = vmatprep.subr.mxu0 0.0
        %3688 = vmatpush2.msra.mxu0 0.0
        %3689 = vmatprep.subr.mxu0 0.0
        %3690 = vmatpush2.msra.mxu0 0.0
        %3691 = vmatprep.subr.mxu0 0.0
        %3692 = vmatpush2.msra.mxu0 0.0
        %3693 = vmatprep.subr.mxu0 0.0
        %3694 = vmatpush2.msra.mxu0 0.0
        %3695 = vmatprep.subr.mxu0 0.0
        %3696 = vmatpush2.msra.mxu0 0.0
        %3697 = vmatprep.subr.mxu0 0.0
        %3698 = vmatpush2.msra.mxu0 0.0
        %3699 = vmatprep.subr.mxu0 0.0
        %3700 = vmatpush2.msra.mxu0 0.0
        %3701 = vmatprep.subr.mxu0 0.0
        %3702 = vmatpush2.msra.mxu0 0.0
        %3703 = vmatprep.subr.mxu0 0.0
        %3704 = vmatpush2.msra.mxu0 0.0
        %3705 = vmatprep.mubr.f32.mxu0 0.0
        %3706 = vmatmul.mubr.f32.gmra.mxu0 %v3639
        %v3707 = vpop.f32.mrf.mxu0
        %v3708 = vadd.f32 0.0, %v3707
        %v3709 = vpop.f32.mrf.mxu0
        %3710 = vdwg.mxu0
        %v3711 = vld [vmem:[#allocation14] sm:$0x1]
        %v3712 = vlaneseq
        %v3713 = vshrl.u32 %v3712, 7
        %v3714 = vsub.s32 0, %v3713
        %v3715 = vrot.slane %v3711, %v3714
        %v3716 = vmul.f32 %v3708, %v3715
        %v3717 = vadd.f32 %v3716, 0.0
        %v3718 = vadd.s32 %v1795, 4294967294
        %vm3719 = vcmp.eq.s32.totalorder %v1692, %v3718
        %v3720 = vsel %vm3719, 1, 0
        %v3721 = vcvt.s32.f32 %v3720
        %v3723 = vsel %vm1801, %v3721, 0
        %3725 = vmatprep.subr.mxu0 0.0
        %3726 = vmatpush1.msra.mxu0 0.0
        %3727 = vmatprep.subr.mxu0 0.0
        %3728 = vmatpush1.msra.mxu0 0.0
        %3729 = vmatprep.subr.mxu0 0.0
        %3730 = vmatpush1.msra.mxu0 0.0
        %3731 = vmatprep.subr.mxu0 0.0
        %3732 = vmatpush1.msra.mxu0 0.0
        %3733 = vmatprep.subr.mxu0 0.0
        %3734 = vmatpush1.msra.mxu0 0.0
        %3735 = vmatprep.subr.mxu0 0.0
        %3736 = vmatpush1.msra.mxu0 0.0
        %3737 = vmatprep.subr.mxu0 0.0
        %3738 = vmatpush1.msra.mxu0 0.0
        %3739 = vmatprep.subr.mxu0 0.0
        %3740 = vmatpush1.msra.mxu0 0.0
        %3741 = vmatprep.subr.mxu0 0.0
        %3742 = vmatpush1.msra.mxu0 0.0
        %3743 = vmatprep.subr.mxu0 0.0
        %3744 = vmatpush1.msra.mxu0 0.0
        %3745 = vmatprep.subr.mxu0 0.0
        %3746 = vmatpush1.msra.mxu0 0.0
        %3747 = vmatprep.subr.mxu0 0.0
        %3748 = vmatpush1.msra.mxu0 0.0
        %3749 = vmatprep.subr.mxu0 0.0
        %3750 = vmatpush1.msra.mxu0 0.0
        %3751 = vmatprep.subr.mxu0 0.0
        %3752 = vmatpush1.msra.mxu0 0.0
        %3753 = vmatprep.subr.mxu0 0.0
        %3754 = vmatpush1.msra.mxu0 0.0
        %3755 = vmatprep.subr.mxu0 0.0
        %3756 = vmatpush1.msra.mxu0 %v3633
        %3757 = vmatprep.subr.mxu0 0.0
        %3758 = vmatpush2.msra.mxu0 0.0
        %3759 = vmatprep.subr.mxu0 0.0
        %3760 = vmatpush2.msra.mxu0 0.0
        %3761 = vmatprep.subr.mxu0 0.0
        %3762 = vmatpush2.msra.mxu0 0.0
        %3763 = vmatprep.subr.mxu0 0.0
        %3764 = vmatpush2.msra.mxu0 0.0
        %3765 = vmatprep.subr.mxu0 0.0
        %3766 = vmatpush2.msra.mxu0 0.0
        %3767 = vmatprep.subr.mxu0 0.0
        %3768 = vmatpush2.msra.mxu0 0.0
        %3769 = vmatprep.subr.mxu0 0.0
        %3770 = vmatpush2.msra.mxu0 0.0
        %3771 = vmatprep.subr.mxu0 0.0
        %3772 = vmatpush2.msra.mxu0 0.0
        %3773 = vmatprep.subr.mxu0 0.0
        %3774 = vmatpush2.msra.mxu0 0.0
        %3775 = vmatprep.subr.mxu0 0.0
        %3776 = vmatpush2.msra.mxu0 0.0
        %3777 = vmatprep.subr.mxu0 0.0
        %3778 = vmatpush2.msra.mxu0 0.0
        %3779 = vmatprep.subr.mxu0 0.0
        %3780 = vmatpush2.msra.mxu0 0.0
        %3781 = vmatprep.subr.mxu0 0.0
        %3782 = vmatpush2.msra.mxu0 0.0
        %3783 = vmatprep.subr.mxu0 0.0
        %3784 = vmatpush2.msra.mxu0 0.0
        %3785 = vmatprep.subr.mxu0 0.0
        %3786 = vmatpush2.msra.mxu0 0.0
        %3787 = vmatprep.subr.mxu0 0.0
        %3788 = vmatpush2.msra.mxu0 0.0
        %3789 = vmatprep.mubr.f32.mxu0 0.0
        %3790 = vmatmul.mubr.f32.gmra.mxu0 %v3723
        %v3791 = vpop.f32.mrf.mxu0
        %v3792 = vadd.f32 0.0, %v3791
        %v3793 = vpop.f32.mrf.mxu0
        %3794 = vdwg.mxu0
        %v3795 = vld [vmem:[#allocation14 + $0x1] sm:$0x1]
        %v3796 = vlaneseq
        %v3797 = vshrl.u32 %v3796, 7
        %v3798 = vsub.s32 0, %v3797
        %v3799 = vrot.slane %v3795, %v3798
        %v3800 = vmul.f32 %v3792, %v3799
        %v3801 = vadd.f32 %v3717, %v3800
        %v3802 = vadd.s32 %v1795, 4294967295
        %vm3803 = vcmp.eq.s32.totalorder %v1692, %v3802
        %v3804 = vsel %vm3803, 1, 0
        %v3805 = vcvt.s32.f32 %v3804
        %v3807 = vsel %vm1801, %v3805, 0
        %3809 = vmatprep.subr.mxu0 0.0
        %3810 = vmatpush1.msra.mxu0 0.0
        %3811 = vmatprep.subr.mxu0 0.0
        %3812 = vmatpush1.msra.mxu0 0.0
        %3813 = vmatprep.subr.mxu0 0.0
        %3814 = vmatpush1.msra.mxu0 0.0
        %3815 = vmatprep.subr.mxu0 0.0
        %3816 = vmatpush1.msra.mxu0 0.0
        %3817 = vmatprep.subr.mxu0 0.0
        %3818 = vmatpush1.msra.mxu0 0.0
        %3819 = vmatprep.subr.mxu0 0.0
        %3820 = vmatpush1.msra.mxu0 0.0
        %3821 = vmatprep.subr.mxu0 0.0
        %3822 = vmatpush1.msra.mxu0 0.0
        %3823 = vmatprep.subr.mxu0 0.0
        %3824 = vmatpush1.msra.mxu0 0.0
        %3825 = vmatprep.subr.mxu0 0.0
        %3826 = vmatpush1.msra.mxu0 0.0
        %3827 = vmatprep.subr.mxu0 0.0
        %3828 = vmatpush1.msra.mxu0 0.0
        %3829 = vmatprep.subr.mxu0 0.0
        %3830 = vmatpush1.msra.mxu0 0.0
        %3831 = vmatprep.subr.mxu0 0.0
        %3832 = vmatpush1.msra.mxu0 0.0
        %3833 = vmatprep.subr.mxu0 0.0
        %3834 = vmatpush1.msra.mxu0 0.0
        %3835 = vmatprep.subr.mxu0 0.0
        %3836 = vmatpush1.msra.mxu0 0.0
        %3837 = vmatprep.subr.mxu0 0.0
        %3838 = vmatpush1.msra.mxu0 0.0
        %3839 = vmatprep.subr.mxu0 0.0
        %3840 = vmatpush1.msra.mxu0 %v3633
        %3841 = vmatprep.subr.mxu0 0.0
        %3842 = vmatpush2.msra.mxu0 0.0
        %3843 = vmatprep.subr.mxu0 0.0
        %3844 = vmatpush2.msra.mxu0 0.0
        %3845 = vmatprep.subr.mxu0 0.0
        %3846 = vmatpush2.msra.mxu0 0.0
        %3847 = vmatprep.subr.mxu0 0.0
        %3848 = vmatpush2.msra.mxu0 0.0
        %3849 = vmatprep.subr.mxu0 0.0
        %3850 = vmatpush2.msra.mxu0 0.0
        %3851 = vmatprep.subr.mxu0 0.0
        %3852 = vmatpush2.msra.mxu0 0.0
        %3853 = vmatprep.subr.mxu0 0.0
        %3854 = vmatpush2.msra.mxu0 0.0
        %3855 = vmatprep.subr.mxu0 0.0
        %3856 = vmatpush2.msra.mxu0 0.0
        %3857 = vmatprep.subr.mxu0 0.0
        %3858 = vmatpush2.msra.mxu0 0.0
        %3859 = vmatprep.subr.mxu0 0.0
        %3860 = vmatpush2.msra.mxu0 0.0
        %3861 = vmatprep.subr.mxu0 0.0
        %3862 = vmatpush2.msra.mxu0 0.0
        %3863 = vmatprep.subr.mxu0 0.0
        %3864 = vmatpush2.msra.mxu0 0.0
        %3865 = vmatprep.subr.mxu0 0.0
        %3866 = vmatpush2.msra.mxu0 0.0
        %3867 = vmatprep.subr.mxu0 0.0
        %3868 = vmatpush2.msra.mxu0 0.0
        %3869 = vmatprep.subr.mxu0 0.0
        %3870 = vmatpush2.msra.mxu0 0.0
        %3871 = vmatprep.subr.mxu0 0.0
        %3872 = vmatpush2.msra.mxu0 0.0
        %3873 = vmatprep.mubr.f32.mxu0 0.0
        %3874 = vmatmul.mubr.f32.gmra.mxu0 %v3807
        %v3875 = vpop.f32.mrf.mxu0
        %v3876 = vadd.f32 0.0, %v3875
        %v3877 = vpop.f32.mrf.mxu0
        %3878 = vdwg.mxu0
        %v3879 = vld [vmem:[#allocation14 + $0x2] sm:$0x1]
        %v3880 = vlaneseq
        %v3881 = vshrl.u32 %v3880, 7
        %v3882 = vsub.s32 0, %v3881
        %v3883 = vrot.slane %v3879, %v3882
        %v3884 = vmul.f32 %v3876, %v3883
        %v3885 = vadd.f32 %v3801, %v3884
        %vm3886 = vcmp.eq.s32.totalorder %v1692, %v1795
        %v3887 = vsel %vm3886, 1, 0
        %v3888 = vcvt.s32.f32 %v3887
        %v3890 = vsel %vm1801, %v3888, 0
        %3892 = vmatprep.subr.mxu0 0.0
        %3893 = vmatpush1.msra.mxu0 0.0
        %3894 = vmatprep.subr.mxu0 0.0
        %3895 = vmatpush1.msra.mxu0 0.0
        %3896 = vmatprep.subr.mxu0 0.0
        %3897 = vmatpush1.msra.mxu0 0.0
        %3898 = vmatprep.subr.mxu0 0.0
        %3899 = vmatpush1.msra.mxu0 0.0
        %3900 = vmatprep.subr.mxu0 0.0
        %3901 = vmatpush1.msra.mxu0 0.0
        %3902 = vmatprep.subr.mxu0 0.0
        %3903 = vmatpush1.msra.mxu0 0.0
        %3904 = vmatprep.subr.mxu0 0.0
        %3905 = vmatpush1.msra.mxu0 0.0
        %3906 = vmatprep.subr.mxu0 0.0
        %3907 = vmatpush1.msra.mxu0 0.0
        %3908 = vmatprep.subr.mxu0 0.0
        %3909 = vmatpush1.msra.mxu0 0.0
        %3910 = vmatprep.subr.mxu0 0.0
        %3911 = vmatpush1.msra.mxu0 0.0
        %3912 = vmatprep.subr.mxu0 0.0
        %3913 = vmatpush1.msra.mxu0 0.0
        %3914 = vmatprep.subr.mxu0 0.0
        %3915 = vmatpush1.msra.mxu0 0.0
        %3916 = vmatprep.subr.mxu0 0.0
        %3917 = vmatpush1.msra.mxu0 0.0
        %3918 = vmatprep.subr.mxu0 0.0
        %3919 = vmatpush1.msra.mxu0 0.0
        %3920 = vmatprep.subr.mxu0 0.0
        %3921 = vmatpush1.msra.mxu0 0.0
        %3922 = vmatprep.subr.mxu0 0.0
        %3923 = vmatpush1.msra.mxu0 %v3633
        %3924 = vmatprep.subr.mxu0 0.0
        %3925 = vmatpush2.msra.mxu0 0.0
        %3926 = vmatprep.subr.mxu0 0.0
        %3927 = vmatpush2.msra.mxu0 0.0
        %3928 = vmatprep.subr.mxu0 0.0
        %3929 = vmatpush2.msra.mxu0 0.0
        %3930 = vmatprep.subr.mxu0 0.0
        %3931 = vmatpush2.msra.mxu0 0.0
        %3932 = vmatprep.subr.mxu0 0.0
        %3933 = vmatpush2.msra.mxu0 0.0
        %3934 = vmatprep.subr.mxu0 0.0
        %3935 = vmatpush2.msra.mxu0 0.0
        %3936 = vmatprep.subr.mxu0 0.0
        %3937 = vmatpush2.msra.mxu0 0.0
        %3938 = vmatprep.subr.mxu0 0.0
        %3939 = vmatpush2.msra.mxu0 0.0
        %3940 = vmatprep.subr.mxu0 0.0
        %3941 = vmatpush2.msra.mxu0 0.0
        %3942 = vmatprep.subr.mxu0 0.0
        %3943 = vmatpush2.msra.mxu0 0.0
        %3944 = vmatprep.subr.mxu0 0.0
        %3945 = vmatpush2.msra.mxu0 0.0
        %3946 = vmatprep.subr.mxu0 0.0
        %3947 = vmatpush2.msra.mxu0 0.0
        %3948 = vmatprep.subr.mxu0 0.0
        %3949 = vmatpush2.msra.mxu0 0.0
        %3950 = vmatprep.subr.mxu0 0.0
        %3951 = vmatpush2.msra.mxu0 0.0
        %3952 = vmatprep.subr.mxu0 0.0
        %3953 = vmatpush2.msra.mxu0 0.0
        %3954 = vmatprep.subr.mxu0 0.0
        %3955 = vmatpush2.msra.mxu0 0.0
        %3956 = vmatprep.mubr.f32.mxu0 0.0
        %3957 = vmatmul.mubr.f32.gmra.mxu0 %v3890
        %v3958 = vpop.f32.mrf.mxu0
        %v3959 = vadd.f32 0.0, %v3958
        %v3960 = vpop.f32.mrf.mxu0
        %3961 = vdwg.mxu0
        %v3962 = vld [vmem:[#allocation14 + $0x3] sm:$0x1]
        %v3963 = vlaneseq
        %v3964 = vshrl.u32 %v3963, 7
        %v3965 = vsub.s32 0, %v3964
        %v3966 = vrot.slane %v3962, %v3965
        %v3967 = vmul.f32 %v3959, %v3966
        %v3968 = vadd.f32 %v3885, %v3967
        %3969 = vmatprep.subr.mxu0 0.0
        %3970 = vmatpush1.msra.mxu0 0.0
        %3971 = vmatprep.subr.mxu0 0.0
        %3972 = vmatpush1.msra.mxu0 0.0
        %3973 = vmatprep.subr.mxu0 0.0
        %3974 = vmatpush1.msra.mxu0 0.0
        %3975 = vmatprep.subr.mxu0 0.0
        %3976 = vmatpush1.msra.mxu0 0.0
        %3977 = vmatprep.subr.mxu0 0.0
        %3978 = vmatpush1.msra.mxu0 0.0
        %3979 = vmatprep.subr.mxu0 0.0
        %3980 = vmatpush1.msra.mxu0 0.0
        %3981 = vmatprep.subr.mxu0 0.0
        %3982 = vmatpush1.msra.mxu0 0.0
        %3983 = vmatprep.subr.mxu0 0.0
        %3984 = vmatpush1.msra.mxu0 0.0
        %3985 = vmatprep.subr.mxu0 0.0
        %3986 = vmatpush1.msra.mxu0 0.0
        %3987 = vmatprep.subr.mxu0 0.0
        %3988 = vmatpush1.msra.mxu0 0.0
        %3989 = vmatprep.subr.mxu0 0.0
        %3990 = vmatpush1.msra.mxu0 0.0
        %3991 = vmatprep.subr.mxu0 0.0
        %3992 = vmatpush1.msra.mxu0 0.0
        %3993 = vmatprep.subr.mxu0 0.0
        %3994 = vmatpush1.msra.mxu0 0.0
        %3995 = vmatprep.subr.mxu0 0.0
        %3996 = vmatpush1.msra.mxu0 0.0
        %3997 = vmatprep.subr.mxu0 0.0
        %3998 = vmatpush1.msra.mxu0 0.0
        %3999 = vmatprep.subr.mxu0 0.0
        %4000 = vmatpush1.msra.mxu0 %v3633
        %4001 = vmatprep.subr.mxu0 0.0
        %4002 = vmatpush2.msra.mxu0 0.0
        %4003 = vmatprep.subr.mxu0 0.0
        %4004 = vmatpush2.msra.mxu0 0.0
        %4005 = vmatprep.subr.mxu0 0.0
        %4006 = vmatpush2.msra.mxu0 0.0
        %4007 = vmatprep.subr.mxu0 0.0
        %4008 = vmatpush2.msra.mxu0 0.0
        %4009 = vmatprep.subr.mxu0 0.0
        %4010 = vmatpush2.msra.mxu0 0.0
        %4011 = vmatprep.subr.mxu0 0.0
        %4012 = vmatpush2.msra.mxu0 0.0
        %4013 = vmatprep.subr.mxu0 0.0
        %4014 = vmatpush2.msra.mxu0 0.0
        %4015 = vmatprep.subr.mxu0 0.0
        %4016 = vmatpush2.msra.mxu0 0.0
        %4017 = vmatprep.subr.mxu0 0.0
        %4018 = vmatpush2.msra.mxu0 0.0
        %4019 = vmatprep.subr.mxu0 0.0
        %4020 = vmatpush2.msra.mxu0 0.0
        %4021 = vmatprep.subr.mxu0 0.0
        %4022 = vmatpush2.msra.mxu0 0.0
        %4023 = vmatprep.subr.mxu0 0.0
        %4024 = vmatpush2.msra.mxu0 0.0
        %4025 = vmatprep.subr.mxu0 0.0
        %4026 = vmatpush2.msra.mxu0 0.0
        %4027 = vmatprep.subr.mxu0 0.0
        %4028 = vmatpush2.msra.mxu0 0.0
        %4029 = vmatprep.subr.mxu0 0.0
        %4030 = vmatpush2.msra.mxu0 0.0
        %4031 = vmatprep.subr.mxu0 0.0
        %4032 = vmatpush2.msra.mxu0 0.0
        %4033 = vmatprep.mubr.f32.mxu0 0.0
        %4034 = vmatmul.mubr.f32.gmra.mxu0 %v1803
        %v4035 = vpop.f32.mrf.mxu0
        %v4036 = vadd.f32 0.0, %v4035
        %v4037 = vpop.f32.mrf.mxu0
        %4038 = vdwg.mxu0
        %v4039 = vld [vmem:[#allocation14 + $0x4] sm:$0x1]
        %v4040 = vlaneseq
        %v4041 = vshrl.u32 %v4040, 7
        %v4042 = vsub.s32 0, %v4041
        %v4043 = vrot.slane %v4039, %v4042
        %v4044 = vmul.f32 %v4036, %v4043
        %v4045 = vadd.f32 %v3968, %v4044
        %v4046 = vadd.s32 %v1795, 2
        %vm4047 = vcmp.eq.s32.totalorder %v1692, %v4046
        %v4048 = vsel %vm4047, 1, 0
        %v4049 = vcvt.s32.f32 %v4048
        %v4051 = vsel %vm1801, %v4049, 0
        %4053 = vmatprep.subr.mxu0 0.0
        %4054 = vmatpush1.msra.mxu0 0.0
        %4055 = vmatprep.subr.mxu0 0.0
        %4056 = vmatpush1.msra.mxu0 0.0
        %4057 = vmatprep.subr.mxu0 0.0
        %4058 = vmatpush1.msra.mxu0 0.0
        %4059 = vmatprep.subr.mxu0 0.0
        %4060 = vmatpush1.msra.mxu0 0.0
        %4061 = vmatprep.subr.mxu0 0.0
        %4062 = vmatpush1.msra.mxu0 0.0
        %4063 = vmatprep.subr.mxu0 0.0
        %4064 = vmatpush1.msra.mxu0 0.0
        %4065 = vmatprep.subr.mxu0 0.0
        %4066 = vmatpush1.msra.mxu0 0.0
        %4067 = vmatprep.subr.mxu0 0.0
        %4068 = vmatpush1.msra.mxu0 0.0
        %4069 = vmatprep.subr.mxu0 0.0
        %4070 = vmatpush1.msra.mxu0 0.0
        %4071 = vmatprep.subr.mxu0 0.0
        %4072 = vmatpush1.msra.mxu0 0.0
        %4073 = vmatprep.subr.mxu0 0.0
        %4074 = vmatpush1.msra.mxu0 0.0
        %4075 = vmatprep.subr.mxu0 0.0
        %4076 = vmatpush1.msra.mxu0 0.0
        %4077 = vmatprep.subr.mxu0 0.0
        %4078 = vmatpush1.msra.mxu0 0.0
        %4079 = vmatprep.subr.mxu0 0.0
        %4080 = vmatpush1.msra.mxu0 0.0
        %4081 = vmatprep.subr.mxu0 0.0
        %4082 = vmatpush1.msra.mxu0 0.0
        %4083 = vmatprep.subr.mxu0 0.0
        %4084 = vmatpush1.msra.mxu0 %v3633
        %4085 = vmatprep.subr.mxu0 0.0
        %4086 = vmatpush2.msra.mxu0 0.0
        %4087 = vmatprep.subr.mxu0 0.0
        %4088 = vmatpush2.msra.mxu0 0.0
        %4089 = vmatprep.subr.mxu0 0.0
        %4090 = vmatpush2.msra.mxu0 0.0
        %4091 = vmatprep.subr.mxu0 0.0
        %4092 = vmatpush2.msra.mxu0 0.0
        %4093 = vmatprep.subr.mxu0 0.0
        %4094 = vmatpush2.msra.mxu0 0.0
        %4095 = vmatprep.subr.mxu0 0.0
        %4096 = vmatpush2.msra.mxu0 0.0
        %4097 = vmatprep.subr.mxu0 0.0
        %4098 = vmatpush2.msra.mxu0 0.0
        %4099 = vmatprep.subr.mxu0 0.0
        %4100 = vmatpush2.msra.mxu0 0.0
        %4101 = vmatprep.subr.mxu0 0.0
        %4102 = vmatpush2.msra.mxu0 0.0
        %4103 = vmatprep.subr.mxu0 0.0
        %4104 = vmatpush2.msra.mxu0 0.0
        %4105 = vmatprep.subr.mxu0 0.0
        %4106 = vmatpush2.msra.mxu0 0.0
        %4107 = vmatprep.subr.mxu0 0.0
        %4108 = vmatpush2.msra.mxu0 0.0
        %4109 = vmatprep.subr.mxu0 0.0
        %4110 = vmatpush2.msra.mxu0 0.0
        %4111 = vmatprep.subr.mxu0 0.0
        %4112 = vmatpush2.msra.mxu0 0.0
        %4113 = vmatprep.subr.mxu0 0.0
        %4114 = vmatpush2.msra.mxu0 0.0
        %4115 = vmatprep.subr.mxu0 0.0
        %4116 = vmatpush2.msra.mxu0 0.0
        %4117 = vmatprep.mubr.f32.mxu0 0.0
        %4118 = vmatmul.mubr.f32.gmra.mxu0 %v4051
        %v4119 = vpop.f32.mrf.mxu0
        %v4120 = vadd.f32 0.0, %v4119
        %v4121 = vpop.f32.mrf.mxu0
        %4122 = vdwg.mxu0
        %v4123 = vld [vmem:[#allocation14 + $0x5] sm:$0x1]
        %v4124 = vlaneseq
        %v4125 = vshrl.u32 %v4124, 7
        %v4126 = vsub.s32 0, %v4125
        %v4127 = vrot.slane %v4123, %v4126
        %v4128 = vmul.f32 %v4120, %v4127
        %v4129 = vadd.f32 %v4045, %v4128
        %v4130 = vadd.s32 %v1795, 3
        %vm4131 = vcmp.eq.s32.totalorder %v1692, %v4130
        %v4132 = vsel %vm4131, 1, 0
        %v4133 = vcvt.s32.f32 %v4132
        %v4135 = vsel %vm1801, %v4133, 0
        %4137 = vmatprep.subr.mxu0 0.0
        %4138 = vmatpush1.msra.mxu0 0.0
        %4139 = vmatprep.subr.mxu0 0.0
        %4140 = vmatpush1.msra.mxu0 0.0
        %4141 = vmatprep.subr.mxu0 0.0
        %4142 = vmatpush1.msra.mxu0 0.0
        %4143 = vmatprep.subr.mxu0 0.0
        %4144 = vmatpush1.msra.mxu0 0.0
        %4145 = vmatprep.subr.mxu0 0.0
        %4146 = vmatpush1.msra.mxu0 0.0
        %4147 = vmatprep.subr.mxu0 0.0
        %4148 = vmatpush1.msra.mxu0 0.0
        %4149 = vmatprep.subr.mxu0 0.0
        %4150 = vmatpush1.msra.mxu0 0.0
        %4151 = vmatprep.subr.mxu0 0.0
        %4152 = vmatpush1.msra.mxu0 0.0
        %4153 = vmatprep.subr.mxu0 0.0
        %4154 = vmatpush1.msra.mxu0 0.0
        %4155 = vmatprep.subr.mxu0 0.0
        %4156 = vmatpush1.msra.mxu0 0.0
        %4157 = vmatprep.subr.mxu0 0.0
        %4158 = vmatpush1.msra.mxu0 0.0
        %4159 = vmatprep.subr.mxu0 0.0
        %4160 = vmatpush1.msra.mxu0 0.0
        %4161 = vmatprep.subr.mxu0 0.0
        %4162 = vmatpush1.msra.mxu0 0.0
        %4163 = vmatprep.subr.mxu0 0.0
        %4164 = vmatpush1.msra.mxu0 0.0
        %4165 = vmatprep.subr.mxu0 0.0
        %4166 = vmatpush1.msra.mxu0 0.0
        %4167 = vmatprep.subr.mxu0 0.0
        %4168 = vmatpush1.msra.mxu0 %v3633
        %4169 = vmatprep.subr.mxu0 0.0
        %4170 = vmatpush2.msra.mxu0 0.0
        %4171 = vmatprep.subr.mxu0 0.0
        %4172 = vmatpush2.msra.mxu0 0.0
        %4173 = vmatprep.subr.mxu0 0.0
        %4174 = vmatpush2.msra.mxu0 0.0
        %4175 = vmatprep.subr.mxu0 0.0
        %4176 = vmatpush2.msra.mxu0 0.0
        %4177 = vmatprep.subr.mxu0 0.0
        %4178 = vmatpush2.msra.mxu0 0.0
        %4179 = vmatprep.subr.mxu0 0.0
        %4180 = vmatpush2.msra.mxu0 0.0
        %4181 = vmatprep.subr.mxu0 0.0
        %4182 = vmatpush2.msra.mxu0 0.0
        %4183 = vmatprep.subr.mxu0 0.0
        %4184 = vmatpush2.msra.mxu0 0.0
        %4185 = vmatprep.subr.mxu0 0.0
        %4186 = vmatpush2.msra.mxu0 0.0
        %4187 = vmatprep.subr.mxu0 0.0
        %4188 = vmatpush2.msra.mxu0 0.0
        %4189 = vmatprep.subr.mxu0 0.0
        %4190 = vmatpush2.msra.mxu0 0.0
        %4191 = vmatprep.subr.mxu0 0.0
        %4192 = vmatpush2.msra.mxu0 0.0
        %4193 = vmatprep.subr.mxu0 0.0
        %4194 = vmatpush2.msra.mxu0 0.0
        %4195 = vmatprep.subr.mxu0 0.0
        %4196 = vmatpush2.msra.mxu0 0.0
        %4197 = vmatprep.subr.mxu0 0.0
        %4198 = vmatpush2.msra.mxu0 0.0
        %4199 = vmatprep.subr.mxu0 0.0
        %4200 = vmatpush2.msra.mxu0 0.0
        %4201 = vmatprep.mubr.f32.mxu0 0.0
        %4202 = vmatmul.mubr.f32.gmra.mxu0 %v4135
        %v4203 = vpop.f32.mrf.mxu0
        %v4204 = vadd.f32 0.0, %v4203
        %v4205 = vpop.f32.mrf.mxu0
        %4206 = vdwg.mxu0
        %v4207 = vld [vmem:[#allocation14 + $0x6] sm:$0x1]
        %v4208 = vlaneseq
        %v4209 = vshrl.u32 %v4208, 7
        %v4210 = vsub.s32 0, %v4209
        %v4211 = vrot.slane %v4207, %v4210
        %v4212 = vmul.f32 %v4204, %v4211
        %v4213 = vadd.f32 %v4129, %v4212
        %v4214 = vld [vmem:[%s51] sm:$0x1]
        %v4216 = vlaneseq
        %v4217 = vshrl.u32 %v4216, 7
        %v4218 = vsub.s32 0, %v4217
        %v4219 = vrot.slane %v4214, %v4218
        %v4221 = vmul.f32 %v4213, %v4219
        %v4222 = vld [vmem:[%s53] sm:$0x1]
        %v4224 = vlaneseq
        %v4225 = vshrl.u32 %v4224, 7
        %v4226 = vsub.s32 0, %v4225
        %v4227 = vrot.slane %v4222, %v4226
        %v4229 = vadd.f32 %v4221, %v4227
        %v4230 = vxor.u32 %v4229, 2147483648
        %v4231 = vmul.f32 %v4230, 1.442695
        %v4232 = vpow.pop %v4231
        %v4233 = vadd.f32 %v4232, 1.0
        %v4234 = vrcp.pop %v4233
        %v4235 = vmul.f32 1.0, %v4234
        %v4236 = vmul.f32 %v4229, %v4235
        %v4237 = vld [vmem:[#allocation16] sm:$0xff]
        %v4238 = vld [vmem:[#allocation16 + $0x8] sm:$0xff]
        %v4239 = vld [vmem:[#allocation16 + $0x10] sm:$0xff]
        %v4240 = vld [vmem:[#allocation16 + $0x18] sm:$0xff]
        %v4241 = vld [vmem:[%s57] sm:$0x1]
        %v4243 = vlaneseq
        %v4244 = vshrl.u32 %v4243, 7
        %v4245 = vsub.s32 0, %v4244
        %v4246 = vrot.slane %v4241, %v4245
        %v4249 = vsel %vm1328, %v4236, 0
        %4251 = vmatprep.subr.mxu0 0.0
        %4252 = vmatpush1.msra.mxu0 0.0
        %4253 = vmatprep.subr.mxu0 0.0
        %4254 = vmatpush1.msra.mxu0 0.0
        %4255 = vmatprep.subr.mxu0 0.0
        %4256 = vmatpush1.msra.mxu0 0.0
        %4257 = vmatprep.subr.mxu0 0.0
        %4258 = vmatpush1.msra.mxu0 0.0
        %4259 = vmatprep.subr.mxu0 0.0
        %4260 = vmatpush1.msra.mxu0 0.0
        %4261 = vmatprep.subr.mxu0 0.0
        %4262 = vmatpush1.msra.mxu0 0.0
        %4263 = vmatprep.subr.mxu0 0.0
        %4264 = vmatpush1.msra.mxu0 0.0
        %4265 = vmatprep.subr.mxu0 0.0
        %4266 = vmatpush1.msra.mxu0 0.0
        %4267 = vmatprep.subr.mxu0 0.0
        %4268 = vmatpush1.msra.mxu0 0.0
        %4269 = vmatprep.subr.mxu0 0.0
        %4270 = vmatpush1.msra.mxu0 0.0
        %4271 = vmatprep.subr.mxu0 0.0
        %4272 = vmatpush1.msra.mxu0 0.0
        %4273 = vmatprep.subr.mxu0 0.0
        %4274 = vmatpush1.msra.mxu0 0.0
        %4275 = vmatprep.subr.mxu0 0.0
        %4276 = vmatpush1.msra.mxu0 %v4240
        %4277 = vmatprep.subr.mxu0 0.0
        %4278 = vmatpush1.msra.mxu0 %v4239
        %4279 = vmatprep.subr.mxu0 0.0
        %4280 = vmatpush1.msra.mxu0 %v4238
        %4281 = vmatprep.subr.mxu0 0.0
        %4282 = vmatpush1.msra.mxu0 %v4237
        %4283 = vmatprep.subr.mxu0 0.0
        %4284 = vmatpush2.msra.mxu0 0.0
        %4285 = vmatprep.subr.mxu0 0.0
        %4286 = vmatpush2.msra.mxu0 0.0
        %4287 = vmatprep.subr.mxu0 0.0
        %4288 = vmatpush2.msra.mxu0 0.0
        %4289 = vmatprep.subr.mxu0 0.0
        %4290 = vmatpush2.msra.mxu0 0.0
        %4291 = vmatprep.subr.mxu0 0.0
        %4292 = vmatpush2.msra.mxu0 0.0
        %4293 = vmatprep.subr.mxu0 0.0
        %4294 = vmatpush2.msra.mxu0 0.0
        %4295 = vmatprep.subr.mxu0 0.0
        %4296 = vmatpush2.msra.mxu0 0.0
        %4297 = vmatprep.subr.mxu0 0.0
        %4298 = vmatpush2.msra.mxu0 0.0
        %4299 = vmatprep.subr.mxu0 0.0
        %4300 = vmatpush2.msra.mxu0 0.0
        %4301 = vmatprep.subr.mxu0 0.0
        %4302 = vmatpush2.msra.mxu0 0.0
        %4303 = vmatprep.subr.mxu0 0.0
        %4304 = vmatpush2.msra.mxu0 0.0
        %4305 = vmatprep.subr.mxu0 0.0
        %4306 = vmatpush2.msra.mxu0 0.0
        %4307 = vmatprep.subr.mxu0 0.0
        %4308 = vmatpush2.msra.mxu0 0.0
        %4309 = vmatprep.subr.mxu0 0.0
        %4310 = vmatpush2.msra.mxu0 0.0
        %4311 = vmatprep.subr.mxu0 0.0
        %4312 = vmatpush2.msra.mxu0 0.0
        %4313 = vmatprep.subr.mxu0 0.0
        %4314 = vmatpush2.msra.mxu0 0.0
        %4315 = vmatprep.mubr.f32.mxu0 0.0
        %4316 = vmatmul.mubr.f32.gmra.mxu0 %v4249
        %v4317 = vpop.f32.mrf.mxu0
        %v4318 = vadd.f32 %v4246, %v4317
        %v4319 = vpop.f32.mrf.mxu0
        %4320 = vdwg.mxu0
        %v4321 = vadd.f32 %v4318, %v3509
        %v4322 = vld [vmem:[%s59] sm:$0x1]
        %v4323 = vld [vmem:[%s61] sm:$0x1]
        %v4324 = vsel %vm1328, %v4321, 0.0
        %4325 = vadd.xlane.f32.xlu0 %v4324
        %v4326 = vpop.xlane.xlu0 %4325
        %v4327 = vmul.f32 %v4326, %v1332
        %v4328 = vsub.f32 %v4321, %v4327
        %v4329 = vmul.f32 %v4328, %v4328
        %v4330 = vsel %vm1328, %v4329, 0.0
        %4331 = vadd.xlane.f32.xlu0 %v4330
        %v4332 = vpop.xlane.xlu0 %4331
        %v4333 = vmul.f32 %v4332, %v1332
        %v4334 = vadd.f32 %v4333, 1e-05
        %v4335 = vrsqrt.pop %v4334
        %v4336 = vmul.f32 %v4328, %v4335
        %v4338 = vlaneseq
        %v4339 = vshrl.u32 %v4338, 7
        %v4340 = vsub.s32 0, %v4339
        %v4341 = vrot.slane %v4322, %v4340
        %v4343 = vmul.f32 %v4336, %v4341
        %v4345 = vlaneseq
        %v4346 = vshrl.u32 %v4345, 7
        %v4347 = vsub.s32 0, %v4346
        %v4348 = vrot.slane %v4323, %v4347
        %v4350 = vadd.f32 %v4343, %v4348
        %v4351 = vld [vmem:[%s63] sm:$0x1]
        %v4352 = vld [vmem:[%s65] sm:$0x1]
        %v4353 = vsel %vm1328, %v4350, 0.0
        %4354 = vadd.xlane.f32.xlu0 %v4353
        %v4355 = vpop.xlane.xlu0 %4354
        %v4356 = vmul.f32 %v4355, %v1332
        %v4357 = vsub.f32 %v4350, %v4356
        %v4358 = vmul.f32 %v4357, %v4357
        %v4359 = vsel %vm1328, %v4358, 0.0
        %4360 = vadd.xlane.f32.xlu0 %v4359
        %v4361 = vpop.xlane.xlu0 %4360
        %v4362 = vmul.f32 %v4361, %v1332
        %v4363 = vadd.f32 %v4362, 1e-05
        %v4364 = vrsqrt.pop %v4363
        %v4365 = vmul.f32 %v4357, %v4364
        %v4367 = vlaneseq
        %v4368 = vshrl.u32 %v4367, 7
        %v4369 = vsub.s32 0, %v4368
        %v4370 = vrot.slane %v4351, %v4369
        %v4372 = vmul.f32 %v4365, %v4370
        %v4374 = vlaneseq
        %v4375 = vshrl.u32 %v4374, 7
        %v4376 = vsub.s32 0, %v4375
        %v4377 = vrot.slane %v4352, %v4376
        %v4379 = vadd.f32 %v4372, %v4377
        %v4380 = vld [vmem:[%s67] sm:$0xff]
        %v4381 = vld [vmem:[%s67 + $0x8] sm:$0xff]
        %v4382 = vld [vmem:[%s67 + $0x10] sm:$0xff]
        %v4383 = vld [vmem:[%s67 + $0x18] sm:$0xff]
        %v4384 = vld [vmem:[%s69] sm:$0x1]
        %v4386 = vlaneseq
        %v4387 = vshrl.u32 %v4386, 7
        %v4388 = vsub.s32 0, %v4387
        %v4389 = vrot.slane %v4384, %v4388
        %v4392 = vsel %vm1328, %v4379, 0
        %4394 = vmatprep.subr.mxu0 0.0
        %4395 = vmatpush1.msra.mxu0 0.0
        %4396 = vmatprep.subr.mxu0 0.0
        %4397 = vmatpush1.msra.mxu0 0.0
        %4398 = vmatprep.subr.mxu0 0.0
        %4399 = vmatpush1.msra.mxu0 0.0
        %4400 = vmatprep.subr.mxu0 0.0
        %4401 = vmatpush1.msra.mxu0 0.0
        %4402 = vmatprep.subr.mxu0 0.0
        %4403 = vmatpush1.msra.mxu0 0.0
        %4404 = vmatprep.subr.mxu0 0.0
        %4405 = vmatpush1.msra.mxu0 0.0
        %4406 = vmatprep.subr.mxu0 0.0
        %4407 = vmatpush1.msra.mxu0 0.0
        %4408 = vmatprep.subr.mxu0 0.0
        %4409 = vmatpush1.msra.mxu0 0.0
        %4410 = vmatprep.subr.mxu0 0.0
        %4411 = vmatpush1.msra.mxu0 0.0
        %4412 = vmatprep.subr.mxu0 0.0
        %4413 = vmatpush1.msra.mxu0 0.0
        %4414 = vmatprep.subr.mxu0 0.0
        %4415 = vmatpush1.msra.mxu0 0.0
        %4416 = vmatprep.subr.mxu0 0.0
        %4417 = vmatpush1.msra.mxu0 0.0
        %4418 = vmatprep.subr.mxu0 0.0
        %4419 = vmatpush1.msra.mxu0 %v4383
        %4420 = vmatprep.subr.mxu0 0.0
        %4421 = vmatpush1.msra.mxu0 %v4382
        %4422 = vmatprep.subr.mxu0 0.0
        %4423 = vmatpush1.msra.mxu0 %v4381
        %4424 = vmatprep.subr.mxu0 0.0
        %4425 = vmatpush1.msra.mxu0 %v4380
        %4426 = vmatprep.subr.mxu0 0.0
        %4427 = vmatpush2.msra.mxu0 0.0
        %4428 = vmatprep.subr.mxu0 0.0
        %4429 = vmatpush2.msra.mxu0 0.0
        %4430 = vmatprep.subr.mxu0 0.0
        %4431 = vmatpush2.msra.mxu0 0.0
        %4432 = vmatprep.subr.mxu0 0.0
        %4433 = vmatpush2.msra.mxu0 0.0
        %4434 = vmatprep.subr.mxu0 0.0
        %4435 = vmatpush2.msra.mxu0 0.0
        %4436 = vmatprep.subr.mxu0 0.0
        %4437 = vmatpush2.msra.mxu0 0.0
        %4438 = vmatprep.subr.mxu0 0.0
        %4439 = vmatpush2.msra.mxu0 0.0
        %4440 = vmatprep.subr.mxu0 0.0
        %4441 = vmatpush2.msra.mxu0 0.0
        %4442 = vmatprep.subr.mxu0 0.0
        %4443 = vmatpush2.msra.mxu0 0.0
        %4444 = vmatprep.subr.mxu0 0.0
        %4445 = vmatpush2.msra.mxu0 0.0
        %4446 = vmatprep.subr.mxu0 0.0
        %4447 = vmatpush2.msra.mxu0 0.0
        %4448 = vmatprep.subr.mxu0 0.0
        %4449 = vmatpush2.msra.mxu0 0.0
        %4450 = vmatprep.subr.mxu0 0.0
        %4451 = vmatpush2.msra.mxu0 0.0
        %4452 = vmatprep.subr.mxu0 0.0
        %4453 = vmatpush2.msra.mxu0 0.0
        %4454 = vmatprep.subr.mxu0 0.0
        %4455 = vmatpush2.msra.mxu0 0.0
        %4456 = vmatprep.subr.mxu0 0.0
        %4457 = vmatpush2.msra.mxu0 0.0
        %4458 = vmatprep.mubr.f32.mxu0 0.0
        %4459 = vmatmul.mubr.f32.gmra.mxu0 %v4392
        %v4460 = vpop.f32.mrf.mxu0
        %v4461 = vadd.f32 %v4389, %v4460
        %v4462 = vpop.f32.mrf.mxu0
        %4463 = vdwg.mxu0
        %v4464 = vxor.u32 %v4461, 2147483648
        %v4465 = vmul.f32 %v4464, 1.442695
        %v4466 = vpow.pop %v4465
        %v4467 = vadd.f32 %v4466, 1.0
        %v4468 = vrcp.pop %v4467
        %v4469 = vmul.f32 1.0, %v4468
        %v4470 = vmul.f32 %v4461, %v4469
        %v4471 = vld [vmem:[#allocation17] sm:$0xff]
        %v4472 = vld [vmem:[#allocation17 + $0x8] sm:$0xff]
        %v4473 = vld [vmem:[#allocation17 + $0x10] sm:$0xff]
        %v4474 = vld [vmem:[#allocation17 + $0x18] sm:$0xff]
        %v4475 = vld [vmem:[#allocation17 + $0x20] sm:$0xff]
        %v4476 = vld [vmem:[#allocation17 + $0x28] sm:$0xff]
        %v4477 = vld [vmem:[#allocation17 + $0x30] sm:$0xff]
        %v4478 = vld [vmem:[#allocation17 + $0x38] sm:$0xff]
        %v4479 = vld [vmem:[#allocation17 + $0x40] sm:$0xff]
        %v4480 = vld [vmem:[#allocation17 + $0x48] sm:$0xff]
        %v4481 = vld [vmem:[#allocation17 + $0x50] sm:$0xff]
        %v4482 = vld [vmem:[#allocation17 + $0x58] sm:$0xff]
        %v4483 = vld [vmem:[#allocation17 + $0x60] sm:$0xff]
        %v4484 = vld [vmem:[#allocation17 + $0x68] sm:$0xff]
        %v4485 = vld [vmem:[#allocation17 + $0x70] sm:$0xff]
        %v4486 = vld [vmem:[#allocation17 + $0x78] sm:$0xff]
        %v4487 = vld [vmem:[%s73] sm:$0x1]
        %v4489 = vlaneseq
        %v4490 = vshrl.u32 %v4489, 7
        %v4491 = vsub.s32 0, %v4490
        %v4492 = vrot.slane %v4487, %v4491
        %4494 = vmatprep.subr.mxu0 0.0
        %4495 = vmatpush1.msra.mxu0 %v4486
        %4496 = vmatprep.subr.mxu0 0.0
        %4497 = vmatpush1.msra.mxu0 %v4485
        %4498 = vmatprep.subr.mxu0 0.0
        %4499 = vmatpush1.msra.mxu0 %v4484
        %4500 = vmatprep.subr.mxu0 0.0
        %4501 = vmatpush1.msra.mxu0 %v4483
        %4502 = vmatprep.subr.mxu0 0.0
        %4503 = vmatpush1.msra.mxu0 %v4482
        %4504 = vmatprep.subr.mxu0 0.0
        %4505 = vmatpush1.msra.mxu0 %v4481
        %4506 = vmatprep.subr.mxu0 0.0
        %4507 = vmatpush1.msra.mxu0 %v4480
        %4508 = vmatprep.subr.mxu0 0.0
        %4509 = vmatpush1.msra.mxu0 %v4479
        %4510 = vmatprep.subr.mxu0 0.0
        %4511 = vmatpush1.msra.mxu0 %v4478
        %4512 = vmatprep.subr.mxu0 0.0
        %4513 = vmatpush1.msra.mxu0 %v4477
        %4514 = vmatprep.subr.mxu0 0.0
        %4515 = vmatpush1.msra.mxu0 %v4476
        %4516 = vmatprep.subr.mxu0 0.0
        %4517 = vmatpush1.msra.mxu0 %v4475
        %4518 = vmatprep.subr.mxu0 0.0
        %4519 = vmatpush1.msra.mxu0 %v4474
        %4520 = vmatprep.subr.mxu0 0.0
        %4521 = vmatpush1.msra.mxu0 %v4473
        %4522 = vmatprep.subr.mxu0 0.0
        %4523 = vmatpush1.msra.mxu0 %v4472
        %4524 = vmatprep.subr.mxu0 0.0
        %4525 = vmatpush1.msra.mxu0 %v4471
        %4526 = vmatprep.subr.mxu0 0.0
        %4527 = vmatpush2.msra.mxu0 0.0
        %4528 = vmatprep.subr.mxu0 0.0
        %4529 = vmatpush2.msra.mxu0 0.0
        %4530 = vmatprep.subr.mxu0 0.0
        %4531 = vmatpush2.msra.mxu0 0.0
        %4532 = vmatprep.subr.mxu0 0.0
        %4533 = vmatpush2.msra.mxu0 0.0
        %4534 = vmatprep.subr.mxu0 0.0
        %4535 = vmatpush2.msra.mxu0 0.0
        %4536 = vmatprep.subr.mxu0 0.0
        %4537 = vmatpush2.msra.mxu0 0.0
        %4538 = vmatprep.subr.mxu0 0.0
        %4539 = vmatpush2.msra.mxu0 0.0
        %4540 = vmatprep.subr.mxu0 0.0
        %4541 = vmatpush2.msra.mxu0 0.0
        %4542 = vmatprep.subr.mxu0 0.0
        %4543 = vmatpush2.msra.mxu0 0.0
        %4544 = vmatprep.subr.mxu0 0.0
        %4545 = vmatpush2.msra.mxu0 0.0
        %4546 = vmatprep.subr.mxu0 0.0
        %4547 = vmatpush2.msra.mxu0 0.0
        %4548 = vmatprep.subr.mxu0 0.0
        %4549 = vmatpush2.msra.mxu0 0.0
        %4550 = vmatprep.subr.mxu0 0.0
        %4551 = vmatpush2.msra.mxu0 0.0
        %4552 = vmatprep.subr.mxu0 0.0
        %4553 = vmatpush2.msra.mxu0 0.0
        %4554 = vmatprep.subr.mxu0 0.0
        %4555 = vmatpush2.msra.mxu0 0.0
        %4556 = vmatprep.subr.mxu0 0.0
        %4557 = vmatpush2.msra.mxu0 0.0
        %4558 = vmatprep.mubr.f32.mxu0 0.0
        %4559 = vmatmul.mubr.f32.gmra.mxu0 %v4470
        %v4560 = vpop.f32.mrf.mxu0
        %v4561 = vadd.f32 %v4492, %v4560
        %v4562 = vpop.f32.mrf.mxu0
        %4563 = vdwg.mxu0
        %v4564 = vadd.f32 %v4561, %v4350
        %v4565 = vld [vmem:[%s75] sm:$0x1]
        %v4566 = vld [vmem:[%s77] sm:$0x1]
        %v4567 = vsel %vm1328, %v4564, 0.0
        %4568 = vadd.xlane.f32.xlu0 %v4567
        %v4569 = vpop.xlane.xlu0 %4568
        %v4570 = vmul.f32 %v4569, %v1332
        %v4571 = vsub.f32 %v4564, %v4570
        %v4572 = vmul.f32 %v4571, %v4571
        %v4573 = vsel %vm1328, %v4572, 0.0
        %4574 = vadd.xlane.f32.xlu0 %v4573
        %v4575 = vpop.xlane.xlu0 %4574
        %v4576 = vmul.f32 %v4575, %v1332
        %v4577 = vadd.f32 %v4576, 1e-05
        %v4578 = vrsqrt.pop %v4577
        %v4579 = vmul.f32 %v4571, %v4578
        %v4581 = vlaneseq
        %v4582 = vshrl.u32 %v4581, 7
        %v4583 = vsub.s32 0, %v4582
        %v4584 = vrot.slane %v4565, %v4583
        %v4586 = vmul.f32 %v4579, %v4584
        %v4588 = vlaneseq
        %v4589 = vshrl.u32 %v4588, 7
        %v4590 = vsub.s32 0, %v4589
        %v4591 = vrot.slane %v4566, %v4590
        %v4593 = vadd.f32 %v4586, %v4591
        %4594 = vst.msk [vmem:[%s1324] sm:$0xff] %vm1328, %v4593
        %s4595 = sand.u32 %s933, 1
        %s4596 = scalar_lea.sflag [#allocation4], %s4595
        %s4597 = sand.u32 %s933, 1
        %s4598 = smul.addr %s4597, 8
        %s4599 = scalar_lea.vmem [#allocation19], %s4598
        // Predicated region
        $region217: #{_lambda_.1} parent=175 // pred_check
          %p4600 = pneg %p943
        $region218: #{_lambda_.1} parent=175 // pred_check_branch
          %4602 = sbr.rel (%p4600) target = $region220
        $region219: #{_lambda_.1} parent=175 // pred_region
          %s4604 = ssub.s32 128, 128
          %4605 = vsyncadd %s4596, %s4604
          %s4606 = smul.addr %s101, 128
          %s4607 = scalar_lea.hbm %s79, %s4606
          %s4609 = sshll.u32 %s4599, 4
          %s4610 = int_to_ptr.vmem [resolvable:$true] %s4609
          %4612 = dma.vmem_to_hbm [thread:$0]  %s4610, 128, %s4607, %s4596
        $region220: #{_lambda_.1} parent=175 // pred_fallthru
          _
      $region176: #{_lambda_.1} parent=5 // pred_fallthru
        _
      %p4613 = scmp.le.s32.totalorder 2, %s96
      // Predicated region
      $region221: #{_lambda_.1} parent=5 // pred_check
        %p4614 = pneg %p4613
      $region222: #{_lambda_.1} parent=5 // pred_check_branch
        %4616 = sbr.rel (%p4614) target = $region224
      $region223: #{_lambda_.1} parent=5 // pred_region
        %s4617 = ssub.s32 %s96, 2
        // Predicated region
        $region225: #{_lambda_.1} parent=223 // pred_check
          %p4618 = pneg %p949
        $region226: #{_lambda_.1} parent=223 // pred_check_branch
          %4620 = sbr.rel (%p4618) target = $region228
        $region227: #{_lambda_.1} parent=223 // pred_region
          %s4621 = sand.u32 %s934, 1
          %s4622 = scalar_lea.sflag [#allocation4], %s4621
          %s4623 = sand.u32 %s934, 1
          %s4624 = smul.addr %s4623, 8
          %s4625 = scalar_lea.vmem [#allocation19], %s4624
          %4626 = dma.done %s4622, 128
        $region228: #{_lambda_.1} parent=223 // pred_fallthru
          _
      $region224: #{_lambda_.1} parent=5 // pred_fallthru
        _
    $region6: #{_lambda_.1} parent=1 // loop_footer
      %s100 = sadd.s32 1, %s96
    $region7: #{_lambda_.1} parent=1 // loop_footer_branch
      %95 = sbr.rel target = $region3
    $region8: #{_lambda_.1} parent=1 // loop_exit
      _
    %4627 = vsyncpa [#allocation3], 1
    %s4628 = scalar_lea.sflag [#allocation3], 1
    %4629 = vsyncpa %s4628, 1
    %4630 = vsyncpa [#allocation6], 1
    %4631 = vsyncpa [#allocation9], 1
    %4632 = vsyncpa [#allocation12], 1
    %4633 = vsyncpa [#allocation15], 1
    %4634 = vsyncpa [#allocation18], 1
    %4635 = vsyncpa [#allocation4], 1
    %s4636 = scalar_lea.sflag [#allocation4], 1
    %4637 = vsyncpa %s4636, 1

</llo_original>
